<compile_context>
chip_gen: v5e
topology: v5e:2x2
jax: 0.10.0
libtpu: 0.0.40
codegen_flags: <defaults>
</compile_context>

<pallas_src>
import jax
import jax.numpy as jnp
from jax import lax
from jax.experimental import pallas as pl
from jax.experimental.pallas import tpu as pltpu

# ----------------------- small deterministic "config" -----------------------
EMB_SIZE = 32
RNN_SIZE = 32
SRC_VOCAB = 50
TGT_VOCAB = 50
SRC_PAD = 0
TGT_PAD = 0
BATCH = 2
SRC_LEN = 8
TGT_LEN = 9                      # decoder sees tgt[:-1] -> 8 steps
ENC_DIR_H = RNN_SIZE // 2        # bidirectional encoder: per-direction hidden size


def _vspec():
    return pl.BlockSpec(memory_space=pltpu.MemorySpace.VMEM)


# ------------------------------ fused kernel ----------------------------------
def _dqn_kernel(src2d_ref, tgt2d_ref, mask_ref,
                enc_wih_ref, enc_whh_ref, enc_b_ref,
                dec_wih_e_ref, dec_rec_ref, dec_b_ref,
                wa_t_ref, wc_ref,
                out_ref, attn_ref,
                mb_ref, mbp_ref):
    """Encoder bi-LSTM + hoisted attention projection + input-feed decoder."""
    Bp, S = mask_ref.shape
    H = enc_whh_ref.shape[0]               # = 2 * Hd = decoder hidden size
    Hd = H // 2
    T = tgt2d_ref.shape[0] // Bp
    f32 = jnp.float32

    # -------------------- encoder: bi-LSTM, both directions fused --------------------
    # Hoisted input projection for BOTH directions: one (S*Bp, E) x (E, 128) matmul.
    gx_enc = (jnp.dot(src2d_ref[...], enc_wih_ref[...], preferred_element_type=f32)
              + enc_b_ref[...])                                     # (S*Bp, 8*Hd)
    enc_whh = enc_whh_ref[...]                                      # (2Hd, 8Hd) block-diag

    # lane mask selecting the forward half of every 32-lane gate block (hoisted)
    lane = lax.broadcasted_iota(jnp.int32, (Bp, 4 * H), 1)
    fwd_mask = (lane % (2 * Hd)) < Hd

    h = jnp.zeros((Bp, H), f32)            # [h_fwd | h_bwd]
    c = jnp.zeros((Bp, H), f32)
    for t in range(S):                     # fully unrolled: static indices everywhere
        # fwd direction reads source position t, bwd direction reads position S-1-t
        gx = jnp.where(fwd_mask,
                       gx_enc[t * Bp:(t + 1) * Bp],
                       gx_enc[(S - 1 - t) * Bp:(S - t) * Bp])
        # single recurrent matmul for both directions (block-diagonal W_hh)
        gates = gx + jnp.dot(h, enc_whh, preferred_element_type=f32)   # (Bp, 128)
        sg = jax.nn.sigmoid(gates)                                  # one full-vreg EUP pass
        i_g = sg[:, 0:H]
        f_g = sg[:, H:2 * H]
        o_g = sg[:, 3 * H:4 * H]
        g_g = jnp.tanh(gates[:, 2 * H:3 * H])                       # tanh only on g slice
        c = f_g * c + i_g * g_g
        h = o_g * jnp.tanh(c)
        # memory bank layout (Bp, S, H): lanes 0:Hd = fwd output, Hd:H = bwd output
        mb_ref[:, t, 0:Hd] = h[:, 0:Hd]
        mb_ref[:, S - 1 - t, Hd:H] = h[:, Hd:H]

    # decoder.init_state: concat(final fwd, final bwd) — already the layout of h / c
    dec_h, dec_c = h, c

    # -------------- "general" attention memory projection (hoisted, once) --------------
    mb = mb_ref[...]                                                # (Bp, S, H)
    wa_t = wa_t_ref[...]
    for p in range(S):                     # memory_bank @ Wa^T, off the recurrence
        mbp_ref[:, p, :] = jnp.dot(mb[:, p, :], wa_t, preferred_element_type=f32)
    mbp = mbp_ref[...]                                              # (Bp, S, H)
    maskb = mask_ref[...]                                           # (Bp, S) additive mask

    # ------------------- decoder: input-feed LSTM + global attention -------------------
    # Hoisted embedding-half projection: one (T*Bp, E) x (E, 128) matmul.
    gx_dec = (jnp.dot(tgt2d_ref[...], dec_wih_e_ref[...], preferred_element_type=f32)
              + dec_b_ref[...])                                     # (T*Bp, 4H)
    dec_rec = dec_rec_ref[...]                                      # (2H, 4H): rows [ifeed ; h]
    wc = wc_ref[...]                                                # (2H, H):  rows [ctx ; h]

    h, c = dec_h, dec_c
    ifeed = jnp.zeros((Bp, H), f32)
    for t in range(T):                     # fully unrolled
        rec_in = jnp.concatenate([ifeed, h], axis=-1)               # (Bp, 2H)
        gates = (gx_dec[t * Bp:(t + 1) * Bp]
                 + jnp.dot(rec_in, dec_rec, preferred_element_type=f32))   # (Bp, 4H)
        sg = jax.nn.sigmoid(gates)
        i_g = sg[:, 0:H]
        f_g = sg[:, H:2 * H]
        o_g = sg[:, 3 * H:4 * H]
        g_g = jnp.tanh(gates[:, 2 * H:3 * H])
        c = f_g * c + i_g * g_g
        h = o_g * jnp.tanh(c)

        # attention scores = (h Wa) . mem with Wa folded into mbp: VPU mul + lane reduce
        scores = jnp.sum(h[:, None, :] * mbp, axis=-1) + maskb      # (Bp, S)
        m = jnp.max(scores, axis=-1, keepdims=True)
        e = jnp.exp(scores - m)
        align = e / jnp.sum(e, axis=-1, keepdims=True)              # exact softmax
        ctx = jnp.sum(align[:, :, None] * mb, axis=1)               # (Bp, H) sublane reduce
        # attn_h = tanh([ctx ; h] @ Wc): one (Bp,64)x(64,32) matmul
        attn_h = jnp.tanh(jnp.dot(jnp.concatenate([ctx, h], axis=-1), wc,
                                  preferred_element_type=f32))      # (Bp, H)

        out_ref[:, t * H:(t + 1) * H] = attn_h                      # lane-dense output slab
        attn_ref[:, t * S:(t + 1) * S] = align
        ifeed = attn_h                     # input feed for the next step


def dqn_pallas(src_emb2d, tgt_emb2d, mask_bias, p):
    Bp, S = mask_bias.shape
    T = tgt_emb2d.shape[0] // Bp
    H = RNN_SIZE
    return pl.pallas_call(
        _dqn_kernel,
        out_shape=(jax.ShapeDtypeStruct((Bp, T * H), jnp.float32),   # dec_out slab
                   jax.ShapeDtypeStruct((Bp, T * S), jnp.float32)),  # attention slab
        in_specs=[_vspec() for _ in range(11)],
        out_specs=(_vspec(), _vspec()),
        scratch_shapes=[pltpu.VMEM((Bp, S, H), jnp.float32),         # memory bank
                        pltpu.VMEM((Bp, S, H), jnp.float32)],        # memory bank @ Wa^T
    )(src_emb2d, tgt_emb2d, mask_bias,
      p['enc_wih'], p['enc_whh'], p['enc_b'],
      p['dec_wih_e'], p['dec_rec'], p['dec_b'],
      p['attn_wa_t'], p['attn_wc'])


# ------------------------------ parameter packing -----------------------------
def _interleave_gate_cols(wf, wb, hd):
    """Per-gate [fwd | bwd] column interleave: (..., 4hd) + (..., 4hd) -> (..., 8hd)."""
    parts = []
    for k in range(4):
        parts.append(wf[..., k * hd:(k + 1) * hd])
        parts.append(wb[..., k * hd:(k + 1) * hd])
    return jnp.concatenate(parts, axis=-1)


def _block_diag_whh(wf, wb, hd):
    """Block-diagonal recurrent weight so [h_f | h_b] @ W yields both directions' gates."""
    z = jnp.zeros((hd, hd), jnp.float32)
    parts = []
    for k in range(4):
        parts.append(jnp.concatenate([wf[:, k * hd:(k + 1) * hd], z], axis=0))
        parts.append(jnp.concatenate([z, wb[:, k * hd:(k + 1) * hd]], axis=0))
    return jnp.concatenate(parts, axis=-1)                           # (2hd, 8hd)


def init_params(key):
    ks = jax.random.split(key, 13)

    def w(k, shape, scale=0.1):
        return (scale * jax.random.normal(k, shape)).astype(jnp.float32)

    E, H, Hd = EMB_SIZE, RNN_SIZE, ENC_DIR_H
    # raw weights — PyTorch gate order [i, f, g, o]; bias is (b_ih + b_hh) folded.
    # NOTE: stored as (in, 4H) acting by x @ W (transposed convention vs torch nn.LSTM).
    src_emb = w(ks[0], (SRC_VOCAB, E)).at[SRC_PAD].set(0.0)
    tgt_emb = w(ks[1], (TGT_VOCAB, E)).at[TGT_PAD].set(0.0)
    enc_f_wih = w(ks[2], (E, 4 * Hd))
    enc_f_whh = w(ks[3], (Hd, 4 * Hd))
    enc_f_b = w(ks[4], (1, 4 * Hd))
    enc_b_wih = w(ks[5], (E, 4 * Hd))
    enc_b_whh = w(ks[6], (Hd, 4 * Hd))
    enc_b_b = w(ks[7], (1, 4 * Hd))
    dec_wih = w(ks[8], (E + H, 4 * H))       # input-feed decoder: input = [emb ; input_feed]
    dec_whh = w(ks[9], (H, 4 * H))
    dec_b = w(ks[10], (1, 4 * H))
    attn_wa = w(ks[11], (H, H))              # global attention "general": linear_in
    attn_wc = w(ks[12], (2 * H, H))          # linear_out (no bias)

    # ---- pre-packed kernel layouts (computed ONCE at init, not per forward) ----
    p = {'src_emb': src_emb, 'tgt_emb': tgt_emb}
    p['enc_wih'] = _interleave_gate_cols(enc_f_wih, enc_b_wih, Hd)    # (E, 8Hd) = (32, 128)
    p['enc_whh'] = _block_diag_whh(enc_f_whh, enc_b_whh, Hd)          # (2Hd, 8Hd) = (32, 128)
    p['enc_b'] = _interleave_gate_cols(enc_f_b, enc_b_b, Hd)          # (1, 8Hd)
    p['dec_wih_e'] = dec_wih[:E]                                      # (E, 4H) embedding half
    p['dec_rec'] = jnp.concatenate([dec_wih[E:], dec_whh], axis=0)    # (2H, 4H) [ifeed ; h]
    p['dec_b'] = dec_b                                                # (1, 4H)
    p['attn_wa_t'] = attn_wa.T                                        # (H, H): mb @ Wa^T
    p['attn_wc'] = attn_wc                                            # (2H, H) [ctx ; h]
    return p


# ------------------------------ forward pass ----------------------------------
@jax.jit
def dqn_forward(params, src, tgt, lengths):
    # DQN.forward training path
    tgt = tgt[:-1]                                   # drop last target token
    src_tok = src[..., 0]                            # (S, B)
    tgt_tok = tgt[..., 0]                            # (T, B)
    S, B = src_tok.shape
    T = tgt_tok.shape[0]
    Bp = -(-B // 8) * 8                              # pad batch to sublane multiple
    pad = Bp - B
    src_tok_p = jnp.pad(src_tok, ((0, 0), (0, pad)), constant_values=SRC_PAD)
    tgt_tok_p = jnp.pad(tgt_tok, ((0, 0), (0, pad)), constant_values=TGT_PAD)
    lengths_p = jnp.pad(lengths, (0, pad), constant_values=S)

    # TODO(synk): onmt packs padded sequences before the encoder LSTM; here lengths are
    # assumed full for the encoder (the attention mask still hides padded positions).
    src_emb2d = jnp.take(params['src_emb'], src_tok_p, axis=0).reshape(S * Bp, EMB_SIZE)
    tgt_emb2d = jnp.take(params['tgt_emb'], tgt_tok_p, axis=0).reshape(T * Bp, EMB_SIZE)
    mask_bias = jnp.where(jnp.arange(S)[None, :] < lengths_p[:, None],
                          0.0, -1e9).astype(jnp.float32)             # (Bp, S)

    out_slab, attn_slab = dqn_pallas(src_emb2d, tgt_emb2d, mask_bias, params)

    # layout plumbing back to module shapes; strip batch padding
    dec_out = out_slab.reshape(Bp, T, RNN_SIZE).transpose(1, 0, 2)[:, :B]   # (T, B, H)
    std_attn = attn_slab.reshape(Bp, T, S).transpose(1, 0, 2)[:, :B]        # (T, B, S)
    return dec_out, {'std': std_attn}


# ----------------------------------- main --------------------------------------
if __name__ == "__main__":
    key = jax.random.PRNGKey(0)
    kp, ksrc, ktgt = jax.random.split(key, 3)
    params = init_params(kp)

    src = jax.random.randint(ksrc, (SRC_LEN, BATCH, 1), 1, SRC_VOCAB, dtype=jnp.int32)
    tgt = jax.random.randint(ktgt, (TGT_LEN, BATCH, 1), 1, TGT_VOCAB, dtype=jnp.int32)
    lengths = jnp.full((BATCH,), SRC_LEN, dtype=jnp.int32)

    dec_out, attns = dqn_forward(params, src, tgt, lengths)
    jax.block_until_ready((dec_out, attns['std']))

    assert dec_out.shape == (TGT_LEN - 1, BATCH, RNN_SIZE)
    assert attns['std'].shape == (TGT_LEN - 1, BATCH, SRC_LEN)
    assert bool(jnp.all(jnp.isfinite(dec_out)))
    assert bool(jnp.all(jnp.isfinite(attns['std'])))
    print("KERNEL_OK")
</pallas_src>

<mosaic_0001>
module attributes {stable_mosaic.version = 11 : i64} {
  func.func @_dqn_kernel(%arg0: memref<64x32xf32, #tpu.memory_space<vmem>>, %arg1: memref<64x32xf32, #tpu.memory_space<vmem>>, %arg2: memref<8x8xf32, #tpu.memory_space<vmem>>, %arg3: memref<32x128xf32, #tpu.memory_space<vmem>>, %arg4: memref<32x128xf32, #tpu.memory_space<vmem>>, %arg5: memref<1x128xf32, #tpu.memory_space<vmem>>, %arg6: memref<32x128xf32, #tpu.memory_space<vmem>>, %arg7: memref<64x128xf32, #tpu.memory_space<vmem>>, %arg8: memref<1x128xf32, #tpu.memory_space<vmem>>, %arg9: memref<32x32xf32, #tpu.memory_space<vmem>>, %arg10: memref<64x32xf32, #tpu.memory_space<vmem>>, %arg11: memref<8x256xf32, #tpu.memory_space<vmem>>, %arg12: memref<8x64xf32, #tpu.memory_space<vmem>>, %arg13: memref<8x8x32xf32, #tpu.memory_space<vmem>>, %arg14: memref<8x8x32xf32, #tpu.memory_space<vmem>>) attributes {dimension_semantics = [], scalar_prefetch = 0 : i64, scratch_operands = 2 : i64, tpu.core_type = #tpu.core_type<tc>} {
    %c0 = arith.constant 0 : index
    %c0_0 = arith.constant 0 : index
    %0 = vector.load %arg0[%c0, %c0_0] : memref<64x32xf32, #tpu.memory_space<vmem>>, vector<64x32xf32>
    %c0_1 = arith.constant 0 : index
    %c0_2 = arith.constant 0 : index
    %1 = vector.load %arg3[%c0_1, %c0_2] : memref<32x128xf32, #tpu.memory_space<vmem>>, vector<32x128xf32>
    %cst = arith.constant dense<0.000000e+00> : vector<64x128xf32>
    %2 = tpu.matmul %0, %1, %cst {dimension_numbers = #tpu.dot_dimension_numbers<[1], [0], [0], [1], [0, 0, 1, 1], [], []>} : vector<64x32xf32>, vector<32x128xf32>, vector<64x128xf32> -> vector<64x128xf32>
    %c0_3 = arith.constant 0 : index
    %c0_4 = arith.constant 0 : index
    %3 = vector.load %arg5[%c0_3, %c0_4] : memref<1x128xf32, #tpu.memory_space<vmem>>, vector<1x128xf32>
    %4 = vector.broadcast %3 : vector<1x128xf32> to vector<64x128xf32>
    %5 = arith.addf %2, %4 : vector<64x128xf32>
    %c0_5 = arith.constant 0 : index
    %c0_6 = arith.constant 0 : index
    %6 = vector.load %arg4[%c0_5, %c0_6] : memref<32x128xf32, #tpu.memory_space<vmem>>, vector<32x128xf32>
    %7 = tpu.iota {dimensions = array<i32: 1>} : vector<8x128xi32>
    %c32_i32 = arith.constant 32 : i32
    %c0_i32 = arith.constant 0 : i32
    %8 = arith.cmpi eq, %c32_i32, %c0_i32 : i32
    %c1_i32 = arith.constant 1 : i32
    %9 = arith.select %8, %c1_i32, %c32_i32 : i32
    %10 = vector.broadcast %9 : i32 to vector<8x128xi32>
    %11 = arith.remsi %7, %10 : vector<8x128xi32>
    %c0_i32_7 = arith.constant 0 : i32
    %12 = vector.broadcast %c0_i32_7 : i32 to vector<8x128xi32>
    %13 = arith.cmpi ne, %11, %12 : vector<8x128xi32>
    %c0_i32_8 = arith.constant 0 : i32
    %14 = vector.broadcast %c0_i32_8 : i32 to vector<8x128xi32>
    %15 = arith.cmpi slt, %11, %14 : vector<8x128xi32>
    %c0_i32_9 = arith.constant 0 : i32
    %16 = arith.cmpi slt, %9, %c0_i32_9 : i32
    %17 = vector.broadcast %16 : i1 to vector<8x128xi1>
    %18 = vector.broadcast %17 : vector<8x128xi1> to vector<8x128xi1>
    %19 = arith.xori %15, %18 : vector<8x128xi1>
    %20 = arith.andi %19, %13 : vector<8x128xi1>
    %21 = vector.broadcast %9 : i32 to vector<8x128xi32>
    %22 = arith.addi %11, %21 : vector<8x128xi32>
    %23 = arith.select %20, %22, %11 : vector<8x128xi1>, vector<8x128xi32>
    %c16_i32 = arith.constant 16 : i32
    %24 = vector.broadcast %c16_i32 : i32 to vector<8x128xi32>
    %25 = arith.cmpi slt, %23, %24 : vector<8x128xi32>
    %cst_10 = arith.constant 0.000000e+00 : f32
    %26 = vector.broadcast %cst_10 : f32 to vector<8x32xf32>
    %cst_11 = arith.constant 0.000000e+00 : f32
    %27 = vector.broadcast %cst_11 : f32 to vector<8x32xf32>
    %28 = vector.extract_strided_slice %5 {offsets = [0, 0], sizes = [8, 128], strides = [1, 1]} : vector<64x128xf32> to vector<8x128xf32>
    %29 = vector.extract_strided_slice %5 {offsets = [56, 0], sizes = [8, 128], strides = [1, 1]} : vector<64x128xf32> to vector<8x128xf32>
    %30 = arith.select %25, %28, %29 : vector<8x128xi1>, vector<8x128xf32>
    %cst_12 = arith.constant dense<0.000000e+00> : vector<8x128xf32>
    %31 = tpu.matmul %26, %6, %cst_12 {dimension_numbers = #tpu.dot_dimension_numbers<[1], [0], [0], [1], [0, 0, 1, 1], [], []>} : vector<8x32xf32>, vector<32x128xf32>, vector<8x128xf32> -> vector<8x128xf32>
    %32 = arith.addf %30, %31 : vector<8x128xf32>
    %33 = arith.negf %32 : vector<8x128xf32>
    %34 = math.exp %33 : vector<8x128xf32>
    %cst_13 = arith.constant 1.000000e+00 : f32
    %35 = vector.broadcast %cst_13 : f32 to vector<8x128xf32>
    %36 = arith.addf %35, %34 : vector<8x128xf32>
    %37 = arith.divf %35, %36 : vector<8x128xf32>
    %38 = vector.extract_strided_slice %37 {offsets = [0, 0], sizes = [8, 32], strides = [1, 1]} : vector<8x128xf32> to vector<8x32xf32>
    %39 = vector.extract_strided_slice %37 {offsets = [0, 32], sizes = [8, 32], strides = [1, 1]} : vector<8x128xf32> to vector<8x32xf32>
    %40 = vector.extract_strided_slice %37 {offsets = [0, 96], sizes = [8, 32], strides = [1, 1]} : vector<8x128xf32> to vector<8x32xf32>
    %41 = vector.extract_strided_slice %32 {offsets = [0, 64], sizes = [8, 32], strides = [1, 1]} : vector<8x128xf32> to vector<8x32xf32>
    %42 = math.tanh %41 : vector<8x32xf32>
    %43 = arith.mulf %39, %27 : vector<8x32xf32>
    %44 = arith.mulf %38, %42 : vector<8x32xf32>
    %45 = arith.addf %43, %44 : vector<8x32xf32>
    %46 = math.tanh %45 : vector<8x32xf32>
    %47 = arith.mulf %40, %46 : vector<8x32xf32>
    %48 = vector.extract_strided_slice %47 {offsets = [0, 0], sizes = [8, 16], strides = [1, 1]} : vector<8x32xf32> to vector<8x16xf32>
    %c0_14 = arith.constant 0 : index
    %c0_15 = arith.constant 0 : index
    %c0_16 = arith.constant 0 : index
    %49 = vector.load %arg13[%c0_14, %c0_15, %c0_16] : memref<8x8x32xf32, #tpu.memory_space<vmem>>, vector<8x1x16xf32>
    %50 = vector.shape_cast %49 : vector<8x1x16xf32> to vector<8x16xf32>
    %51 = vector.shape_cast %48 : vector<8x16xf32> to vector<8x1x16xf32>
    tpu.vector_store %arg13[%c0_14, %c0_15, %c0_16], %51 {strides = array<i32>} : memref<8x8x32xf32, #tpu.memory_space<vmem>>, vector<8x1x16xf32>,
    %52 = vector.extract_strided_slice %47 {offsets = [0, 16], sizes = [8, 16], strides = [1, 1]} : vector<8x32xf32> to vector<8x16xf32>
    %c0_17 = arith.constant 0 : index
    %c7 = arith.constant 7 : index
    %c16 = arith.constant 16 : index
    %53 = vector.load %arg13[%c0_17, %c7, %c16] : memref<8x8x32xf32, #tpu.memory_space<vmem>>, vector<8x1x16xf32>
    %54 = vector.shape_cast %53 : vector<8x1x16xf32> to vector<8x16xf32>
    %55 = vector.shape_cast %52 : vector<8x16xf32> to vector<8x1x16xf32>
    tpu.vector_store %arg13[%c0_17, %c7, %c16], %55 {strides = array<i32>} : memref<8x8x32xf32, #tpu.memory_space<vmem>>, vector<8x1x16xf32>,
    %56 = vector.extract_strided_slice %5 {offsets = [8, 0], sizes = [8, 128], strides = [1, 1]} : vector<64x128xf32> to vector<8x128xf32>
    %57 = vector.extract_strided_slice %5 {offsets = [48, 0], sizes = [8, 128], strides = [1, 1]} : vector<64x128xf32> to vector<8x128xf32>
    %58 = arith.select %25, %56, %57 : vector<8x128xi1>, vector<8x128xf32>
    %cst_18 = arith.constant dense<0.000000e+00> : vector<8x128xf32>
    %59 = tpu.matmul %47, %6, %cst_18 {dimension_numbers = #tpu.dot_dimension_numbers<[1], [0], [0], [1], [0, 0, 1, 1], [], []>} : vector<8x32xf32>, vector<32x128xf32>, vector<8x128xf32> -> vector<8x128xf32>
    %60 = arith.addf %58, %59 : vector<8x128xf32>
    %61 = arith.negf %60 : vector<8x128xf32>
    %62 = math.exp %61 : vector<8x128xf32>
    %cst_19 = arith.constant 1.000000e+00 : f32
    %63 = vector.broadcast %cst_19 : f32 to vector<8x128xf32>
    %64 = arith.addf %63, %62 : vector<8x128xf32>
    %65 = arith.divf %63, %64 : vector<8x128xf32>
    %66 = vector.extract_strided_slice %65 {offsets = [0, 0], sizes = [8, 32], strides = [1, 1]} : vector<8x128xf32> to vector<8x32xf32>
    %67 = vector.extract_strided_slice %65 {offsets = [0, 32], sizes = [8, 32], strides = [1, 1]} : vector<8x128xf32> to vector<8x32xf32>
    %68 = vector.extract_strided_slice %65 {offsets = [0, 96], sizes = [8, 32], strides = [1, 1]} : vector<8x128xf32> to vector<8x32xf32>
    %69 = vector.extract_strided_slice %60 {offsets = [0, 64], sizes = [8, 32], strides = [1, 1]} : vector<8x128xf32> to vector<8x32xf32>
    %70 = math.tanh %69 : vector<8x32xf32>
    %71 = arith.mulf %67, %45 : vector<8x32xf32>
    %72 = arith.mulf %66, %70 : vector<8x32xf32>
    %73 = arith.addf %71, %72 : vector<8x32xf32>
    %74 = math.tanh %73 : vector<8x32xf32>
    %75 = arith.mulf %68, %74 : vector<8x32xf32>
    %76 = vector.extract_strided_slice %75 {offsets = [0, 0], sizes = [8, 16], strides = [1, 1]} : vector<8x32xf32> to vector<8x16xf32>
    %c0_20 = arith.constant 0 : index
    %c1 = arith.constant 1 : index
    %c0_21 = arith.constant 0 : index
    %77 = vector.load %arg13[%c0_20, %c1, %c0_21] : memref<8x8x32xf32, #tpu.memory_space<vmem>>, vector<8x1x16xf32>
    %78 = vector.shape_cast %77 : vector<8x1x16xf32> to vector<8x16xf32>
    %79 = vector.shape_cast %76 : vector<8x16xf32> to vector<8x1x16xf32>
    tpu.vector_store %arg13[%c0_20, %c1, %c0_21], %79 {strides = array<i32>} : memref<8x8x32xf32, #tpu.memory_space<vmem>>, vector<8x1x16xf32>,
    %80 = vector.extract_strided_slice %75 {offsets = [0, 16], sizes = [8, 16], strides = [1, 1]} : vector<8x32xf32> to vector<8x16xf32>
    %c0_22 = arith.constant 0 : index
    %c6 = arith.constant 6 : index
    %c16_23 = arith.constant 16 : index
    %81 = vector.load %arg13[%c0_22, %c6, %c16_23] : memref<8x8x32xf32, #tpu.memory_space<vmem>>, vector<8x1x16xf32>
    %82 = vector.shape_cast %81 : vector<8x1x16xf32> to vector<8x16xf32>
    %83 = vector.shape_cast %80 : vector<8x16xf32> to vector<8x1x16xf32>
    tpu.vector_store %arg13[%c0_22, %c6, %c16_23], %83 {strides = array<i32>} : memref<8x8x32xf32, #tpu.memory_space<vmem>>, vector<8x1x16xf32>,
    %84 = vector.extract_strided_slice %5 {offsets = [16, 0], sizes = [8, 128], strides = [1, 1]} : vector<64x128xf32> to vector<8x128xf32>
    %85 = vector.extract_strided_slice %5 {offsets = [40, 0], sizes = [8, 128], strides = [1, 1]} : vector<64x128xf32> to vector<8x128xf32>
    %86 = arith.select %25, %84, %85 : vector<8x128xi1>, vector<8x128xf32>
    %cst_24 = arith.constant dense<0.000000e+00> : vector<8x128xf32>
    %87 = tpu.matmul %75, %6, %cst_24 {dimension_numbers = #tpu.dot_dimension_numbers<[1], [0], [0], [1], [0, 0, 1, 1], [], []>} : vector<8x32xf32>, vector<32x128xf32>, vector<8x128xf32> -> vector<8x128xf32>
    %88 = arith.addf %86, %87 : vector<8x128xf32>
    %89 = arith.negf %88 : vector<8x128xf32>
    %90 = math.exp %89 : vector<8x128xf32>
    %cst_25 = arith.constant 1.000000e+00 : f32
    %91 = vector.broadcast %cst_25 : f32 to vector<8x128xf32>
    %92 = arith.addf %91, %90 : vector<8x128xf32>
    %93 = arith.divf %91, %92 : vector<8x128xf32>
    %94 = vector.extract_strided_slice %93 {offsets = [0, 0], sizes = [8, 32], strides = [1, 1]} : vector<8x128xf32> to vector<8x32xf32>
    %95 = vector.extract_strided_slice %93 {offsets = [0, 32], sizes = [8, 32], strides = [1, 1]} : vector<8x128xf32> to vector<8x32xf32>
    %96 = vector.extract_strided_slice %93 {offsets = [0, 96], sizes = [8, 32], strides = [1, 1]} : vector<8x128xf32> to vector<8x32xf32>
    %97 = vector.extract_strided_slice %88 {offsets = [0, 64], sizes = [8, 32], strides = [1, 1]} : vector<8x128xf32> to vector<8x32xf32>
    %98 = math.tanh %97 : vector<8x32xf32>
    %99 = arith.mulf %95, %73 : vector<8x32xf32>
    %100 = arith.mulf %94, %98 : vector<8x32xf32>
    %101 = arith.addf %99, %100 : vector<8x32xf32>
    %102 = math.tanh %101 : vector<8x32xf32>
    %103 = arith.mulf %96, %102 : vector<8x32xf32>
    %104 = vector.extract_strided_slice %103 {offsets = [0, 0], sizes = [8, 16], strides = [1, 1]} : vector<8x32xf32> to vector<8x16xf32>
    %c0_26 = arith.constant 0 : index
    %c2 = arith.constant 2 : index
    %c0_27 = arith.constant 0 : index
    %105 = vector.load %arg13[%c0_26, %c2, %c0_27] : memref<8x8x32xf32, #tpu.memory_space<vmem>>, vector<8x1x16xf32>
    %106 = vector.shape_cast %105 : vector<8x1x16xf32> to vector<8x16xf32>
    %107 = vector.shape_cast %104 : vector<8x16xf32> to vector<8x1x16xf32>
    tpu.vector_store %arg13[%c0_26, %c2, %c0_27], %107 {strides = array<i32>} : memref<8x8x32xf32, #tpu.memory_space<vmem>>, vector<8x1x16xf32>,
    %108 = vector.extract_strided_slice %103 {offsets = [0, 16], sizes = [8, 16], strides = [1, 1]} : vector<8x32xf32> to vector<8x16xf32>
    %c0_28 = arith.constant 0 : index
    %c5 = arith.constant 5 : index
    %c16_29 = arith.constant 16 : index
    %109 = vector.load %arg13[%c0_28, %c5, %c16_29] : memref<8x8x32xf32, #tpu.memory_space<vmem>>, vector<8x1x16xf32>
    %110 = vector.shape_cast %109 : vector<8x1x16xf32> to vector<8x16xf32>
    %111 = vector.shape_cast %108 : vector<8x16xf32> to vector<8x1x16xf32>
    tpu.vector_store %arg13[%c0_28, %c5, %c16_29], %111 {strides = array<i32>} : memref<8x8x32xf32, #tpu.memory_space<vmem>>, vector<8x1x16xf32>,
    %112 = vector.extract_strided_slice %5 {offsets = [24, 0], sizes = [8, 128], strides = [1, 1]} : vector<64x128xf32> to vector<8x128xf32>
    %113 = vector.extract_strided_slice %5 {offsets = [32, 0], sizes = [8, 128], strides = [1, 1]} : vector<64x128xf32> to vector<8x128xf32>
    %114 = arith.select %25, %112, %113 : vector<8x128xi1>, vector<8x128xf32>
    %cst_30 = arith.constant dense<0.000000e+00> : vector<8x128xf32>
    %115 = tpu.matmul %103, %6, %cst_30 {dimension_numbers = #tpu.dot_dimension_numbers<[1], [0], [0], [1], [0, 0, 1, 1], [], []>} : vector<8x32xf32>, vector<32x128xf32>, vector<8x128xf32> -> vector<8x128xf32>
    %116 = arith.addf %114, %115 : vector<8x128xf32>
    %117 = arith.negf %116 : vector<8x128xf32>
    %118 = math.exp %117 : vector<8x128xf32>
    %cst_31 = arith.constant 1.000000e+00 : f32
    %119 = vector.broadcast %cst_31 : f32 to vector<8x128xf32>
    %120 = arith.addf %119, %118 : vector<8x128xf32>
    %121 = arith.divf %119, %120 : vector<8x128xf32>
    %122 = vector.extract_strided_slice %121 {offsets = [0, 0], sizes = [8, 32], strides = [1, 1]} : vector<8x128xf32> to vector<8x32xf32>
    %123 = vector.extract_strided_slice %121 {offsets = [0, 32], sizes = [8, 32], strides = [1, 1]} : vector<8x128xf32> to vector<8x32xf32>
    %124 = vector.extract_strided_slice %121 {offsets = [0, 96], sizes = [8, 32], strides = [1, 1]} : vector<8x128xf32> to vector<8x32xf32>
    %125 = vector.extract_strided_slice %116 {offsets = [0, 64], sizes = [8, 32], strides = [1, 1]} : vector<8x128xf32> to vector<8x32xf32>
    %126 = math.tanh %125 : vector<8x32xf32>
    %127 = arith.mulf %123, %101 : vector<8x32xf32>
    %128 = arith.mulf %122, %126 : vector<8x32xf32>
    %129 = arith.addf %127, %128 : vector<8x32xf32>
    %130 = math.tanh %129 : vector<8x32xf32>
    %131 = arith.mulf %124, %130 : vector<8x32xf32>
    %132 = vector.extract_strided_slice %131 {offsets = [0, 0], sizes = [8, 16], strides = [1, 1]} : vector<8x32xf32> to vector<8x16xf32>
    %c0_32 = arith.constant 0 : index
    %c3 = arith.constant 3 : index
    %c0_33 = arith.constant 0 : index
    %133 = vector.load %arg13[%c0_32, %c3, %c0_33] : memref<8x8x32xf32, #tpu.memory_space<vmem>>, vector<8x1x16xf32>
    %134 = vector.shape_cast %133 : vector<8x1x16xf32> to vector<8x16xf32>
    %135 = vector.shape_cast %132 : vector<8x16xf32> to vector<8x1x16xf32>
    tpu.vector_store %arg13[%c0_32, %c3, %c0_33], %135 {strides = array<i32>} : memref<8x8x32xf32, #tpu.memory_space<vmem>>, vector<8x1x16xf32>,
    %136 = vector.extract_strided_slice %131 {offsets = [0, 16], sizes = [8, 16], strides = [1, 1]} : vector<8x32xf32> to vector<8x16xf32>
    %c0_34 = arith.constant 0 : index
    %c4 = arith.constant 4 : index
    %c16_35 = arith.constant 16 : index
    %137 = vector.load %arg13[%c0_34, %c4, %c16_35] : memref<8x8x32xf32, #tpu.memory_space<vmem>>, vector<8x1x16xf32>
    %138 = vector.shape_cast %137 : vector<8x1x16xf32> to vector<8x16xf32>
    %139 = vector.shape_cast %136 : vector<8x16xf32> to vector<8x1x16xf32>
    tpu.vector_store %arg13[%c0_34, %c4, %c16_35], %139 {strides = array<i32>} : memref<8x8x32xf32, #tpu.memory_space<vmem>>, vector<8x1x16xf32>,
    %140 = vector.extract_strided_slice %5 {offsets = [32, 0], sizes = [8, 128], strides = [1, 1]} : vector<64x128xf32> to vector<8x128xf32>
    %141 = vector.extract_strided_slice %5 {offsets = [24, 0], sizes = [8, 128], strides = [1, 1]} : vector<64x128xf32> to vector<8x128xf32>
    %142 = arith.select %25, %140, %141 : vector<8x128xi1>, vector<8x128xf32>
    %cst_36 = arith.constant dense<0.000000e+00> : vector<8x128xf32>
    %143 = tpu.matmul %131, %6, %cst_36 {dimension_numbers = #tpu.dot_dimension_numbers<[1], [0], [0], [1], [0, 0, 1, 1], [], []>} : vector<8x32xf32>, vector<32x128xf32>, vector<8x128xf32> -> vector<8x128xf32>
    %144 = arith.addf %142, %143 : vector<8x128xf32>
    %145 = arith.negf %144 : vector<8x128xf32>
    %146 = math.exp %145 : vector<8x128xf32>
    %cst_37 = arith.constant 1.000000e+00 : f32
    %147 = vector.broadcast %cst_37 : f32 to vector<8x128xf32>
    %148 = arith.addf %147, %146 : vector<8x128xf32>
    %149 = arith.divf %147, %148 : vector<8x128xf32>
    %150 = vector.extract_strided_slice %149 {offsets = [0, 0], sizes = [8, 32], strides = [1, 1]} : vector<8x128xf32> to vector<8x32xf32>
    %151 = vector.extract_strided_slice %149 {offsets = [0, 32], sizes = [8, 32], strides = [1, 1]} : vector<8x128xf32> to vector<8x32xf32>
    %152 = vector.extract_strided_slice %149 {offsets = [0, 96], sizes = [8, 32], strides = [1, 1]} : vector<8x128xf32> to vector<8x32xf32>
    %153 = vector.extract_strided_slice %144 {offsets = [0, 64], sizes = [8, 32], strides = [1, 1]} : vector<8x128xf32> to vector<8x32xf32>
    %154 = math.tanh %153 : vector<8x32xf32>
    %155 = arith.mulf %151, %129 : vector<8x32xf32>
    %156 = arith.mulf %150, %154 : vector<8x32xf32>
    %157 = arith.addf %155, %156 : vector<8x32xf32>
    %158 = math.tanh %157 : vector<8x32xf32>
    %159 = arith.mulf %152, %158 : vector<8x32xf32>
    %160 = vector.extract_strided_slice %159 {offsets = [0, 0], sizes = [8, 16], strides = [1, 1]} : vector<8x32xf32> to vector<8x16xf32>
    %c0_38 = arith.constant 0 : index
    %c4_39 = arith.constant 4 : index
    %c0_40 = arith.constant 0 : index
    %161 = vector.load %arg13[%c0_38, %c4_39, %c0_40] : memref<8x8x32xf32, #tpu.memory_space<vmem>>, vector<8x1x16xf32>
    %162 = vector.shape_cast %161 : vector<8x1x16xf32> to vector<8x16xf32>
    %163 = vector.shape_cast %160 : vector<8x16xf32> to vector<8x1x16xf32>
    tpu.vector_store %arg13[%c0_38, %c4_39, %c0_40], %163 {strides = array<i32>} : memref<8x8x32xf32, #tpu.memory_space<vmem>>, vector<8x1x16xf32>,
    %164 = vector.extract_strided_slice %159 {offsets = [0, 16], sizes = [8, 16], strides = [1, 1]} : vector<8x32xf32> to vector<8x16xf32>
    %c0_41 = arith.constant 0 : index
    %c3_42 = arith.constant 3 : index
    %c16_43 = arith.constant 16 : index
    %165 = vector.load %arg13[%c0_41, %c3_42, %c16_43] : memref<8x8x32xf32, #tpu.memory_space<vmem>>, vector<8x1x16xf32>
    %166 = vector.shape_cast %165 : vector<8x1x16xf32> to vector<8x16xf32>
    %167 = vector.shape_cast %164 : vector<8x16xf32> to vector<8x1x16xf32>
    tpu.vector_store %arg13[%c0_41, %c3_42, %c16_43], %167 {strides = array<i32>} : memref<8x8x32xf32, #tpu.memory_space<vmem>>, vector<8x1x16xf32>,
    %168 = vector.extract_strided_slice %5 {offsets = [40, 0], sizes = [8, 128], strides = [1, 1]} : vector<64x128xf32> to vector<8x128xf32>
    %169 = vector.extract_strided_slice %5 {offsets = [16, 0], sizes = [8, 128], strides = [1, 1]} : vector<64x128xf32> to vector<8x128xf32>
    %170 = arith.select %25, %168, %169 : vector<8x128xi1>, vector<8x128xf32>
    %cst_44 = arith.constant dense<0.000000e+00> : vector<8x128xf32>
    %171 = tpu.matmul %159, %6, %cst_44 {dimension_numbers = #tpu.dot_dimension_numbers<[1], [0], [0], [1], [0, 0, 1, 1], [], []>} : vector<8x32xf32>, vector<32x128xf32>, vector<8x128xf32> -> vector<8x128xf32>
    %172 = arith.addf %170, %171 : vector<8x128xf32>
    %173 = arith.negf %172 : vector<8x128xf32>
    %174 = math.exp %173 : vector<8x128xf32>
    %cst_45 = arith.constant 1.000000e+00 : f32
    %175 = vector.broadcast %cst_45 : f32 to vector<8x128xf32>
    %176 = arith.addf %175, %174 : vector<8x128xf32>
    %177 = arith.divf %175, %176 : vector<8x128xf32>
    %178 = vector.extract_strided_slice %177 {offsets = [0, 0], sizes = [8, 32], strides = [1, 1]} : vector<8x128xf32> to vector<8x32xf32>
    %179 = vector.extract_strided_slice %177 {offsets = [0, 32], sizes = [8, 32], strides = [1, 1]} : vector<8x128xf32> to vector<8x32xf32>
    %180 = vector.extract_strided_slice %177 {offsets = [0, 96], sizes = [8, 32], strides = [1, 1]} : vector<8x128xf32> to vector<8x32xf32>
    %181 = vector.extract_strided_slice %172 {offsets = [0, 64], sizes = [8, 32], strides = [1, 1]} : vector<8x128xf32> to vector<8x32xf32>
    %182 = math.tanh %181 : vector<8x32xf32>
    %183 = arith.mulf %179, %157 : vector<8x32xf32>
    %184 = arith.mulf %178, %182 : vector<8x32xf32>
    %185 = arith.addf %183, %184 : vector<8x32xf32>
    %186 = math.tanh %185 : vector<8x32xf32>
    %187 = arith.mulf %180, %186 : vector<8x32xf32>
    %188 = vector.extract_strided_slice %187 {offsets = [0, 0], sizes = [8, 16], strides = [1, 1]} : vector<8x32xf32> to vector<8x16xf32>
    %c0_46 = arith.constant 0 : index
    %c5_47 = arith.constant 5 : index
    %c0_48 = arith.constant 0 : index
    %189 = vector.load %arg13[%c0_46, %c5_47, %c0_48] : memref<8x8x32xf32, #tpu.memory_space<vmem>>, vector<8x1x16xf32>
    %190 = vector.shape_cast %189 : vector<8x1x16xf32> to vector<8x16xf32>
    %191 = vector.shape_cast %188 : vector<8x16xf32> to vector<8x1x16xf32>
    tpu.vector_store %arg13[%c0_46, %c5_47, %c0_48], %191 {strides = array<i32>} : memref<8x8x32xf32, #tpu.memory_space<vmem>>, vector<8x1x16xf32>,
    %192 = vector.extract_strided_slice %187 {offsets = [0, 16], sizes = [8, 16], strides = [1, 1]} : vector<8x32xf32> to vector<8x16xf32>
    %c0_49 = arith.constant 0 : index
    %c2_50 = arith.constant 2 : index
    %c16_51 = arith.constant 16 : index
    %193 = vector.load %arg13[%c0_49, %c2_50, %c16_51] : memref<8x8x32xf32, #tpu.memory_space<vmem>>, vector<8x1x16xf32>
    %194 = vector.shape_cast %193 : vector<8x1x16xf32> to vector<8x16xf32>
    %195 = vector.shape_cast %192 : vector<8x16xf32> to vector<8x1x16xf32>
    tpu.vector_store %arg13[%c0_49, %c2_50, %c16_51], %195 {strides = array<i32>} : memref<8x8x32xf32, #tpu.memory_space<vmem>>, vector<8x1x16xf32>,
    %196 = vector.extract_strided_slice %5 {offsets = [48, 0], sizes = [8, 128], strides = [1, 1]} : vector<64x128xf32> to vector<8x128xf32>
    %197 = vector.extract_strided_slice %5 {offsets = [8, 0], sizes = [8, 128], strides = [1, 1]} : vector<64x128xf32> to vector<8x128xf32>
    %198 = arith.select %25, %196, %197 : vector<8x128xi1>, vector<8x128xf32>
    %cst_52 = arith.constant dense<0.000000e+00> : vector<8x128xf32>
    %199 = tpu.matmul %187, %6, %cst_52 {dimension_numbers = #tpu.dot_dimension_numbers<[1], [0], [0], [1], [0, 0, 1, 1], [], []>} : vector<8x32xf32>, vector<32x128xf32>, vector<8x128xf32> -> vector<8x128xf32>
    %200 = arith.addf %198, %199 : vector<8x128xf32>
    %201 = arith.negf %200 : vector<8x128xf32>
    %202 = math.exp %201 : vector<8x128xf32>
    %cst_53 = arith.constant 1.000000e+00 : f32
    %203 = vector.broadcast %cst_53 : f32 to vector<8x128xf32>
    %204 = arith.addf %203, %202 : vector<8x128xf32>
    %205 = arith.divf %203, %204 : vector<8x128xf32>
    %206 = vector.extract_strided_slice %205 {offsets = [0, 0], sizes = [8, 32], strides = [1, 1]} : vector<8x128xf32> to vector<8x32xf32>
    %207 = vector.extract_strided_slice %205 {offsets = [0, 32], sizes = [8, 32], strides = [1, 1]} : vector<8x128xf32> to vector<8x32xf32>
    %208 = vector.extract_strided_slice %205 {offsets = [0, 96], sizes = [8, 32], strides = [1, 1]} : vector<8x128xf32> to vector<8x32xf32>
    %209 = vector.extract_strided_slice %200 {offsets = [0, 64], sizes = [8, 32], strides = [1, 1]} : vector<8x128xf32> to vector<8x32xf32>
    %210 = math.tanh %209 : vector<8x32xf32>
    %211 = arith.mulf %207, %185 : vector<8x32xf32>
    %212 = arith.mulf %206, %210 : vector<8x32xf32>
    %213 = arith.addf %211, %212 : vector<8x32xf32>
    %214 = math.tanh %213 : vector<8x32xf32>
    %215 = arith.mulf %208, %214 : vector<8x32xf32>
    %216 = vector.extract_strided_slice %215 {offsets = [0, 0], sizes = [8, 16], strides = [1, 1]} : vector<8x32xf32> to vector<8x16xf32>
    %c0_54 = arith.constant 0 : index
    %c6_55 = arith.constant 6 : index
    %c0_56 = arith.constant 0 : index
    %217 = vector.load %arg13[%c0_54, %c6_55, %c0_56] : memref<8x8x32xf32, #tpu.memory_space<vmem>>, vector<8x1x16xf32>
    %218 = vector.shape_cast %217 : vector<8x1x16xf32> to vector<8x16xf32>
    %219 = vector.shape_cast %216 : vector<8x16xf32> to vector<8x1x16xf32>
    tpu.vector_store %arg13[%c0_54, %c6_55, %c0_56], %219 {strides = array<i32>} : memref<8x8x32xf32, #tpu.memory_space<vmem>>, vector<8x1x16xf32>,
    %220 = vector.extract_strided_slice %215 {offsets = [0, 16], sizes = [8, 16], strides = [1, 1]} : vector<8x32xf32> to vector<8x16xf32>
    %c0_57 = arith.constant 0 : index
    %c1_58 = arith.constant 1 : index
    %c16_59 = arith.constant 16 : index
    %221 = vector.load %arg13[%c0_57, %c1_58, %c16_59] : memref<8x8x32xf32, #tpu.memory_space<vmem>>, vector<8x1x16xf32>
    %222 = vector.shape_cast %221 : vector<8x1x16xf32> to vector<8x16xf32>
    %223 = vector.shape_cast %220 : vector<8x16xf32> to vector<8x1x16xf32>
    tpu.vector_store %arg13[%c0_57, %c1_58, %c16_59], %223 {strides = array<i32>} : memref<8x8x32xf32, #tpu.memory_space<vmem>>, vector<8x1x16xf32>,
    %224 = vector.extract_strided_slice %5 {offsets = [56, 0], sizes = [8, 128], strides = [1, 1]} : vector<64x128xf32> to vector<8x128xf32>
    %225 = vector.extract_strided_slice %5 {offsets = [0, 0], sizes = [8, 128], strides = [1, 1]} : vector<64x128xf32> to vector<8x128xf32>
    %226 = arith.select %25, %224, %225 : vector<8x128xi1>, vector<8x128xf32>
    %cst_60 = arith.constant dense<0.000000e+00> : vector<8x128xf32>
    %227 = tpu.matmul %215, %6, %cst_60 {dimension_numbers = #tpu.dot_dimension_numbers<[1], [0], [0], [1], [0, 0, 1, 1], [], []>} : vector<8x32xf32>, vector<32x128xf32>, vector<8x128xf32> -> vector<8x128xf32>
    %228 = arith.addf %226, %227 : vector<8x128xf32>
    %229 = arith.negf %228 : vector<8x128xf32>
    %230 = math.exp %229 : vector<8x128xf32>
    %cst_61 = arith.constant 1.000000e+00 : f32
    %231 = vector.broadcast %cst_61 : f32 to vector<8x128xf32>
    %232 = arith.addf %231, %230 : vector<8x128xf32>
    %233 = arith.divf %231, %232 : vector<8x128xf32>
    %234 = vector.extract_strided_slice %233 {offsets = [0, 0], sizes = [8, 32], strides = [1, 1]} : vector<8x128xf32> to vector<8x32xf32>
    %235 = vector.extract_strided_slice %233 {offsets = [0, 32], sizes = [8, 32], strides = [1, 1]} : vector<8x128xf32> to vector<8x32xf32>
    %236 = vector.extract_strided_slice %233 {offsets = [0, 96], sizes = [8, 32], strides = [1, 1]} : vector<8x128xf32> to vector<8x32xf32>
    %237 = vector.extract_strided_slice %228 {offsets = [0, 64], sizes = [8, 32], strides = [1, 1]} : vector<8x128xf32> to vector<8x32xf32>
    %238 = math.tanh %237 : vector<8x32xf32>
    %239 = arith.mulf %235, %213 : vector<8x32xf32>
    %240 = arith.mulf %234, %238 : vector<8x32xf32>
    %241 = arith.addf %239, %240 : vector<8x32xf32>
    %242 = math.tanh %241 : vector<8x32xf32>
    %243 = arith.mulf %236, %242 : vector<8x32xf32>
    %244 = vector.extract_strided_slice %243 {offsets = [0, 0], sizes = [8, 16], strides = [1, 1]} : vector<8x32xf32> to vector<8x16xf32>
    %c0_62 = arith.constant 0 : index
    %c7_63 = arith.constant 7 : index
    %c0_64 = arith.constant 0 : index
    %245 = vector.load %arg13[%c0_62, %c7_63, %c0_64] : memref<8x8x32xf32, #tpu.memory_space<vmem>>, vector<8x1x16xf32>
    %246 = vector.shape_cast %245 : vector<8x1x16xf32> to vector<8x16xf32>
    %247 = vector.shape_cast %244 : vector<8x16xf32> to vector<8x1x16xf32>
    tpu.vector_store %arg13[%c0_62, %c7_63, %c0_64], %247 {strides = array<i32>} : memref<8x8x32xf32, #tpu.memory_space<vmem>>, vector<8x1x16xf32>,
    %248 = vector.extract_strided_slice %243 {offsets = [0, 16], sizes = [8, 16], strides = [1, 1]} : vector<8x32xf32> to vector<8x16xf32>
    %c0_65 = arith.constant 0 : index
    %c0_66 = arith.constant 0 : index
    %c16_67 = arith.constant 16 : index
    %249 = vector.load %arg13[%c0_65, %c0_66, %c16_67] : memref<8x8x32xf32, #tpu.memory_space<vmem>>, vector<8x1x16xf32>
    %250 = vector.shape_cast %249 : vector<8x1x16xf32> to vector<8x16xf32>
    %251 = vector.shape_cast %248 : vector<8x16xf32> to vector<8x1x16xf32>
    tpu.vector_store %arg13[%c0_65, %c0_66, %c16_67], %251 {strides = array<i32>} : memref<8x8x32xf32, #tpu.memory_space<vmem>>, vector<8x1x16xf32>,
    %c0_68 = arith.constant 0 : index
    %c0_69 = arith.constant 0 : index
    %c0_70 = arith.constant 0 : index
    %252 = vector.load %arg13[%c0_68, %c0_69, %c0_70] : memref<8x8x32xf32, #tpu.memory_space<vmem>>, vector<8x8x32xf32>
    %c0_71 = arith.constant 0 : index
    %c0_72 = arith.constant 0 : index
    %253 = vector.load %arg9[%c0_71, %c0_72] : memref<32x32xf32, #tpu.memory_space<vmem>>, vector<32x32xf32>
    %254 = vector.extract_strided_slice %252 {offsets = [0, 0, 0], sizes = [8, 1, 32], strides = [1, 1, 1]} : vector<8x8x32xf32> to vector<8x1x32xf32>
    %255 = vector.shape_cast %254 : vector<8x1x32xf32> to vector<8x32xf32>
    %cst_73 = arith.constant dense<0.000000e+00> : vector<8x32xf32>
    %256 = tpu.matmul %255, %253, %cst_73 {dimension_numbers = #tpu.dot_dimension_numbers<[1], [0], [0], [1], [0, 0, 1, 1], [], []>} : vector<8x32xf32>, vector<32x32xf32>, vector<8x32xf32> -> vector<8x32xf32>
    %c0_74 = arith.constant 0 : index
    %c0_75 = arith.constant 0 : index
    %c0_76 = arith.constant 0 : index
    %257 = vector.load %arg14[%c0_74, %c0_75, %c0_76] : memref<8x8x32xf32, #tpu.memory_space<vmem>>, vector<8x1x32xf32>
    %258 = vector.shape_cast %257 : vector<8x1x32xf32> to vector<8x32xf32>
    %259 = vector.shape_cast %256 : vector<8x32xf32> to vector<8x1x32xf32>
    tpu.vector_store %arg14[%c0_74, %c0_75, %c0_76], %259 {strides = array<i32>} : memref<8x8x32xf32, #tpu.memory_space<vmem>>, vector<8x1x32xf32>,
    %260 = vector.extract_strided_slice %252 {offsets = [0, 1, 0], sizes = [8, 1, 32], strides = [1, 1, 1]} : vector<8x8x32xf32> to vector<8x1x32xf32>
    %261 = vector.shape_cast %260 : vector<8x1x32xf32> to vector<8x32xf32>
    %cst_77 = arith.constant dense<0.000000e+00> : vector<8x32xf32>
    %262 = tpu.matmul %261, %253, %cst_77 {dimension_numbers = #tpu.dot_dimension_numbers<[1], [0], [0], [1], [0, 0, 1, 1], [], []>} : vector<8x32xf32>, vector<32x32xf32>, vector<8x32xf32> -> vector<8x32xf32>
    %c0_78 = arith.constant 0 : index
    %c1_79 = arith.constant 1 : index
    %c0_80 = arith.constant 0 : index
    %263 = vector.load %arg14[%c0_78, %c1_79, %c0_80] : memref<8x8x32xf32, #tpu.memory_space<vmem>>, vector<8x1x32xf32>
    %264 = vector.shape_cast %263 : vector<8x1x32xf32> to vector<8x32xf32>
    %265 = vector.shape_cast %262 : vector<8x32xf32> to vector<8x1x32xf32>
    tpu.vector_store %arg14[%c0_78, %c1_79, %c0_80], %265 {strides = array<i32>} : memref<8x8x32xf32, #tpu.memory_space<vmem>>, vector<8x1x32xf32>,
    %266 = vector.extract_strided_slice %252 {offsets = [0, 2, 0], sizes = [8, 1, 32], strides = [1, 1, 1]} : vector<8x8x32xf32> to vector<8x1x32xf32>
    %267 = vector.shape_cast %266 : vector<8x1x32xf32> to vector<8x32xf32>
    %cst_81 = arith.constant dense<0.000000e+00> : vector<8x32xf32>
    %268 = tpu.matmul %267, %253, %cst_81 {dimension_numbers = #tpu.dot_dimension_numbers<[1], [0], [0], [1], [0, 0, 1, 1], [], []>} : vector<8x32xf32>, vector<32x32xf32>, vector<8x32xf32> -> vector<8x32xf32>
    %c0_82 = arith.constant 0 : index
    %c2_83 = arith.constant 2 : index
    %c0_84 = arith.constant 0 : index
    %269 = vector.load %arg14[%c0_82, %c2_83, %c0_84] : memref<8x8x32xf32, #tpu.memory_space<vmem>>, vector<8x1x32xf32>
    %270 = vector.shape_cast %269 : vector<8x1x32xf32> to vector<8x32xf32>
    %271 = vector.shape_cast %268 : vector<8x32xf32> to vector<8x1x32xf32>
    tpu.vector_store %arg14[%c0_82, %c2_83, %c0_84], %271 {strides = array<i32>} : memref<8x8x32xf32, #tpu.memory_space<vmem>>, vector<8x1x32xf32>,
    %272 = vector.extract_strided_slice %252 {offsets = [0, 3, 0], sizes = [8, 1, 32], strides = [1, 1, 1]} : vector<8x8x32xf32> to vector<8x1x32xf32>
    %273 = vector.shape_cast %272 : vector<8x1x32xf32> to vector<8x32xf32>
    %cst_85 = arith.constant dense<0.000000e+00> : vector<8x32xf32>
    %274 = tpu.matmul %273, %253, %cst_85 {dimension_numbers = #tpu.dot_dimension_numbers<[1], [0], [0], [1], [0, 0, 1, 1], [], []>} : vector<8x32xf32>, vector<32x32xf32>, vector<8x32xf32> -> vector<8x32xf32>
    %c0_86 = arith.constant 0 : index
    %c3_87 = arith.constant 3 : index
    %c0_88 = arith.constant 0 : index
    %275 = vector.load %arg14[%c0_86, %c3_87, %c0_88] : memref<8x8x32xf32, #tpu.memory_space<vmem>>, vector<8x1x32xf32>
    %276 = vector.shape_cast %275 : vector<8x1x32xf32> to vector<8x32xf32>
    %277 = vector.shape_cast %274 : vector<8x32xf32> to vector<8x1x32xf32>
    tpu.vector_store %arg14[%c0_86, %c3_87, %c0_88], %277 {strides = array<i32>} : memref<8x8x32xf32, #tpu.memory_space<vmem>>, vector<8x1x32xf32>,
    %278 = vector.extract_strided_slice %252 {offsets = [0, 4, 0], sizes = [8, 1, 32], strides = [1, 1, 1]} : vector<8x8x32xf32> to vector<8x1x32xf32>
    %279 = vector.shape_cast %278 : vector<8x1x32xf32> to vector<8x32xf32>
    %cst_89 = arith.constant dense<0.000000e+00> : vector<8x32xf32>
    %280 = tpu.matmul %279, %253, %cst_89 {dimension_numbers = #tpu.dot_dimension_numbers<[1], [0], [0], [1], [0, 0, 1, 1], [], []>} : vector<8x32xf32>, vector<32x32xf32>, vector<8x32xf32> -> vector<8x32xf32>
    %c0_90 = arith.constant 0 : index
    %c4_91 = arith.constant 4 : index
    %c0_92 = arith.constant 0 : index
    %281 = vector.load %arg14[%c0_90, %c4_91, %c0_92] : memref<8x8x32xf32, #tpu.memory_space<vmem>>, vector<8x1x32xf32>
    %282 = vector.shape_cast %281 : vector<8x1x32xf32> to vector<8x32xf32>
    %283 = vector.shape_cast %280 : vector<8x32xf32> to vector<8x1x32xf32>
    tpu.vector_store %arg14[%c0_90, %c4_91, %c0_92], %283 {strides = array<i32>} : memref<8x8x32xf32, #tpu.memory_space<vmem>>, vector<8x1x32xf32>,
    %284 = vector.extract_strided_slice %252 {offsets = [0, 5, 0], sizes = [8, 1, 32], strides = [1, 1, 1]} : vector<8x8x32xf32> to vector<8x1x32xf32>
    %285 = vector.shape_cast %284 : vector<8x1x32xf32> to vector<8x32xf32>
    %cst_93 = arith.constant dense<0.000000e+00> : vector<8x32xf32>
    %286 = tpu.matmul %285, %253, %cst_93 {dimension_numbers = #tpu.dot_dimension_numbers<[1], [0], [0], [1], [0, 0, 1, 1], [], []>} : vector<8x32xf32>, vector<32x32xf32>, vector<8x32xf32> -> vector<8x32xf32>
    %c0_94 = arith.constant 0 : index
    %c5_95 = arith.constant 5 : index
    %c0_96 = arith.constant 0 : index
    %287 = vector.load %arg14[%c0_94, %c5_95, %c0_96] : memref<8x8x32xf32, #tpu.memory_space<vmem>>, vector<8x1x32xf32>
    %288 = vector.shape_cast %287 : vector<8x1x32xf32> to vector<8x32xf32>
    %289 = vector.shape_cast %286 : vector<8x32xf32> to vector<8x1x32xf32>
    tpu.vector_store %arg14[%c0_94, %c5_95, %c0_96], %289 {strides = array<i32>} : memref<8x8x32xf32, #tpu.memory_space<vmem>>, vector<8x1x32xf32>,
    %290 = vector.extract_strided_slice %252 {offsets = [0, 6, 0], sizes = [8, 1, 32], strides = [1, 1, 1]} : vector<8x8x32xf32> to vector<8x1x32xf32>
    %291 = vector.shape_cast %290 : vector<8x1x32xf32> to vector<8x32xf32>
    %cst_97 = arith.constant dense<0.000000e+00> : vector<8x32xf32>
    %292 = tpu.matmul %291, %253, %cst_97 {dimension_numbers = #tpu.dot_dimension_numbers<[1], [0], [0], [1], [0, 0, 1, 1], [], []>} : vector<8x32xf32>, vector<32x32xf32>, vector<8x32xf32> -> vector<8x32xf32>
    %c0_98 = arith.constant 0 : index
    %c6_99 = arith.constant 6 : index
    %c0_100 = arith.constant 0 : index
    %293 = vector.load %arg14[%c0_98, %c6_99, %c0_100] : memref<8x8x32xf32, #tpu.memory_space<vmem>>, vector<8x1x32xf32>
    %294 = vector.shape_cast %293 : vector<8x1x32xf32> to vector<8x32xf32>
    %295 = vector.shape_cast %292 : vector<8x32xf32> to vector<8x1x32xf32>
    tpu.vector_store %arg14[%c0_98, %c6_99, %c0_100], %295 {strides = array<i32>} : memref<8x8x32xf32, #tpu.memory_space<vmem>>, vector<8x1x32xf32>,
    %296 = vector.extract_strided_slice %252 {offsets = [0, 7, 0], sizes = [8, 1, 32], strides = [1, 1, 1]} : vector<8x8x32xf32> to vector<8x1x32xf32>
    %297 = vector.shape_cast %296 : vector<8x1x32xf32> to vector<8x32xf32>
    %cst_101 = arith.constant dense<0.000000e+00> : vector<8x32xf32>
    %298 = tpu.matmul %297, %253, %cst_101 {dimension_numbers = #tpu.dot_dimension_numbers<[1], [0], [0], [1], [0, 0, 1, 1], [], []>} : vector<8x32xf32>, vector<32x32xf32>, vector<8x32xf32> -> vector<8x32xf32>
    %c0_102 = arith.constant 0 : index
    %c7_103 = arith.constant 7 : index
    %c0_104 = arith.constant 0 : index
    %299 = vector.load %arg14[%c0_102, %c7_103, %c0_104] : memref<8x8x32xf32, #tpu.memory_space<vmem>>, vector<8x1x32xf32>
    %300 = vector.shape_cast %299 : vector<8x1x32xf32> to vector<8x32xf32>
    %301 = vector.shape_cast %298 : vector<8x32xf32> to vector<8x1x32xf32>
    tpu.vector_store %arg14[%c0_102, %c7_103, %c0_104], %301 {strides = array<i32>} : memref<8x8x32xf32, #tpu.memory_space<vmem>>, vector<8x1x32xf32>,
    %c0_105 = arith.constant 0 : index
    %c0_106 = arith.constant 0 : index
    %c0_107 = arith.constant 0 : index
    %302 = vector.load %arg14[%c0_105, %c0_106, %c0_107] : memref<8x8x32xf32, #tpu.memory_space<vmem>>, vector<8x8x32xf32>
    %c0_108 = arith.constant 0 : index
    %c0_109 = arith.constant 0 : index
    %303 = vector.load %arg2[%c0_108, %c0_109] : memref<8x8xf32, #tpu.memory_space<vmem>>, vector<8x8xf32>
    %c0_110 = arith.constant 0 : index
    %c0_111 = arith.constant 0 : index
    %304 = vector.load %arg1[%c0_110, %c0_111] : memref<64x32xf32, #tpu.memory_space<vmem>>, vector<64x32xf32>
    %c0_112 = arith.constant 0 : index
    %c0_113 = arith.constant 0 : index
    %305 = vector.load %arg6[%c0_112, %c0_113] : memref<32x128xf32, #tpu.memory_space<vmem>>, vector<32x128xf32>
    %cst_114 = arith.constant dense<0.000000e+00> : vector<64x128xf32>
    %306 = tpu.matmul %304, %305, %cst_114 {dimension_numbers = #tpu.dot_dimension_numbers<[1], [0], [0], [1], [0, 0, 1, 1], [], []>} : vector<64x32xf32>, vector<32x128xf32>, vector<64x128xf32> -> vector<64x128xf32>
    %c0_115 = arith.constant 0 : index
    %c0_116 = arith.constant 0 : index
    %307 = vector.load %arg8[%c0_115, %c0_116] : memref<1x128xf32, #tpu.memory_space<vmem>>, vector<1x128xf32>
    %308 = vector.broadcast %307 : vector<1x128xf32> to vector<64x128xf32>
    %309 = arith.addf %306, %308 : vector<64x128xf32>
    %c0_117 = arith.constant 0 : index
    %c0_118 = arith.constant 0 : index
    %310 = vector.load %arg7[%c0_117, %c0_118] : memref<64x128xf32, #tpu.memory_space<vmem>>, vector<64x128xf32>
    %c0_119 = arith.constant 0 : index
    %c0_120 = arith.constant 0 : index
    %311 = vector.load %arg10[%c0_119, %c0_120] : memref<64x32xf32, #tpu.memory_space<vmem>>, vector<64x32xf32>
    %cst_121 = arith.constant 0.000000e+00 : f32
    %312 = vector.broadcast %cst_121 : f32 to vector<8x32xf32>
    %313 = tpu.concatenate %312, %243 in 1 : vector<8x32xf32>, vector<8x32xf32> -> vector<8x64xf32>
    %314 = vector.extract_strided_slice %309 {offsets = [0, 0], sizes = [8, 128], strides = [1, 1]} : vector<64x128xf32> to vector<8x128xf32>
    %cst_122 = arith.constant dense<0.000000e+00> : vector<8x128xf32>
    %315 = tpu.matmul %313, %310, %cst_122 {dimension_numbers = #tpu.dot_dimension_numbers<[1], [0], [0], [1], [0, 0, 1, 1], [], []>} : vector<8x64xf32>, vector<64x128xf32>, vector<8x128xf32> -> vector<8x128xf32>
    %316 = arith.addf %314, %315 : vector<8x128xf32>
    %317 = arith.negf %316 : vector<8x128xf32>
    %318 = math.exp %317 : vector<8x128xf32>
    %cst_123 = arith.constant 1.000000e+00 : f32
    %319 = vector.broadcast %cst_123 : f32 to vector<8x128xf32>
    %320 = arith.addf %319, %318 : vector<8x128xf32>
    %321 = arith.divf %319, %320 : vector<8x128xf32>
    %322 = vector.extract_strided_slice %321 {offsets = [0, 0], sizes = [8, 32], strides = [1, 1]} : vector<8x128xf32> to vector<8x32xf32>
    %323 = vector.extract_strided_slice %321 {offsets = [0, 32], sizes = [8, 32], strides = [1, 1]} : vector<8x128xf32> to vector<8x32xf32>
    %324 = vector.extract_strided_slice %321 {offsets = [0, 96], sizes = [8, 32], strides = [1, 1]} : vector<8x128xf32> to vector<8x32xf32>
    %325 = vector.extract_strided_slice %316 {offsets = [0, 64], sizes = [8, 32], strides = [1, 1]} : vector<8x128xf32> to vector<8x32xf32>
    %326 = math.tanh %325 : vector<8x32xf32>
    %327 = arith.mulf %323, %241 : vector<8x32xf32>
    %328 = arith.mulf %322, %326 : vector<8x32xf32>
    %329 = arith.addf %327, %328 : vector<8x32xf32>
    %330 = math.tanh %329 : vector<8x32xf32>
    %331 = arith.mulf %324, %330 : vector<8x32xf32>
    %332 = vector.shape_cast %331 : vector<8x32xf32> to vector<8x1x32xf32>
    %333 = vector.broadcast %332 : vector<8x1x32xf32> to vector<8x8x32xf32>
    %334 = arith.mulf %333, %302 : vector<8x8x32xf32>
    %cst_124 = arith.constant dense<0.000000e+00> : vector<8x8xf32>
    %335 = vector.multi_reduction <add>, %334, %cst_124 [2] : vector<8x8x32xf32> to vector<8x8xf32>
    %336 = arith.addf %335, %303 : vector<8x8xf32>
    %cst_125 = arith.constant dense<0xFF800000> : vector<8xf32>
    %337 = vector.multi_reduction <maximumf>, %336, %cst_125 [1] : vector<8x8xf32> to vector<8xf32>
    %338 = vector.shape_cast %337 : vector<8xf32> to vector<8x1xf32>
    %339 = vector.broadcast %338 : vector<8x1xf32> to vector<8x8xf32>
    %340 = arith.subf %336, %339 : vector<8x8xf32>
    %341 = math.exp %340 : vector<8x8xf32>
    %cst_126 = arith.constant dense<0.000000e+00> : vector<8xf32>
    %342 = vector.multi_reduction <add>, %341, %cst_126 [1] : vector<8x8xf32> to vector<8xf32>
    %343 = vector.shape_cast %342 : vector<8xf32> to vector<8x1xf32>
    %344 = vector.broadcast %343 : vector<8x1xf32> to vector<8x8xf32>
    %345 = arith.divf %341, %344 : vector<8x8xf32>
    %346 = vector.shape_cast %345 : vector<8x8xf32> to vector<8x8x1xf32>
    %347 = vector.broadcast %346 : vector<8x8x1xf32> to vector<8x8x32xf32>
    %348 = arith.mulf %347, %252 : vector<8x8x32xf32>
    %cst_127 = arith.constant dense<0.000000e+00> : vector<8x32xf32>
    %349 = vector.multi_reduction <add>, %348, %cst_127 [1] : vector<8x8x32xf32> to vector<8x32xf32>
    %350 = tpu.concatenate %349, %331 in 1 : vector<8x32xf32>, vector<8x32xf32> -> vector<8x64xf32>
    %cst_128 = arith.constant dense<0.000000e+00> : vector<8x32xf32>
    %351 = tpu.matmul %350, %311, %cst_128 {dimension_numbers = #tpu.dot_dimension_numbers<[1], [0], [0], [1], [0, 0, 1, 1], [], []>} : vector<8x64xf32>, vector<64x32xf32>, vector<8x32xf32> -> vector<8x32xf32>
    %352 = math.tanh %351 : vector<8x32xf32>
    %c0_129 = arith.constant 0 : index
    %c0_130 = arith.constant 0 : index
    %353 = vector.load %arg11[%c0_129, %c0_130] : memref<8x256xf32, #tpu.memory_space<vmem>>, vector<8x32xf32>
    tpu.vector_store %arg11[%c0_129, %c0_130], %352 {strides = array<i32>} : memref<8x256xf32, #tpu.memory_space<vmem>>, vector<8x32xf32>,
    %c0_131 = arith.constant 0 : index
    %c0_132 = arith.constant 0 : index
    %354 = vector.load %arg12[%c0_131, %c0_132] : memref<8x64xf32, #tpu.memory_space<vmem>>, vector<8x8xf32>
    tpu.vector_store %arg12[%c0_131, %c0_132], %345 {strides = array<i32>} : memref<8x64xf32, #tpu.memory_space<vmem>>, vector<8x8xf32>,
    %355 = tpu.concatenate %352, %331 in 1 : vector<8x32xf32>, vector<8x32xf32> -> vector<8x64xf32>
    %356 = vector.extract_strided_slice %309 {offsets = [8, 0], sizes = [8, 128], strides = [1, 1]} : vector<64x128xf32> to vector<8x128xf32>
    %cst_133 = arith.constant dense<0.000000e+00> : vector<8x128xf32>
    %357 = tpu.matmul %355, %310, %cst_133 {dimension_numbers = #tpu.dot_dimension_numbers<[1], [0], [0], [1], [0, 0, 1, 1], [], []>} : vector<8x64xf32>, vector<64x128xf32>, vector<8x128xf32> -> vector<8x128xf32>
    %358 = arith.addf %356, %357 : vector<8x128xf32>
    %359 = arith.negf %358 : vector<8x128xf32>
    %360 = math.exp %359 : vector<8x128xf32>
    %cst_134 = arith.constant 1.000000e+00 : f32
    %361 = vector.broadcast %cst_134 : f32 to vector<8x128xf32>
    %362 = arith.addf %361, %360 : vector<8x128xf32>
    %363 = arith.divf %361, %362 : vector<8x128xf32>
    %364 = vector.extract_strided_slice %363 {offsets = [0, 0], sizes = [8, 32], strides = [1, 1]} : vector<8x128xf32> to vector<8x32xf32>
    %365 = vector.extract_strided_slice %363 {offsets = [0, 32], sizes = [8, 32], strides = [1, 1]} : vector<8x128xf32> to vector<8x32xf32>
    %366 = vector.extract_strided_slice %363 {offsets = [0, 96], sizes = [8, 32], strides = [1, 1]} : vector<8x128xf32> to vector<8x32xf32>
    %367 = vector.extract_strided_slice %358 {offsets = [0, 64], sizes = [8, 32], strides = [1, 1]} : vector<8x128xf32> to vector<8x32xf32>
    %368 = math.tanh %367 : vector<8x32xf32>
    %369 = arith.mulf %365, %329 : vector<8x32xf32>
    %370 = arith.mulf %364, %368 : vector<8x32xf32>
    %371 = arith.addf %369, %370 : vector<8x32xf32>
    %372 = math.tanh %371 : vector<8x32xf32>
    %373 = arith.mulf %366, %372 : vector<8x32xf32>
    %374 = vector.shape_cast %373 : vector<8x32xf32> to vector<8x1x32xf32>
    %375 = vector.broadcast %374 : vector<8x1x32xf32> to vector<8x8x32xf32>
    %376 = arith.mulf %375, %302 : vector<8x8x32xf32>
    %cst_135 = arith.constant dense<0.000000e+00> : vector<8x8xf32>
    %377 = vector.multi_reduction <add>, %376, %cst_135 [2] : vector<8x8x32xf32> to vector<8x8xf32>
    %378 = arith.addf %377, %303 : vector<8x8xf32>
    %cst_136 = arith.constant dense<0xFF800000> : vector<8xf32>
    %379 = vector.multi_reduction <maximumf>, %378, %cst_136 [1] : vector<8x8xf32> to vector<8xf32>
    %380 = vector.shape_cast %379 : vector<8xf32> to vector<8x1xf32>
    %381 = vector.broadcast %380 : vector<8x1xf32> to vector<8x8xf32>
    %382 = arith.subf %378, %381 : vector<8x8xf32>
    %383 = math.exp %382 : vector<8x8xf32>
    %cst_137 = arith.constant dense<0.000000e+00> : vector<8xf32>
    %384 = vector.multi_reduction <add>, %383, %cst_137 [1] : vector<8x8xf32> to vector<8xf32>
    %385 = vector.shape_cast %384 : vector<8xf32> to vector<8x1xf32>
    %386 = vector.broadcast %385 : vector<8x1xf32> to vector<8x8xf32>
    %387 = arith.divf %383, %386 : vector<8x8xf32>
    %388 = vector.shape_cast %387 : vector<8x8xf32> to vector<8x8x1xf32>
    %389 = vector.broadcast %388 : vector<8x8x1xf32> to vector<8x8x32xf32>
    %390 = arith.mulf %389, %252 : vector<8x8x32xf32>
    %cst_138 = arith.constant dense<0.000000e+00> : vector<8x32xf32>
    %391 = vector.multi_reduction <add>, %390, %cst_138 [1] : vector<8x8x32xf32> to vector<8x32xf32>
    %392 = tpu.concatenate %391, %373 in 1 : vector<8x32xf32>, vector<8x32xf32> -> vector<8x64xf32>
    %cst_139 = arith.constant dense<0.000000e+00> : vector<8x32xf32>
    %393 = tpu.matmul %392, %311, %cst_139 {dimension_numbers = #tpu.dot_dimension_numbers<[1], [0], [0], [1], [0, 0, 1, 1], [], []>} : vector<8x64xf32>, vector<64x32xf32>, vector<8x32xf32> -> vector<8x32xf32>
    %394 = math.tanh %393 : vector<8x32xf32>
    %c0_140 = arith.constant 0 : index
    %c32 = arith.constant 32 : index
    %395 = vector.load %arg11[%c0_140, %c32] : memref<8x256xf32, #tpu.memory_space<vmem>>, vector<8x32xf32>
    tpu.vector_store %arg11[%c0_140, %c32], %394 {strides = array<i32>} : memref<8x256xf32, #tpu.memory_space<vmem>>, vector<8x32xf32>,
    %c0_141 = arith.constant 0 : index
    %c8 = arith.constant 8 : index
    %396 = vector.load %arg12[%c0_141, %c8] : memref<8x64xf32, #tpu.memory_space<vmem>>, vector<8x8xf32>
    tpu.vector_store %arg12[%c0_141, %c8], %387 {strides = array<i32>} : memref<8x64xf32, #tpu.memory_space<vmem>>, vector<8x8xf32>,
    %397 = tpu.concatenate %394, %373 in 1 : vector<8x32xf32>, vector<8x32xf32> -> vector<8x64xf32>
    %398 = vector.extract_strided_slice %309 {offsets = [16, 0], sizes = [8, 128], strides = [1, 1]} : vector<64x128xf32> to vector<8x128xf32>
    %cst_142 = arith.constant dense<0.000000e+00> : vector<8x128xf32>
    %399 = tpu.matmul %397, %310, %cst_142 {dimension_numbers = #tpu.dot_dimension_numbers<[1], [0], [0], [1], [0, 0, 1, 1], [], []>} : vector<8x64xf32>, vector<64x128xf32>, vector<8x128xf32> -> vector<8x128xf32>
    %400 = arith.addf %398, %399 : vector<8x128xf32>
    %401 = arith.negf %400 : vector<8x128xf32>
    %402 = math.exp %401 : vector<8x128xf32>
    %cst_143 = arith.constant 1.000000e+00 : f32
    %403 = vector.broadcast %cst_143 : f32 to vector<8x128xf32>
    %404 = arith.addf %403, %402 : vector<8x128xf32>
    %405 = arith.divf %403, %404 : vector<8x128xf32>
    %406 = vector.extract_strided_slice %405 {offsets = [0, 0], sizes = [8, 32], strides = [1, 1]} : vector<8x128xf32> to vector<8x32xf32>
    %407 = vector.extract_strided_slice %405 {offsets = [0, 32], sizes = [8, 32], strides = [1, 1]} : vector<8x128xf32> to vector<8x32xf32>
    %408 = vector.extract_strided_slice %405 {offsets = [0, 96], sizes = [8, 32], strides = [1, 1]} : vector<8x128xf32> to vector<8x32xf32>
    %409 = vector.extract_strided_slice %400 {offsets = [0, 64], sizes = [8, 32], strides = [1, 1]} : vector<8x128xf32> to vector<8x32xf32>
    %410 = math.tanh %409 : vector<8x32xf32>
    %411 = arith.mulf %407, %371 : vector<8x32xf32>
    %412 = arith.mulf %406, %410 : vector<8x32xf32>
    %413 = arith.addf %411, %412 : vector<8x32xf32>
    %414 = math.tanh %413 : vector<8x32xf32>
    %415 = arith.mulf %408, %414 : vector<8x32xf32>
    %416 = vector.shape_cast %415 : vector<8x32xf32> to vector<8x1x32xf32>
    %417 = vector.broadcast %416 : vector<8x1x32xf32> to vector<8x8x32xf32>
    %418 = arith.mulf %417, %302 : vector<8x8x32xf32>
    %cst_144 = arith.constant dense<0.000000e+00> : vector<8x8xf32>
    %419 = vector.multi_reduction <add>, %418, %cst_144 [2] : vector<8x8x32xf32> to vector<8x8xf32>
    %420 = arith.addf %419, %303 : vector<8x8xf32>
    %cst_145 = arith.constant dense<0xFF800000> : vector<8xf32>
    %421 = vector.multi_reduction <maximumf>, %420, %cst_145 [1] : vector<8x8xf32> to vector<8xf32>
    %422 = vector.shape_cast %421 : vector<8xf32> to vector<8x1xf32>
    %423 = vector.broadcast %422 : vector<8x1xf32> to vector<8x8xf32>
    %424 = arith.subf %420, %423 : vector<8x8xf32>
    %425 = math.exp %424 : vector<8x8xf32>
    %cst_146 = arith.constant dense<0.000000e+00> : vector<8xf32>
    %426 = vector.multi_reduction <add>, %425, %cst_146 [1] : vector<8x8xf32> to vector<8xf32>
    %427 = vector.shape_cast %426 : vector<8xf32> to vector<8x1xf32>
    %428 = vector.broadcast %427 : vector<8x1xf32> to vector<8x8xf32>
    %429 = arith.divf %425, %428 : vector<8x8xf32>
    %430 = vector.shape_cast %429 : vector<8x8xf32> to vector<8x8x1xf32>
    %431 = vector.broadcast %430 : vector<8x8x1xf32> to vector<8x8x32xf32>
    %432 = arith.mulf %431, %252 : vector<8x8x32xf32>
    %cst_147 = arith.constant dense<0.000000e+00> : vector<8x32xf32>
    %433 = vector.multi_reduction <add>, %432, %cst_147 [1] : vector<8x8x32xf32> to vector<8x32xf32>
    %434 = tpu.concatenate %433, %415 in 1 : vector<8x32xf32>, vector<8x32xf32> -> vector<8x64xf32>
    %cst_148 = arith.constant dense<0.000000e+00> : vector<8x32xf32>
    %435 = tpu.matmul %434, %311, %cst_148 {dimension_numbers = #tpu.dot_dimension_numbers<[1], [0], [0], [1], [0, 0, 1, 1], [], []>} : vector<8x64xf32>, vector<64x32xf32>, vector<8x32xf32> -> vector<8x32xf32>
    %436 = math.tanh %435 : vector<8x32xf32>
    %c0_149 = arith.constant 0 : index
    %c64 = arith.constant 64 : index
    %437 = vector.load %arg11[%c0_149, %c64] : memref<8x256xf32, #tpu.memory_space<vmem>>, vector<8x32xf32>
    tpu.vector_store %arg11[%c0_149, %c64], %436 {strides = array<i32>} : memref<8x256xf32, #tpu.memory_space<vmem>>, vector<8x32xf32>,
    %c0_150 = arith.constant 0 : index
    %c16_151 = arith.constant 16 : index
    %438 = vector.load %arg12[%c0_150, %c16_151] : memref<8x64xf32, #tpu.memory_space<vmem>>, vector<8x8xf32>
    tpu.vector_store %arg12[%c0_150, %c16_151], %429 {strides = array<i32>} : memref<8x64xf32, #tpu.memory_space<vmem>>, vector<8x8xf32>,
    %439 = tpu.concatenate %436, %415 in 1 : vector<8x32xf32>, vector<8x32xf32> -> vector<8x64xf32>
    %440 = vector.extract_strided_slice %309 {offsets = [24, 0], sizes = [8, 128], strides = [1, 1]} : vector<64x128xf32> to vector<8x128xf32>
    %cst_152 = arith.constant dense<0.000000e+00> : vector<8x128xf32>
    %441 = tpu.matmul %439, %310, %cst_152 {dimension_numbers = #tpu.dot_dimension_numbers<[1], [0], [0], [1], [0, 0, 1, 1], [], []>} : vector<8x64xf32>, vector<64x128xf32>, vector<8x128xf32> -> vector<8x128xf32>
    %442 = arith.addf %440, %441 : vector<8x128xf32>
    %443 = arith.negf %442 : vector<8x128xf32>
    %444 = math.exp %443 : vector<8x128xf32>
    %cst_153 = arith.constant 1.000000e+00 : f32
    %445 = vector.broadcast %cst_153 : f32 to vector<8x128xf32>
    %446 = arith.addf %445, %444 : vector<8x128xf32>
    %447 = arith.divf %445, %446 : vector<8x128xf32>
    %448 = vector.extract_strided_slice %447 {offsets = [0, 0], sizes = [8, 32], strides = [1, 1]} : vector<8x128xf32> to vector<8x32xf32>
    %449 = vector.extract_strided_slice %447 {offsets = [0, 32], sizes = [8, 32], strides = [1, 1]} : vector<8x128xf32> to vector<8x32xf32>
    %450 = vector.extract_strided_slice %447 {offsets = [0, 96], sizes = [8, 32], strides = [1, 1]} : vector<8x128xf32> to vector<8x32xf32>
    %451 = vector.extract_strided_slice %442 {offsets = [0, 64], sizes = [8, 32], strides = [1, 1]} : vector<8x128xf32> to vector<8x32xf32>
    %452 = math.tanh %451 : vector<8x32xf32>
    %453 = arith.mulf %449, %413 : vector<8x32xf32>
    %454 = arith.mulf %448, %452 : vector<8x32xf32>
    %455 = arith.addf %453, %454 : vector<8x32xf32>
    %456 = math.tanh %455 : vector<8x32xf32>
    %457 = arith.mulf %450, %456 : vector<8x32xf32>
    %458 = vector.shape_cast %457 : vector<8x32xf32> to vector<8x1x32xf32>
    %459 = vector.broadcast %458 : vector<8x1x32xf32> to vector<8x8x32xf32>
    %460 = arith.mulf %459, %302 : vector<8x8x32xf32>
    %cst_154 = arith.constant dense<0.000000e+00> : vector<8x8xf32>
    %461 = vector.multi_reduction <add>, %460, %cst_154 [2] : vector<8x8x32xf32> to vector<8x8xf32>
    %462 = arith.addf %461, %303 : vector<8x8xf32>
    %cst_155 = arith.constant dense<0xFF800000> : vector<8xf32>
    %463 = vector.multi_reduction <maximumf>, %462, %cst_155 [1] : vector<8x8xf32> to vector<8xf32>
    %464 = vector.shape_cast %463 : vector<8xf32> to vector<8x1xf32>
    %465 = vector.broadcast %464 : vector<8x1xf32> to vector<8x8xf32>
    %466 = arith.subf %462, %465 : vector<8x8xf32>
    %467 = math.exp %466 : vector<8x8xf32>
    %cst_156 = arith.constant dense<0.000000e+00> : vector<8xf32>
    %468 = vector.multi_reduction <add>, %467, %cst_156 [1] : vector<8x8xf32> to vector<8xf32>
    %469 = vector.shape_cast %468 : vector<8xf32> to vector<8x1xf32>
    %470 = vector.broadcast %469 : vector<8x1xf32> to vector<8x8xf32>
    %471 = arith.divf %467, %470 : vector<8x8xf32>
    %472 = vector.shape_cast %471 : vector<8x8xf32> to vector<8x8x1xf32>
    %473 = vector.broadcast %472 : vector<8x8x1xf32> to vector<8x8x32xf32>
    %474 = arith.mulf %473, %252 : vector<8x8x32xf32>
    %cst_157 = arith.constant dense<0.000000e+00> : vector<8x32xf32>
    %475 = vector.multi_reduction <add>, %474, %cst_157 [1] : vector<8x8x32xf32> to vector<8x32xf32>
    %476 = tpu.concatenate %475, %457 in 1 : vector<8x32xf32>, vector<8x32xf32> -> vector<8x64xf32>
    %cst_158 = arith.constant dense<0.000000e+00> : vector<8x32xf32>
    %477 = tpu.matmul %476, %311, %cst_158 {dimension_numbers = #tpu.dot_dimension_numbers<[1], [0], [0], [1], [0, 0, 1, 1], [], []>} : vector<8x64xf32>, vector<64x32xf32>, vector<8x32xf32> -> vector<8x32xf32>
    %478 = math.tanh %477 : vector<8x32xf32>
    %c0_159 = arith.constant 0 : index
    %c96 = arith.constant 96 : index
    %479 = vector.load %arg11[%c0_159, %c96] : memref<8x256xf32, #tpu.memory_space<vmem>>, vector<8x32xf32>
    tpu.vector_store %arg11[%c0_159, %c96], %478 {strides = array<i32>} : memref<8x256xf32, #tpu.memory_space<vmem>>, vector<8x32xf32>,
    %c0_160 = arith.constant 0 : index
    %c24 = arith.constant 24 : index
    %480 = vector.load %arg12[%c0_160, %c24] : memref<8x64xf32, #tpu.memory_space<vmem>>, vector<8x8xf32>
    tpu.vector_store %arg12[%c0_160, %c24], %471 {strides = array<i32>} : memref<8x64xf32, #tpu.memory_space<vmem>>, vector<8x8xf32>,
    %481 = tpu.concatenate %478, %457 in 1 : vector<8x32xf32>, vector<8x32xf32> -> vector<8x64xf32>
    %482 = vector.extract_strided_slice %309 {offsets = [32, 0], sizes = [8, 128], strides = [1, 1]} : vector<64x128xf32> to vector<8x128xf32>
    %cst_161 = arith.constant dense<0.000000e+00> : vector<8x128xf32>
    %483 = tpu.matmul %481, %310, %cst_161 {dimension_numbers = #tpu.dot_dimension_numbers<[1], [0], [0], [1], [0, 0, 1, 1], [], []>} : vector<8x64xf32>, vector<64x128xf32>, vector<8x128xf32> -> vector<8x128xf32>
    %484 = arith.addf %482, %483 : vector<8x128xf32>
    %485 = arith.negf %484 : vector<8x128xf32>
    %486 = math.exp %485 : vector<8x128xf32>
    %cst_162 = arith.constant 1.000000e+00 : f32
    %487 = vector.broadcast %cst_162 : f32 to vector<8x128xf32>
    %488 = arith.addf %487, %486 : vector<8x128xf32>
    %489 = arith.divf %487, %488 : vector<8x128xf32>
    %490 = vector.extract_strided_slice %489 {offsets = [0, 0], sizes = [8, 32], strides = [1, 1]} : vector<8x128xf32> to vector<8x32xf32>
    %491 = vector.extract_strided_slice %489 {offsets = [0, 32], sizes = [8, 32], strides = [1, 1]} : vector<8x128xf32> to vector<8x32xf32>
    %492 = vector.extract_strided_slice %489 {offsets = [0, 96], sizes = [8, 32], strides = [1, 1]} : vector<8x128xf32> to vector<8x32xf32>
    %493 = vector.extract_strided_slice %484 {offsets = [0, 64], sizes = [8, 32], strides = [1, 1]} : vector<8x128xf32> to vector<8x32xf32>
    %494 = math.tanh %493 : vector<8x32xf32>
    %495 = arith.mulf %491, %455 : vector<8x32xf32>
    %496 = arith.mulf %490, %494 : vector<8x32xf32>
    %497 = arith.addf %495, %496 : vector<8x32xf32>
    %498 = math.tanh %497 : vector<8x32xf32>
    %499 = arith.mulf %492, %498 : vector<8x32xf32>
    %500 = vector.shape_cast %499 : vector<8x32xf32> to vector<8x1x32xf32>
    %501 = vector.broadcast %500 : vector<8x1x32xf32> to vector<8x8x32xf32>
    %502 = arith.mulf %501, %302 : vector<8x8x32xf32>
    %cst_163 = arith.constant dense<0.000000e+00> : vector<8x8xf32>
    %503 = vector.multi_reduction <add>, %502, %cst_163 [2] : vector<8x8x32xf32> to vector<8x8xf32>
    %504 = arith.addf %503, %303 : vector<8x8xf32>
    %cst_164 = arith.constant dense<0xFF800000> : vector<8xf32>
    %505 = vector.multi_reduction <maximumf>, %504, %cst_164 [1] : vector<8x8xf32> to vector<8xf32>
    %506 = vector.shape_cast %505 : vector<8xf32> to vector<8x1xf32>
    %507 = vector.broadcast %506 : vector<8x1xf32> to vector<8x8xf32>
    %508 = arith.subf %504, %507 : vector<8x8xf32>
    %509 = math.exp %508 : vector<8x8xf32>
    %cst_165 = arith.constant dense<0.000000e+00> : vector<8xf32>
    %510 = vector.multi_reduction <add>, %509, %cst_165 [1] : vector<8x8xf32> to vector<8xf32>
    %511 = vector.shape_cast %510 : vector<8xf32> to vector<8x1xf32>
    %512 = vector.broadcast %511 : vector<8x1xf32> to vector<8x8xf32>
    %513 = arith.divf %509, %512 : vector<8x8xf32>
    %514 = vector.shape_cast %513 : vector<8x8xf32> to vector<8x8x1xf32>
    %515 = vector.broadcast %514 : vector<8x8x1xf32> to vector<8x8x32xf32>
    %516 = arith.mulf %515, %252 : vector<8x8x32xf32>
    %cst_166 = arith.constant dense<0.000000e+00> : vector<8x32xf32>
    %517 = vector.multi_reduction <add>, %516, %cst_166 [1] : vector<8x8x32xf32> to vector<8x32xf32>
    %518 = tpu.concatenate %517, %499 in 1 : vector<8x32xf32>, vector<8x32xf32> -> vector<8x64xf32>
    %cst_167 = arith.constant dense<0.000000e+00> : vector<8x32xf32>
    %519 = tpu.matmul %518, %311, %cst_167 {dimension_numbers = #tpu.dot_dimension_numbers<[1], [0], [0], [1], [0, 0, 1, 1], [], []>} : vector<8x64xf32>, vector<64x32xf32>, vector<8x32xf32> -> vector<8x32xf32>
    %520 = math.tanh %519 : vector<8x32xf32>
    %c0_168 = arith.constant 0 : index
    %c128 = arith.constant 128 : index
    %521 = vector.load %arg11[%c0_168, %c128] : memref<8x256xf32, #tpu.memory_space<vmem>>, vector<8x32xf32>
    tpu.vector_store %arg11[%c0_168, %c128], %520 {strides = array<i32>} : memref<8x256xf32, #tpu.memory_space<vmem>>, vector<8x32xf32>,
    %c0_169 = arith.constant 0 : index
    %c32_170 = arith.constant 32 : index
    %522 = vector.load %arg12[%c0_169, %c32_170] : memref<8x64xf32, #tpu.memory_space<vmem>>, vector<8x8xf32>
    tpu.vector_store %arg12[%c0_169, %c32_170], %513 {strides = array<i32>} : memref<8x64xf32, #tpu.memory_space<vmem>>, vector<8x8xf32>,
    %523 = tpu.concatenate %520, %499 in 1 : vector<8x32xf32>, vector<8x32xf32> -> vector<8x64xf32>
    %524 = vector.extract_strided_slice %309 {offsets = [40, 0], sizes = [8, 128], strides = [1, 1]} : vector<64x128xf32> to vector<8x128xf32>
    %cst_171 = arith.constant dense<0.000000e+00> : vector<8x128xf32>
    %525 = tpu.matmul %523, %310, %cst_171 {dimension_numbers = #tpu.dot_dimension_numbers<[1], [0], [0], [1], [0, 0, 1, 1], [], []>} : vector<8x64xf32>, vector<64x128xf32>, vector<8x128xf32> -> vector<8x128xf32>
    %526 = arith.addf %524, %525 : vector<8x128xf32>
    %527 = arith.negf %526 : vector<8x128xf32>
    %528 = math.exp %527 : vector<8x128xf32>
    %cst_172 = arith.constant 1.000000e+00 : f32
    %529 = vector.broadcast %cst_172 : f32 to vector<8x128xf32>
    %530 = arith.addf %529, %528 : vector<8x128xf32>
    %531 = arith.divf %529, %530 : vector<8x128xf32>
    %532 = vector.extract_strided_slice %531 {offsets = [0, 0], sizes = [8, 32], strides = [1, 1]} : vector<8x128xf32> to vector<8x32xf32>
    %533 = vector.extract_strided_slice %531 {offsets = [0, 32], sizes = [8, 32], strides = [1, 1]} : vector<8x128xf32> to vector<8x32xf32>
    %534 = vector.extract_strided_slice %531 {offsets = [0, 96], sizes = [8, 32], strides = [1, 1]} : vector<8x128xf32> to vector<8x32xf32>
    %535 = vector.extract_strided_slice %526 {offsets = [0, 64], sizes = [8, 32], strides = [1, 1]} : vector<8x128xf32> to vector<8x32xf32>
    %536 = math.tanh %535 : vector<8x32xf32>
    %537 = arith.mulf %533, %497 : vector<8x32xf32>
    %538 = arith.mulf %532, %536 : vector<8x32xf32>
    %539 = arith.addf %537, %538 : vector<8x32xf32>
    %540 = math.tanh %539 : vector<8x32xf32>
    %541 = arith.mulf %534, %540 : vector<8x32xf32>
    %542 = vector.shape_cast %541 : vector<8x32xf32> to vector<8x1x32xf32>
    %543 = vector.broadcast %542 : vector<8x1x32xf32> to vector<8x8x32xf32>
    %544 = arith.mulf %543, %302 : vector<8x8x32xf32>
    %cst_173 = arith.constant dense<0.000000e+00> : vector<8x8xf32>
    %545 = vector.multi_reduction <add>, %544, %cst_173 [2] : vector<8x8x32xf32> to vector<8x8xf32>
    %546 = arith.addf %545, %303 : vector<8x8xf32>
    %cst_174 = arith.constant dense<0xFF800000> : vector<8xf32>
    %547 = vector.multi_reduction <maximumf>, %546, %cst_174 [1] : vector<8x8xf32> to vector<8xf32>
    %548 = vector.shape_cast %547 : vector<8xf32> to vector<8x1xf32>
    %549 = vector.broadcast %548 : vector<8x1xf32> to vector<8x8xf32>
    %550 = arith.subf %546, %549 : vector<8x8xf32>
    %551 = math.exp %550 : vector<8x8xf32>
    %cst_175 = arith.constant dense<0.000000e+00> : vector<8xf32>
    %552 = vector.multi_reduction <add>, %551, %cst_175 [1] : vector<8x8xf32> to vector<8xf32>
    %553 = vector.shape_cast %552 : vector<8xf32> to vector<8x1xf32>
    %554 = vector.broadcast %553 : vector<8x1xf32> to vector<8x8xf32>
    %555 = arith.divf %551, %554 : vector<8x8xf32>
    %556 = vector.shape_cast %555 : vector<8x8xf32> to vector<8x8x1xf32>
    %557 = vector.broadcast %556 : vector<8x8x1xf32> to vector<8x8x32xf32>
    %558 = arith.mulf %557, %252 : vector<8x8x32xf32>
    %cst_176 = arith.constant dense<0.000000e+00> : vector<8x32xf32>
    %559 = vector.multi_reduction <add>, %558, %cst_176 [1] : vector<8x8x32xf32> to vector<8x32xf32>
    %560 = tpu.concatenate %559, %541 in 1 : vector<8x32xf32>, vector<8x32xf32> -> vector<8x64xf32>
    %cst_177 = arith.constant dense<0.000000e+00> : vector<8x32xf32>
    %561 = tpu.matmul %560, %311, %cst_177 {dimension_numbers = #tpu.dot_dimension_numbers<[1], [0], [0], [1], [0, 0, 1, 1], [], []>} : vector<8x64xf32>, vector<64x32xf32>, vector<8x32xf32> -> vector<8x32xf32>
    %562 = math.tanh %561 : vector<8x32xf32>
    %c0_178 = arith.constant 0 : index
    %c160 = arith.constant 160 : index
    %563 = vector.load %arg11[%c0_178, %c160] : memref<8x256xf32, #tpu.memory_space<vmem>>, vector<8x32xf32>
    tpu.vector_store %arg11[%c0_178, %c160], %562 {strides = array<i32>} : memref<8x256xf32, #tpu.memory_space<vmem>>, vector<8x32xf32>,
    %c0_179 = arith.constant 0 : index
    %c40 = arith.constant 40 : index
    %564 = vector.load %arg12[%c0_179, %c40] : memref<8x64xf32, #tpu.memory_space<vmem>>, vector<8x8xf32>
    tpu.vector_store %arg12[%c0_179, %c40], %555 {strides = array<i32>} : memref<8x64xf32, #tpu.memory_space<vmem>>, vector<8x8xf32>,
    %565 = tpu.concatenate %562, %541 in 1 : vector<8x32xf32>, vector<8x32xf32> -> vector<8x64xf32>
    %566 = vector.extract_strided_slice %309 {offsets = [48, 0], sizes = [8, 128], strides = [1, 1]} : vector<64x128xf32> to vector<8x128xf32>
    %cst_180 = arith.constant dense<0.000000e+00> : vector<8x128xf32>
    %567 = tpu.matmul %565, %310, %cst_180 {dimension_numbers = #tpu.dot_dimension_numbers<[1], [0], [0], [1], [0, 0, 1, 1], [], []>} : vector<8x64xf32>, vector<64x128xf32>, vector<8x128xf32> -> vector<8x128xf32>
    %568 = arith.addf %566, %567 : vector<8x128xf32>
    %569 = arith.negf %568 : vector<8x128xf32>
    %570 = math.exp %569 : vector<8x128xf32>
    %cst_181 = arith.constant 1.000000e+00 : f32
    %571 = vector.broadcast %cst_181 : f32 to vector<8x128xf32>
    %572 = arith.addf %571, %570 : vector<8x128xf32>
    %573 = arith.divf %571, %572 : vector<8x128xf32>
    %574 = vector.extract_strided_slice %573 {offsets = [0, 0], sizes = [8, 32], strides = [1, 1]} : vector<8x128xf32> to vector<8x32xf32>
    %575 = vector.extract_strided_slice %573 {offsets = [0, 32], sizes = [8, 32], strides = [1, 1]} : vector<8x128xf32> to vector<8x32xf32>
    %576 = vector.extract_strided_slice %573 {offsets = [0, 96], sizes = [8, 32], strides = [1, 1]} : vector<8x128xf32> to vector<8x32xf32>
    %577 = vector.extract_strided_slice %568 {offsets = [0, 64], sizes = [8, 32], strides = [1, 1]} : vector<8x128xf32> to vector<8x32xf32>
    %578 = math.tanh %577 : vector<8x32xf32>
    %579 = arith.mulf %575, %539 : vector<8x32xf32>
    %580 = arith.mulf %574, %578 : vector<8x32xf32>
    %581 = arith.addf %579, %580 : vector<8x32xf32>
    %582 = math.tanh %581 : vector<8x32xf32>
    %583 = arith.mulf %576, %582 : vector<8x32xf32>
    %584 = vector.shape_cast %583 : vector<8x32xf32> to vector<8x1x32xf32>
    %585 = vector.broadcast %584 : vector<8x1x32xf32> to vector<8x8x32xf32>
    %586 = arith.mulf %585, %302 : vector<8x8x32xf32>
    %cst_182 = arith.constant dense<0.000000e+00> : vector<8x8xf32>
    %587 = vector.multi_reduction <add>, %586, %cst_182 [2] : vector<8x8x32xf32> to vector<8x8xf32>
    %588 = arith.addf %587, %303 : vector<8x8xf32>
    %cst_183 = arith.constant dense<0xFF800000> : vector<8xf32>
    %589 = vector.multi_reduction <maximumf>, %588, %cst_183 [1] : vector<8x8xf32> to vector<8xf32>
    %590 = vector.shape_cast %589 : vector<8xf32> to vector<8x1xf32>
    %591 = vector.broadcast %590 : vector<8x1xf32> to vector<8x8xf32>
    %592 = arith.subf %588, %591 : vector<8x8xf32>
    %593 = math.exp %592 : vector<8x8xf32>
    %cst_184 = arith.constant dense<0.000000e+00> : vector<8xf32>
    %594 = vector.multi_reduction <add>, %593, %cst_184 [1] : vector<8x8xf32> to vector<8xf32>
    %595 = vector.shape_cast %594 : vector<8xf32> to vector<8x1xf32>
    %596 = vector.broadcast %595 : vector<8x1xf32> to vector<8x8xf32>
    %597 = arith.divf %593, %596 : vector<8x8xf32>
    %598 = vector.shape_cast %597 : vector<8x8xf32> to vector<8x8x1xf32>
    %599 = vector.broadcast %598 : vector<8x8x1xf32> to vector<8x8x32xf32>
    %600 = arith.mulf %599, %252 : vector<8x8x32xf32>
    %cst_185 = arith.constant dense<0.000000e+00> : vector<8x32xf32>
    %601 = vector.multi_reduction <add>, %600, %cst_185 [1] : vector<8x8x32xf32> to vector<8x32xf32>
    %602 = tpu.concatenate %601, %583 in 1 : vector<8x32xf32>, vector<8x32xf32> -> vector<8x64xf32>
    %cst_186 = arith.constant dense<0.000000e+00> : vector<8x32xf32>
    %603 = tpu.matmul %602, %311, %cst_186 {dimension_numbers = #tpu.dot_dimension_numbers<[1], [0], [0], [1], [0, 0, 1, 1], [], []>} : vector<8x64xf32>, vector<64x32xf32>, vector<8x32xf32> -> vector<8x32xf32>
    %604 = math.tanh %603 : vector<8x32xf32>
    %c0_187 = arith.constant 0 : index
    %c192 = arith.constant 192 : index
    %605 = vector.load %arg11[%c0_187, %c192] : memref<8x256xf32, #tpu.memory_space<vmem>>, vector<8x32xf32>
    tpu.vector_store %arg11[%c0_187, %c192], %604 {strides = array<i32>} : memref<8x256xf32, #tpu.memory_space<vmem>>, vector<8x32xf32>,
    %c0_188 = arith.constant 0 : index
    %c48 = arith.constant 48 : index
    %606 = vector.load %arg12[%c0_188, %c48] : memref<8x64xf32, #tpu.memory_space<vmem>>, vector<8x8xf32>
    tpu.vector_store %arg12[%c0_188, %c48], %597 {strides = array<i32>} : memref<8x64xf32, #tpu.memory_space<vmem>>, vector<8x8xf32>,
    %607 = tpu.concatenate %604, %583 in 1 : vector<8x32xf32>, vector<8x32xf32> -> vector<8x64xf32>
    %608 = vector.extract_strided_slice %309 {offsets = [56, 0], sizes = [8, 128], strides = [1, 1]} : vector<64x128xf32> to vector<8x128xf32>
    %cst_189 = arith.constant dense<0.000000e+00> : vector<8x128xf32>
    %609 = tpu.matmul %607, %310, %cst_189 {dimension_numbers = #tpu.dot_dimension_numbers<[1], [0], [0], [1], [0, 0, 1, 1], [], []>} : vector<8x64xf32>, vector<64x128xf32>, vector<8x128xf32> -> vector<8x128xf32>
    %610 = arith.addf %608, %609 : vector<8x128xf32>
    %611 = arith.negf %610 : vector<8x128xf32>
    %612 = math.exp %611 : vector<8x128xf32>
    %cst_190 = arith.constant 1.000000e+00 : f32
    %613 = vector.broadcast %cst_190 : f32 to vector<8x128xf32>
    %614 = arith.addf %613, %612 : vector<8x128xf32>
    %615 = arith.divf %613, %614 : vector<8x128xf32>
    %616 = vector.extract_strided_slice %615 {offsets = [0, 0], sizes = [8, 32], strides = [1, 1]} : vector<8x128xf32> to vector<8x32xf32>
    %617 = vector.extract_strided_slice %615 {offsets = [0, 32], sizes = [8, 32], strides = [1, 1]} : vector<8x128xf32> to vector<8x32xf32>
    %618 = vector.extract_strided_slice %615 {offsets = [0, 96], sizes = [8, 32], strides = [1, 1]} : vector<8x128xf32> to vector<8x32xf32>
    %619 = vector.extract_strided_slice %610 {offsets = [0, 64], sizes = [8, 32], strides = [1, 1]} : vector<8x128xf32> to vector<8x32xf32>
    %620 = math.tanh %619 : vector<8x32xf32>
    %621 = arith.mulf %617, %581 : vector<8x32xf32>
    %622 = arith.mulf %616, %620 : vector<8x32xf32>
    %623 = arith.addf %621, %622 : vector<8x32xf32>
    %624 = math.tanh %623 : vector<8x32xf32>
    %625 = arith.mulf %618, %624 : vector<8x32xf32>
    %626 = vector.shape_cast %625 : vector<8x32xf32> to vector<8x1x32xf32>
    %627 = vector.broadcast %626 : vector<8x1x32xf32> to vector<8x8x32xf32>
    %628 = arith.mulf %627, %302 : vector<8x8x32xf32>
    %cst_191 = arith.constant dense<0.000000e+00> : vector<8x8xf32>
    %629 = vector.multi_reduction <add>, %628, %cst_191 [2] : vector<8x8x32xf32> to vector<8x8xf32>
    %630 = arith.addf %629, %303 : vector<8x8xf32>
    %cst_192 = arith.constant dense<0xFF800000> : vector<8xf32>
    %631 = vector.multi_reduction <maximumf>, %630, %cst_192 [1] : vector<8x8xf32> to vector<8xf32>
    %632 = vector.shape_cast %631 : vector<8xf32> to vector<8x1xf32>
    %633 = vector.broadcast %632 : vector<8x1xf32> to vector<8x8xf32>
    %634 = arith.subf %630, %633 : vector<8x8xf32>
    %635 = math.exp %634 : vector<8x8xf32>
    %cst_193 = arith.constant dense<0.000000e+00> : vector<8xf32>
    %636 = vector.multi_reduction <add>, %635, %cst_193 [1] : vector<8x8xf32> to vector<8xf32>
    %637 = vector.shape_cast %636 : vector<8xf32> to vector<8x1xf32>
    %638 = vector.broadcast %637 : vector<8x1xf32> to vector<8x8xf32>
    %639 = arith.divf %635, %638 : vector<8x8xf32>
    %640 = vector.shape_cast %639 : vector<8x8xf32> to vector<8x8x1xf32>
    %641 = vector.broadcast %640 : vector<8x8x1xf32> to vector<8x8x32xf32>
    %642 = arith.mulf %641, %252 : vector<8x8x32xf32>
    %cst_194 = arith.constant dense<0.000000e+00> : vector<8x32xf32>
    %643 = vector.multi_reduction <add>, %642, %cst_194 [1] : vector<8x8x32xf32> to vector<8x32xf32>
    %644 = tpu.concatenate %643, %625 in 1 : vector<8x32xf32>, vector<8x32xf32> -> vector<8x64xf32>
    %cst_195 = arith.constant dense<0.000000e+00> : vector<8x32xf32>
    %645 = tpu.matmul %644, %311, %cst_195 {dimension_numbers = #tpu.dot_dimension_numbers<[1], [0], [0], [1], [0, 0, 1, 1], [], []>} : vector<8x64xf32>, vector<64x32xf32>, vector<8x32xf32> -> vector<8x32xf32>
    %646 = math.tanh %645 : vector<8x32xf32>
    %c0_196 = arith.constant 0 : index
    %c224 = arith.constant 224 : index
    %647 = vector.load %arg11[%c0_196, %c224] : memref<8x256xf32, #tpu.memory_space<vmem>>, vector<8x32xf32>
    tpu.vector_store %arg11[%c0_196, %c224], %646 {strides = array<i32>} : memref<8x256xf32, #tpu.memory_space<vmem>>, vector<8x32xf32>,
    %c0_197 = arith.constant 0 : index
    %c56 = arith.constant 56 : index
    %648 = vector.load %arg12[%c0_197, %c56] : memref<8x64xf32, #tpu.memory_space<vmem>>, vector<8x8xf32>
    tpu.vector_store %arg12[%c0_197, %c56], %639 {strides = array<i32>} : memref<8x64xf32, #tpu.memory_space<vmem>>, vector<8x8xf32>,
    return
  }
}

</mosaic_0001>

<llo_original>
// kernel: dqn_forward.1
$region0: #{dqn_forward.1}
  #allocation0 [shape = 'u32[]', space=smem, size = 0x4, offset = 0x4, fixed_abs, tag = 'smem constant byte address 0x4 - core index']
  #allocation1 [shape = 'u32[72,128]{1,0:T(1,128)}', space=vmem, size = 0x9000, scoped, tag = 'internal scratch']
  #allocation2 [shape = 'f32[8,8,32]{2,1,0:T(8,128)}', space=vmem, size = 0x8000, scoped, tag = 'scratch operand']
  #allocation3 [shape = 'f32[8,8,32]{2,1,0:T(8,128)}', space=vmem, size = 0x8000, scoped, tag = 'scratch operand']
  %s0 = inlined_call_operand.vmem [shape: f32[64,32], index: 0, kind: input, shape index: {}]
  %s1 = inlined_call_operand.vmem [shape: f32[64,32], index: 1, kind: input, shape index: {}]
  %s2 = inlined_call_operand.vmem [shape: f32[8,8], index: 2, kind: input, shape index: {}]
  %s3 = inlined_call_operand.vmem [shape: f32[32,128], index: 3, kind: input, shape index: {}]
  %s4 = inlined_call_operand.vmem [shape: f32[32,128], index: 4, kind: input, shape index: {}]
  %s5 = inlined_call_operand.vmem [shape: f32[1,128], index: 5, kind: input, shape index: {}]
  %s6 = inlined_call_operand.vmem [shape: f32[32,128], index: 6, kind: input, shape index: {}]
  %s7 = inlined_call_operand.vmem [shape: f32[64,128], index: 7, kind: input, shape index: {}]
  %s8 = inlined_call_operand.vmem [shape: f32[1,128], index: 8, kind: input, shape index: {}]
  %s9 = inlined_call_operand.vmem [shape: f32[32,32], index: 9, kind: input, shape index: {}]
  %s10 = inlined_call_operand.vmem [shape: f32[64,32], index: 10, kind: input, shape index: {}]
  %s11 = inlined_call_operand.vmem [shape: f32[8,256], index: 11, kind: output, shape index: {0}]
  %s12 = inlined_call_operand.vmem [shape: f32[8,64], index: 12, kind: output, shape index: {1}]
  %13 = xla_tuple %s11, %s12
  %s14 = sld [smem:[#allocation0]]
  $region62: #{dqn_forward.1} parent=0
    _
  %s16 = ssub.s32 1, %s14
  %s17 = scalar_select 0, %s16, %s14
  // Predicated region
  $region2: #{dqn_forward.1} parent=0 // pred_check
    _
  $region3: #{dqn_forward.1} parent=0 // pred_check_branch
    %19 = sbr.rel (0) target = $region5
  $region4: #{dqn_forward.1} parent=0 // pred_region
    _
  $region5: #{dqn_forward.1} parent=0 // pred_fallthru
    _
  // Predicated region
  $region6: #{dqn_forward.1} parent=0 // pred_check
    _
  $region7: #{dqn_forward.1} parent=0 // pred_check_branch
    %21 = sbr.rel (0) target = $region9
  $region8: #{dqn_forward.1} parent=0 // pred_region
    _
  $region9: #{dqn_forward.1} parent=0 // pred_fallthru
    _
  // Predicated region
  $region10: #{dqn_forward.1} parent=0 // pred_check
    _
  $region11: #{dqn_forward.1} parent=0 // pred_check_branch
    %23 = sbr.rel (0) target = $region13
  $region12: #{dqn_forward.1} parent=0 // pred_region
    _
  $region13: #{dqn_forward.1} parent=0 // pred_fallthru
    _
  // Predicated region
  $region14: #{dqn_forward.1} parent=0 // pred_check
    _
  $region15: #{dqn_forward.1} parent=0 // pred_check_branch
    %25 = sbr.rel (0) target = $region17
  $region16: #{dqn_forward.1} parent=0 // pred_region
    _
  $region17: #{dqn_forward.1} parent=0 // pred_fallthru
    _
  // Predicated region
  $region18: #{dqn_forward.1} parent=0 // pred_check
    _
  $region19: #{dqn_forward.1} parent=0 // pred_check_branch
    %27 = sbr.rel (0) target = $region21
  $region20: #{dqn_forward.1} parent=0 // pred_region
    _
  $region21: #{dqn_forward.1} parent=0 // pred_fallthru
    _
  // Predicated region
  $region22: #{dqn_forward.1} parent=0 // pred_check
    _
  $region23: #{dqn_forward.1} parent=0 // pred_check_branch
    %29 = sbr.rel (0) target = $region25
  $region24: #{dqn_forward.1} parent=0 // pred_region
    _
  $region25: #{dqn_forward.1} parent=0 // pred_fallthru
    _
  // Predicated region
  $region26: #{dqn_forward.1} parent=0 // pred_check
    _
  $region27: #{dqn_forward.1} parent=0 // pred_check_branch
    %31 = sbr.rel (0) target = $region29
  $region28: #{dqn_forward.1} parent=0 // pred_region
    _
  $region29: #{dqn_forward.1} parent=0 // pred_fallthru
    _
  // Predicated region
  $region30: #{dqn_forward.1} parent=0 // pred_check
    _
  $region31: #{dqn_forward.1} parent=0 // pred_check_branch
    %33 = sbr.rel (0) target = $region33
  $region32: #{dqn_forward.1} parent=0 // pred_region
    _
  $region33: #{dqn_forward.1} parent=0 // pred_fallthru
    _
  // Predicated region
  $region34: #{dqn_forward.1} parent=0 // pred_check
    _
  $region35: #{dqn_forward.1} parent=0 // pred_check_branch
    %35 = sbr.rel (0) target = $region37
  $region36: #{dqn_forward.1} parent=0 // pred_region
    _
  $region37: #{dqn_forward.1} parent=0 // pred_fallthru
    _
  // Predicated region
  $region38: #{dqn_forward.1} parent=0 // pred_check
    _
  $region39: #{dqn_forward.1} parent=0 // pred_check_branch
    %37 = sbr.rel (0) target = $region41
  $region40: #{dqn_forward.1} parent=0 // pred_region
    _
  $region41: #{dqn_forward.1} parent=0 // pred_fallthru
    _
  // Predicated region
  $region42: #{dqn_forward.1} parent=0 // pred_check
    _
  $region43: #{dqn_forward.1} parent=0 // pred_check_branch
    %39 = sbr.rel (0) target = $region45
  $region44: #{dqn_forward.1} parent=0 // pred_region
    _
  $region45: #{dqn_forward.1} parent=0 // pred_fallthru
    _
  %v40 = vld [vmem:[%s0] sm:$0xff]
  %v41 = vld [vmem:[%s0 + $0x8] sm:$0xff]
  %v42 = vld [vmem:[%s0 + $0x10] sm:$0xff]
  %v43 = vld [vmem:[%s0 + $0x18] sm:$0xff]
  %v44 = vld [vmem:[%s0 + $0x20] sm:$0xff]
  %v45 = vld [vmem:[%s0 + $0x28] sm:$0xff]
  %v46 = vld [vmem:[%s0 + $0x30] sm:$0xff]
  %v47 = vld [vmem:[%s0 + $0x38] sm:$0xff]
  %v48 = vld [vmem:[%s3] sm:$0xff]
  %v49 = vld [vmem:[%s3 + $0x8] sm:$0xff]
  %v50 = vld [vmem:[%s3 + $0x10] sm:$0xff]
  %v51 = vld [vmem:[%s3 + $0x18] sm:$0xff]
  %v52 = vld [vmem:[%s5] sm:$0x1]
  %v54 = vperm.slane %v52, 0
  %vm56 = vcmask 261120
  %v58 = vsel %vm56, %v40, 0
  %v61 = vsel %vm56, %v41, 0
  %v64 = vsel %vm56, %v42, 0
  %v67 = vsel %vm56, %v43, 0
  %v70 = vsel %vm56, %v44, 0
  %v73 = vsel %vm56, %v45, 0
  %v76 = vsel %vm56, %v46, 0
  %v79 = vsel %vm56, %v47, 0
  %81 = vmatpush.msra.mxu0 0.0
  %82 = vmatpush.msra.mxu0 0.0
  %83 = vmatpush.msra.mxu0 0.0
  %84 = vmatpush.msra.mxu0 0.0
  %85 = vmatpush.msra.mxu0 0.0
  %86 = vmatpush.msra.mxu0 0.0
  %87 = vmatpush.msra.mxu0 0.0
  %88 = vmatpush.msra.mxu0 0.0
  %89 = vmatpush.msra.mxu0 0.0
  %90 = vmatpush.msra.mxu0 0.0
  %91 = vmatpush.msra.mxu0 0.0
  %92 = vmatpush.msra.mxu0 0.0
  %93 = vmatpush.msra.mxu0 %v51
  %94 = vmatpush.msra.mxu0 %v50
  %95 = vmatpush.msra.mxu0 %v49
  %96 = vmatpush.msra.mxu0 %v48
  %97 = vmatmul.f32.gmra.mxu0 %v58
  %v98 = vpop.f32.mrf.mxu0
  %v99 = vadd.f32 %v54, %v98
  %100 = vmatmul.f32.gmra.mxu0 %v61
  %v101 = vpop.f32.mrf.mxu0
  %v102 = vadd.f32 %v54, %v101
  %103 = vmatmul.f32.gmra.mxu0 %v64
  %v104 = vpop.f32.mrf.mxu0
  %v105 = vadd.f32 %v54, %v104
  %106 = vmatmul.f32.gmra.mxu0 %v67
  %v107 = vpop.f32.mrf.mxu0
  %v108 = vadd.f32 %v54, %v107
  %109 = vmatmul.f32.gmra.mxu0 %v70
  %v110 = vpop.f32.mrf.mxu0
  %v111 = vadd.f32 %v54, %v110
  %112 = vmatmul.f32.gmra.mxu0 %v73
  %v113 = vpop.f32.mrf.mxu0
  %v114 = vadd.f32 %v54, %v113
  %115 = vmatmul.f32.gmra.mxu0 %v76
  %v116 = vpop.f32.mrf.mxu0
  %v117 = vadd.f32 %v54, %v116
  %118 = vmatmul.f32.gmra.mxu0 %v79
  %v119 = vpop.f32.mrf.mxu0
  %v120 = vadd.f32 %v54, %v119
  %121 = vdwg.mxu0
  %v122 = vld [vmem:[%s4] sm:$0xff]
  %v123 = vld [vmem:[%s4 + $0x8] sm:$0xff]
  %v124 = vld [vmem:[%s4 + $0x10] sm:$0xff]
  %v125 = vld [vmem:[%s4 + $0x18] sm:$0xff]
  %v126 = vlaneseq
  %v127 = vand.u32 %v126, 127
  %vm128 = vcmp.lt.s32.totalorder %v127, 0
  %v129 = vsub.s32 0, %v127
  %v130 = vsel %vm128, %v129, %v127
  %v131 = vshrl.u32 %v130, 5
  %v132 = vand.u32 %v130, 31
  %v133 = vsub.s32 0, %v132
  %v134 = vsel %vm128, %v133, %v132
  %vm135 = vcmp.ne.s32.totalorder %v134, 0
  %vm136 = vcmp.lt.s32.totalorder %v134, 0
  %vm137 = vmand %vm136, %vm135
  %v138 = vadd.s32 %v134, 32
  %v139 = vsel %vm137, %v138, %v134
  %vm140 = vcmp.lt.s32.totalorder %v139, 16
  %v141 = vsel %vm140, %v99, %v120
  %v143 = vsel %vm56, 0.0, 0
  %145 = vmatpush.msra.mxu0 0.0
  %146 = vmatpush.msra.mxu0 0.0
  %147 = vmatpush.msra.mxu0 0.0
  %148 = vmatpush.msra.mxu0 0.0
  %149 = vmatpush.msra.mxu0 0.0
  %150 = vmatpush.msra.mxu0 0.0
  %151 = vmatpush.msra.mxu0 0.0
  %152 = vmatpush.msra.mxu0 0.0
  %153 = vmatpush.msra.mxu0 0.0
  %154 = vmatpush.msra.mxu0 0.0
  %155 = vmatpush.msra.mxu0 0.0
  %156 = vmatpush.msra.mxu0 0.0
  %157 = vmatpush.msra.mxu0 %v125
  %158 = vmatpush.msra.mxu0 %v124
  %159 = vmatpush.msra.mxu0 %v123
  %160 = vmatpush.msra.mxu0 %v122
  %161 = vmatmul.f32.gmra.mxu0 %v143
  %v162 = vpop.f32.mrf.mxu0
  %v163 = vadd.f32 0.0, %v162
  %164 = vdwg.mxu0
  %v165 = vadd.f32 %v141, %v163
  %v166 = vxor.u32 %v165, 2147483648
  %v167 = vmul.f32 %v166, 1.442695
  %v168 = vpow.pop %v167
  %v169 = vadd.f32 %v168, 1.0
  %v170 = vrcp.pop %v169
  %v171 = vmul.f32 %v169, %v170
  %v172 = vsub.f32 1.0, %v171
  %v173 = vmul.f32 %v170, %v172
  %v174 = vadd.f32 %v170, %v173
  %vm175 = vweird.f32 %v169
  %vm176 = vweird.f32 %v170
  %vm177 = vmor %vm175, %vm176
  %v178 = vsel %vm177, %v170, %v174
  %v179 = vand.u32 2147483647, %v169
  %vm180 = vcmp.eq.f32.partialorder %v179, 8.507059e+37
  %v181 = vand.u32 %v169, 2147483648
  %v182 = vor.u32 1.1754944e-38, %v181
  %v183 = vsel %vm180, %v182, %v178
  %v184 = vmul.f32 1.0, %v183
  %v185 = vtanh.pop %v165
  %v186 = vmul.f32 %v184, 0.0
  %188 = vrot.lane.b32.xlu0 %v185, 64
  %v189 = vpop.permute.xlu0 %188
  %v191 = vmul.f32 %v184, %v189
  %193 = vrot.lane.b32.xlu0 %v191, 32
  %v194 = vpop.permute.xlu0 %193
  %v196 = vadd.f32 %v186, %v194
  %v197 = vtanh.pop %v196
  %199 = vrot.lane.b32.xlu0 %v197, 64
  %v200 = vpop.permute.xlu0 %199
  %v202 = vmul.f32 %v184, %v200
  %v204 = vrot.slane %v202, 1
  %v205 = vrot.slane %v202, 2
  %v206 = vrot.slane %v202, 3
  %v207 = vrot.slane %v202, 4
  %v208 = vrot.slane %v202, 5
  %v209 = vrot.slane %v202, 6
  %v210 = vrot.slane %v202, 7
  %v211 = vperm.slane %v202, 0
  %v212 = vperm.slane %v204, 0
  %v213 = vperm.slane %v205, 0
  %v214 = vperm.slane %v206, 0
  %v215 = vperm.slane %v207, 0
  %v216 = vperm.slane %v208, 0
  %v217 = vperm.slane %v209, 0
  %v218 = vperm.slane %v210, 0
  %219 = vrot.lane.b32.xlu0 %v211, 32
  %v220 = vpop.permute.xlu0 %219
  %221 = vrot.lane.b32.xlu0 %v212, 32
  %v222 = vpop.permute.xlu0 %221
  %223 = vrot.lane.b32.xlu0 %v213, 32
  %v224 = vpop.permute.xlu0 %223
  %225 = vrot.lane.b32.xlu0 %v214, 32
  %v226 = vpop.permute.xlu0 %225
  %227 = vrot.lane.b32.xlu0 %v215, 32
  %v228 = vpop.permute.xlu0 %227
  %229 = vrot.lane.b32.xlu0 %v216, 32
  %v230 = vpop.permute.xlu0 %229
  %231 = vrot.lane.b32.xlu0 %v217, 32
  %v232 = vpop.permute.xlu0 %231
  %233 = vrot.lane.b32.xlu0 %v218, 32
  %v234 = vpop.permute.xlu0 %233
  %vm243 = vcmask 122880
  %244 = vst.msk [vmem:[#allocation2] sm:$0x1] %vm243, %v220
  %245 = vst.msk [vmem:[#allocation2 + $0x8] sm:$0x1] %vm243, %v222
  %246 = vst.msk [vmem:[#allocation2 + $0x10] sm:$0x1] %vm243, %v224
  %247 = vst.msk [vmem:[#allocation2 + $0x18] sm:$0x1] %vm243, %v226
  %248 = vst.msk [vmem:[#allocation2 + $0x20] sm:$0x1] %vm243, %v228
  %249 = vst.msk [vmem:[#allocation2 + $0x28] sm:$0x1] %vm243, %v230
  %250 = vst.msk [vmem:[#allocation2 + $0x30] sm:$0x1] %vm243, %v232
  %251 = vst.msk [vmem:[#allocation2 + $0x38] sm:$0x1] %vm243, %v234
  %vm252 = vcmask 254080
  %253 = vst.msk [vmem:[#allocation2 + $0x7] sm:$0x1] %vm252, %v220
  %254 = vst.msk [vmem:[#allocation2 + $0xf] sm:$0x1] %vm252, %v222
  %255 = vst.msk [vmem:[#allocation2 + $0x17] sm:$0x1] %vm252, %v224
  %256 = vst.msk [vmem:[#allocation2 + $0x1f] sm:$0x1] %vm252, %v226
  %257 = vst.msk [vmem:[#allocation2 + $0x27] sm:$0x1] %vm252, %v228
  %258 = vst.msk [vmem:[#allocation2 + $0x2f] sm:$0x1] %vm252, %v230
  %259 = vst.msk [vmem:[#allocation2 + $0x37] sm:$0x1] %vm252, %v232
  %260 = vst.msk [vmem:[#allocation2 + $0x3f] sm:$0x1] %vm252, %v234
  %v261 = vsel %vm140, %v102, %v117
  %262 = vrot.lane.b32.xlu0 %v202, 32
  %v263 = vpop.permute.xlu0 %262
  %v264 = vsel %vm56, %v263, 0
  %266 = vmatpush.msra.mxu0 0.0
  %267 = vmatpush.msra.mxu0 0.0
  %268 = vmatpush.msra.mxu0 0.0
  %269 = vmatpush.msra.mxu0 0.0
  %270 = vmatpush.msra.mxu0 0.0
  %271 = vmatpush.msra.mxu0 0.0
  %272 = vmatpush.msra.mxu0 0.0
  %273 = vmatpush.msra.mxu0 0.0
  %274 = vmatpush.msra.mxu0 0.0
  %275 = vmatpush.msra.mxu0 0.0
  %276 = vmatpush.msra.mxu0 0.0
  %277 = vmatpush.msra.mxu0 0.0
  %278 = vmatpush.msra.mxu0 %v125
  %279 = vmatpush.msra.mxu0 %v124
  %280 = vmatpush.msra.mxu0 %v123
  %281 = vmatpush.msra.mxu0 %v122
  %282 = vmatmul.f32.gmra.mxu0 %v264
  %v283 = vpop.f32.mrf.mxu0
  %v284 = vadd.f32 0.0, %v283
  %285 = vdwg.mxu0
  %v286 = vadd.f32 %v261, %v284
  %v287 = vxor.u32 %v286, 2147483648
  %v288 = vmul.f32 %v287, 1.442695
  %v289 = vpow.pop %v288
  %v290 = vadd.f32 %v289, 1.0
  %v291 = vrcp.pop %v290
  %v292 = vmul.f32 %v290, %v291
  %v293 = vsub.f32 1.0, %v292
  %v294 = vmul.f32 %v291, %v293
  %v295 = vadd.f32 %v291, %v294
  %vm296 = vweird.f32 %v290
  %vm297 = vweird.f32 %v291
  %vm298 = vmor %vm296, %vm297
  %v299 = vsel %vm298, %v291, %v295
  %v300 = vand.u32 2147483647, %v290
  %vm301 = vcmp.eq.f32.partialorder %v300, 8.507059e+37
  %v302 = vand.u32 %v290, 2147483648
  %v303 = vor.u32 1.1754944e-38, %v302
  %v304 = vsel %vm301, %v303, %v299
  %v305 = vmul.f32 1.0, %v304
  %v306 = vtanh.pop %v286
  %v307 = vmul.f32 %v305, %v196
  %309 = vrot.lane.b32.xlu0 %v306, 64
  %v310 = vpop.permute.xlu0 %309
  %v312 = vmul.f32 %v305, %v310
  %314 = vrot.lane.b32.xlu0 %v312, 32
  %v315 = vpop.permute.xlu0 %314
  %v317 = vadd.f32 %v307, %v315
  %v318 = vtanh.pop %v317
  %320 = vrot.lane.b32.xlu0 %v318, 64
  %v321 = vpop.permute.xlu0 %320
  %v323 = vmul.f32 %v305, %v321
  %v325 = vrot.slane %v323, 1
  %v326 = vrot.slane %v323, 2
  %v327 = vrot.slane %v323, 3
  %v328 = vrot.slane %v323, 4
  %v329 = vrot.slane %v323, 5
  %v330 = vrot.slane %v323, 6
  %v331 = vrot.slane %v323, 7
  %v332 = vperm.slane %v323, 0
  %v333 = vperm.slane %v325, 0
  %v334 = vperm.slane %v326, 0
  %v335 = vperm.slane %v327, 0
  %v336 = vperm.slane %v328, 0
  %v337 = vperm.slane %v329, 0
  %v338 = vperm.slane %v330, 0
  %v339 = vperm.slane %v331, 0
  %340 = vrot.lane.b32.xlu0 %v332, 32
  %v341 = vpop.permute.xlu0 %340
  %342 = vrot.lane.b32.xlu0 %v333, 32
  %v343 = vpop.permute.xlu0 %342
  %344 = vrot.lane.b32.xlu0 %v334, 32
  %v345 = vpop.permute.xlu0 %344
  %346 = vrot.lane.b32.xlu0 %v335, 32
  %v347 = vpop.permute.xlu0 %346
  %348 = vrot.lane.b32.xlu0 %v336, 32
  %v349 = vpop.permute.xlu0 %348
  %350 = vrot.lane.b32.xlu0 %v337, 32
  %v351 = vpop.permute.xlu0 %350
  %352 = vrot.lane.b32.xlu0 %v338, 32
  %v353 = vpop.permute.xlu0 %352
  %354 = vrot.lane.b32.xlu0 %v339, 32
  %v355 = vpop.permute.xlu0 %354
  %364 = vst.msk [vmem:[#allocation2 + $0x1] sm:$0x1] %vm243, %v341
  %365 = vst.msk [vmem:[#allocation2 + $0x9] sm:$0x1] %vm243, %v343
  %366 = vst.msk [vmem:[#allocation2 + $0x11] sm:$0x1] %vm243, %v345
  %367 = vst.msk [vmem:[#allocation2 + $0x19] sm:$0x1] %vm243, %v347
  %368 = vst.msk [vmem:[#allocation2 + $0x21] sm:$0x1] %vm243, %v349
  %369 = vst.msk [vmem:[#allocation2 + $0x29] sm:$0x1] %vm243, %v351
  %370 = vst.msk [vmem:[#allocation2 + $0x31] sm:$0x1] %vm243, %v353
  %371 = vst.msk [vmem:[#allocation2 + $0x39] sm:$0x1] %vm243, %v355
  %372 = vst.msk [vmem:[#allocation2 + $0x6] sm:$0x1] %vm252, %v341
  %373 = vst.msk [vmem:[#allocation2 + $0xe] sm:$0x1] %vm252, %v343
  %374 = vst.msk [vmem:[#allocation2 + $0x16] sm:$0x1] %vm252, %v345
  %375 = vst.msk [vmem:[#allocation2 + $0x1e] sm:$0x1] %vm252, %v347
  %376 = vst.msk [vmem:[#allocation2 + $0x26] sm:$0x1] %vm252, %v349
  %377 = vst.msk [vmem:[#allocation2 + $0x2e] sm:$0x1] %vm252, %v351
  %378 = vst.msk [vmem:[#allocation2 + $0x36] sm:$0x1] %vm252, %v353
  %379 = vst.msk [vmem:[#allocation2 + $0x3e] sm:$0x1] %vm252, %v355
  %v380 = vsel %vm140, %v105, %v114
  %381 = vrot.lane.b32.xlu0 %v323, 32
  %v382 = vpop.permute.xlu0 %381
  %v383 = vsel %vm56, %v382, 0
  %385 = vmatpush.msra.mxu0 0.0
  %386 = vmatpush.msra.mxu0 0.0
  %387 = vmatpush.msra.mxu0 0.0
  %388 = vmatpush.msra.mxu0 0.0
  %389 = vmatpush.msra.mxu0 0.0
  %390 = vmatpush.msra.mxu0 0.0
  %391 = vmatpush.msra.mxu0 0.0
  %392 = vmatpush.msra.mxu0 0.0
  %393 = vmatpush.msra.mxu0 0.0
  %394 = vmatpush.msra.mxu0 0.0
  %395 = vmatpush.msra.mxu0 0.0
  %396 = vmatpush.msra.mxu0 0.0
  %397 = vmatpush.msra.mxu0 %v125
  %398 = vmatpush.msra.mxu0 %v124
  %399 = vmatpush.msra.mxu0 %v123
  %400 = vmatpush.msra.mxu0 %v122
  %401 = vmatmul.f32.gmra.mxu0 %v383
  %v402 = vpop.f32.mrf.mxu0
  %v403 = vadd.f32 0.0, %v402
  %404 = vdwg.mxu0
  %v405 = vadd.f32 %v380, %v403
  %v406 = vxor.u32 %v405, 2147483648
  %v407 = vmul.f32 %v406, 1.442695
  %v408 = vpow.pop %v407
  %v409 = vadd.f32 %v408, 1.0
  %v410 = vrcp.pop %v409
  %v411 = vmul.f32 %v409, %v410
  %v412 = vsub.f32 1.0, %v411
  %v413 = vmul.f32 %v410, %v412
  %v414 = vadd.f32 %v410, %v413
  %vm415 = vweird.f32 %v409
  %vm416 = vweird.f32 %v410
  %vm417 = vmor %vm415, %vm416
  %v418 = vsel %vm417, %v410, %v414
  %v419 = vand.u32 2147483647, %v409
  %vm420 = vcmp.eq.f32.partialorder %v419, 8.507059e+37
  %v421 = vand.u32 %v409, 2147483648
  %v422 = vor.u32 1.1754944e-38, %v421
  %v423 = vsel %vm420, %v422, %v418
  %v424 = vmul.f32 1.0, %v423
  %v425 = vtanh.pop %v405
  %v426 = vmul.f32 %v424, %v317
  %428 = vrot.lane.b32.xlu0 %v425, 64
  %v429 = vpop.permute.xlu0 %428
  %v431 = vmul.f32 %v424, %v429
  %433 = vrot.lane.b32.xlu0 %v431, 32
  %v434 = vpop.permute.xlu0 %433
  %v436 = vadd.f32 %v426, %v434
  %v437 = vtanh.pop %v436
  %439 = vrot.lane.b32.xlu0 %v437, 64
  %v440 = vpop.permute.xlu0 %439
  %v442 = vmul.f32 %v424, %v440
  %v444 = vrot.slane %v442, 1
  %v445 = vrot.slane %v442, 2
  %v446 = vrot.slane %v442, 3
  %v447 = vrot.slane %v442, 4
  %v448 = vrot.slane %v442, 5
  %v449 = vrot.slane %v442, 6
  %v450 = vrot.slane %v442, 7
  %v451 = vperm.slane %v442, 0
  %v452 = vperm.slane %v444, 0
  %v453 = vperm.slane %v445, 0
  %v454 = vperm.slane %v446, 0
  %v455 = vperm.slane %v447, 0
  %v456 = vperm.slane %v448, 0
  %v457 = vperm.slane %v449, 0
  %v458 = vperm.slane %v450, 0
  %459 = vrot.lane.b32.xlu0 %v451, 32
  %v460 = vpop.permute.xlu0 %459
  %461 = vrot.lane.b32.xlu0 %v452, 32
  %v462 = vpop.permute.xlu0 %461
  %463 = vrot.lane.b32.xlu0 %v453, 32
  %v464 = vpop.permute.xlu0 %463
  %465 = vrot.lane.b32.xlu0 %v454, 32
  %v466 = vpop.permute.xlu0 %465
  %467 = vrot.lane.b32.xlu0 %v455, 32
  %v468 = vpop.permute.xlu0 %467
  %469 = vrot.lane.b32.xlu0 %v456, 32
  %v470 = vpop.permute.xlu0 %469
  %471 = vrot.lane.b32.xlu0 %v457, 32
  %v472 = vpop.permute.xlu0 %471
  %473 = vrot.lane.b32.xlu0 %v458, 32
  %v474 = vpop.permute.xlu0 %473
  %483 = vst.msk [vmem:[#allocation2 + $0x2] sm:$0x1] %vm243, %v460
  %484 = vst.msk [vmem:[#allocation2 + $0xa] sm:$0x1] %vm243, %v462
  %485 = vst.msk [vmem:[#allocation2 + $0x12] sm:$0x1] %vm243, %v464
  %486 = vst.msk [vmem:[#allocation2 + $0x1a] sm:$0x1] %vm243, %v466
  %487 = vst.msk [vmem:[#allocation2 + $0x22] sm:$0x1] %vm243, %v468
  %488 = vst.msk [vmem:[#allocation2 + $0x2a] sm:$0x1] %vm243, %v470
  %489 = vst.msk [vmem:[#allocation2 + $0x32] sm:$0x1] %vm243, %v472
  %490 = vst.msk [vmem:[#allocation2 + $0x3a] sm:$0x1] %vm243, %v474
  %491 = vst.msk [vmem:[#allocation2 + $0x5] sm:$0x1] %vm252, %v460
  %492 = vst.msk [vmem:[#allocation2 + $0xd] sm:$0x1] %vm252, %v462
  %493 = vst.msk [vmem:[#allocation2 + $0x15] sm:$0x1] %vm252, %v464
  %494 = vst.msk [vmem:[#allocation2 + $0x1d] sm:$0x1] %vm252, %v466
  %495 = vst.msk [vmem:[#allocation2 + $0x25] sm:$0x1] %vm252, %v468
  %496 = vst.msk [vmem:[#allocation2 + $0x2d] sm:$0x1] %vm252, %v470
  %497 = vst.msk [vmem:[#allocation2 + $0x35] sm:$0x1] %vm252, %v472
  %498 = vst.msk [vmem:[#allocation2 + $0x3d] sm:$0x1] %vm252, %v474
  %v499 = vsel %vm140, %v108, %v111
  %500 = vrot.lane.b32.xlu0 %v442, 32
  %v501 = vpop.permute.xlu0 %500
  %v502 = vsel %vm56, %v501, 0
  %504 = vmatpush.msra.mxu0 0.0
  %505 = vmatpush.msra.mxu0 0.0
  %506 = vmatpush.msra.mxu0 0.0
  %507 = vmatpush.msra.mxu0 0.0
  %508 = vmatpush.msra.mxu0 0.0
  %509 = vmatpush.msra.mxu0 0.0
  %510 = vmatpush.msra.mxu0 0.0
  %511 = vmatpush.msra.mxu0 0.0
  %512 = vmatpush.msra.mxu0 0.0
  %513 = vmatpush.msra.mxu0 0.0
  %514 = vmatpush.msra.mxu0 0.0
  %515 = vmatpush.msra.mxu0 0.0
  %516 = vmatpush.msra.mxu0 %v125
  %517 = vmatpush.msra.mxu0 %v124
  %518 = vmatpush.msra.mxu0 %v123
  %519 = vmatpush.msra.mxu0 %v122
  %520 = vmatmul.f32.gmra.mxu0 %v502
  %v521 = vpop.f32.mrf.mxu0
  %v522 = vadd.f32 0.0, %v521
  %523 = vdwg.mxu0
  %v524 = vadd.f32 %v499, %v522
  %v525 = vxor.u32 %v524, 2147483648
  %v526 = vmul.f32 %v525, 1.442695
  %v527 = vpow.pop %v526
  %v528 = vadd.f32 %v527, 1.0
  %v529 = vrcp.pop %v528
  %v530 = vmul.f32 %v528, %v529
  %v531 = vsub.f32 1.0, %v530
  %v532 = vmul.f32 %v529, %v531
  %v533 = vadd.f32 %v529, %v532
  %vm534 = vweird.f32 %v528
  %vm535 = vweird.f32 %v529
  %vm536 = vmor %vm534, %vm535
  %v537 = vsel %vm536, %v529, %v533
  %v538 = vand.u32 2147483647, %v528
  %vm539 = vcmp.eq.f32.partialorder %v538, 8.507059e+37
  %v540 = vand.u32 %v528, 2147483648
  %v541 = vor.u32 1.1754944e-38, %v540
  %v542 = vsel %vm539, %v541, %v537
  %v543 = vmul.f32 1.0, %v542
  %v544 = vtanh.pop %v524
  %v545 = vmul.f32 %v543, %v436
  %547 = vrot.lane.b32.xlu0 %v544, 64
  %v548 = vpop.permute.xlu0 %547
  %v550 = vmul.f32 %v543, %v548
  %552 = vrot.lane.b32.xlu0 %v550, 32
  %v553 = vpop.permute.xlu0 %552
  %v555 = vadd.f32 %v545, %v553
  %v556 = vtanh.pop %v555
  %558 = vrot.lane.b32.xlu0 %v556, 64
  %v559 = vpop.permute.xlu0 %558
  %v561 = vmul.f32 %v543, %v559
  %v563 = vrot.slane %v561, 1
  %v564 = vrot.slane %v561, 2
  %v565 = vrot.slane %v561, 3
  %v566 = vrot.slane %v561, 4
  %v567 = vrot.slane %v561, 5
  %v568 = vrot.slane %v561, 6
  %v569 = vrot.slane %v561, 7
  %v570 = vperm.slane %v561, 0
  %v571 = vperm.slane %v563, 0
  %v572 = vperm.slane %v564, 0
  %v573 = vperm.slane %v565, 0
  %v574 = vperm.slane %v566, 0
  %v575 = vperm.slane %v567, 0
  %v576 = vperm.slane %v568, 0
  %v577 = vperm.slane %v569, 0
  %578 = vrot.lane.b32.xlu0 %v570, 32
  %v579 = vpop.permute.xlu0 %578
  %580 = vrot.lane.b32.xlu0 %v571, 32
  %v581 = vpop.permute.xlu0 %580
  %582 = vrot.lane.b32.xlu0 %v572, 32
  %v583 = vpop.permute.xlu0 %582
  %584 = vrot.lane.b32.xlu0 %v573, 32
  %v585 = vpop.permute.xlu0 %584
  %586 = vrot.lane.b32.xlu0 %v574, 32
  %v587 = vpop.permute.xlu0 %586
  %588 = vrot.lane.b32.xlu0 %v575, 32
  %v589 = vpop.permute.xlu0 %588
  %590 = vrot.lane.b32.xlu0 %v576, 32
  %v591 = vpop.permute.xlu0 %590
  %592 = vrot.lane.b32.xlu0 %v577, 32
  %v593 = vpop.permute.xlu0 %592
  %602 = vst.msk [vmem:[#allocation2 + $0x3] sm:$0x1] %vm243, %v579
  %603 = vst.msk [vmem:[#allocation2 + $0xb] sm:$0x1] %vm243, %v581
  %604 = vst.msk [vmem:[#allocation2 + $0x13] sm:$0x1] %vm243, %v583
  %605 = vst.msk [vmem:[#allocation2 + $0x1b] sm:$0x1] %vm243, %v585
  %606 = vst.msk [vmem:[#allocation2 + $0x23] sm:$0x1] %vm243, %v587
  %607 = vst.msk [vmem:[#allocation2 + $0x2b] sm:$0x1] %vm243, %v589
  %608 = vst.msk [vmem:[#allocation2 + $0x33] sm:$0x1] %vm243, %v591
  %609 = vst.msk [vmem:[#allocation2 + $0x3b] sm:$0x1] %vm243, %v593
  %610 = vst.msk [vmem:[#allocation2 + $0x4] sm:$0x1] %vm252, %v579
  %611 = vst.msk [vmem:[#allocation2 + $0xc] sm:$0x1] %vm252, %v581
  %612 = vst.msk [vmem:[#allocation2 + $0x14] sm:$0x1] %vm252, %v583
  %613 = vst.msk [vmem:[#allocation2 + $0x1c] sm:$0x1] %vm252, %v585
  %614 = vst.msk [vmem:[#allocation2 + $0x24] sm:$0x1] %vm252, %v587
  %615 = vst.msk [vmem:[#allocation2 + $0x2c] sm:$0x1] %vm252, %v589
  %616 = vst.msk [vmem:[#allocation2 + $0x34] sm:$0x1] %vm252, %v591
  %617 = vst.msk [vmem:[#allocation2 + $0x3c] sm:$0x1] %vm252, %v593
  %v618 = vsel %vm140, %v111, %v108
  %619 = vrot.lane.b32.xlu0 %v561, 32
  %v620 = vpop.permute.xlu0 %619
  %v621 = vsel %vm56, %v620, 0
  %623 = vmatpush.msra.mxu0 0.0
  %624 = vmatpush.msra.mxu0 0.0
  %625 = vmatpush.msra.mxu0 0.0
  %626 = vmatpush.msra.mxu0 0.0
  %627 = vmatpush.msra.mxu0 0.0
  %628 = vmatpush.msra.mxu0 0.0
  %629 = vmatpush.msra.mxu0 0.0
  %630 = vmatpush.msra.mxu0 0.0
  %631 = vmatpush.msra.mxu0 0.0
  %632 = vmatpush.msra.mxu0 0.0
  %633 = vmatpush.msra.mxu0 0.0
  %634 = vmatpush.msra.mxu0 0.0
  %635 = vmatpush.msra.mxu0 %v125
  %636 = vmatpush.msra.mxu0 %v124
  %637 = vmatpush.msra.mxu0 %v123
  %638 = vmatpush.msra.mxu0 %v122
  %639 = vmatmul.f32.gmra.mxu0 %v621
  %v640 = vpop.f32.mrf.mxu0
  %v641 = vadd.f32 0.0, %v640
  %642 = vdwg.mxu0
  %v643 = vadd.f32 %v618, %v641
  %v644 = vxor.u32 %v643, 2147483648
  %v645 = vmul.f32 %v644, 1.442695
  %v646 = vpow.pop %v645
  %v647 = vadd.f32 %v646, 1.0
  %v648 = vrcp.pop %v647
  %v649 = vmul.f32 %v647, %v648
  %v650 = vsub.f32 1.0, %v649
  %v651 = vmul.f32 %v648, %v650
  %v652 = vadd.f32 %v648, %v651
  %vm653 = vweird.f32 %v647
  %vm654 = vweird.f32 %v648
  %vm655 = vmor %vm653, %vm654
  %v656 = vsel %vm655, %v648, %v652
  %v657 = vand.u32 2147483647, %v647
  %vm658 = vcmp.eq.f32.partialorder %v657, 8.507059e+37
  %v659 = vand.u32 %v647, 2147483648
  %v660 = vor.u32 1.1754944e-38, %v659
  %v661 = vsel %vm658, %v660, %v656
  %v662 = vmul.f32 1.0, %v661
  %v663 = vtanh.pop %v643
  %v664 = vmul.f32 %v662, %v555
  %666 = vrot.lane.b32.xlu0 %v663, 64
  %v667 = vpop.permute.xlu0 %666
  %v669 = vmul.f32 %v662, %v667
  %671 = vrot.lane.b32.xlu0 %v669, 32
  %v672 = vpop.permute.xlu0 %671
  %v674 = vadd.f32 %v664, %v672
  %v675 = vtanh.pop %v674
  %677 = vrot.lane.b32.xlu0 %v675, 64
  %v678 = vpop.permute.xlu0 %677
  %v680 = vmul.f32 %v662, %v678
  %v682 = vrot.slane %v680, 1
  %v683 = vrot.slane %v680, 2
  %v684 = vrot.slane %v680, 3
  %v685 = vrot.slane %v680, 4
  %v686 = vrot.slane %v680, 5
  %v687 = vrot.slane %v680, 6
  %v688 = vrot.slane %v680, 7
  %v689 = vperm.slane %v680, 0
  %v690 = vperm.slane %v682, 0
  %v691 = vperm.slane %v683, 0
  %v692 = vperm.slane %v684, 0
  %v693 = vperm.slane %v685, 0
  %v694 = vperm.slane %v686, 0
  %v695 = vperm.slane %v687, 0
  %v696 = vperm.slane %v688, 0
  %697 = vrot.lane.b32.xlu0 %v689, 32
  %v698 = vpop.permute.xlu0 %697
  %699 = vrot.lane.b32.xlu0 %v690, 32
  %v700 = vpop.permute.xlu0 %699
  %701 = vrot.lane.b32.xlu0 %v691, 32
  %v702 = vpop.permute.xlu0 %701
  %703 = vrot.lane.b32.xlu0 %v692, 32
  %v704 = vpop.permute.xlu0 %703
  %705 = vrot.lane.b32.xlu0 %v693, 32
  %v706 = vpop.permute.xlu0 %705
  %707 = vrot.lane.b32.xlu0 %v694, 32
  %v708 = vpop.permute.xlu0 %707
  %709 = vrot.lane.b32.xlu0 %v695, 32
  %v710 = vpop.permute.xlu0 %709
  %711 = vrot.lane.b32.xlu0 %v696, 32
  %v712 = vpop.permute.xlu0 %711
  %721 = vst.msk [vmem:[#allocation2 + $0x4] sm:$0x1] %vm243, %v698
  %722 = vst.msk [vmem:[#allocation2 + $0xc] sm:$0x1] %vm243, %v700
  %723 = vst.msk [vmem:[#allocation2 + $0x14] sm:$0x1] %vm243, %v702
  %724 = vst.msk [vmem:[#allocation2 + $0x1c] sm:$0x1] %vm243, %v704
  %725 = vst.msk [vmem:[#allocation2 + $0x24] sm:$0x1] %vm243, %v706
  %726 = vst.msk [vmem:[#allocation2 + $0x2c] sm:$0x1] %vm243, %v708
  %727 = vst.msk [vmem:[#allocation2 + $0x34] sm:$0x1] %vm243, %v710
  %728 = vst.msk [vmem:[#allocation2 + $0x3c] sm:$0x1] %vm243, %v712
  %729 = vst.msk [vmem:[#allocation2 + $0x3] sm:$0x1] %vm252, %v698
  %730 = vst.msk [vmem:[#allocation2 + $0xb] sm:$0x1] %vm252, %v700
  %731 = vst.msk [vmem:[#allocation2 + $0x13] sm:$0x1] %vm252, %v702
  %732 = vst.msk [vmem:[#allocation2 + $0x1b] sm:$0x1] %vm252, %v704
  %733 = vst.msk [vmem:[#allocation2 + $0x23] sm:$0x1] %vm252, %v706
  %734 = vst.msk [vmem:[#allocation2 + $0x2b] sm:$0x1] %vm252, %v708
  %735 = vst.msk [vmem:[#allocation2 + $0x33] sm:$0x1] %vm252, %v710
  %736 = vst.msk [vmem:[#allocation2 + $0x3b] sm:$0x1] %vm252, %v712
  %v737 = vsel %vm140, %v114, %v105
  %738 = vrot.lane.b32.xlu0 %v680, 32
  %v739 = vpop.permute.xlu0 %738
  %v740 = vsel %vm56, %v739, 0
  %742 = vmatpush.msra.mxu0 0.0
  %743 = vmatpush.msra.mxu0 0.0
  %744 = vmatpush.msra.mxu0 0.0
  %745 = vmatpush.msra.mxu0 0.0
  %746 = vmatpush.msra.mxu0 0.0
  %747 = vmatpush.msra.mxu0 0.0
  %748 = vmatpush.msra.mxu0 0.0
  %749 = vmatpush.msra.mxu0 0.0
  %750 = vmatpush.msra.mxu0 0.0
  %751 = vmatpush.msra.mxu0 0.0
  %752 = vmatpush.msra.mxu0 0.0
  %753 = vmatpush.msra.mxu0 0.0
  %754 = vmatpush.msra.mxu0 %v125
  %755 = vmatpush.msra.mxu0 %v124
  %756 = vmatpush.msra.mxu0 %v123
  %757 = vmatpush.msra.mxu0 %v122
  %758 = vmatmul.f32.gmra.mxu0 %v740
  %v759 = vpop.f32.mrf.mxu0
  %v760 = vadd.f32 0.0, %v759
  %761 = vdwg.mxu0
  %v762 = vadd.f32 %v737, %v760
  %v763 = vxor.u32 %v762, 2147483648
  %v764 = vmul.f32 %v763, 1.442695
  %v765 = vpow.pop %v764
  %v766 = vadd.f32 %v765, 1.0
  %v767 = vrcp.pop %v766
  %v768 = vmul.f32 %v766, %v767
  %v769 = vsub.f32 1.0, %v768
  %v770 = vmul.f32 %v767, %v769
  %v771 = vadd.f32 %v767, %v770
  %vm772 = vweird.f32 %v766
  %vm773 = vweird.f32 %v767
  %vm774 = vmor %vm772, %vm773
  %v775 = vsel %vm774, %v767, %v771
  %v776 = vand.u32 2147483647, %v766
  %vm777 = vcmp.eq.f32.partialorder %v776, 8.507059e+37
  %v778 = vand.u32 %v766, 2147483648
  %v779 = vor.u32 1.1754944e-38, %v778
  %v780 = vsel %vm777, %v779, %v775
  %v781 = vmul.f32 1.0, %v780
  %v782 = vtanh.pop %v762
  %v783 = vmul.f32 %v781, %v674
  %785 = vrot.lane.b32.xlu0 %v782, 64
  %v786 = vpop.permute.xlu0 %785
  %v788 = vmul.f32 %v781, %v786
  %790 = vrot.lane.b32.xlu0 %v788, 32
  %v791 = vpop.permute.xlu0 %790
  %v793 = vadd.f32 %v783, %v791
  %v794 = vtanh.pop %v793
  %796 = vrot.lane.b32.xlu0 %v794, 64
  %v797 = vpop.permute.xlu0 %796
  %v799 = vmul.f32 %v781, %v797
  %v801 = vrot.slane %v799, 1
  %v802 = vrot.slane %v799, 2
  %v803 = vrot.slane %v799, 3
  %v804 = vrot.slane %v799, 4
  %v805 = vrot.slane %v799, 5
  %v806 = vrot.slane %v799, 6
  %v807 = vrot.slane %v799, 7
  %v808 = vperm.slane %v799, 0
  %v809 = vperm.slane %v801, 0
  %v810 = vperm.slane %v802, 0
  %v811 = vperm.slane %v803, 0
  %v812 = vperm.slane %v804, 0
  %v813 = vperm.slane %v805, 0
  %v814 = vperm.slane %v806, 0
  %v815 = vperm.slane %v807, 0
  %816 = vrot.lane.b32.xlu0 %v808, 32
  %v817 = vpop.permute.xlu0 %816
  %818 = vrot.lane.b32.xlu0 %v809, 32
  %v819 = vpop.permute.xlu0 %818
  %820 = vrot.lane.b32.xlu0 %v810, 32
  %v821 = vpop.permute.xlu0 %820
  %822 = vrot.lane.b32.xlu0 %v811, 32
  %v823 = vpop.permute.xlu0 %822
  %824 = vrot.lane.b32.xlu0 %v812, 32
  %v825 = vpop.permute.xlu0 %824
  %826 = vrot.lane.b32.xlu0 %v813, 32
  %v827 = vpop.permute.xlu0 %826
  %828 = vrot.lane.b32.xlu0 %v814, 32
  %v829 = vpop.permute.xlu0 %828
  %830 = vrot.lane.b32.xlu0 %v815, 32
  %v831 = vpop.permute.xlu0 %830
  %840 = vst.msk [vmem:[#allocation2 + $0x5] sm:$0x1] %vm243, %v817
  %841 = vst.msk [vmem:[#allocation2 + $0xd] sm:$0x1] %vm243, %v819
  %842 = vst.msk [vmem:[#allocation2 + $0x15] sm:$0x1] %vm243, %v821
  %843 = vst.msk [vmem:[#allocation2 + $0x1d] sm:$0x1] %vm243, %v823
  %844 = vst.msk [vmem:[#allocation2 + $0x25] sm:$0x1] %vm243, %v825
  %845 = vst.msk [vmem:[#allocation2 + $0x2d] sm:$0x1] %vm243, %v827
  %846 = vst.msk [vmem:[#allocation2 + $0x35] sm:$0x1] %vm243, %v829
  %847 = vst.msk [vmem:[#allocation2 + $0x3d] sm:$0x1] %vm243, %v831
  %848 = vst.msk [vmem:[#allocation2 + $0x2] sm:$0x1] %vm252, %v817
  %849 = vst.msk [vmem:[#allocation2 + $0xa] sm:$0x1] %vm252, %v819
  %850 = vst.msk [vmem:[#allocation2 + $0x12] sm:$0x1] %vm252, %v821
  %851 = vst.msk [vmem:[#allocation2 + $0x1a] sm:$0x1] %vm252, %v823
  %852 = vst.msk [vmem:[#allocation2 + $0x22] sm:$0x1] %vm252, %v825
  %853 = vst.msk [vmem:[#allocation2 + $0x2a] sm:$0x1] %vm252, %v827
  %854 = vst.msk [vmem:[#allocation2 + $0x32] sm:$0x1] %vm252, %v829
  %855 = vst.msk [vmem:[#allocation2 + $0x3a] sm:$0x1] %vm252, %v831
  %v856 = vsel %vm140, %v117, %v102
  %857 = vrot.lane.b32.xlu0 %v799, 32
  %v858 = vpop.permute.xlu0 %857
  %v859 = vsel %vm56, %v858, 0
  %861 = vmatpush.msra.mxu0 0.0
  %862 = vmatpush.msra.mxu0 0.0
  %863 = vmatpush.msra.mxu0 0.0
  %864 = vmatpush.msra.mxu0 0.0
  %865 = vmatpush.msra.mxu0 0.0
  %866 = vmatpush.msra.mxu0 0.0
  %867 = vmatpush.msra.mxu0 0.0
  %868 = vmatpush.msra.mxu0 0.0
  %869 = vmatpush.msra.mxu0 0.0
  %870 = vmatpush.msra.mxu0 0.0
  %871 = vmatpush.msra.mxu0 0.0
  %872 = vmatpush.msra.mxu0 0.0
  %873 = vmatpush.msra.mxu0 %v125
  %874 = vmatpush.msra.mxu0 %v124
  %875 = vmatpush.msra.mxu0 %v123
  %876 = vmatpush.msra.mxu0 %v122
  %877 = vmatmul.f32.gmra.mxu0 %v859
  %v878 = vpop.f32.mrf.mxu0
  %v879 = vadd.f32 0.0, %v878
  %880 = vdwg.mxu0
  %v881 = vadd.f32 %v856, %v879
  %v882 = vxor.u32 %v881, 2147483648
  %v883 = vmul.f32 %v882, 1.442695
  %v884 = vpow.pop %v883
  %v885 = vadd.f32 %v884, 1.0
  %v886 = vrcp.pop %v885
  %v887 = vmul.f32 %v885, %v886
  %v888 = vsub.f32 1.0, %v887
  %v889 = vmul.f32 %v886, %v888
  %v890 = vadd.f32 %v886, %v889
  %vm891 = vweird.f32 %v885
  %vm892 = vweird.f32 %v886
  %vm893 = vmor %vm891, %vm892
  %v894 = vsel %vm893, %v886, %v890
  %v895 = vand.u32 2147483647, %v885
  %vm896 = vcmp.eq.f32.partialorder %v895, 8.507059e+37
  %v897 = vand.u32 %v885, 2147483648
  %v898 = vor.u32 1.1754944e-38, %v897
  %v899 = vsel %vm896, %v898, %v894
  %v900 = vmul.f32 1.0, %v899
  %v901 = vtanh.pop %v881
  %v902 = vmul.f32 %v900, %v793
  %904 = vrot.lane.b32.xlu0 %v901, 64
  %v905 = vpop.permute.xlu0 %904
  %v907 = vmul.f32 %v900, %v905
  %909 = vrot.lane.b32.xlu0 %v907, 32
  %v910 = vpop.permute.xlu0 %909
  %v912 = vadd.f32 %v902, %v910
  %v913 = vtanh.pop %v912
  %915 = vrot.lane.b32.xlu0 %v913, 64
  %v916 = vpop.permute.xlu0 %915
  %v918 = vmul.f32 %v900, %v916
  %v920 = vrot.slane %v918, 1
  %v921 = vrot.slane %v918, 2
  %v922 = vrot.slane %v918, 3
  %v923 = vrot.slane %v918, 4
  %v924 = vrot.slane %v918, 5
  %v925 = vrot.slane %v918, 6
  %v926 = vrot.slane %v918, 7
  %v927 = vperm.slane %v918, 0
  %v928 = vperm.slane %v920, 0
  %v929 = vperm.slane %v921, 0
  %v930 = vperm.slane %v922, 0
  %v931 = vperm.slane %v923, 0
  %v932 = vperm.slane %v924, 0
  %v933 = vperm.slane %v925, 0
  %v934 = vperm.slane %v926, 0
  %935 = vrot.lane.b32.xlu0 %v927, 32
  %v936 = vpop.permute.xlu0 %935
  %937 = vrot.lane.b32.xlu0 %v928, 32
  %v938 = vpop.permute.xlu0 %937
  %939 = vrot.lane.b32.xlu0 %v929, 32
  %v940 = vpop.permute.xlu0 %939
  %941 = vrot.lane.b32.xlu0 %v930, 32
  %v942 = vpop.permute.xlu0 %941
  %943 = vrot.lane.b32.xlu0 %v931, 32
  %v944 = vpop.permute.xlu0 %943
  %945 = vrot.lane.b32.xlu0 %v932, 32
  %v946 = vpop.permute.xlu0 %945
  %947 = vrot.lane.b32.xlu0 %v933, 32
  %v948 = vpop.permute.xlu0 %947
  %949 = vrot.lane.b32.xlu0 %v934, 32
  %v950 = vpop.permute.xlu0 %949
  %959 = vst.msk [vmem:[#allocation2 + $0x6] sm:$0x1] %vm243, %v936
  %960 = vst.msk [vmem:[#allocation2 + $0xe] sm:$0x1] %vm243, %v938
  %961 = vst.msk [vmem:[#allocation2 + $0x16] sm:$0x1] %vm243, %v940
  %962 = vst.msk [vmem:[#allocation2 + $0x1e] sm:$0x1] %vm243, %v942
  %963 = vst.msk [vmem:[#allocation2 + $0x26] sm:$0x1] %vm243, %v944
  %964 = vst.msk [vmem:[#allocation2 + $0x2e] sm:$0x1] %vm243, %v946
  %965 = vst.msk [vmem:[#allocation2 + $0x36] sm:$0x1] %vm243, %v948
  %966 = vst.msk [vmem:[#allocation2 + $0x3e] sm:$0x1] %vm243, %v950
  %967 = vst.msk [vmem:[#allocation2 + $0x1] sm:$0x1] %vm252, %v936
  %968 = vst.msk [vmem:[#allocation2 + $0x9] sm:$0x1] %vm252, %v938
  %969 = vst.msk [vmem:[#allocation2 + $0x11] sm:$0x1] %vm252, %v940
  %970 = vst.msk [vmem:[#allocation2 + $0x19] sm:$0x1] %vm252, %v942
  %971 = vst.msk [vmem:[#allocation2 + $0x21] sm:$0x1] %vm252, %v944
  %972 = vst.msk [vmem:[#allocation2 + $0x29] sm:$0x1] %vm252, %v946
  %973 = vst.msk [vmem:[#allocation2 + $0x31] sm:$0x1] %vm252, %v948
  %974 = vst.msk [vmem:[#allocation2 + $0x39] sm:$0x1] %vm252, %v950
  %v975 = vsel %vm140, %v120, %v99
  %976 = vrot.lane.b32.xlu0 %v918, 32
  %v977 = vpop.permute.xlu0 %976
  %v978 = vsel %vm56, %v977, 0
  %980 = vmatpush.msra.mxu0 0.0
  %981 = vmatpush.msra.mxu0 0.0
  %982 = vmatpush.msra.mxu0 0.0
  %983 = vmatpush.msra.mxu0 0.0
  %984 = vmatpush.msra.mxu0 0.0
  %985 = vmatpush.msra.mxu0 0.0
  %986 = vmatpush.msra.mxu0 0.0
  %987 = vmatpush.msra.mxu0 0.0
  %988 = vmatpush.msra.mxu0 0.0
  %989 = vmatpush.msra.mxu0 0.0
  %990 = vmatpush.msra.mxu0 0.0
  %991 = vmatpush.msra.mxu0 0.0
  %992 = vmatpush.msra.mxu0 %v125
  %993 = vmatpush.msra.mxu0 %v124
  %994 = vmatpush.msra.mxu0 %v123
  %995 = vmatpush.msra.mxu0 %v122
  %996 = vmatmul.f32.gmra.mxu0 %v978
  %v997 = vpop.f32.mrf.mxu0
  %v998 = vadd.f32 0.0, %v997
  %999 = vdwg.mxu0
  %v1000 = vadd.f32 %v975, %v998
  %v1001 = vxor.u32 %v1000, 2147483648
  %v1002 = vmul.f32 %v1001, 1.442695
  %v1003 = vpow.pop %v1002
  %v1004 = vadd.f32 %v1003, 1.0
  %v1005 = vrcp.pop %v1004
  %v1006 = vmul.f32 %v1004, %v1005
  %v1007 = vsub.f32 1.0, %v1006
  %v1008 = vmul.f32 %v1005, %v1007
  %v1009 = vadd.f32 %v1005, %v1008
  %vm1010 = vweird.f32 %v1004
  %vm1011 = vweird.f32 %v1005
  %vm1012 = vmor %vm1010, %vm1011
  %v1013 = vsel %vm1012, %v1005, %v1009
  %v1014 = vand.u32 2147483647, %v1004
  %vm1015 = vcmp.eq.f32.partialorder %v1014, 8.507059e+37
  %v1016 = vand.u32 %v1004, 2147483648
  %v1017 = vor.u32 1.1754944e-38, %v1016
  %v1018 = vsel %vm1015, %v1017, %v1013
  %v1019 = vmul.f32 1.0, %v1018
  %v1020 = vtanh.pop %v1000
  %v1021 = vmul.f32 %v1019, %v912
  %1023 = vrot.lane.b32.xlu0 %v1020, 64
  %v1024 = vpop.permute.xlu0 %1023
  %v1026 = vmul.f32 %v1019, %v1024
  %1028 = vrot.lane.b32.xlu0 %v1026, 32
  %v1029 = vpop.permute.xlu0 %1028
  %v1031 = vadd.f32 %v1021, %v1029
  %v1032 = vtanh.pop %v1031
  %1034 = vrot.lane.b32.xlu0 %v1032, 64
  %v1035 = vpop.permute.xlu0 %1034
  %v1037 = vmul.f32 %v1019, %v1035
  %v1039 = vrot.slane %v1037, 1
  %v1040 = vrot.slane %v1037, 2
  %v1041 = vrot.slane %v1037, 3
  %v1042 = vrot.slane %v1037, 4
  %v1043 = vrot.slane %v1037, 5
  %v1044 = vrot.slane %v1037, 6
  %v1045 = vrot.slane %v1037, 7
  %v1046 = vperm.slane %v1037, 0
  %v1047 = vperm.slane %v1039, 0
  %v1048 = vperm.slane %v1040, 0
  %v1049 = vperm.slane %v1041, 0
  %v1050 = vperm.slane %v1042, 0
  %v1051 = vperm.slane %v1043, 0
  %v1052 = vperm.slane %v1044, 0
  %v1053 = vperm.slane %v1045, 0
  %1054 = vrot.lane.b32.xlu0 %v1046, 32
  %v1055 = vpop.permute.xlu0 %1054
  %1056 = vrot.lane.b32.xlu0 %v1047, 32
  %v1057 = vpop.permute.xlu0 %1056
  %1058 = vrot.lane.b32.xlu0 %v1048, 32
  %v1059 = vpop.permute.xlu0 %1058
  %1060 = vrot.lane.b32.xlu0 %v1049, 32
  %v1061 = vpop.permute.xlu0 %1060
  %1062 = vrot.lane.b32.xlu0 %v1050, 32
  %v1063 = vpop.permute.xlu0 %1062
  %1064 = vrot.lane.b32.xlu0 %v1051, 32
  %v1065 = vpop.permute.xlu0 %1064
  %1066 = vrot.lane.b32.xlu0 %v1052, 32
  %v1067 = vpop.permute.xlu0 %1066
  %1068 = vrot.lane.b32.xlu0 %v1053, 32
  %v1069 = vpop.permute.xlu0 %1068
  %1078 = vst.msk [vmem:[#allocation2 + $0x7] sm:$0x1] %vm243, %v1055
  %1079 = vst.msk [vmem:[#allocation2 + $0xf] sm:$0x1] %vm243, %v1057
  %1080 = vst.msk [vmem:[#allocation2 + $0x17] sm:$0x1] %vm243, %v1059
  %1081 = vst.msk [vmem:[#allocation2 + $0x1f] sm:$0x1] %vm243, %v1061
  %1082 = vst.msk [vmem:[#allocation2 + $0x27] sm:$0x1] %vm243, %v1063
  %1083 = vst.msk [vmem:[#allocation2 + $0x2f] sm:$0x1] %vm243, %v1065
  %1084 = vst.msk [vmem:[#allocation2 + $0x37] sm:$0x1] %vm243, %v1067
  %1085 = vst.msk [vmem:[#allocation2 + $0x3f] sm:$0x1] %vm243, %v1069
  %1086 = vst.msk [vmem:[#allocation2] sm:$0x1] %vm252, %v1055
  %1087 = vst.msk [vmem:[#allocation2 + $0x8] sm:$0x1] %vm252, %v1057
  %1088 = vst.msk [vmem:[#allocation2 + $0x10] sm:$0x1] %vm252, %v1059
  %1089 = vst.msk [vmem:[#allocation2 + $0x18] sm:$0x1] %vm252, %v1061
  %1090 = vst.msk [vmem:[#allocation2 + $0x20] sm:$0x1] %vm252, %v1063
  %1091 = vst.msk [vmem:[#allocation2 + $0x28] sm:$0x1] %vm252, %v1065
  %1092 = vst.msk [vmem:[#allocation2 + $0x30] sm:$0x1] %vm252, %v1067
  %1093 = vst.msk [vmem:[#allocation2 + $0x38] sm:$0x1] %vm252, %v1069
  %v1094 = vld [vmem:[#allocation2] sm:$0xff]
  %v1095 = vld [vmem:[#allocation2 + $0x8] sm:$0xff]
  %v1096 = vld [vmem:[#allocation2 + $0x10] sm:$0xff]
  %v1097 = vld [vmem:[#allocation2 + $0x18] sm:$0xff]
  %v1098 = vld [vmem:[#allocation2 + $0x20] sm:$0xff]
  %v1099 = vld [vmem:[#allocation2 + $0x28] sm:$0xff]
  %v1100 = vld [vmem:[#allocation2 + $0x30] sm:$0xff]
  %v1101 = vld [vmem:[#allocation2 + $0x38] sm:$0xff]
  %v1102 = vld [vmem:[%s9] sm:$0xff]
  %v1103 = vld [vmem:[%s9 + $0x8] sm:$0xff]
  %v1104 = vld [vmem:[%s9 + $0x10] sm:$0xff]
  %v1105 = vld [vmem:[%s9 + $0x18] sm:$0xff]
  %v1114 = vrot.slane %v1095, 7
  %vm1115 = vcmask 1041409
  %v1116 = vsel %vm1115, %v1114, %v1094
  %v1117 = vrot.slane %v1096, 6
  %vm1118 = vcmask 1042434
  %v1119 = vsel %vm1118, %v1117, %v1116
  %v1120 = vrot.slane %v1097, 5
  %vm1121 = vcmask 1043459
  %v1122 = vsel %vm1121, %v1120, %v1119
  %v1123 = vrot.slane %v1098, 4
  %vm1124 = vcmask 1044484
  %v1125 = vsel %vm1124, %v1123, %v1122
  %v1126 = vrot.slane %v1099, 3
  %vm1127 = vcmask 1045509
  %v1128 = vsel %vm1127, %v1126, %v1125
  %v1129 = vrot.slane %v1100, 2
  %vm1130 = vcmask 1046534
  %v1131 = vsel %vm1130, %v1129, %v1128
  %v1132 = vrot.slane %v1101, 1
  %vm1133 = vcmask 1047559
  %v1134 = vsel %vm1133, %v1132, %v1131
  %v1135 = vsel %vm56, %v1134, 0
  %1137 = vmatpush.msra.mxu0 0.0
  %1138 = vmatpush.msra.mxu0 0.0
  %1139 = vmatpush.msra.mxu0 0.0
  %1140 = vmatpush.msra.mxu0 0.0
  %1141 = vmatpush.msra.mxu0 0.0
  %1142 = vmatpush.msra.mxu0 0.0
  %1143 = vmatpush.msra.mxu0 0.0
  %1144 = vmatpush.msra.mxu0 0.0
  %1145 = vmatpush.msra.mxu0 0.0
  %1146 = vmatpush.msra.mxu0 0.0
  %1147 = vmatpush.msra.mxu0 0.0
  %1148 = vmatpush.msra.mxu0 0.0
  %1149 = vmatpush.msra.mxu0 %v1105
  %1150 = vmatpush.msra.mxu0 %v1104
  %1151 = vmatpush.msra.mxu0 %v1103
  %1152 = vmatpush.msra.mxu0 %v1102
  %1153 = vmatmul.f32.gmra.mxu0 %v1135
  %v1154 = vpop.f32.mrf.mxu0
  %v1155 = vadd.f32 0.0, %v1154
  %1156 = vdwg.mxu0
  %v1158 = vrot.slane %v1155, 1
  %v1159 = vrot.slane %v1155, 2
  %v1160 = vrot.slane %v1155, 3
  %v1161 = vrot.slane %v1155, 4
  %v1162 = vrot.slane %v1155, 5
  %v1163 = vrot.slane %v1155, 6
  %v1164 = vrot.slane %v1155, 7
  %vm1172 = vcmask 253952
  %1173 = vst.msk [vmem:[#allocation3] sm:$0x1] %vm1172, %v1155
  %1174 = vst.msk [vmem:[#allocation3 + $0x8] sm:$0x1] %vm1172, %v1158
  %1175 = vst.msk [vmem:[#allocation3 + $0x10] sm:$0x1] %vm1172, %v1159
  %1176 = vst.msk [vmem:[#allocation3 + $0x18] sm:$0x1] %vm1172, %v1160
  %1177 = vst.msk [vmem:[#allocation3 + $0x20] sm:$0x1] %vm1172, %v1161
  %1178 = vst.msk [vmem:[#allocation3 + $0x28] sm:$0x1] %vm1172, %v1162
  %1179 = vst.msk [vmem:[#allocation3 + $0x30] sm:$0x1] %vm1172, %v1163
  %1180 = vst.msk [vmem:[#allocation3 + $0x38] sm:$0x1] %vm1172, %v1164
  %v1181 = vrot.slane %v1094, 1
  %v1182 = vsel %vm1115, %v1095, %v1181
  %v1183 = vrot.slane %v1096, 7
  %v1184 = vsel %vm1118, %v1183, %v1182
  %v1185 = vrot.slane %v1097, 6
  %v1186 = vsel %vm1121, %v1185, %v1184
  %v1187 = vrot.slane %v1098, 5
  %v1188 = vsel %vm1124, %v1187, %v1186
  %v1189 = vrot.slane %v1099, 4
  %v1190 = vsel %vm1127, %v1189, %v1188
  %v1191 = vrot.slane %v1100, 3
  %v1192 = vsel %vm1130, %v1191, %v1190
  %v1193 = vrot.slane %v1101, 2
  %v1194 = vsel %vm1133, %v1193, %v1192
  %v1195 = vsel %vm56, %v1194, 0
  %1197 = vmatpush.msra.mxu0 0.0
  %1198 = vmatpush.msra.mxu0 0.0
  %1199 = vmatpush.msra.mxu0 0.0
  %1200 = vmatpush.msra.mxu0 0.0
  %1201 = vmatpush.msra.mxu0 0.0
  %1202 = vmatpush.msra.mxu0 0.0
  %1203 = vmatpush.msra.mxu0 0.0
  %1204 = vmatpush.msra.mxu0 0.0
  %1205 = vmatpush.msra.mxu0 0.0
  %1206 = vmatpush.msra.mxu0 0.0
  %1207 = vmatpush.msra.mxu0 0.0
  %1208 = vmatpush.msra.mxu0 0.0
  %1209 = vmatpush.msra.mxu0 %v1105
  %1210 = vmatpush.msra.mxu0 %v1104
  %1211 = vmatpush.msra.mxu0 %v1103
  %1212 = vmatpush.msra.mxu0 %v1102
  %1213 = vmatmul.f32.gmra.mxu0 %v1195
  %v1214 = vpop.f32.mrf.mxu0
  %v1215 = vadd.f32 0.0, %v1214
  %1216 = vdwg.mxu0
  %v1218 = vrot.slane %v1215, 1
  %v1219 = vrot.slane %v1215, 2
  %v1220 = vrot.slane %v1215, 3
  %v1221 = vrot.slane %v1215, 4
  %v1222 = vrot.slane %v1215, 5
  %v1223 = vrot.slane %v1215, 6
  %v1224 = vrot.slane %v1215, 7
  %1232 = vst.msk [vmem:[#allocation3 + $0x1] sm:$0x1] %vm1172, %v1215
  %1233 = vst.msk [vmem:[#allocation3 + $0x9] sm:$0x1] %vm1172, %v1218
  %1234 = vst.msk [vmem:[#allocation3 + $0x11] sm:$0x1] %vm1172, %v1219
  %1235 = vst.msk [vmem:[#allocation3 + $0x19] sm:$0x1] %vm1172, %v1220
  %1236 = vst.msk [vmem:[#allocation3 + $0x21] sm:$0x1] %vm1172, %v1221
  %1237 = vst.msk [vmem:[#allocation3 + $0x29] sm:$0x1] %vm1172, %v1222
  %1238 = vst.msk [vmem:[#allocation3 + $0x31] sm:$0x1] %vm1172, %v1223
  %1239 = vst.msk [vmem:[#allocation3 + $0x39] sm:$0x1] %vm1172, %v1224
  %v1240 = vrot.slane %v1094, 2
  %v1241 = vrot.slane %v1095, 1
  %v1242 = vsel %vm1115, %v1241, %v1240
  %v1243 = vsel %vm1118, %v1096, %v1242
  %v1244 = vrot.slane %v1097, 7
  %v1245 = vsel %vm1121, %v1244, %v1243
  %v1246 = vrot.slane %v1098, 6
  %v1247 = vsel %vm1124, %v1246, %v1245
  %v1248 = vrot.slane %v1099, 5
  %v1249 = vsel %vm1127, %v1248, %v1247
  %v1250 = vrot.slane %v1100, 4
  %v1251 = vsel %vm1130, %v1250, %v1249
  %v1252 = vrot.slane %v1101, 3
  %v1253 = vsel %vm1133, %v1252, %v1251
  %v1254 = vsel %vm56, %v1253, 0
  %1256 = vmatpush.msra.mxu0 0.0
  %1257 = vmatpush.msra.mxu0 0.0
  %1258 = vmatpush.msra.mxu0 0.0
  %1259 = vmatpush.msra.mxu0 0.0
  %1260 = vmatpush.msra.mxu0 0.0
  %1261 = vmatpush.msra.mxu0 0.0
  %1262 = vmatpush.msra.mxu0 0.0
  %1263 = vmatpush.msra.mxu0 0.0
  %1264 = vmatpush.msra.mxu0 0.0
  %1265 = vmatpush.msra.mxu0 0.0
  %1266 = vmatpush.msra.mxu0 0.0
  %1267 = vmatpush.msra.mxu0 0.0
  %1268 = vmatpush.msra.mxu0 %v1105
  %1269 = vmatpush.msra.mxu0 %v1104
  %1270 = vmatpush.msra.mxu0 %v1103
  %1271 = vmatpush.msra.mxu0 %v1102
  %1272 = vmatmul.f32.gmra.mxu0 %v1254
  %v1273 = vpop.f32.mrf.mxu0
  %v1274 = vadd.f32 0.0, %v1273
  %1275 = vdwg.mxu0
  %v1277 = vrot.slane %v1274, 1
  %v1278 = vrot.slane %v1274, 2
  %v1279 = vrot.slane %v1274, 3
  %v1280 = vrot.slane %v1274, 4
  %v1281 = vrot.slane %v1274, 5
  %v1282 = vrot.slane %v1274, 6
  %v1283 = vrot.slane %v1274, 7
  %1291 = vst.msk [vmem:[#allocation3 + $0x2] sm:$0x1] %vm1172, %v1274
  %1292 = vst.msk [vmem:[#allocation3 + $0xa] sm:$0x1] %vm1172, %v1277
  %1293 = vst.msk [vmem:[#allocation3 + $0x12] sm:$0x1] %vm1172, %v1278
  %1294 = vst.msk [vmem:[#allocation3 + $0x1a] sm:$0x1] %vm1172, %v1279
  %1295 = vst.msk [vmem:[#allocation3 + $0x22] sm:$0x1] %vm1172, %v1280
  %1296 = vst.msk [vmem:[#allocation3 + $0x2a] sm:$0x1] %vm1172, %v1281
  %1297 = vst.msk [vmem:[#allocation3 + $0x32] sm:$0x1] %vm1172, %v1282
  %1298 = vst.msk [vmem:[#allocation3 + $0x3a] sm:$0x1] %vm1172, %v1283
  %v1299 = vrot.slane %v1094, 3
  %v1300 = vrot.slane %v1095, 2
  %v1301 = vsel %vm1115, %v1300, %v1299
  %v1302 = vrot.slane %v1096, 1
  %v1303 = vsel %vm1118, %v1302, %v1301
  %v1304 = vsel %vm1121, %v1097, %v1303
  %v1305 = vrot.slane %v1098, 7
  %v1306 = vsel %vm1124, %v1305, %v1304
  %v1307 = vrot.slane %v1099, 6
  %v1308 = vsel %vm1127, %v1307, %v1306
  %v1309 = vrot.slane %v1100, 5
  %v1310 = vsel %vm1130, %v1309, %v1308
  %v1311 = vrot.slane %v1101, 4
  %v1312 = vsel %vm1133, %v1311, %v1310
  %v1313 = vsel %vm56, %v1312, 0
  %1315 = vmatpush.msra.mxu0 0.0
  %1316 = vmatpush.msra.mxu0 0.0
  %1317 = vmatpush.msra.mxu0 0.0
  %1318 = vmatpush.msra.mxu0 0.0
  %1319 = vmatpush.msra.mxu0 0.0
  %1320 = vmatpush.msra.mxu0 0.0
  %1321 = vmatpush.msra.mxu0 0.0
  %1322 = vmatpush.msra.mxu0 0.0
  %1323 = vmatpush.msra.mxu0 0.0
  %1324 = vmatpush.msra.mxu0 0.0
  %1325 = vmatpush.msra.mxu0 0.0
  %1326 = vmatpush.msra.mxu0 0.0
  %1327 = vmatpush.msra.mxu0 %v1105
  %1328 = vmatpush.msra.mxu0 %v1104
  %1329 = vmatpush.msra.mxu0 %v1103
  %1330 = vmatpush.msra.mxu0 %v1102
  %1331 = vmatmul.f32.gmra.mxu0 %v1313
  %v1332 = vpop.f32.mrf.mxu0
  %v1333 = vadd.f32 0.0, %v1332
  %1334 = vdwg.mxu0
  %v1336 = vrot.slane %v1333, 1
  %v1337 = vrot.slane %v1333, 2
  %v1338 = vrot.slane %v1333, 3
  %v1339 = vrot.slane %v1333, 4
  %v1340 = vrot.slane %v1333, 5
  %v1341 = vrot.slane %v1333, 6
  %v1342 = vrot.slane %v1333, 7
  %1350 = vst.msk [vmem:[#allocation3 + $0x3] sm:$0x1] %vm1172, %v1333
  %1351 = vst.msk [vmem:[#allocation3 + $0xb] sm:$0x1] %vm1172, %v1336
  %1352 = vst.msk [vmem:[#allocation3 + $0x13] sm:$0x1] %vm1172, %v1337
  %1353 = vst.msk [vmem:[#allocation3 + $0x1b] sm:$0x1] %vm1172, %v1338
  %1354 = vst.msk [vmem:[#allocation3 + $0x23] sm:$0x1] %vm1172, %v1339
  %1355 = vst.msk [vmem:[#allocation3 + $0x2b] sm:$0x1] %vm1172, %v1340
  %1356 = vst.msk [vmem:[#allocation3 + $0x33] sm:$0x1] %vm1172, %v1341
  %1357 = vst.msk [vmem:[#allocation3 + $0x3b] sm:$0x1] %vm1172, %v1342
  %v1358 = vrot.slane %v1094, 4
  %v1359 = vrot.slane %v1095, 3
  %v1360 = vsel %vm1115, %v1359, %v1358
  %v1361 = vrot.slane %v1096, 2
  %v1362 = vsel %vm1118, %v1361, %v1360
  %v1363 = vrot.slane %v1097, 1
  %v1364 = vsel %vm1121, %v1363, %v1362
  %v1365 = vsel %vm1124, %v1098, %v1364
  %v1366 = vrot.slane %v1099, 7
  %v1367 = vsel %vm1127, %v1366, %v1365
  %v1368 = vrot.slane %v1100, 6
  %v1369 = vsel %vm1130, %v1368, %v1367
  %v1370 = vrot.slane %v1101, 5
  %v1371 = vsel %vm1133, %v1370, %v1369
  %v1372 = vsel %vm56, %v1371, 0
  %1374 = vmatpush.msra.mxu0 0.0
  %1375 = vmatpush.msra.mxu0 0.0
  %1376 = vmatpush.msra.mxu0 0.0
  %1377 = vmatpush.msra.mxu0 0.0
  %1378 = vmatpush.msra.mxu0 0.0
  %1379 = vmatpush.msra.mxu0 0.0
  %1380 = vmatpush.msra.mxu0 0.0
  %1381 = vmatpush.msra.mxu0 0.0
  %1382 = vmatpush.msra.mxu0 0.0
  %1383 = vmatpush.msra.mxu0 0.0
  %1384 = vmatpush.msra.mxu0 0.0
  %1385 = vmatpush.msra.mxu0 0.0
  %1386 = vmatpush.msra.mxu0 %v1105
  %1387 = vmatpush.msra.mxu0 %v1104
  %1388 = vmatpush.msra.mxu0 %v1103
  %1389 = vmatpush.msra.mxu0 %v1102
  %1390 = vmatmul.f32.gmra.mxu0 %v1372
  %v1391 = vpop.f32.mrf.mxu0
  %v1392 = vadd.f32 0.0, %v1391
  %1393 = vdwg.mxu0
  %v1395 = vrot.slane %v1392, 1
  %v1396 = vrot.slane %v1392, 2
  %v1397 = vrot.slane %v1392, 3
  %v1398 = vrot.slane %v1392, 4
  %v1399 = vrot.slane %v1392, 5
  %v1400 = vrot.slane %v1392, 6
  %v1401 = vrot.slane %v1392, 7
  %1409 = vst.msk [vmem:[#allocation3 + $0x4] sm:$0x1] %vm1172, %v1392
  %1410 = vst.msk [vmem:[#allocation3 + $0xc] sm:$0x1] %vm1172, %v1395
  %1411 = vst.msk [vmem:[#allocation3 + $0x14] sm:$0x1] %vm1172, %v1396
  %1412 = vst.msk [vmem:[#allocation3 + $0x1c] sm:$0x1] %vm1172, %v1397
  %1413 = vst.msk [vmem:[#allocation3 + $0x24] sm:$0x1] %vm1172, %v1398
  %1414 = vst.msk [vmem:[#allocation3 + $0x2c] sm:$0x1] %vm1172, %v1399
  %1415 = vst.msk [vmem:[#allocation3 + $0x34] sm:$0x1] %vm1172, %v1400
  %1416 = vst.msk [vmem:[#allocation3 + $0x3c] sm:$0x1] %vm1172, %v1401
  %v1417 = vrot.slane %v1094, 5
  %v1418 = vrot.slane %v1095, 4
  %v1419 = vsel %vm1115, %v1418, %v1417
  %v1420 = vrot.slane %v1096, 3
  %v1421 = vsel %vm1118, %v1420, %v1419
  %v1422 = vrot.slane %v1097, 2
  %v1423 = vsel %vm1121, %v1422, %v1421
  %v1424 = vrot.slane %v1098, 1
  %v1425 = vsel %vm1124, %v1424, %v1423
  %v1426 = vsel %vm1127, %v1099, %v1425
  %v1427 = vrot.slane %v1100, 7
  %v1428 = vsel %vm1130, %v1427, %v1426
  %v1429 = vrot.slane %v1101, 6
  %v1430 = vsel %vm1133, %v1429, %v1428
  %v1431 = vsel %vm56, %v1430, 0
  %1433 = vmatpush.msra.mxu0 0.0
  %1434 = vmatpush.msra.mxu0 0.0
  %1435 = vmatpush.msra.mxu0 0.0
  %1436 = vmatpush.msra.mxu0 0.0
  %1437 = vmatpush.msra.mxu0 0.0
  %1438 = vmatpush.msra.mxu0 0.0
  %1439 = vmatpush.msra.mxu0 0.0
  %1440 = vmatpush.msra.mxu0 0.0
  %1441 = vmatpush.msra.mxu0 0.0
  %1442 = vmatpush.msra.mxu0 0.0
  %1443 = vmatpush.msra.mxu0 0.0
  %1444 = vmatpush.msra.mxu0 0.0
  %1445 = vmatpush.msra.mxu0 %v1105
  %1446 = vmatpush.msra.mxu0 %v1104
  %1447 = vmatpush.msra.mxu0 %v1103
  %1448 = vmatpush.msra.mxu0 %v1102
  %1449 = vmatmul.f32.gmra.mxu0 %v1431
  %v1450 = vpop.f32.mrf.mxu0
  %v1451 = vadd.f32 0.0, %v1450
  %1452 = vdwg.mxu0
  %v1454 = vrot.slane %v1451, 1
  %v1455 = vrot.slane %v1451, 2
  %v1456 = vrot.slane %v1451, 3
  %v1457 = vrot.slane %v1451, 4
  %v1458 = vrot.slane %v1451, 5
  %v1459 = vrot.slane %v1451, 6
  %v1460 = vrot.slane %v1451, 7
  %1468 = vst.msk [vmem:[#allocation3 + $0x5] sm:$0x1] %vm1172, %v1451
  %1469 = vst.msk [vmem:[#allocation3 + $0xd] sm:$0x1] %vm1172, %v1454
  %1470 = vst.msk [vmem:[#allocation3 + $0x15] sm:$0x1] %vm1172, %v1455
  %1471 = vst.msk [vmem:[#allocation3 + $0x1d] sm:$0x1] %vm1172, %v1456
  %1472 = vst.msk [vmem:[#allocation3 + $0x25] sm:$0x1] %vm1172, %v1457
  %1473 = vst.msk [vmem:[#allocation3 + $0x2d] sm:$0x1] %vm1172, %v1458
  %1474 = vst.msk [vmem:[#allocation3 + $0x35] sm:$0x1] %vm1172, %v1459
  %1475 = vst.msk [vmem:[#allocation3 + $0x3d] sm:$0x1] %vm1172, %v1460
  %v1476 = vrot.slane %v1094, 6
  %v1477 = vrot.slane %v1095, 5
  %v1478 = vsel %vm1115, %v1477, %v1476
  %v1479 = vrot.slane %v1096, 4
  %v1480 = vsel %vm1118, %v1479, %v1478
  %v1481 = vrot.slane %v1097, 3
  %v1482 = vsel %vm1121, %v1481, %v1480
  %v1483 = vrot.slane %v1098, 2
  %v1484 = vsel %vm1124, %v1483, %v1482
  %v1485 = vrot.slane %v1099, 1
  %v1486 = vsel %vm1127, %v1485, %v1484
  %v1487 = vsel %vm1130, %v1100, %v1486
  %v1488 = vrot.slane %v1101, 7
  %v1489 = vsel %vm1133, %v1488, %v1487
  %v1490 = vsel %vm56, %v1489, 0
  %1492 = vmatpush.msra.mxu0 0.0
  %1493 = vmatpush.msra.mxu0 0.0
  %1494 = vmatpush.msra.mxu0 0.0
  %1495 = vmatpush.msra.mxu0 0.0
  %1496 = vmatpush.msra.mxu0 0.0
  %1497 = vmatpush.msra.mxu0 0.0
  %1498 = vmatpush.msra.mxu0 0.0
  %1499 = vmatpush.msra.mxu0 0.0
  %1500 = vmatpush.msra.mxu0 0.0
  %1501 = vmatpush.msra.mxu0 0.0
  %1502 = vmatpush.msra.mxu0 0.0
  %1503 = vmatpush.msra.mxu0 0.0
  %1504 = vmatpush.msra.mxu0 %v1105
  %1505 = vmatpush.msra.mxu0 %v1104
  %1506 = vmatpush.msra.mxu0 %v1103
  %1507 = vmatpush.msra.mxu0 %v1102
  %1508 = vmatmul.f32.gmra.mxu0 %v1490
  %v1509 = vpop.f32.mrf.mxu0
  %v1510 = vadd.f32 0.0, %v1509
  %1511 = vdwg.mxu0
  %v1513 = vrot.slane %v1510, 1
  %v1514 = vrot.slane %v1510, 2
  %v1515 = vrot.slane %v1510, 3
  %v1516 = vrot.slane %v1510, 4
  %v1517 = vrot.slane %v1510, 5
  %v1518 = vrot.slane %v1510, 6
  %v1519 = vrot.slane %v1510, 7
  %1527 = vst.msk [vmem:[#allocation3 + $0x6] sm:$0x1] %vm1172, %v1510
  %1528 = vst.msk [vmem:[#allocation3 + $0xe] sm:$0x1] %vm1172, %v1513
  %1529 = vst.msk [vmem:[#allocation3 + $0x16] sm:$0x1] %vm1172, %v1514
  %1530 = vst.msk [vmem:[#allocation3 + $0x1e] sm:$0x1] %vm1172, %v1515
  %1531 = vst.msk [vmem:[#allocation3 + $0x26] sm:$0x1] %vm1172, %v1516
  %1532 = vst.msk [vmem:[#allocation3 + $0x2e] sm:$0x1] %vm1172, %v1517
  %1533 = vst.msk [vmem:[#allocation3 + $0x36] sm:$0x1] %vm1172, %v1518
  %1534 = vst.msk [vmem:[#allocation3 + $0x3e] sm:$0x1] %vm1172, %v1519
  %v1535 = vrot.slane %v1094, 7
  %v1536 = vrot.slane %v1095, 6
  %v1537 = vsel %vm1115, %v1536, %v1535
  %v1538 = vrot.slane %v1096, 5
  %v1539 = vsel %vm1118, %v1538, %v1537
  %v1540 = vrot.slane %v1097, 4
  %v1541 = vsel %vm1121, %v1540, %v1539
  %v1542 = vrot.slane %v1098, 3
  %v1543 = vsel %vm1124, %v1542, %v1541
  %v1544 = vrot.slane %v1099, 2
  %v1545 = vsel %vm1127, %v1544, %v1543
  %v1546 = vrot.slane %v1100, 1
  %v1547 = vsel %vm1130, %v1546, %v1545
  %v1548 = vsel %vm1133, %v1101, %v1547
  %v1549 = vsel %vm56, %v1548, 0
  %1551 = vmatpush.msra.mxu0 0.0
  %1552 = vmatpush.msra.mxu0 0.0
  %1553 = vmatpush.msra.mxu0 0.0
  %1554 = vmatpush.msra.mxu0 0.0
  %1555 = vmatpush.msra.mxu0 0.0
  %1556 = vmatpush.msra.mxu0 0.0
  %1557 = vmatpush.msra.mxu0 0.0
  %1558 = vmatpush.msra.mxu0 0.0
  %1559 = vmatpush.msra.mxu0 0.0
  %1560 = vmatpush.msra.mxu0 0.0
  %1561 = vmatpush.msra.mxu0 0.0
  %1562 = vmatpush.msra.mxu0 0.0
  %1563 = vmatpush.msra.mxu0 %v1105
  %1564 = vmatpush.msra.mxu0 %v1104
  %1565 = vmatpush.msra.mxu0 %v1103
  %1566 = vmatpush.msra.mxu0 %v1102
  %1567 = vmatmul.f32.gmra.mxu0 %v1549
  %v1568 = vpop.f32.mrf.mxu0
  %v1569 = vadd.f32 0.0, %v1568
  %1570 = vdwg.mxu0
  %v1572 = vrot.slane %v1569, 1
  %v1573 = vrot.slane %v1569, 2
  %v1574 = vrot.slane %v1569, 3
  %v1575 = vrot.slane %v1569, 4
  %v1576 = vrot.slane %v1569, 5
  %v1577 = vrot.slane %v1569, 6
  %v1578 = vrot.slane %v1569, 7
  %1586 = vst.msk [vmem:[#allocation3 + $0x7] sm:$0x1] %vm1172, %v1569
  %1587 = vst.msk [vmem:[#allocation3 + $0xf] sm:$0x1] %vm1172, %v1572
  %1588 = vst.msk [vmem:[#allocation3 + $0x17] sm:$0x1] %vm1172, %v1573
  %1589 = vst.msk [vmem:[#allocation3 + $0x1f] sm:$0x1] %vm1172, %v1574
  %1590 = vst.msk [vmem:[#allocation3 + $0x27] sm:$0x1] %vm1172, %v1575
  %1591 = vst.msk [vmem:[#allocation3 + $0x2f] sm:$0x1] %vm1172, %v1576
  %1592 = vst.msk [vmem:[#allocation3 + $0x37] sm:$0x1] %vm1172, %v1577
  %1593 = vst.msk [vmem:[#allocation3 + $0x3f] sm:$0x1] %vm1172, %v1578
  %v1594 = vld [vmem:[#allocation3] sm:$0xff]
  %v1595 = vld [vmem:[#allocation3 + $0x8] sm:$0xff]
  %v1596 = vld [vmem:[#allocation3 + $0x10] sm:$0xff]
  %v1597 = vld [vmem:[#allocation3 + $0x18] sm:$0xff]
  %v1598 = vld [vmem:[#allocation3 + $0x20] sm:$0xff]
  %v1599 = vld [vmem:[#allocation3 + $0x28] sm:$0xff]
  %v1600 = vld [vmem:[#allocation3 + $0x30] sm:$0xff]
  %v1601 = vld [vmem:[#allocation3 + $0x38] sm:$0xff]
  %v1602 = vld [vmem:[%s2] sm:$0xff]
  %v1603 = vld [vmem:[%s1] sm:$0xff]
  %v1604 = vld [vmem:[%s1 + $0x8] sm:$0xff]
  %v1605 = vld [vmem:[%s1 + $0x10] sm:$0xff]
  %v1606 = vld [vmem:[%s1 + $0x18] sm:$0xff]
  %v1607 = vld [vmem:[%s1 + $0x20] sm:$0xff]
  %v1608 = vld [vmem:[%s1 + $0x28] sm:$0xff]
  %v1609 = vld [vmem:[%s1 + $0x30] sm:$0xff]
  %v1610 = vld [vmem:[%s1 + $0x38] sm:$0xff]
  %v1611 = vld [vmem:[%s6] sm:$0xff]
  %v1612 = vld [vmem:[%s6 + $0x8] sm:$0xff]
  %v1613 = vld [vmem:[%s6 + $0x10] sm:$0xff]
  %v1614 = vld [vmem:[%s6 + $0x18] sm:$0xff]
  %v1615 = vld [vmem:[%s8] sm:$0x1]
  %v1617 = vperm.slane %v1615, 0
  %v1620 = vsel %vm56, %v1603, 0
  %v1623 = vsel %vm56, %v1604, 0
  %v1626 = vsel %vm56, %v1605, 0
  %v1629 = vsel %vm56, %v1606, 0
  %v1632 = vsel %vm56, %v1607, 0
  %v1635 = vsel %vm56, %v1608, 0
  %v1638 = vsel %vm56, %v1609, 0
  %v1641 = vsel %vm56, %v1610, 0
  %1643 = vmatpush.msra.mxu0 0.0
  %1644 = vmatpush.msra.mxu0 0.0
  %1645 = vmatpush.msra.mxu0 0.0
  %1646 = vmatpush.msra.mxu0 0.0
  %1647 = vmatpush.msra.mxu0 0.0
  %1648 = vmatpush.msra.mxu0 0.0
  %1649 = vmatpush.msra.mxu0 0.0
  %1650 = vmatpush.msra.mxu0 0.0
  %1651 = vmatpush.msra.mxu0 0.0
  %1652 = vmatpush.msra.mxu0 0.0
  %1653 = vmatpush.msra.mxu0 0.0
  %1654 = vmatpush.msra.mxu0 0.0
  %1655 = vmatpush.msra.mxu0 %v1614
  %1656 = vmatpush.msra.mxu0 %v1613
  %1657 = vmatpush.msra.mxu0 %v1612
  %1658 = vmatpush.msra.mxu0 %v1611
  %1659 = vmatmul.f32.gmra.mxu0 %v1620
  %v1660 = vpop.f32.mrf.mxu0
  %v1661 = vadd.f32 %v1617, %v1660
  %1662 = vmatmul.f32.gmra.mxu0 %v1623
  %v1663 = vpop.f32.mrf.mxu0
  %v1664 = vadd.f32 %v1617, %v1663
  %1665 = vmatmul.f32.gmra.mxu0 %v1626
  %v1666 = vpop.f32.mrf.mxu0
  %v1667 = vadd.f32 %v1617, %v1666
  %1668 = vmatmul.f32.gmra.mxu0 %v1629
  %v1669 = vpop.f32.mrf.mxu0
  %v1670 = vadd.f32 %v1617, %v1669
  %1671 = vmatmul.f32.gmra.mxu0 %v1632
  %v1672 = vpop.f32.mrf.mxu0
  %v1673 = vadd.f32 %v1617, %v1672
  %1674 = vmatmul.f32.gmra.mxu0 %v1635
  %v1675 = vpop.f32.mrf.mxu0
  %v1676 = vadd.f32 %v1617, %v1675
  %1677 = vmatmul.f32.gmra.mxu0 %v1638
  %v1678 = vpop.f32.mrf.mxu0
  %v1679 = vadd.f32 %v1617, %v1678
  %1680 = vmatmul.f32.gmra.mxu0 %v1641
  %v1681 = vpop.f32.mrf.mxu0
  %v1682 = vadd.f32 %v1617, %v1681
  %1683 = vdwg.mxu0
  %v1684 = vld [vmem:[%s7] sm:$0xff]
  %v1685 = vld [vmem:[%s7 + $0x8] sm:$0xff]
  %v1686 = vld [vmem:[%s7 + $0x10] sm:$0xff]
  %v1687 = vld [vmem:[%s7 + $0x18] sm:$0xff]
  %v1688 = vld [vmem:[%s7 + $0x20] sm:$0xff]
  %v1689 = vld [vmem:[%s7 + $0x28] sm:$0xff]
  %v1690 = vld [vmem:[%s7 + $0x30] sm:$0xff]
  %v1691 = vld [vmem:[%s7 + $0x38] sm:$0xff]
  %v1692 = vld [vmem:[%s10] sm:$0xff]
  %v1693 = vld [vmem:[%s10 + $0x8] sm:$0xff]
  %v1694 = vld [vmem:[%s10 + $0x10] sm:$0xff]
  %v1695 = vld [vmem:[%s10 + $0x18] sm:$0xff]
  %v1696 = vld [vmem:[%s10 + $0x20] sm:$0xff]
  %v1697 = vld [vmem:[%s10 + $0x28] sm:$0xff]
  %v1698 = vld [vmem:[%s10 + $0x30] sm:$0xff]
  %v1699 = vld [vmem:[%s10 + $0x38] sm:$0xff]
  %1700 = vrot.lane.b32.xlu0 %v1037, 64
  %v1701 = vpop.permute.xlu0 %1700
  %v1703 = vsel %vm56, 0.0, %v1701
  %vm1704 = vcmask 523264
  %v1706 = vsel %vm1704, %v1703, 0
  %1708 = vmatpush.msra.mxu0 0.0
  %1709 = vmatpush.msra.mxu0 0.0
  %1710 = vmatpush.msra.mxu0 0.0
  %1711 = vmatpush.msra.mxu0 0.0
  %1712 = vmatpush.msra.mxu0 0.0
  %1713 = vmatpush.msra.mxu0 0.0
  %1714 = vmatpush.msra.mxu0 0.0
  %1715 = vmatpush.msra.mxu0 0.0
  %1716 = vmatpush.msra.mxu0 %v1691
  %1717 = vmatpush.msra.mxu0 %v1690
  %1718 = vmatpush.msra.mxu0 %v1689
  %1719 = vmatpush.msra.mxu0 %v1688
  %1720 = vmatpush.msra.mxu0 %v1687
  %1721 = vmatpush.msra.mxu0 %v1686
  %1722 = vmatpush.msra.mxu0 %v1685
  %1723 = vmatpush.msra.mxu0 %v1684
  %1724 = vmatmul.f32.gmra.mxu0 %v1706
  %v1725 = vpop.f32.mrf.mxu0
  %v1726 = vadd.f32 0.0, %v1725
  %1727 = vdwg.mxu0
  %v1728 = vadd.f32 %v1661, %v1726
  %v1729 = vxor.u32 %v1728, 2147483648
  %v1730 = vmul.f32 %v1729, 1.442695
  %v1731 = vpow.pop %v1730
  %v1732 = vadd.f32 %v1731, 1.0
  %v1733 = vrcp.pop %v1732
  %v1734 = vmul.f32 %v1732, %v1733
  %v1735 = vsub.f32 1.0, %v1734
  %v1736 = vmul.f32 %v1733, %v1735
  %v1737 = vadd.f32 %v1733, %v1736
  %vm1738 = vweird.f32 %v1732
  %vm1739 = vweird.f32 %v1733
  %vm1740 = vmor %vm1738, %vm1739
  %v1741 = vsel %vm1740, %v1733, %v1737
  %v1742 = vand.u32 2147483647, %v1732
  %vm1743 = vcmp.eq.f32.partialorder %v1742, 8.507059e+37
  %v1744 = vand.u32 %v1732, 2147483648
  %v1745 = vor.u32 1.1754944e-38, %v1744
  %v1746 = vsel %vm1743, %v1745, %v1741
  %v1747 = vmul.f32 1.0, %v1746
  %v1748 = vtanh.pop %v1728
  %v1749 = vmul.f32 %v1747, %v1031
  %1751 = vrot.lane.b32.xlu0 %v1748, 64
  %v1752 = vpop.permute.xlu0 %1751
  %v1754 = vmul.f32 %v1747, %v1752
  %1756 = vrot.lane.b32.xlu0 %v1754, 32
  %v1757 = vpop.permute.xlu0 %1756
  %v1759 = vadd.f32 %v1749, %v1757
  %v1760 = vtanh.pop %v1759
  %1762 = vrot.lane.b32.xlu0 %v1760, 64
  %v1763 = vpop.permute.xlu0 %1762
  %v1765 = vmul.f32 %v1747, %v1763
  %v1767 = vrot.slane %v1765, 1
  %v1768 = vrot.slane %v1765, 2
  %v1769 = vrot.slane %v1765, 3
  %v1770 = vrot.slane %v1765, 4
  %v1771 = vrot.slane %v1765, 5
  %v1772 = vrot.slane %v1765, 6
  %v1773 = vrot.slane %v1765, 7
  %v1774 = vperm.slane %v1765, 0
  %v1775 = vperm.slane %v1767, 0
  %v1776 = vperm.slane %v1768, 0
  %v1777 = vperm.slane %v1769, 0
  %v1778 = vperm.slane %v1770, 0
  %v1779 = vperm.slane %v1771, 0
  %v1780 = vperm.slane %v1772, 0
  %v1781 = vperm.slane %v1773, 0
  %1798 = vrot.lane.b32.xlu0 %v1594, 96
  %v1799 = vpop.permute.xlu0 %1798
  %1800 = vrot.lane.b32.xlu0 %v1595, 96
  %v1801 = vpop.permute.xlu0 %1800
  %1802 = vrot.lane.b32.xlu0 %v1596, 96
  %v1803 = vpop.permute.xlu0 %1802
  %1804 = vrot.lane.b32.xlu0 %v1597, 96
  %v1805 = vpop.permute.xlu0 %1804
  %1806 = vrot.lane.b32.xlu0 %v1598, 96
  %v1807 = vpop.permute.xlu0 %1806
  %1808 = vrot.lane.b32.xlu0 %v1599, 96
  %v1809 = vpop.permute.xlu0 %1808
  %1810 = vrot.lane.b32.xlu0 %v1600, 96
  %v1811 = vpop.permute.xlu0 %1810
  %1812 = vrot.lane.b32.xlu0 %v1601, 96
  %v1813 = vpop.permute.xlu0 %1812
  %v1822 = vmul.f32 %v1774, %v1799
  %v1823 = vmul.f32 %v1775, %v1801
  %v1824 = vmul.f32 %v1776, %v1803
  %v1825 = vmul.f32 %v1777, %v1805
  %v1826 = vmul.f32 %v1778, %v1807
  %v1827 = vmul.f32 %v1779, %v1809
  %v1828 = vmul.f32 %v1780, %v1811
  %v1829 = vmul.f32 %v1781, %v1813
  %1838 = vrot.lane.b32.xlu0 %v1822, 32
  %v1839 = vpop.permute.xlu0 %1838
  %1840 = vrot.lane.b32.xlu0 %v1823, 32
  %v1841 = vpop.permute.xlu0 %1840
  %1842 = vrot.lane.b32.xlu0 %v1824, 32
  %v1843 = vpop.permute.xlu0 %1842
  %1844 = vrot.lane.b32.xlu0 %v1825, 32
  %v1845 = vpop.permute.xlu0 %1844
  %1846 = vrot.lane.b32.xlu0 %v1826, 32
  %v1847 = vpop.permute.xlu0 %1846
  %1848 = vrot.lane.b32.xlu0 %v1827, 32
  %v1849 = vpop.permute.xlu0 %1848
  %1850 = vrot.lane.b32.xlu0 %v1828, 32
  %v1851 = vpop.permute.xlu0 %1850
  %1852 = vrot.lane.b32.xlu0 %v1829, 32
  %v1853 = vpop.permute.xlu0 %1852
  %v1862 = vsel %vm56, %v1839, 0.0
  %1863 = vadd.xlane.f32.xlu0 %v1862
  %v1864 = vpop.xlane.xlu0 %1863
  %v1865 = vsel %vm56, %v1841, 0.0
  %1866 = vadd.xlane.f32.xlu0 %v1865
  %v1867 = vpop.xlane.xlu0 %1866
  %v1868 = vsel %vm56, %v1843, 0.0
  %1869 = vadd.xlane.f32.xlu0 %v1868
  %v1870 = vpop.xlane.xlu0 %1869
  %v1871 = vsel %vm56, %v1845, 0.0
  %1872 = vadd.xlane.f32.xlu0 %v1871
  %v1873 = vpop.xlane.xlu0 %1872
  %v1874 = vsel %vm56, %v1847, 0.0
  %1875 = vadd.xlane.f32.xlu0 %v1874
  %v1876 = vpop.xlane.xlu0 %1875
  %v1877 = vsel %vm56, %v1849, 0.0
  %1878 = vadd.xlane.f32.xlu0 %v1877
  %v1879 = vpop.xlane.xlu0 %1878
  %v1880 = vsel %vm56, %v1851, 0.0
  %1881 = vadd.xlane.f32.xlu0 %v1880
  %v1882 = vpop.xlane.xlu0 %1881
  %v1883 = vsel %vm56, %v1853, 0.0
  %1884 = vadd.xlane.f32.xlu0 %v1883
  %v1885 = vpop.xlane.xlu0 %1884
  %v1887 = vperm.slane %v1602, 0
  %v1888 = vlaneseq
  %v1889 = vshrl.u32 %v1888, 7
  %1891 = vset.pattern.permute.xlu0 %v1889
  %1892 = vperm.xlu0 %1891, %v1887
  %v1893 = vpop.permute.xlu0 %1892
  %v1894 = vperm.slane %v1602, 1
  %v1895 = vlaneseq
  %v1896 = vshrl.u32 %v1895, 7
  %1898 = vset.pattern.permute.xlu0 %v1896
  %1899 = vperm.xlu0 %1898, %v1894
  %v1900 = vpop.permute.xlu0 %1899
  %v1901 = vperm.slane %v1602, 2
  %v1902 = vlaneseq
  %v1903 = vshrl.u32 %v1902, 7
  %1905 = vset.pattern.permute.xlu0 %v1903
  %1906 = vperm.xlu0 %1905, %v1901
  %v1907 = vpop.permute.xlu0 %1906
  %v1908 = vperm.slane %v1602, 3
  %v1909 = vlaneseq
  %v1910 = vshrl.u32 %v1909, 7
  %1912 = vset.pattern.permute.xlu0 %v1910
  %1913 = vperm.xlu0 %1912, %v1908
  %v1914 = vpop.permute.xlu0 %1913
  %v1915 = vperm.slane %v1602, 4
  %v1916 = vlaneseq
  %v1917 = vshrl.u32 %v1916, 7
  %1919 = vset.pattern.permute.xlu0 %v1917
  %1920 = vperm.xlu0 %1919, %v1915
  %v1921 = vpop.permute.xlu0 %1920
  %v1922 = vperm.slane %v1602, 5
  %v1923 = vlaneseq
  %v1924 = vshrl.u32 %v1923, 7
  %1926 = vset.pattern.permute.xlu0 %v1924
  %1927 = vperm.xlu0 %1926, %v1922
  %v1928 = vpop.permute.xlu0 %1927
  %v1929 = vperm.slane %v1602, 6
  %v1930 = vlaneseq
  %v1931 = vshrl.u32 %v1930, 7
  %1933 = vset.pattern.permute.xlu0 %v1931
  %1934 = vperm.xlu0 %1933, %v1929
  %v1935 = vpop.permute.xlu0 %1934
  %v1936 = vperm.slane %v1602, 7
  %v1937 = vlaneseq
  %v1938 = vshrl.u32 %v1937, 7
  %1940 = vset.pattern.permute.xlu0 %v1938
  %1941 = vperm.xlu0 %1940, %v1936
  %v1942 = vpop.permute.xlu0 %1941
  %v1951 = vadd.f32 %v1864, %v1893
  %v1952 = vadd.f32 %v1867, %v1900
  %v1953 = vadd.f32 %v1870, %v1907
  %v1954 = vadd.f32 %v1873, %v1914
  %v1955 = vadd.f32 %v1876, %v1921
  %v1956 = vadd.f32 %v1879, %v1928
  %v1957 = vadd.f32 %v1882, %v1935
  %v1958 = vadd.f32 %v1885, %v1942
  %1967 = vset.pattern.permute.xlu0 0
  %1968 = vperm.xlu0 %1967, %v1951
  %v1969 = vpop.permute.xlu0 %1968
  %1970 = vset.pattern.permute.xlu0 0
  %1971 = vperm.xlu0 %1970, %v1952
  %v1972 = vpop.permute.xlu0 %1971
  %1973 = vset.pattern.permute.xlu0 0
  %1974 = vperm.xlu0 %1973, %v1953
  %v1975 = vpop.permute.xlu0 %1974
  %1976 = vset.pattern.permute.xlu0 0
  %1977 = vperm.xlu0 %1976, %v1954
  %v1978 = vpop.permute.xlu0 %1977
  %1979 = vset.pattern.permute.xlu0 0
  %1980 = vperm.xlu0 %1979, %v1955
  %v1981 = vpop.permute.xlu0 %1980
  %1982 = vset.pattern.permute.xlu0 0
  %1983 = vperm.xlu0 %1982, %v1956
  %v1984 = vpop.permute.xlu0 %1983
  %1985 = vset.pattern.permute.xlu0 0
  %1986 = vperm.xlu0 %1985, %v1957
  %v1987 = vpop.permute.xlu0 %1986
  %1988 = vset.pattern.permute.xlu0 0
  %1989 = vperm.xlu0 %1988, %v1958
  %v1990 = vpop.permute.xlu0 %1989
  %v1991 = vperm.slane %v1969, %v127
  %v1992 = vperm.slane %v1972, %v127
  %v1993 = vperm.slane %v1975, %v127
  %v1994 = vperm.slane %v1978, %v127
  %v1995 = vperm.slane %v1981, %v127
  %v1996 = vperm.slane %v1984, %v127
  %v1997 = vperm.slane %v1987, %v127
  %v1998 = vperm.slane %v1990, %v127
  %v1999 = vsel %vm1115, %v1992, %v1991
  %v2000 = vsel %vm1118, %v1993, %v1999
  %v2001 = vsel %vm1121, %v1994, %v2000
  %v2002 = vsel %vm1124, %v1995, %v2001
  %v2003 = vsel %vm1127, %v1996, %v2002
  %v2004 = vsel %vm1130, %v1997, %v2003
  %v2005 = vsel %vm1133, %v1998, %v2004
  %vm2007 = vcmask 64512
  %v2008 = vsel %vm2007, %v2005, -inf
  %2009 = vmax.xlane.f32.xlu0 %v2008
  %v2010 = vpop.xlane.xlu0 %2009
  %v2012 = vperm.slane %v2010, 0
  %v2013 = vperm.slane %v2010, 1
  %v2014 = vperm.slane %v2010, 2
  %v2015 = vperm.slane %v2010, 3
  %v2016 = vperm.slane %v2010, 4
  %v2017 = vperm.slane %v2010, 5
  %v2018 = vperm.slane %v2010, 6
  %v2019 = vperm.slane %v2010, 7
  %v2028 = vsub.f32 %v1951, %v2012
  %v2029 = vsub.f32 %v1952, %v2013
  %v2030 = vsub.f32 %v1953, %v2014
  %v2031 = vsub.f32 %v1954, %v2015
  %v2032 = vsub.f32 %v1955, %v2016
  %v2033 = vsub.f32 %v1956, %v2017
  %v2034 = vsub.f32 %v1957, %v2018
  %v2035 = vsub.f32 %v1958, %v2019
  %v2036 = vmul.f32 %v2028, 1.442695
  %v2037 = vpow.pop %v2036
  %v2038 = vmul.f32 %v2029, 1.442695
  %v2039 = vpow.pop %v2038
  %v2040 = vmul.f32 %v2030, 1.442695
  %v2041 = vpow.pop %v2040
  %v2042 = vmul.f32 %v2031, 1.442695
  %v2043 = vpow.pop %v2042
  %v2044 = vmul.f32 %v2032, 1.442695
  %v2045 = vpow.pop %v2044
  %v2046 = vmul.f32 %v2033, 1.442695
  %v2047 = vpow.pop %v2046
  %v2048 = vmul.f32 %v2034, 1.442695
  %v2049 = vpow.pop %v2048
  %v2050 = vmul.f32 %v2035, 1.442695
  %v2051 = vpow.pop %v2050
  %2060 = vset.pattern.permute.xlu0 0
  %2061 = vperm.xlu0 %2060, %v2037
  %v2062 = vpop.permute.xlu0 %2061
  %2063 = vset.pattern.permute.xlu0 0
  %2064 = vperm.xlu0 %2063, %v2039
  %v2065 = vpop.permute.xlu0 %2064
  %2066 = vset.pattern.permute.xlu0 0
  %2067 = vperm.xlu0 %2066, %v2041
  %v2068 = vpop.permute.xlu0 %2067
  %2069 = vset.pattern.permute.xlu0 0
  %2070 = vperm.xlu0 %2069, %v2043
  %v2071 = vpop.permute.xlu0 %2070
  %2072 = vset.pattern.permute.xlu0 0
  %2073 = vperm.xlu0 %2072, %v2045
  %v2074 = vpop.permute.xlu0 %2073
  %2075 = vset.pattern.permute.xlu0 0
  %2076 = vperm.xlu0 %2075, %v2047
  %v2077 = vpop.permute.xlu0 %2076
  %2078 = vset.pattern.permute.xlu0 0
  %2079 = vperm.xlu0 %2078, %v2049
  %v2080 = vpop.permute.xlu0 %2079
  %2081 = vset.pattern.permute.xlu0 0
  %2082 = vperm.xlu0 %2081, %v2051
  %v2083 = vpop.permute.xlu0 %2082
  %v2084 = vperm.slane %v2062, %v127
  %v2085 = vperm.slane %v2065, %v127
  %v2086 = vperm.slane %v2068, %v127
  %v2087 = vperm.slane %v2071, %v127
  %v2088 = vperm.slane %v2074, %v127
  %v2089 = vperm.slane %v2077, %v127
  %v2090 = vperm.slane %v2080, %v127
  %v2091 = vperm.slane %v2083, %v127
  %v2092 = vsel %vm1115, %v2085, %v2084
  %v2093 = vsel %vm1118, %v2086, %v2092
  %v2094 = vsel %vm1121, %v2087, %v2093
  %v2095 = vsel %vm1124, %v2088, %v2094
  %v2096 = vsel %vm1127, %v2089, %v2095
  %v2097 = vsel %vm1130, %v2090, %v2096
  %v2098 = vsel %vm1133, %v2091, %v2097
  %v2100 = vsel %vm2007, %v2098, 0.0
  %2101 = vadd.xlane.f32.xlu0 %v2100
  %v2102 = vpop.xlane.xlu0 %2101
  %v2104 = vperm.slane %v2102, 0
  %v2105 = vperm.slane %v2102, 1
  %v2106 = vperm.slane %v2102, 2
  %v2107 = vperm.slane %v2102, 3
  %v2108 = vperm.slane %v2102, 4
  %v2109 = vperm.slane %v2102, 5
  %v2110 = vperm.slane %v2102, 6
  %v2111 = vperm.slane %v2102, 7
  %v2120 = vrcp.pop %v2104
  %v2121 = vmul.f32 %v2104, %v2120
  %v2122 = vsub.f32 1.0, %v2121
  %v2123 = vmul.f32 %v2120, %v2122
  %v2124 = vadd.f32 %v2120, %v2123
  %vm2125 = vweird.f32 %v2104
  %vm2126 = vweird.f32 %v2120
  %vm2127 = vmor %vm2125, %vm2126
  %v2128 = vsel %vm2127, %v2120, %v2124
  %v2129 = vand.u32 2147483647, %v2104
  %vm2130 = vcmp.eq.f32.partialorder %v2129, 8.507059e+37
  %v2131 = vand.u32 %v2104, 2147483648
  %v2132 = vor.u32 1.1754944e-38, %v2131
  %v2133 = vsel %vm2130, %v2132, %v2128
  %v2134 = vmul.f32 %v2037, %v2133
  %v2135 = vrcp.pop %v2105
  %v2136 = vmul.f32 %v2105, %v2135
  %v2137 = vsub.f32 1.0, %v2136
  %v2138 = vmul.f32 %v2135, %v2137
  %v2139 = vadd.f32 %v2135, %v2138
  %vm2140 = vweird.f32 %v2105
  %vm2141 = vweird.f32 %v2135
  %vm2142 = vmor %vm2140, %vm2141
  %v2143 = vsel %vm2142, %v2135, %v2139
  %v2144 = vand.u32 2147483647, %v2105
  %vm2145 = vcmp.eq.f32.partialorder %v2144, 8.507059e+37
  %v2146 = vand.u32 %v2105, 2147483648
  %v2147 = vor.u32 1.1754944e-38, %v2146
  %v2148 = vsel %vm2145, %v2147, %v2143
  %v2149 = vmul.f32 %v2039, %v2148
  %v2150 = vrcp.pop %v2106
  %v2151 = vmul.f32 %v2106, %v2150
  %v2152 = vsub.f32 1.0, %v2151
  %v2153 = vmul.f32 %v2150, %v2152
  %v2154 = vadd.f32 %v2150, %v2153
  %vm2155 = vweird.f32 %v2106
  %vm2156 = vweird.f32 %v2150
  %vm2157 = vmor %vm2155, %vm2156
  %v2158 = vsel %vm2157, %v2150, %v2154
  %v2159 = vand.u32 2147483647, %v2106
  %vm2160 = vcmp.eq.f32.partialorder %v2159, 8.507059e+37
  %v2161 = vand.u32 %v2106, 2147483648
  %v2162 = vor.u32 1.1754944e-38, %v2161
  %v2163 = vsel %vm2160, %v2162, %v2158
  %v2164 = vmul.f32 %v2041, %v2163
  %v2165 = vrcp.pop %v2107
  %v2166 = vmul.f32 %v2107, %v2165
  %v2167 = vsub.f32 1.0, %v2166
  %v2168 = vmul.f32 %v2165, %v2167
  %v2169 = vadd.f32 %v2165, %v2168
  %vm2170 = vweird.f32 %v2107
  %vm2171 = vweird.f32 %v2165
  %vm2172 = vmor %vm2170, %vm2171
  %v2173 = vsel %vm2172, %v2165, %v2169
  %v2174 = vand.u32 2147483647, %v2107
  %vm2175 = vcmp.eq.f32.partialorder %v2174, 8.507059e+37
  %v2176 = vand.u32 %v2107, 2147483648
  %v2177 = vor.u32 1.1754944e-38, %v2176
  %v2178 = vsel %vm2175, %v2177, %v2173
  %v2179 = vmul.f32 %v2043, %v2178
  %v2180 = vrcp.pop %v2108
  %v2181 = vmul.f32 %v2108, %v2180
  %v2182 = vsub.f32 1.0, %v2181
  %v2183 = vmul.f32 %v2180, %v2182
  %v2184 = vadd.f32 %v2180, %v2183
  %vm2185 = vweird.f32 %v2108
  %vm2186 = vweird.f32 %v2180
  %vm2187 = vmor %vm2185, %vm2186
  %v2188 = vsel %vm2187, %v2180, %v2184
  %v2189 = vand.u32 2147483647, %v2108
  %vm2190 = vcmp.eq.f32.partialorder %v2189, 8.507059e+37
  %v2191 = vand.u32 %v2108, 2147483648
  %v2192 = vor.u32 1.1754944e-38, %v2191
  %v2193 = vsel %vm2190, %v2192, %v2188
  %v2194 = vmul.f32 %v2045, %v2193
  %v2195 = vrcp.pop %v2109
  %v2196 = vmul.f32 %v2109, %v2195
  %v2197 = vsub.f32 1.0, %v2196
  %v2198 = vmul.f32 %v2195, %v2197
  %v2199 = vadd.f32 %v2195, %v2198
  %vm2200 = vweird.f32 %v2109
  %vm2201 = vweird.f32 %v2195
  %vm2202 = vmor %vm2200, %vm2201
  %v2203 = vsel %vm2202, %v2195, %v2199
  %v2204 = vand.u32 2147483647, %v2109
  %vm2205 = vcmp.eq.f32.partialorder %v2204, 8.507059e+37
  %v2206 = vand.u32 %v2109, 2147483648
  %v2207 = vor.u32 1.1754944e-38, %v2206
  %v2208 = vsel %vm2205, %v2207, %v2203
  %v2209 = vmul.f32 %v2047, %v2208
  %v2210 = vrcp.pop %v2110
  %v2211 = vmul.f32 %v2110, %v2210
  %v2212 = vsub.f32 1.0, %v2211
  %v2213 = vmul.f32 %v2210, %v2212
  %v2214 = vadd.f32 %v2210, %v2213
  %vm2215 = vweird.f32 %v2110
  %vm2216 = vweird.f32 %v2210
  %vm2217 = vmor %vm2215, %vm2216
  %v2218 = vsel %vm2217, %v2210, %v2214
  %v2219 = vand.u32 2147483647, %v2110
  %vm2220 = vcmp.eq.f32.partialorder %v2219, 8.507059e+37
  %v2221 = vand.u32 %v2110, 2147483648
  %v2222 = vor.u32 1.1754944e-38, %v2221
  %v2223 = vsel %vm2220, %v2222, %v2218
  %v2224 = vmul.f32 %v2049, %v2223
  %v2225 = vrcp.pop %v2111
  %v2226 = vmul.f32 %v2111, %v2225
  %v2227 = vsub.f32 1.0, %v2226
  %v2228 = vmul.f32 %v2225, %v2227
  %v2229 = vadd.f32 %v2225, %v2228
  %vm2230 = vweird.f32 %v2111
  %vm2231 = vweird.f32 %v2225
  %vm2232 = vmor %vm2230, %vm2231
  %v2233 = vsel %vm2232, %v2225, %v2229
  %v2234 = vand.u32 2147483647, %v2111
  %vm2235 = vcmp.eq.f32.partialorder %v2234, 8.507059e+37
  %v2236 = vand.u32 %v2111, 2147483648
  %v2237 = vor.u32 1.1754944e-38, %v2236
  %v2238 = vsel %vm2235, %v2237, %v2233
  %v2239 = vmul.f32 %v2051, %v2238
  %2241 = vset.pattern.permute.xlu0 0
  %2242 = vperm.xlu0 %2241, %v2134
  %v2243 = vpop.permute.xlu0 %2242
  %2246 = vset.pattern.permute.xlu0 0
  %2247 = vperm.xlu0 %2246, %v2149
  %v2248 = vpop.permute.xlu0 %2247
  %2251 = vset.pattern.permute.xlu0 0
  %2252 = vperm.xlu0 %2251, %v2164
  %v2253 = vpop.permute.xlu0 %2252
  %2256 = vset.pattern.permute.xlu0 0
  %2257 = vperm.xlu0 %2256, %v2179
  %v2258 = vpop.permute.xlu0 %2257
  %2261 = vset.pattern.permute.xlu0 0
  %2262 = vperm.xlu0 %2261, %v2194
  %v2263 = vpop.permute.xlu0 %2262
  %2266 = vset.pattern.permute.xlu0 0
  %2267 = vperm.xlu0 %2266, %v2209
  %v2268 = vpop.permute.xlu0 %2267
  %2271 = vset.pattern.permute.xlu0 0
  %2272 = vperm.xlu0 %2271, %v2224
  %v2273 = vpop.permute.xlu0 %2272
  %2276 = vset.pattern.permute.xlu0 0
  %2277 = vperm.xlu0 %2276, %v2239
  %v2278 = vpop.permute.xlu0 %2277
  %v2280 = vmul.f32 %v2243, %v1094
  %v2281 = vmul.f32 %v2248, %v1095
  %v2282 = vmul.f32 %v2253, %v1096
  %v2283 = vmul.f32 %v2258, %v1097
  %v2284 = vmul.f32 %v2263, %v1098
  %v2285 = vmul.f32 %v2268, %v1099
  %v2286 = vmul.f32 %v2273, %v1100
  %v2287 = vmul.f32 %v2278, %v1101
  %v2288 = vsel %vm56, %v2280, 0.0
  %v2289 = vrot.slane %v2288, 4
  %v2290 = vadd.f32 %v2288, %v2289
  %v2291 = vrot.slane %v2290, 2
  %v2292 = vadd.f32 %v2290, %v2291
  %v2293 = vrot.slane %v2292, 1
  %v2294 = vadd.f32 %v2292, %v2293
  %v2295 = vsel %vm56, %v2281, 0.0
  %v2296 = vrot.slane %v2295, 4
  %v2297 = vadd.f32 %v2295, %v2296
  %v2298 = vrot.slane %v2297, 2
  %v2299 = vadd.f32 %v2297, %v2298
  %v2300 = vrot.slane %v2299, 1
  %v2301 = vadd.f32 %v2299, %v2300
  %v2302 = vsel %vm56, %v2282, 0.0
  %v2303 = vrot.slane %v2302, 4
  %v2304 = vadd.f32 %v2302, %v2303
  %v2305 = vrot.slane %v2304, 2
  %v2306 = vadd.f32 %v2304, %v2305
  %v2307 = vrot.slane %v2306, 1
  %v2308 = vadd.f32 %v2306, %v2307
  %v2309 = vsel %vm56, %v2283, 0.0
  %v2310 = vrot.slane %v2309, 4
  %v2311 = vadd.f32 %v2309, %v2310
  %v2312 = vrot.slane %v2311, 2
  %v2313 = vadd.f32 %v2311, %v2312
  %v2314 = vrot.slane %v2313, 1
  %v2315 = vadd.f32 %v2313, %v2314
  %v2316 = vsel %vm56, %v2284, 0.0
  %v2317 = vrot.slane %v2316, 4
  %v2318 = vadd.f32 %v2316, %v2317
  %v2319 = vrot.slane %v2318, 2
  %v2320 = vadd.f32 %v2318, %v2319
  %v2321 = vrot.slane %v2320, 1
  %v2322 = vadd.f32 %v2320, %v2321
  %v2323 = vsel %vm56, %v2285, 0.0
  %v2324 = vrot.slane %v2323, 4
  %v2325 = vadd.f32 %v2323, %v2324
  %v2326 = vrot.slane %v2325, 2
  %v2327 = vadd.f32 %v2325, %v2326
  %v2328 = vrot.slane %v2327, 1
  %v2329 = vadd.f32 %v2327, %v2328
  %v2330 = vsel %vm56, %v2286, 0.0
  %v2331 = vrot.slane %v2330, 4
  %v2332 = vadd.f32 %v2330, %v2331
  %v2333 = vrot.slane %v2332, 2
  %v2334 = vadd.f32 %v2332, %v2333
  %v2335 = vrot.slane %v2334, 1
  %v2336 = vadd.f32 %v2334, %v2335
  %v2337 = vsel %vm56, %v2287, 0.0
  %v2338 = vrot.slane %v2337, 4
  %v2339 = vadd.f32 %v2337, %v2338
  %v2340 = vrot.slane %v2339, 2
  %v2341 = vadd.f32 %v2339, %v2340
  %v2342 = vrot.slane %v2341, 1
  %v2343 = vadd.f32 %v2341, %v2342
  %v2352 = vsel %vm1115, %v2301, %v2294
  %v2353 = vsel %vm1118, %v2308, %v2352
  %v2354 = vsel %vm1121, %v2315, %v2353
  %v2355 = vsel %vm1124, %v2322, %v2354
  %v2356 = vsel %vm1127, %v2329, %v2355
  %v2357 = vsel %vm1130, %v2336, %v2356
  %v2358 = vsel %vm1133, %v2343, %v2357
  %2360 = vrot.lane.b32.xlu0 %v1765, 64
  %v2361 = vpop.permute.xlu0 %2360
  %v2363 = vsel %vm56, %v2358, %v2361
  %v2365 = vsel %vm1704, %v2363, 0
  %2367 = vmatpush.msra.mxu0 0.0
  %2368 = vmatpush.msra.mxu0 0.0
  %2369 = vmatpush.msra.mxu0 0.0
  %2370 = vmatpush.msra.mxu0 0.0
  %2371 = vmatpush.msra.mxu0 0.0
  %2372 = vmatpush.msra.mxu0 0.0
  %2373 = vmatpush.msra.mxu0 0.0
  %2374 = vmatpush.msra.mxu0 0.0
  %2375 = vmatpush.msra.mxu0 %v1699
  %2376 = vmatpush.msra.mxu0 %v1698
  %2377 = vmatpush.msra.mxu0 %v1697
  %2378 = vmatpush.msra.mxu0 %v1696
  %2379 = vmatpush.msra.mxu0 %v1695
  %2380 = vmatpush.msra.mxu0 %v1694
  %2381 = vmatpush.msra.mxu0 %v1693
  %2382 = vmatpush.msra.mxu0 %v1692
  %2383 = vmatmul.f32.gmra.mxu0 %v2365
  %v2384 = vpop.f32.mrf.mxu0
  %v2385 = vadd.f32 0.0, %v2384
  %2386 = vdwg.mxu0
  %v2387 = vtanh.pop %v2385
  %2388 = vst.msk [vmem:[%s11] sm:$0xff] %vm56, %v2387
  %v2389 = vperm.slane %v2243, %v127
  %v2390 = vperm.slane %v2248, %v127
  %v2391 = vperm.slane %v2253, %v127
  %v2392 = vperm.slane %v2258, %v127
  %v2393 = vperm.slane %v2263, %v127
  %v2394 = vperm.slane %v2268, %v127
  %v2395 = vperm.slane %v2273, %v127
  %v2396 = vperm.slane %v2278, %v127
  %v2397 = vsel %vm1115, %v2390, %v2389
  %v2398 = vsel %vm1118, %v2391, %v2397
  %v2399 = vsel %vm1121, %v2392, %v2398
  %v2400 = vsel %vm1124, %v2393, %v2399
  %v2401 = vsel %vm1127, %v2394, %v2400
  %v2402 = vsel %vm1130, %v2395, %v2401
  %v2403 = vsel %vm1133, %v2396, %v2402
  %2405 = vst.msk [vmem:[%s12] sm:$0xff] %vm2007, %v2403
  %v2406 = vsel %vm56, %v2387, %v2361
  %v2408 = vsel %vm1704, %v2406, 0
  %2410 = vmatpush.msra.mxu0 0.0
  %2411 = vmatpush.msra.mxu0 0.0
  %2412 = vmatpush.msra.mxu0 0.0
  %2413 = vmatpush.msra.mxu0 0.0
  %2414 = vmatpush.msra.mxu0 0.0
  %2415 = vmatpush.msra.mxu0 0.0
  %2416 = vmatpush.msra.mxu0 0.0
  %2417 = vmatpush.msra.mxu0 0.0
  %2418 = vmatpush.msra.mxu0 %v1691
  %2419 = vmatpush.msra.mxu0 %v1690
  %2420 = vmatpush.msra.mxu0 %v1689
  %2421 = vmatpush.msra.mxu0 %v1688
  %2422 = vmatpush.msra.mxu0 %v1687
  %2423 = vmatpush.msra.mxu0 %v1686
  %2424 = vmatpush.msra.mxu0 %v1685
  %2425 = vmatpush.msra.mxu0 %v1684
  %2426 = vmatmul.f32.gmra.mxu0 %v2408
  %v2427 = vpop.f32.mrf.mxu0
  %v2428 = vadd.f32 0.0, %v2427
  %2429 = vdwg.mxu0
  %v2430 = vadd.f32 %v1664, %v2428
  %v2431 = vxor.u32 %v2430, 2147483648
  %v2432 = vmul.f32 %v2431, 1.442695
  %v2433 = vpow.pop %v2432
  %v2434 = vadd.f32 %v2433, 1.0
  %v2435 = vrcp.pop %v2434
  %v2436 = vmul.f32 %v2434, %v2435
  %v2437 = vsub.f32 1.0, %v2436
  %v2438 = vmul.f32 %v2435, %v2437
  %v2439 = vadd.f32 %v2435, %v2438
  %vm2440 = vweird.f32 %v2434
  %vm2441 = vweird.f32 %v2435
  %vm2442 = vmor %vm2440, %vm2441
  %v2443 = vsel %vm2442, %v2435, %v2439
  %v2444 = vand.u32 2147483647, %v2434
  %vm2445 = vcmp.eq.f32.partialorder %v2444, 8.507059e+37
  %v2446 = vand.u32 %v2434, 2147483648
  %v2447 = vor.u32 1.1754944e-38, %v2446
  %v2448 = vsel %vm2445, %v2447, %v2443
  %v2449 = vmul.f32 1.0, %v2448
  %v2450 = vtanh.pop %v2430
  %v2451 = vmul.f32 %v2449, %v1759
  %2453 = vrot.lane.b32.xlu0 %v2450, 64
  %v2454 = vpop.permute.xlu0 %2453
  %v2456 = vmul.f32 %v2449, %v2454
  %2458 = vrot.lane.b32.xlu0 %v2456, 32
  %v2459 = vpop.permute.xlu0 %2458
  %v2461 = vadd.f32 %v2451, %v2459
  %v2462 = vtanh.pop %v2461
  %2464 = vrot.lane.b32.xlu0 %v2462, 64
  %v2465 = vpop.permute.xlu0 %2464
  %v2467 = vmul.f32 %v2449, %v2465
  %v2469 = vrot.slane %v2467, 1
  %v2470 = vrot.slane %v2467, 2
  %v2471 = vrot.slane %v2467, 3
  %v2472 = vrot.slane %v2467, 4
  %v2473 = vrot.slane %v2467, 5
  %v2474 = vrot.slane %v2467, 6
  %v2475 = vrot.slane %v2467, 7
  %v2476 = vperm.slane %v2467, 0
  %v2477 = vperm.slane %v2469, 0
  %v2478 = vperm.slane %v2470, 0
  %v2479 = vperm.slane %v2471, 0
  %v2480 = vperm.slane %v2472, 0
  %v2481 = vperm.slane %v2473, 0
  %v2482 = vperm.slane %v2474, 0
  %v2483 = vperm.slane %v2475, 0
  %v2492 = vmul.f32 %v2476, %v1799
  %v2493 = vmul.f32 %v2477, %v1801
  %v2494 = vmul.f32 %v2478, %v1803
  %v2495 = vmul.f32 %v2479, %v1805
  %v2496 = vmul.f32 %v2480, %v1807
  %v2497 = vmul.f32 %v2481, %v1809
  %v2498 = vmul.f32 %v2482, %v1811
  %v2499 = vmul.f32 %v2483, %v1813
  %2508 = vrot.lane.b32.xlu0 %v2492, 32
  %v2509 = vpop.permute.xlu0 %2508
  %2510 = vrot.lane.b32.xlu0 %v2493, 32
  %v2511 = vpop.permute.xlu0 %2510
  %2512 = vrot.lane.b32.xlu0 %v2494, 32
  %v2513 = vpop.permute.xlu0 %2512
  %2514 = vrot.lane.b32.xlu0 %v2495, 32
  %v2515 = vpop.permute.xlu0 %2514
  %2516 = vrot.lane.b32.xlu0 %v2496, 32
  %v2517 = vpop.permute.xlu0 %2516
  %2518 = vrot.lane.b32.xlu0 %v2497, 32
  %v2519 = vpop.permute.xlu0 %2518
  %2520 = vrot.lane.b32.xlu0 %v2498, 32
  %v2521 = vpop.permute.xlu0 %2520
  %2522 = vrot.lane.b32.xlu0 %v2499, 32
  %v2523 = vpop.permute.xlu0 %2522
  %v2532 = vsel %vm56, %v2509, 0.0
  %2533 = vadd.xlane.f32.xlu0 %v2532
  %v2534 = vpop.xlane.xlu0 %2533
  %v2535 = vsel %vm56, %v2511, 0.0
  %2536 = vadd.xlane.f32.xlu0 %v2535
  %v2537 = vpop.xlane.xlu0 %2536
  %v2538 = vsel %vm56, %v2513, 0.0
  %2539 = vadd.xlane.f32.xlu0 %v2538
  %v2540 = vpop.xlane.xlu0 %2539
  %v2541 = vsel %vm56, %v2515, 0.0
  %2542 = vadd.xlane.f32.xlu0 %v2541
  %v2543 = vpop.xlane.xlu0 %2542
  %v2544 = vsel %vm56, %v2517, 0.0
  %2545 = vadd.xlane.f32.xlu0 %v2544
  %v2546 = vpop.xlane.xlu0 %2545
  %v2547 = vsel %vm56, %v2519, 0.0
  %2548 = vadd.xlane.f32.xlu0 %v2547
  %v2549 = vpop.xlane.xlu0 %2548
  %v2550 = vsel %vm56, %v2521, 0.0
  %2551 = vadd.xlane.f32.xlu0 %v2550
  %v2552 = vpop.xlane.xlu0 %2551
  %v2553 = vsel %vm56, %v2523, 0.0
  %2554 = vadd.xlane.f32.xlu0 %v2553
  %v2555 = vpop.xlane.xlu0 %2554
  %v2556 = vadd.f32 %v2534, %v1893
  %v2557 = vadd.f32 %v2537, %v1900
  %v2558 = vadd.f32 %v2540, %v1907
  %v2559 = vadd.f32 %v2543, %v1914
  %v2560 = vadd.f32 %v2546, %v1921
  %v2561 = vadd.f32 %v2549, %v1928
  %v2562 = vadd.f32 %v2552, %v1935
  %v2563 = vadd.f32 %v2555, %v1942
  %2572 = vset.pattern.permute.xlu0 0
  %2573 = vperm.xlu0 %2572, %v2556
  %v2574 = vpop.permute.xlu0 %2573
  %2575 = vset.pattern.permute.xlu0 0
  %2576 = vperm.xlu0 %2575, %v2557
  %v2577 = vpop.permute.xlu0 %2576
  %2578 = vset.pattern.permute.xlu0 0
  %2579 = vperm.xlu0 %2578, %v2558
  %v2580 = vpop.permute.xlu0 %2579
  %2581 = vset.pattern.permute.xlu0 0
  %2582 = vperm.xlu0 %2581, %v2559
  %v2583 = vpop.permute.xlu0 %2582
  %2584 = vset.pattern.permute.xlu0 0
  %2585 = vperm.xlu0 %2584, %v2560
  %v2586 = vpop.permute.xlu0 %2585
  %2587 = vset.pattern.permute.xlu0 0
  %2588 = vperm.xlu0 %2587, %v2561
  %v2589 = vpop.permute.xlu0 %2588
  %2590 = vset.pattern.permute.xlu0 0
  %2591 = vperm.xlu0 %2590, %v2562
  %v2592 = vpop.permute.xlu0 %2591
  %2593 = vset.pattern.permute.xlu0 0
  %2594 = vperm.xlu0 %2593, %v2563
  %v2595 = vpop.permute.xlu0 %2594
  %v2596 = vperm.slane %v2574, %v127
  %v2597 = vperm.slane %v2577, %v127
  %v2598 = vperm.slane %v2580, %v127
  %v2599 = vperm.slane %v2583, %v127
  %v2600 = vperm.slane %v2586, %v127
  %v2601 = vperm.slane %v2589, %v127
  %v2602 = vperm.slane %v2592, %v127
  %v2603 = vperm.slane %v2595, %v127
  %v2604 = vsel %vm1115, %v2597, %v2596
  %v2605 = vsel %vm1118, %v2598, %v2604
  %v2606 = vsel %vm1121, %v2599, %v2605
  %v2607 = vsel %vm1124, %v2600, %v2606
  %v2608 = vsel %vm1127, %v2601, %v2607
  %v2609 = vsel %vm1130, %v2602, %v2608
  %v2610 = vsel %vm1133, %v2603, %v2609
  %v2612 = vsel %vm2007, %v2610, -inf
  %2613 = vmax.xlane.f32.xlu0 %v2612
  %v2614 = vpop.xlane.xlu0 %2613
  %v2616 = vperm.slane %v2614, 0
  %v2617 = vperm.slane %v2614, 1
  %v2618 = vperm.slane %v2614, 2
  %v2619 = vperm.slane %v2614, 3
  %v2620 = vperm.slane %v2614, 4
  %v2621 = vperm.slane %v2614, 5
  %v2622 = vperm.slane %v2614, 6
  %v2623 = vperm.slane %v2614, 7
  %v2632 = vsub.f32 %v2556, %v2616
  %v2633 = vsub.f32 %v2557, %v2617
  %v2634 = vsub.f32 %v2558, %v2618
  %v2635 = vsub.f32 %v2559, %v2619
  %v2636 = vsub.f32 %v2560, %v2620
  %v2637 = vsub.f32 %v2561, %v2621
  %v2638 = vsub.f32 %v2562, %v2622
  %v2639 = vsub.f32 %v2563, %v2623
  %v2640 = vmul.f32 %v2632, 1.442695
  %v2641 = vpow.pop %v2640
  %v2642 = vmul.f32 %v2633, 1.442695
  %v2643 = vpow.pop %v2642
  %v2644 = vmul.f32 %v2634, 1.442695
  %v2645 = vpow.pop %v2644
  %v2646 = vmul.f32 %v2635, 1.442695
  %v2647 = vpow.pop %v2646
  %v2648 = vmul.f32 %v2636, 1.442695
  %v2649 = vpow.pop %v2648
  %v2650 = vmul.f32 %v2637, 1.442695
  %v2651 = vpow.pop %v2650
  %v2652 = vmul.f32 %v2638, 1.442695
  %v2653 = vpow.pop %v2652
  %v2654 = vmul.f32 %v2639, 1.442695
  %v2655 = vpow.pop %v2654
  %2664 = vset.pattern.permute.xlu0 0
  %2665 = vperm.xlu0 %2664, %v2641
  %v2666 = vpop.permute.xlu0 %2665
  %2667 = vset.pattern.permute.xlu0 0
  %2668 = vperm.xlu0 %2667, %v2643
  %v2669 = vpop.permute.xlu0 %2668
  %2670 = vset.pattern.permute.xlu0 0
  %2671 = vperm.xlu0 %2670, %v2645
  %v2672 = vpop.permute.xlu0 %2671
  %2673 = vset.pattern.permute.xlu0 0
  %2674 = vperm.xlu0 %2673, %v2647
  %v2675 = vpop.permute.xlu0 %2674
  %2676 = vset.pattern.permute.xlu0 0
  %2677 = vperm.xlu0 %2676, %v2649
  %v2678 = vpop.permute.xlu0 %2677
  %2679 = vset.pattern.permute.xlu0 0
  %2680 = vperm.xlu0 %2679, %v2651
  %v2681 = vpop.permute.xlu0 %2680
  %2682 = vset.pattern.permute.xlu0 0
  %2683 = vperm.xlu0 %2682, %v2653
  %v2684 = vpop.permute.xlu0 %2683
  %2685 = vset.pattern.permute.xlu0 0
  %2686 = vperm.xlu0 %2685, %v2655
  %v2687 = vpop.permute.xlu0 %2686
  %v2688 = vperm.slane %v2666, %v127
  %v2689 = vperm.slane %v2669, %v127
  %v2690 = vperm.slane %v2672, %v127
  %v2691 = vperm.slane %v2675, %v127
  %v2692 = vperm.slane %v2678, %v127
  %v2693 = vperm.slane %v2681, %v127
  %v2694 = vperm.slane %v2684, %v127
  %v2695 = vperm.slane %v2687, %v127
  %v2696 = vsel %vm1115, %v2689, %v2688
  %v2697 = vsel %vm1118, %v2690, %v2696
  %v2698 = vsel %vm1121, %v2691, %v2697
  %v2699 = vsel %vm1124, %v2692, %v2698
  %v2700 = vsel %vm1127, %v2693, %v2699
  %v2701 = vsel %vm1130, %v2694, %v2700
  %v2702 = vsel %vm1133, %v2695, %v2701
  %v2704 = vsel %vm2007, %v2702, 0.0
  %2705 = vadd.xlane.f32.xlu0 %v2704
  %v2706 = vpop.xlane.xlu0 %2705
  %v2708 = vperm.slane %v2706, 0
  %v2709 = vperm.slane %v2706, 1
  %v2710 = vperm.slane %v2706, 2
  %v2711 = vperm.slane %v2706, 3
  %v2712 = vperm.slane %v2706, 4
  %v2713 = vperm.slane %v2706, 5
  %v2714 = vperm.slane %v2706, 6
  %v2715 = vperm.slane %v2706, 7
  %v2724 = vrcp.pop %v2708
  %v2725 = vmul.f32 %v2708, %v2724
  %v2726 = vsub.f32 1.0, %v2725
  %v2727 = vmul.f32 %v2724, %v2726
  %v2728 = vadd.f32 %v2724, %v2727
  %vm2729 = vweird.f32 %v2708
  %vm2730 = vweird.f32 %v2724
  %vm2731 = vmor %vm2729, %vm2730
  %v2732 = vsel %vm2731, %v2724, %v2728
  %v2733 = vand.u32 2147483647, %v2708
  %vm2734 = vcmp.eq.f32.partialorder %v2733, 8.507059e+37
  %v2735 = vand.u32 %v2708, 2147483648
  %v2736 = vor.u32 1.1754944e-38, %v2735
  %v2737 = vsel %vm2734, %v2736, %v2732
  %v2738 = vmul.f32 %v2641, %v2737
  %v2739 = vrcp.pop %v2709
  %v2740 = vmul.f32 %v2709, %v2739
  %v2741 = vsub.f32 1.0, %v2740
  %v2742 = vmul.f32 %v2739, %v2741
  %v2743 = vadd.f32 %v2739, %v2742
  %vm2744 = vweird.f32 %v2709
  %vm2745 = vweird.f32 %v2739
  %vm2746 = vmor %vm2744, %vm2745
  %v2747 = vsel %vm2746, %v2739, %v2743
  %v2748 = vand.u32 2147483647, %v2709
  %vm2749 = vcmp.eq.f32.partialorder %v2748, 8.507059e+37
  %v2750 = vand.u32 %v2709, 2147483648
  %v2751 = vor.u32 1.1754944e-38, %v2750
  %v2752 = vsel %vm2749, %v2751, %v2747
  %v2753 = vmul.f32 %v2643, %v2752
  %v2754 = vrcp.pop %v2710
  %v2755 = vmul.f32 %v2710, %v2754
  %v2756 = vsub.f32 1.0, %v2755
  %v2757 = vmul.f32 %v2754, %v2756
  %v2758 = vadd.f32 %v2754, %v2757
  %vm2759 = vweird.f32 %v2710
  %vm2760 = vweird.f32 %v2754
  %vm2761 = vmor %vm2759, %vm2760
  %v2762 = vsel %vm2761, %v2754, %v2758
  %v2763 = vand.u32 2147483647, %v2710
  %vm2764 = vcmp.eq.f32.partialorder %v2763, 8.507059e+37
  %v2765 = vand.u32 %v2710, 2147483648
  %v2766 = vor.u32 1.1754944e-38, %v2765
  %v2767 = vsel %vm2764, %v2766, %v2762
  %v2768 = vmul.f32 %v2645, %v2767
  %v2769 = vrcp.pop %v2711
  %v2770 = vmul.f32 %v2711, %v2769
  %v2771 = vsub.f32 1.0, %v2770
  %v2772 = vmul.f32 %v2769, %v2771
  %v2773 = vadd.f32 %v2769, %v2772
  %vm2774 = vweird.f32 %v2711
  %vm2775 = vweird.f32 %v2769
  %vm2776 = vmor %vm2774, %vm2775
  %v2777 = vsel %vm2776, %v2769, %v2773
  %v2778 = vand.u32 2147483647, %v2711
  %vm2779 = vcmp.eq.f32.partialorder %v2778, 8.507059e+37
  %v2780 = vand.u32 %v2711, 2147483648
  %v2781 = vor.u32 1.1754944e-38, %v2780
  %v2782 = vsel %vm2779, %v2781, %v2777
  %v2783 = vmul.f32 %v2647, %v2782
  %v2784 = vrcp.pop %v2712
  %v2785 = vmul.f32 %v2712, %v2784
  %v2786 = vsub.f32 1.0, %v2785
  %v2787 = vmul.f32 %v2784, %v2786
  %v2788 = vadd.f32 %v2784, %v2787
  %vm2789 = vweird.f32 %v2712
  %vm2790 = vweird.f32 %v2784
  %vm2791 = vmor %vm2789, %vm2790
  %v2792 = vsel %vm2791, %v2784, %v2788
  %v2793 = vand.u32 2147483647, %v2712
  %vm2794 = vcmp.eq.f32.partialorder %v2793, 8.507059e+37
  %v2795 = vand.u32 %v2712, 2147483648
  %v2796 = vor.u32 1.1754944e-38, %v2795
  %v2797 = vsel %vm2794, %v2796, %v2792
  %v2798 = vmul.f32 %v2649, %v2797
  %v2799 = vrcp.pop %v2713
  %v2800 = vmul.f32 %v2713, %v2799
  %v2801 = vsub.f32 1.0, %v2800
  %v2802 = vmul.f32 %v2799, %v2801
  %v2803 = vadd.f32 %v2799, %v2802
  %vm2804 = vweird.f32 %v2713
  %vm2805 = vweird.f32 %v2799
  %vm2806 = vmor %vm2804, %vm2805
  %v2807 = vsel %vm2806, %v2799, %v2803
  %v2808 = vand.u32 2147483647, %v2713
  %vm2809 = vcmp.eq.f32.partialorder %v2808, 8.507059e+37
  %v2810 = vand.u32 %v2713, 2147483648
  %v2811 = vor.u32 1.1754944e-38, %v2810
  %v2812 = vsel %vm2809, %v2811, %v2807
  %v2813 = vmul.f32 %v2651, %v2812
  %v2814 = vrcp.pop %v2714
  %v2815 = vmul.f32 %v2714, %v2814
  %v2816 = vsub.f32 1.0, %v2815
  %v2817 = vmul.f32 %v2814, %v2816
  %v2818 = vadd.f32 %v2814, %v2817
  %vm2819 = vweird.f32 %v2714
  %vm2820 = vweird.f32 %v2814
  %vm2821 = vmor %vm2819, %vm2820
  %v2822 = vsel %vm2821, %v2814, %v2818
  %v2823 = vand.u32 2147483647, %v2714
  %vm2824 = vcmp.eq.f32.partialorder %v2823, 8.507059e+37
  %v2825 = vand.u32 %v2714, 2147483648
  %v2826 = vor.u32 1.1754944e-38, %v2825
  %v2827 = vsel %vm2824, %v2826, %v2822
  %v2828 = vmul.f32 %v2653, %v2827
  %v2829 = vrcp.pop %v2715
  %v2830 = vmul.f32 %v2715, %v2829
  %v2831 = vsub.f32 1.0, %v2830
  %v2832 = vmul.f32 %v2829, %v2831
  %v2833 = vadd.f32 %v2829, %v2832
  %vm2834 = vweird.f32 %v2715
  %vm2835 = vweird.f32 %v2829
  %vm2836 = vmor %vm2834, %vm2835
  %v2837 = vsel %vm2836, %v2829, %v2833
  %v2838 = vand.u32 2147483647, %v2715
  %vm2839 = vcmp.eq.f32.partialorder %v2838, 8.507059e+37
  %v2840 = vand.u32 %v2715, 2147483648
  %v2841 = vor.u32 1.1754944e-38, %v2840
  %v2842 = vsel %vm2839, %v2841, %v2837
  %v2843 = vmul.f32 %v2655, %v2842
  %2845 = vset.pattern.permute.xlu0 0
  %2846 = vperm.xlu0 %2845, %v2738
  %v2847 = vpop.permute.xlu0 %2846
  %2850 = vset.pattern.permute.xlu0 0
  %2851 = vperm.xlu0 %2850, %v2753
  %v2852 = vpop.permute.xlu0 %2851
  %2855 = vset.pattern.permute.xlu0 0
  %2856 = vperm.xlu0 %2855, %v2768
  %v2857 = vpop.permute.xlu0 %2856
  %2860 = vset.pattern.permute.xlu0 0
  %2861 = vperm.xlu0 %2860, %v2783
  %v2862 = vpop.permute.xlu0 %2861
  %2865 = vset.pattern.permute.xlu0 0
  %2866 = vperm.xlu0 %2865, %v2798
  %v2867 = vpop.permute.xlu0 %2866
  %2870 = vset.pattern.permute.xlu0 0
  %2871 = vperm.xlu0 %2870, %v2813
  %v2872 = vpop.permute.xlu0 %2871
  %2875 = vset.pattern.permute.xlu0 0
  %2876 = vperm.xlu0 %2875, %v2828
  %v2877 = vpop.permute.xlu0 %2876
  %2880 = vset.pattern.permute.xlu0 0
  %2881 = vperm.xlu0 %2880, %v2843
  %v2882 = vpop.permute.xlu0 %2881
  %v2884 = vmul.f32 %v2847, %v1094
  %v2885 = vmul.f32 %v2852, %v1095
  %v2886 = vmul.f32 %v2857, %v1096
  %v2887 = vmul.f32 %v2862, %v1097
  %v2888 = vmul.f32 %v2867, %v1098
  %v2889 = vmul.f32 %v2872, %v1099
  %v2890 = vmul.f32 %v2877, %v1100
  %v2891 = vmul.f32 %v2882, %v1101
  %v2892 = vsel %vm56, %v2884, 0.0
  %v2893 = vrot.slane %v2892, 4
  %v2894 = vadd.f32 %v2892, %v2893
  %v2895 = vrot.slane %v2894, 2
  %v2896 = vadd.f32 %v2894, %v2895
  %v2897 = vrot.slane %v2896, 1
  %v2898 = vadd.f32 %v2896, %v2897
  %v2899 = vsel %vm56, %v2885, 0.0
  %v2900 = vrot.slane %v2899, 4
  %v2901 = vadd.f32 %v2899, %v2900
  %v2902 = vrot.slane %v2901, 2
  %v2903 = vadd.f32 %v2901, %v2902
  %v2904 = vrot.slane %v2903, 1
  %v2905 = vadd.f32 %v2903, %v2904
  %v2906 = vsel %vm56, %v2886, 0.0
  %v2907 = vrot.slane %v2906, 4
  %v2908 = vadd.f32 %v2906, %v2907
  %v2909 = vrot.slane %v2908, 2
  %v2910 = vadd.f32 %v2908, %v2909
  %v2911 = vrot.slane %v2910, 1
  %v2912 = vadd.f32 %v2910, %v2911
  %v2913 = vsel %vm56, %v2887, 0.0
  %v2914 = vrot.slane %v2913, 4
  %v2915 = vadd.f32 %v2913, %v2914
  %v2916 = vrot.slane %v2915, 2
  %v2917 = vadd.f32 %v2915, %v2916
  %v2918 = vrot.slane %v2917, 1
  %v2919 = vadd.f32 %v2917, %v2918
  %v2920 = vsel %vm56, %v2888, 0.0
  %v2921 = vrot.slane %v2920, 4
  %v2922 = vadd.f32 %v2920, %v2921
  %v2923 = vrot.slane %v2922, 2
  %v2924 = vadd.f32 %v2922, %v2923
  %v2925 = vrot.slane %v2924, 1
  %v2926 = vadd.f32 %v2924, %v2925
  %v2927 = vsel %vm56, %v2889, 0.0
  %v2928 = vrot.slane %v2927, 4
  %v2929 = vadd.f32 %v2927, %v2928
  %v2930 = vrot.slane %v2929, 2
  %v2931 = vadd.f32 %v2929, %v2930
  %v2932 = vrot.slane %v2931, 1
  %v2933 = vadd.f32 %v2931, %v2932
  %v2934 = vsel %vm56, %v2890, 0.0
  %v2935 = vrot.slane %v2934, 4
  %v2936 = vadd.f32 %v2934, %v2935
  %v2937 = vrot.slane %v2936, 2
  %v2938 = vadd.f32 %v2936, %v2937
  %v2939 = vrot.slane %v2938, 1
  %v2940 = vadd.f32 %v2938, %v2939
  %v2941 = vsel %vm56, %v2891, 0.0
  %v2942 = vrot.slane %v2941, 4
  %v2943 = vadd.f32 %v2941, %v2942
  %v2944 = vrot.slane %v2943, 2
  %v2945 = vadd.f32 %v2943, %v2944
  %v2946 = vrot.slane %v2945, 1
  %v2947 = vadd.f32 %v2945, %v2946
  %v2956 = vsel %vm1115, %v2905, %v2898
  %v2957 = vsel %vm1118, %v2912, %v2956
  %v2958 = vsel %vm1121, %v2919, %v2957
  %v2959 = vsel %vm1124, %v2926, %v2958
  %v2960 = vsel %vm1127, %v2933, %v2959
  %v2961 = vsel %vm1130, %v2940, %v2960
  %v2962 = vsel %vm1133, %v2947, %v2961
  %2964 = vrot.lane.b32.xlu0 %v2467, 64
  %v2965 = vpop.permute.xlu0 %2964
  %v2967 = vsel %vm56, %v2962, %v2965
  %v2969 = vsel %vm1704, %v2967, 0
  %2971 = vmatpush.msra.mxu0 0.0
  %2972 = vmatpush.msra.mxu0 0.0
  %2973 = vmatpush.msra.mxu0 0.0
  %2974 = vmatpush.msra.mxu0 0.0
  %2975 = vmatpush.msra.mxu0 0.0
  %2976 = vmatpush.msra.mxu0 0.0
  %2977 = vmatpush.msra.mxu0 0.0
  %2978 = vmatpush.msra.mxu0 0.0
  %2979 = vmatpush.msra.mxu0 %v1699
  %2980 = vmatpush.msra.mxu0 %v1698
  %2981 = vmatpush.msra.mxu0 %v1697
  %2982 = vmatpush.msra.mxu0 %v1696
  %2983 = vmatpush.msra.mxu0 %v1695
  %2984 = vmatpush.msra.mxu0 %v1694
  %2985 = vmatpush.msra.mxu0 %v1693
  %2986 = vmatpush.msra.mxu0 %v1692
  %2987 = vmatmul.f32.gmra.mxu0 %v2969
  %v2988 = vpop.f32.mrf.mxu0
  %v2989 = vadd.f32 0.0, %v2988
  %2990 = vdwg.mxu0
  %v2991 = vtanh.pop %v2989
  %2993 = vrot.lane.b32.xlu0 %v2991, 32
  %v2994 = vpop.permute.xlu0 %2993
  %vm2996 = vcmask 523520
  %2997 = vst.msk [vmem:[%s11] sm:$0xff] %vm2996, %v2994
  %v2998 = vadd.s32 %v127, 4294967288
  %v2999 = vperm.slane %v2847, %v2998
  %v3000 = vperm.slane %v2852, %v2998
  %v3001 = vperm.slane %v2857, %v2998
  %v3002 = vperm.slane %v2862, %v2998
  %v3003 = vperm.slane %v2867, %v2998
  %v3004 = vperm.slane %v2872, %v2998
  %v3005 = vperm.slane %v2877, %v2998
  %v3006 = vperm.slane %v2882, %v2998
  %v3007 = vsel %vm1115, %v3000, %v2999
  %v3008 = vsel %vm1118, %v3001, %v3007
  %v3009 = vsel %vm1121, %v3002, %v3008
  %v3010 = vsel %vm1124, %v3003, %v3009
  %v3011 = vsel %vm1127, %v3004, %v3010
  %v3012 = vsel %vm1130, %v3005, %v3011
  %v3013 = vsel %vm1133, %v3006, %v3012
  %vm3015 = vcmask 130112
  %3016 = vst.msk [vmem:[%s12] sm:$0xff] %vm3015, %v3013
  %v3017 = vsel %vm56, %v2991, %v2965
  %v3019 = vsel %vm1704, %v3017, 0
  %3021 = vmatpush.msra.mxu0 0.0
  %3022 = vmatpush.msra.mxu0 0.0
  %3023 = vmatpush.msra.mxu0 0.0
  %3024 = vmatpush.msra.mxu0 0.0
  %3025 = vmatpush.msra.mxu0 0.0
  %3026 = vmatpush.msra.mxu0 0.0
  %3027 = vmatpush.msra.mxu0 0.0
  %3028 = vmatpush.msra.mxu0 0.0
  %3029 = vmatpush.msra.mxu0 %v1691
  %3030 = vmatpush.msra.mxu0 %v1690
  %3031 = vmatpush.msra.mxu0 %v1689
  %3032 = vmatpush.msra.mxu0 %v1688
  %3033 = vmatpush.msra.mxu0 %v1687
  %3034 = vmatpush.msra.mxu0 %v1686
  %3035 = vmatpush.msra.mxu0 %v1685
  %3036 = vmatpush.msra.mxu0 %v1684
  %3037 = vmatmul.f32.gmra.mxu0 %v3019
  %v3038 = vpop.f32.mrf.mxu0
  %v3039 = vadd.f32 0.0, %v3038
  %3040 = vdwg.mxu0
  %v3041 = vadd.f32 %v1667, %v3039
  %v3042 = vxor.u32 %v3041, 2147483648
  %v3043 = vmul.f32 %v3042, 1.442695
  %v3044 = vpow.pop %v3043
  %v3045 = vadd.f32 %v3044, 1.0
  %v3046 = vrcp.pop %v3045
  %v3047 = vmul.f32 %v3045, %v3046
  %v3048 = vsub.f32 1.0, %v3047
  %v3049 = vmul.f32 %v3046, %v3048
  %v3050 = vadd.f32 %v3046, %v3049
  %vm3051 = vweird.f32 %v3045
  %vm3052 = vweird.f32 %v3046
  %vm3053 = vmor %vm3051, %vm3052
  %v3054 = vsel %vm3053, %v3046, %v3050
  %v3055 = vand.u32 2147483647, %v3045
  %vm3056 = vcmp.eq.f32.partialorder %v3055, 8.507059e+37
  %v3057 = vand.u32 %v3045, 2147483648
  %v3058 = vor.u32 1.1754944e-38, %v3057
  %v3059 = vsel %vm3056, %v3058, %v3054
  %v3060 = vmul.f32 1.0, %v3059
  %v3061 = vtanh.pop %v3041
  %v3062 = vmul.f32 %v3060, %v2461
  %3064 = vrot.lane.b32.xlu0 %v3061, 64
  %v3065 = vpop.permute.xlu0 %3064
  %v3067 = vmul.f32 %v3060, %v3065
  %3069 = vrot.lane.b32.xlu0 %v3067, 32
  %v3070 = vpop.permute.xlu0 %3069
  %v3072 = vadd.f32 %v3062, %v3070
  %v3073 = vtanh.pop %v3072
  %3075 = vrot.lane.b32.xlu0 %v3073, 64
  %v3076 = vpop.permute.xlu0 %3075
  %v3078 = vmul.f32 %v3060, %v3076
  %v3080 = vrot.slane %v3078, 1
  %v3081 = vrot.slane %v3078, 2
  %v3082 = vrot.slane %v3078, 3
  %v3083 = vrot.slane %v3078, 4
  %v3084 = vrot.slane %v3078, 5
  %v3085 = vrot.slane %v3078, 6
  %v3086 = vrot.slane %v3078, 7
  %v3087 = vperm.slane %v3078, 0
  %v3088 = vperm.slane %v3080, 0
  %v3089 = vperm.slane %v3081, 0
  %v3090 = vperm.slane %v3082, 0
  %v3091 = vperm.slane %v3083, 0
  %v3092 = vperm.slane %v3084, 0
  %v3093 = vperm.slane %v3085, 0
  %v3094 = vperm.slane %v3086, 0
  %v3103 = vmul.f32 %v3087, %v1799
  %v3104 = vmul.f32 %v3088, %v1801
  %v3105 = vmul.f32 %v3089, %v1803
  %v3106 = vmul.f32 %v3090, %v1805
  %v3107 = vmul.f32 %v3091, %v1807
  %v3108 = vmul.f32 %v3092, %v1809
  %v3109 = vmul.f32 %v3093, %v1811
  %v3110 = vmul.f32 %v3094, %v1813
  %3119 = vrot.lane.b32.xlu0 %v3103, 32
  %v3120 = vpop.permute.xlu0 %3119
  %3121 = vrot.lane.b32.xlu0 %v3104, 32
  %v3122 = vpop.permute.xlu0 %3121
  %3123 = vrot.lane.b32.xlu0 %v3105, 32
  %v3124 = vpop.permute.xlu0 %3123
  %3125 = vrot.lane.b32.xlu0 %v3106, 32
  %v3126 = vpop.permute.xlu0 %3125
  %3127 = vrot.lane.b32.xlu0 %v3107, 32
  %v3128 = vpop.permute.xlu0 %3127
  %3129 = vrot.lane.b32.xlu0 %v3108, 32
  %v3130 = vpop.permute.xlu0 %3129
  %3131 = vrot.lane.b32.xlu0 %v3109, 32
  %v3132 = vpop.permute.xlu0 %3131
  %3133 = vrot.lane.b32.xlu0 %v3110, 32
  %v3134 = vpop.permute.xlu0 %3133
  %v3143 = vsel %vm56, %v3120, 0.0
  %3144 = vadd.xlane.f32.xlu0 %v3143
  %v3145 = vpop.xlane.xlu0 %3144
  %v3146 = vsel %vm56, %v3122, 0.0
  %3147 = vadd.xlane.f32.xlu0 %v3146
  %v3148 = vpop.xlane.xlu0 %3147
  %v3149 = vsel %vm56, %v3124, 0.0
  %3150 = vadd.xlane.f32.xlu0 %v3149
  %v3151 = vpop.xlane.xlu0 %3150
  %v3152 = vsel %vm56, %v3126, 0.0
  %3153 = vadd.xlane.f32.xlu0 %v3152
  %v3154 = vpop.xlane.xlu0 %3153
  %v3155 = vsel %vm56, %v3128, 0.0
  %3156 = vadd.xlane.f32.xlu0 %v3155
  %v3157 = vpop.xlane.xlu0 %3156
  %v3158 = vsel %vm56, %v3130, 0.0
  %3159 = vadd.xlane.f32.xlu0 %v3158
  %v3160 = vpop.xlane.xlu0 %3159
  %v3161 = vsel %vm56, %v3132, 0.0
  %3162 = vadd.xlane.f32.xlu0 %v3161
  %v3163 = vpop.xlane.xlu0 %3162
  %v3164 = vsel %vm56, %v3134, 0.0
  %3165 = vadd.xlane.f32.xlu0 %v3164
  %v3166 = vpop.xlane.xlu0 %3165
  %v3167 = vadd.f32 %v3145, %v1893
  %v3168 = vadd.f32 %v3148, %v1900
  %v3169 = vadd.f32 %v3151, %v1907
  %v3170 = vadd.f32 %v3154, %v1914
  %v3171 = vadd.f32 %v3157, %v1921
  %v3172 = vadd.f32 %v3160, %v1928
  %v3173 = vadd.f32 %v3163, %v1935
  %v3174 = vadd.f32 %v3166, %v1942
  %3183 = vset.pattern.permute.xlu0 0
  %3184 = vperm.xlu0 %3183, %v3167
  %v3185 = vpop.permute.xlu0 %3184
  %3186 = vset.pattern.permute.xlu0 0
  %3187 = vperm.xlu0 %3186, %v3168
  %v3188 = vpop.permute.xlu0 %3187
  %3189 = vset.pattern.permute.xlu0 0
  %3190 = vperm.xlu0 %3189, %v3169
  %v3191 = vpop.permute.xlu0 %3190
  %3192 = vset.pattern.permute.xlu0 0
  %3193 = vperm.xlu0 %3192, %v3170
  %v3194 = vpop.permute.xlu0 %3193
  %3195 = vset.pattern.permute.xlu0 0
  %3196 = vperm.xlu0 %3195, %v3171
  %v3197 = vpop.permute.xlu0 %3196
  %3198 = vset.pattern.permute.xlu0 0
  %3199 = vperm.xlu0 %3198, %v3172
  %v3200 = vpop.permute.xlu0 %3199
  %3201 = vset.pattern.permute.xlu0 0
  %3202 = vperm.xlu0 %3201, %v3173
  %v3203 = vpop.permute.xlu0 %3202
  %3204 = vset.pattern.permute.xlu0 0
  %3205 = vperm.xlu0 %3204, %v3174
  %v3206 = vpop.permute.xlu0 %3205
  %v3207 = vperm.slane %v3185, %v127
  %v3208 = vperm.slane %v3188, %v127
  %v3209 = vperm.slane %v3191, %v127
  %v3210 = vperm.slane %v3194, %v127
  %v3211 = vperm.slane %v3197, %v127
  %v3212 = vperm.slane %v3200, %v127
  %v3213 = vperm.slane %v3203, %v127
  %v3214 = vperm.slane %v3206, %v127
  %v3215 = vsel %vm1115, %v3208, %v3207
  %v3216 = vsel %vm1118, %v3209, %v3215
  %v3217 = vsel %vm1121, %v3210, %v3216
  %v3218 = vsel %vm1124, %v3211, %v3217
  %v3219 = vsel %vm1127, %v3212, %v3218
  %v3220 = vsel %vm1130, %v3213, %v3219
  %v3221 = vsel %vm1133, %v3214, %v3220
  %v3223 = vsel %vm2007, %v3221, -inf
  %3224 = vmax.xlane.f32.xlu0 %v3223
  %v3225 = vpop.xlane.xlu0 %3224
  %v3227 = vperm.slane %v3225, 0
  %v3228 = vperm.slane %v3225, 1
  %v3229 = vperm.slane %v3225, 2
  %v3230 = vperm.slane %v3225, 3
  %v3231 = vperm.slane %v3225, 4
  %v3232 = vperm.slane %v3225, 5
  %v3233 = vperm.slane %v3225, 6
  %v3234 = vperm.slane %v3225, 7
  %v3243 = vsub.f32 %v3167, %v3227
  %v3244 = vsub.f32 %v3168, %v3228
  %v3245 = vsub.f32 %v3169, %v3229
  %v3246 = vsub.f32 %v3170, %v3230
  %v3247 = vsub.f32 %v3171, %v3231
  %v3248 = vsub.f32 %v3172, %v3232
  %v3249 = vsub.f32 %v3173, %v3233
  %v3250 = vsub.f32 %v3174, %v3234
  %v3251 = vmul.f32 %v3243, 1.442695
  %v3252 = vpow.pop %v3251
  %v3253 = vmul.f32 %v3244, 1.442695
  %v3254 = vpow.pop %v3253
  %v3255 = vmul.f32 %v3245, 1.442695
  %v3256 = vpow.pop %v3255
  %v3257 = vmul.f32 %v3246, 1.442695
  %v3258 = vpow.pop %v3257
  %v3259 = vmul.f32 %v3247, 1.442695
  %v3260 = vpow.pop %v3259
  %v3261 = vmul.f32 %v3248, 1.442695
  %v3262 = vpow.pop %v3261
  %v3263 = vmul.f32 %v3249, 1.442695
  %v3264 = vpow.pop %v3263
  %v3265 = vmul.f32 %v3250, 1.442695
  %v3266 = vpow.pop %v3265
  %3275 = vset.pattern.permute.xlu0 0
  %3276 = vperm.xlu0 %3275, %v3252
  %v3277 = vpop.permute.xlu0 %3276
  %3278 = vset.pattern.permute.xlu0 0
  %3279 = vperm.xlu0 %3278, %v3254
  %v3280 = vpop.permute.xlu0 %3279
  %3281 = vset.pattern.permute.xlu0 0
  %3282 = vperm.xlu0 %3281, %v3256
  %v3283 = vpop.permute.xlu0 %3282
  %3284 = vset.pattern.permute.xlu0 0
  %3285 = vperm.xlu0 %3284, %v3258
  %v3286 = vpop.permute.xlu0 %3285
  %3287 = vset.pattern.permute.xlu0 0
  %3288 = vperm.xlu0 %3287, %v3260
  %v3289 = vpop.permute.xlu0 %3288
  %3290 = vset.pattern.permute.xlu0 0
  %3291 = vperm.xlu0 %3290, %v3262
  %v3292 = vpop.permute.xlu0 %3291
  %3293 = vset.pattern.permute.xlu0 0
  %3294 = vperm.xlu0 %3293, %v3264
  %v3295 = vpop.permute.xlu0 %3294
  %3296 = vset.pattern.permute.xlu0 0
  %3297 = vperm.xlu0 %3296, %v3266
  %v3298 = vpop.permute.xlu0 %3297
  %v3299 = vperm.slane %v3277, %v127
  %v3300 = vperm.slane %v3280, %v127
  %v3301 = vperm.slane %v3283, %v127
  %v3302 = vperm.slane %v3286, %v127
  %v3303 = vperm.slane %v3289, %v127
  %v3304 = vperm.slane %v3292, %v127
  %v3305 = vperm.slane %v3295, %v127
  %v3306 = vperm.slane %v3298, %v127
  %v3307 = vsel %vm1115, %v3300, %v3299
  %v3308 = vsel %vm1118, %v3301, %v3307
  %v3309 = vsel %vm1121, %v3302, %v3308
  %v3310 = vsel %vm1124, %v3303, %v3309
  %v3311 = vsel %vm1127, %v3304, %v3310
  %v3312 = vsel %vm1130, %v3305, %v3311
  %v3313 = vsel %vm1133, %v3306, %v3312
  %v3315 = vsel %vm2007, %v3313, 0.0
  %3316 = vadd.xlane.f32.xlu0 %v3315
  %v3317 = vpop.xlane.xlu0 %3316
  %v3319 = vperm.slane %v3317, 0
  %v3320 = vperm.slane %v3317, 1
  %v3321 = vperm.slane %v3317, 2
  %v3322 = vperm.slane %v3317, 3
  %v3323 = vperm.slane %v3317, 4
  %v3324 = vperm.slane %v3317, 5
  %v3325 = vperm.slane %v3317, 6
  %v3326 = vperm.slane %v3317, 7
  %v3335 = vrcp.pop %v3319
  %v3336 = vmul.f32 %v3319, %v3335
  %v3337 = vsub.f32 1.0, %v3336
  %v3338 = vmul.f32 %v3335, %v3337
  %v3339 = vadd.f32 %v3335, %v3338
  %vm3340 = vweird.f32 %v3319
  %vm3341 = vweird.f32 %v3335
  %vm3342 = vmor %vm3340, %vm3341
  %v3343 = vsel %vm3342, %v3335, %v3339
  %v3344 = vand.u32 2147483647, %v3319
  %vm3345 = vcmp.eq.f32.partialorder %v3344, 8.507059e+37
  %v3346 = vand.u32 %v3319, 2147483648
  %v3347 = vor.u32 1.1754944e-38, %v3346
  %v3348 = vsel %vm3345, %v3347, %v3343
  %v3349 = vmul.f32 %v3252, %v3348
  %v3350 = vrcp.pop %v3320
  %v3351 = vmul.f32 %v3320, %v3350
  %v3352 = vsub.f32 1.0, %v3351
  %v3353 = vmul.f32 %v3350, %v3352
  %v3354 = vadd.f32 %v3350, %v3353
  %vm3355 = vweird.f32 %v3320
  %vm3356 = vweird.f32 %v3350
  %vm3357 = vmor %vm3355, %vm3356
  %v3358 = vsel %vm3357, %v3350, %v3354
  %v3359 = vand.u32 2147483647, %v3320
  %vm3360 = vcmp.eq.f32.partialorder %v3359, 8.507059e+37
  %v3361 = vand.u32 %v3320, 2147483648
  %v3362 = vor.u32 1.1754944e-38, %v3361
  %v3363 = vsel %vm3360, %v3362, %v3358
  %v3364 = vmul.f32 %v3254, %v3363
  %v3365 = vrcp.pop %v3321
  %v3366 = vmul.f32 %v3321, %v3365
  %v3367 = vsub.f32 1.0, %v3366
  %v3368 = vmul.f32 %v3365, %v3367
  %v3369 = vadd.f32 %v3365, %v3368
  %vm3370 = vweird.f32 %v3321
  %vm3371 = vweird.f32 %v3365
  %vm3372 = vmor %vm3370, %vm3371
  %v3373 = vsel %vm3372, %v3365, %v3369
  %v3374 = vand.u32 2147483647, %v3321
  %vm3375 = vcmp.eq.f32.partialorder %v3374, 8.507059e+37
  %v3376 = vand.u32 %v3321, 2147483648
  %v3377 = vor.u32 1.1754944e-38, %v3376
  %v3378 = vsel %vm3375, %v3377, %v3373
  %v3379 = vmul.f32 %v3256, %v3378
  %v3380 = vrcp.pop %v3322
  %v3381 = vmul.f32 %v3322, %v3380
  %v3382 = vsub.f32 1.0, %v3381
  %v3383 = vmul.f32 %v3380, %v3382
  %v3384 = vadd.f32 %v3380, %v3383
  %vm3385 = vweird.f32 %v3322
  %vm3386 = vweird.f32 %v3380
  %vm3387 = vmor %vm3385, %vm3386
  %v3388 = vsel %vm3387, %v3380, %v3384
  %v3389 = vand.u32 2147483647, %v3322
  %vm3390 = vcmp.eq.f32.partialorder %v3389, 8.507059e+37
  %v3391 = vand.u32 %v3322, 2147483648
  %v3392 = vor.u32 1.1754944e-38, %v3391
  %v3393 = vsel %vm3390, %v3392, %v3388
  %v3394 = vmul.f32 %v3258, %v3393
  %v3395 = vrcp.pop %v3323
  %v3396 = vmul.f32 %v3323, %v3395
  %v3397 = vsub.f32 1.0, %v3396
  %v3398 = vmul.f32 %v3395, %v3397
  %v3399 = vadd.f32 %v3395, %v3398
  %vm3400 = vweird.f32 %v3323
  %vm3401 = vweird.f32 %v3395
  %vm3402 = vmor %vm3400, %vm3401
  %v3403 = vsel %vm3402, %v3395, %v3399
  %v3404 = vand.u32 2147483647, %v3323
  %vm3405 = vcmp.eq.f32.partialorder %v3404, 8.507059e+37
  %v3406 = vand.u32 %v3323, 2147483648
  %v3407 = vor.u32 1.1754944e-38, %v3406
  %v3408 = vsel %vm3405, %v3407, %v3403
  %v3409 = vmul.f32 %v3260, %v3408
  %v3410 = vrcp.pop %v3324
  %v3411 = vmul.f32 %v3324, %v3410
  %v3412 = vsub.f32 1.0, %v3411
  %v3413 = vmul.f32 %v3410, %v3412
  %v3414 = vadd.f32 %v3410, %v3413
  %vm3415 = vweird.f32 %v3324
  %vm3416 = vweird.f32 %v3410
  %vm3417 = vmor %vm3415, %vm3416
  %v3418 = vsel %vm3417, %v3410, %v3414
  %v3419 = vand.u32 2147483647, %v3324
  %vm3420 = vcmp.eq.f32.partialorder %v3419, 8.507059e+37
  %v3421 = vand.u32 %v3324, 2147483648
  %v3422 = vor.u32 1.1754944e-38, %v3421
  %v3423 = vsel %vm3420, %v3422, %v3418
  %v3424 = vmul.f32 %v3262, %v3423
  %v3425 = vrcp.pop %v3325
  %v3426 = vmul.f32 %v3325, %v3425
  %v3427 = vsub.f32 1.0, %v3426
  %v3428 = vmul.f32 %v3425, %v3427
  %v3429 = vadd.f32 %v3425, %v3428
  %vm3430 = vweird.f32 %v3325
  %vm3431 = vweird.f32 %v3425
  %vm3432 = vmor %vm3430, %vm3431
  %v3433 = vsel %vm3432, %v3425, %v3429
  %v3434 = vand.u32 2147483647, %v3325
  %vm3435 = vcmp.eq.f32.partialorder %v3434, 8.507059e+37
  %v3436 = vand.u32 %v3325, 2147483648
  %v3437 = vor.u32 1.1754944e-38, %v3436
  %v3438 = vsel %vm3435, %v3437, %v3433
  %v3439 = vmul.f32 %v3264, %v3438
  %v3440 = vrcp.pop %v3326
  %v3441 = vmul.f32 %v3326, %v3440
  %v3442 = vsub.f32 1.0, %v3441
  %v3443 = vmul.f32 %v3440, %v3442
  %v3444 = vadd.f32 %v3440, %v3443
  %vm3445 = vweird.f32 %v3326
  %vm3446 = vweird.f32 %v3440
  %vm3447 = vmor %vm3445, %vm3446
  %v3448 = vsel %vm3447, %v3440, %v3444
  %v3449 = vand.u32 2147483647, %v3326
  %vm3450 = vcmp.eq.f32.partialorder %v3449, 8.507059e+37
  %v3451 = vand.u32 %v3326, 2147483648
  %v3452 = vor.u32 1.1754944e-38, %v3451
  %v3453 = vsel %vm3450, %v3452, %v3448
  %v3454 = vmul.f32 %v3266, %v3453
  %3456 = vset.pattern.permute.xlu0 0
  %3457 = vperm.xlu0 %3456, %v3349
  %v3458 = vpop.permute.xlu0 %3457
  %3461 = vset.pattern.permute.xlu0 0
  %3462 = vperm.xlu0 %3461, %v3364
  %v3463 = vpop.permute.xlu0 %3462
  %3466 = vset.pattern.permute.xlu0 0
  %3467 = vperm.xlu0 %3466, %v3379
  %v3468 = vpop.permute.xlu0 %3467
  %3471 = vset.pattern.permute.xlu0 0
  %3472 = vperm.xlu0 %3471, %v3394
  %v3473 = vpop.permute.xlu0 %3472
  %3476 = vset.pattern.permute.xlu0 0
  %3477 = vperm.xlu0 %3476, %v3409
  %v3478 = vpop.permute.xlu0 %3477
  %3481 = vset.pattern.permute.xlu0 0
  %3482 = vperm.xlu0 %3481, %v3424
  %v3483 = vpop.permute.xlu0 %3482
  %3486 = vset.pattern.permute.xlu0 0
  %3487 = vperm.xlu0 %3486, %v3439
  %v3488 = vpop.permute.xlu0 %3487
  %3491 = vset.pattern.permute.xlu0 0
  %3492 = vperm.xlu0 %3491, %v3454
  %v3493 = vpop.permute.xlu0 %3492
  %v3495 = vmul.f32 %v3458, %v1094
  %v3496 = vmul.f32 %v3463, %v1095
  %v3497 = vmul.f32 %v3468, %v1096
  %v3498 = vmul.f32 %v3473, %v1097
  %v3499 = vmul.f32 %v3478, %v1098
  %v3500 = vmul.f32 %v3483, %v1099
  %v3501 = vmul.f32 %v3488, %v1100
  %v3502 = vmul.f32 %v3493, %v1101
  %v3503 = vsel %vm56, %v3495, 0.0
  %v3504 = vrot.slane %v3503, 4
  %v3505 = vadd.f32 %v3503, %v3504
  %v3506 = vrot.slane %v3505, 2
  %v3507 = vadd.f32 %v3505, %v3506
  %v3508 = vrot.slane %v3507, 1
  %v3509 = vadd.f32 %v3507, %v3508
  %v3510 = vsel %vm56, %v3496, 0.0
  %v3511 = vrot.slane %v3510, 4
  %v3512 = vadd.f32 %v3510, %v3511
  %v3513 = vrot.slane %v3512, 2
  %v3514 = vadd.f32 %v3512, %v3513
  %v3515 = vrot.slane %v3514, 1
  %v3516 = vadd.f32 %v3514, %v3515
  %v3517 = vsel %vm56, %v3497, 0.0
  %v3518 = vrot.slane %v3517, 4
  %v3519 = vadd.f32 %v3517, %v3518
  %v3520 = vrot.slane %v3519, 2
  %v3521 = vadd.f32 %v3519, %v3520
  %v3522 = vrot.slane %v3521, 1
  %v3523 = vadd.f32 %v3521, %v3522
  %v3524 = vsel %vm56, %v3498, 0.0
  %v3525 = vrot.slane %v3524, 4
  %v3526 = vadd.f32 %v3524, %v3525
  %v3527 = vrot.slane %v3526, 2
  %v3528 = vadd.f32 %v3526, %v3527
  %v3529 = vrot.slane %v3528, 1
  %v3530 = vadd.f32 %v3528, %v3529
  %v3531 = vsel %vm56, %v3499, 0.0
  %v3532 = vrot.slane %v3531, 4
  %v3533 = vadd.f32 %v3531, %v3532
  %v3534 = vrot.slane %v3533, 2
  %v3535 = vadd.f32 %v3533, %v3534
  %v3536 = vrot.slane %v3535, 1
  %v3537 = vadd.f32 %v3535, %v3536
  %v3538 = vsel %vm56, %v3500, 0.0
  %v3539 = vrot.slane %v3538, 4
  %v3540 = vadd.f32 %v3538, %v3539
  %v3541 = vrot.slane %v3540, 2
  %v3542 = vadd.f32 %v3540, %v3541
  %v3543 = vrot.slane %v3542, 1
  %v3544 = vadd.f32 %v3542, %v3543
  %v3545 = vsel %vm56, %v3501, 0.0
  %v3546 = vrot.slane %v3545, 4
  %v3547 = vadd.f32 %v3545, %v3546
  %v3548 = vrot.slane %v3547, 2
  %v3549 = vadd.f32 %v3547, %v3548
  %v3550 = vrot.slane %v3549, 1
  %v3551 = vadd.f32 %v3549, %v3550
  %v3552 = vsel %vm56, %v3502, 0.0
  %v3553 = vrot.slane %v3552, 4
  %v3554 = vadd.f32 %v3552, %v3553
  %v3555 = vrot.slane %v3554, 2
  %v3556 = vadd.f32 %v3554, %v3555
  %v3557 = vrot.slane %v3556, 1
  %v3558 = vadd.f32 %v3556, %v3557
  %v3567 = vsel %vm1115, %v3516, %v3509
  %v3568 = vsel %vm1118, %v3523, %v3567
  %v3569 = vsel %vm1121, %v3530, %v3568
  %v3570 = vsel %vm1124, %v3537, %v3569
  %v3571 = vsel %vm1127, %v3544, %v3570
  %v3572 = vsel %vm1130, %v3551, %v3571
  %v3573 = vsel %vm1133, %v3558, %v3572
  %3575 = vrot.lane.b32.xlu0 %v3078, 64
  %v3576 = vpop.permute.xlu0 %3575
  %v3578 = vsel %vm56, %v3573, %v3576
  %v3580 = vsel %vm1704, %v3578, 0
  %3582 = vmatpush.msra.mxu0 0.0
  %3583 = vmatpush.msra.mxu0 0.0
  %3584 = vmatpush.msra.mxu0 0.0
  %3585 = vmatpush.msra.mxu0 0.0
  %3586 = vmatpush.msra.mxu0 0.0
  %3587 = vmatpush.msra.mxu0 0.0
  %3588 = vmatpush.msra.mxu0 0.0
  %3589 = vmatpush.msra.mxu0 0.0
  %3590 = vmatpush.msra.mxu0 %v1699
  %3591 = vmatpush.msra.mxu0 %v1698
  %3592 = vmatpush.msra.mxu0 %v1697
  %3593 = vmatpush.msra.mxu0 %v1696
  %3594 = vmatpush.msra.mxu0 %v1695
  %3595 = vmatpush.msra.mxu0 %v1694
  %3596 = vmatpush.msra.mxu0 %v1693
  %3597 = vmatpush.msra.mxu0 %v1692
  %3598 = vmatmul.f32.gmra.mxu0 %v3580
  %v3599 = vpop.f32.mrf.mxu0
  %v3600 = vadd.f32 0.0, %v3599
  %3601 = vdwg.mxu0
  %v3602 = vtanh.pop %v3600
  %3604 = vrot.lane.b32.xlu0 %v3602, 64
  %v3605 = vpop.permute.xlu0 %3604
  %vm3607 = vcmask 785920
  %3608 = vst.msk [vmem:[%s11] sm:$0xff] %vm3607, %v3605
  %v3609 = vadd.s32 %v127, 4294967280
  %v3610 = vperm.slane %v3458, %v3609
  %v3611 = vperm.slane %v3463, %v3609
  %v3612 = vperm.slane %v3468, %v3609
  %v3613 = vperm.slane %v3473, %v3609
  %v3614 = vperm.slane %v3478, %v3609
  %v3615 = vperm.slane %v3483, %v3609
  %v3616 = vperm.slane %v3488, %v3609
  %v3617 = vperm.slane %v3493, %v3609
  %v3618 = vsel %vm1115, %v3611, %v3610
  %v3619 = vsel %vm1118, %v3612, %v3618
  %v3620 = vsel %vm1121, %v3613, %v3619
  %v3621 = vsel %vm1124, %v3614, %v3620
  %v3622 = vsel %vm1127, %v3615, %v3621
  %v3623 = vsel %vm1130, %v3616, %v3622
  %v3624 = vsel %vm1133, %v3617, %v3623
  %vm3626 = vcmask 195712
  %3627 = vst.msk [vmem:[%s12] sm:$0xff] %vm3626, %v3624
  %v3628 = vsel %vm56, %v3602, %v3576
  %v3630 = vsel %vm1704, %v3628, 0
  %3632 = vmatpush.msra.mxu0 0.0
  %3633 = vmatpush.msra.mxu0 0.0
  %3634 = vmatpush.msra.mxu0 0.0
  %3635 = vmatpush.msra.mxu0 0.0
  %3636 = vmatpush.msra.mxu0 0.0
  %3637 = vmatpush.msra.mxu0 0.0
  %3638 = vmatpush.msra.mxu0 0.0
  %3639 = vmatpush.msra.mxu0 0.0
  %3640 = vmatpush.msra.mxu0 %v1691
  %3641 = vmatpush.msra.mxu0 %v1690
  %3642 = vmatpush.msra.mxu0 %v1689
  %3643 = vmatpush.msra.mxu0 %v1688
  %3644 = vmatpush.msra.mxu0 %v1687
  %3645 = vmatpush.msra.mxu0 %v1686
  %3646 = vmatpush.msra.mxu0 %v1685
  %3647 = vmatpush.msra.mxu0 %v1684
  %3648 = vmatmul.f32.gmra.mxu0 %v3630
  %v3649 = vpop.f32.mrf.mxu0
  %v3650 = vadd.f32 0.0, %v3649
  %3651 = vdwg.mxu0
  %v3652 = vadd.f32 %v1670, %v3650
  %v3653 = vxor.u32 %v3652, 2147483648
  %v3654 = vmul.f32 %v3653, 1.442695
  %v3655 = vpow.pop %v3654
  %v3656 = vadd.f32 %v3655, 1.0
  %v3657 = vrcp.pop %v3656
  %v3658 = vmul.f32 %v3656, %v3657
  %v3659 = vsub.f32 1.0, %v3658
  %v3660 = vmul.f32 %v3657, %v3659
  %v3661 = vadd.f32 %v3657, %v3660
  %vm3662 = vweird.f32 %v3656
  %vm3663 = vweird.f32 %v3657
  %vm3664 = vmor %vm3662, %vm3663
  %v3665 = vsel %vm3664, %v3657, %v3661
  %v3666 = vand.u32 2147483647, %v3656
  %vm3667 = vcmp.eq.f32.partialorder %v3666, 8.507059e+37
  %v3668 = vand.u32 %v3656, 2147483648
  %v3669 = vor.u32 1.1754944e-38, %v3668
  %v3670 = vsel %vm3667, %v3669, %v3665
  %v3671 = vmul.f32 1.0, %v3670
  %v3672 = vtanh.pop %v3652
  %v3673 = vmul.f32 %v3671, %v3072
  %3675 = vrot.lane.b32.xlu0 %v3672, 64
  %v3676 = vpop.permute.xlu0 %3675
  %v3678 = vmul.f32 %v3671, %v3676
  %3680 = vrot.lane.b32.xlu0 %v3678, 32
  %v3681 = vpop.permute.xlu0 %3680
  %v3683 = vadd.f32 %v3673, %v3681
  %v3684 = vtanh.pop %v3683
  %3686 = vrot.lane.b32.xlu0 %v3684, 64
  %v3687 = vpop.permute.xlu0 %3686
  %v3689 = vmul.f32 %v3671, %v3687
  %v3691 = vrot.slane %v3689, 1
  %v3692 = vrot.slane %v3689, 2
  %v3693 = vrot.slane %v3689, 3
  %v3694 = vrot.slane %v3689, 4
  %v3695 = vrot.slane %v3689, 5
  %v3696 = vrot.slane %v3689, 6
  %v3697 = vrot.slane %v3689, 7
  %v3698 = vperm.slane %v3689, 0
  %v3699 = vperm.slane %v3691, 0
  %v3700 = vperm.slane %v3692, 0
  %v3701 = vperm.slane %v3693, 0
  %v3702 = vperm.slane %v3694, 0
  %v3703 = vperm.slane %v3695, 0
  %v3704 = vperm.slane %v3696, 0
  %v3705 = vperm.slane %v3697, 0
  %v3714 = vmul.f32 %v3698, %v1799
  %v3715 = vmul.f32 %v3699, %v1801
  %v3716 = vmul.f32 %v3700, %v1803
  %v3717 = vmul.f32 %v3701, %v1805
  %v3718 = vmul.f32 %v3702, %v1807
  %v3719 = vmul.f32 %v3703, %v1809
  %v3720 = vmul.f32 %v3704, %v1811
  %v3721 = vmul.f32 %v3705, %v1813
  %3730 = vrot.lane.b32.xlu0 %v3714, 32
  %v3731 = vpop.permute.xlu0 %3730
  %3732 = vrot.lane.b32.xlu0 %v3715, 32
  %v3733 = vpop.permute.xlu0 %3732
  %3734 = vrot.lane.b32.xlu0 %v3716, 32
  %v3735 = vpop.permute.xlu0 %3734
  %3736 = vrot.lane.b32.xlu0 %v3717, 32
  %v3737 = vpop.permute.xlu0 %3736
  %3738 = vrot.lane.b32.xlu0 %v3718, 32
  %v3739 = vpop.permute.xlu0 %3738
  %3740 = vrot.lane.b32.xlu0 %v3719, 32
  %v3741 = vpop.permute.xlu0 %3740
  %3742 = vrot.lane.b32.xlu0 %v3720, 32
  %v3743 = vpop.permute.xlu0 %3742
  %3744 = vrot.lane.b32.xlu0 %v3721, 32
  %v3745 = vpop.permute.xlu0 %3744
  %v3754 = vsel %vm56, %v3731, 0.0
  %3755 = vadd.xlane.f32.xlu0 %v3754
  %v3756 = vpop.xlane.xlu0 %3755
  %v3757 = vsel %vm56, %v3733, 0.0
  %3758 = vadd.xlane.f32.xlu0 %v3757
  %v3759 = vpop.xlane.xlu0 %3758
  %v3760 = vsel %vm56, %v3735, 0.0
  %3761 = vadd.xlane.f32.xlu0 %v3760
  %v3762 = vpop.xlane.xlu0 %3761
  %v3763 = vsel %vm56, %v3737, 0.0
  %3764 = vadd.xlane.f32.xlu0 %v3763
  %v3765 = vpop.xlane.xlu0 %3764
  %v3766 = vsel %vm56, %v3739, 0.0
  %3767 = vadd.xlane.f32.xlu0 %v3766
  %v3768 = vpop.xlane.xlu0 %3767
  %v3769 = vsel %vm56, %v3741, 0.0
  %3770 = vadd.xlane.f32.xlu0 %v3769
  %v3771 = vpop.xlane.xlu0 %3770
  %v3772 = vsel %vm56, %v3743, 0.0
  %3773 = vadd.xlane.f32.xlu0 %v3772
  %v3774 = vpop.xlane.xlu0 %3773
  %v3775 = vsel %vm56, %v3745, 0.0
  %3776 = vadd.xlane.f32.xlu0 %v3775
  %v3777 = vpop.xlane.xlu0 %3776
  %v3778 = vadd.f32 %v3756, %v1893
  %v3779 = vadd.f32 %v3759, %v1900
  %v3780 = vadd.f32 %v3762, %v1907
  %v3781 = vadd.f32 %v3765, %v1914
  %v3782 = vadd.f32 %v3768, %v1921
  %v3783 = vadd.f32 %v3771, %v1928
  %v3784 = vadd.f32 %v3774, %v1935
  %v3785 = vadd.f32 %v3777, %v1942
  %3794 = vset.pattern.permute.xlu0 0
  %3795 = vperm.xlu0 %3794, %v3778
  %v3796 = vpop.permute.xlu0 %3795
  %3797 = vset.pattern.permute.xlu0 0
  %3798 = vperm.xlu0 %3797, %v3779
  %v3799 = vpop.permute.xlu0 %3798
  %3800 = vset.pattern.permute.xlu0 0
  %3801 = vperm.xlu0 %3800, %v3780
  %v3802 = vpop.permute.xlu0 %3801
  %3803 = vset.pattern.permute.xlu0 0
  %3804 = vperm.xlu0 %3803, %v3781
  %v3805 = vpop.permute.xlu0 %3804
  %3806 = vset.pattern.permute.xlu0 0
  %3807 = vperm.xlu0 %3806, %v3782
  %v3808 = vpop.permute.xlu0 %3807
  %3809 = vset.pattern.permute.xlu0 0
  %3810 = vperm.xlu0 %3809, %v3783
  %v3811 = vpop.permute.xlu0 %3810
  %3812 = vset.pattern.permute.xlu0 0
  %3813 = vperm.xlu0 %3812, %v3784
  %v3814 = vpop.permute.xlu0 %3813
  %3815 = vset.pattern.permute.xlu0 0
  %3816 = vperm.xlu0 %3815, %v3785
  %v3817 = vpop.permute.xlu0 %3816
  %v3818 = vperm.slane %v3796, %v127
  %v3819 = vperm.slane %v3799, %v127
  %v3820 = vperm.slane %v3802, %v127
  %v3821 = vperm.slane %v3805, %v127
  %v3822 = vperm.slane %v3808, %v127
  %v3823 = vperm.slane %v3811, %v127
  %v3824 = vperm.slane %v3814, %v127
  %v3825 = vperm.slane %v3817, %v127
  %v3826 = vsel %vm1115, %v3819, %v3818
  %v3827 = vsel %vm1118, %v3820, %v3826
  %v3828 = vsel %vm1121, %v3821, %v3827
  %v3829 = vsel %vm1124, %v3822, %v3828
  %v3830 = vsel %vm1127, %v3823, %v3829
  %v3831 = vsel %vm1130, %v3824, %v3830
  %v3832 = vsel %vm1133, %v3825, %v3831
  %v3834 = vsel %vm2007, %v3832, -inf
  %3835 = vmax.xlane.f32.xlu0 %v3834
  %v3836 = vpop.xlane.xlu0 %3835
  %v3838 = vperm.slane %v3836, 0
  %v3839 = vperm.slane %v3836, 1
  %v3840 = vperm.slane %v3836, 2
  %v3841 = vperm.slane %v3836, 3
  %v3842 = vperm.slane %v3836, 4
  %v3843 = vperm.slane %v3836, 5
  %v3844 = vperm.slane %v3836, 6
  %v3845 = vperm.slane %v3836, 7
  %v3854 = vsub.f32 %v3778, %v3838
  %v3855 = vsub.f32 %v3779, %v3839
  %v3856 = vsub.f32 %v3780, %v3840
  %v3857 = vsub.f32 %v3781, %v3841
  %v3858 = vsub.f32 %v3782, %v3842
  %v3859 = vsub.f32 %v3783, %v3843
  %v3860 = vsub.f32 %v3784, %v3844
  %v3861 = vsub.f32 %v3785, %v3845
  %v3862 = vmul.f32 %v3854, 1.442695
  %v3863 = vpow.pop %v3862
  %v3864 = vmul.f32 %v3855, 1.442695
  %v3865 = vpow.pop %v3864
  %v3866 = vmul.f32 %v3856, 1.442695
  %v3867 = vpow.pop %v3866
  %v3868 = vmul.f32 %v3857, 1.442695
  %v3869 = vpow.pop %v3868
  %v3870 = vmul.f32 %v3858, 1.442695
  %v3871 = vpow.pop %v3870
  %v3872 = vmul.f32 %v3859, 1.442695
  %v3873 = vpow.pop %v3872
  %v3874 = vmul.f32 %v3860, 1.442695
  %v3875 = vpow.pop %v3874
  %v3876 = vmul.f32 %v3861, 1.442695
  %v3877 = vpow.pop %v3876
  %3886 = vset.pattern.permute.xlu0 0
  %3887 = vperm.xlu0 %3886, %v3863
  %v3888 = vpop.permute.xlu0 %3887
  %3889 = vset.pattern.permute.xlu0 0
  %3890 = vperm.xlu0 %3889, %v3865
  %v3891 = vpop.permute.xlu0 %3890
  %3892 = vset.pattern.permute.xlu0 0
  %3893 = vperm.xlu0 %3892, %v3867
  %v3894 = vpop.permute.xlu0 %3893
  %3895 = vset.pattern.permute.xlu0 0
  %3896 = vperm.xlu0 %3895, %v3869
  %v3897 = vpop.permute.xlu0 %3896
  %3898 = vset.pattern.permute.xlu0 0
  %3899 = vperm.xlu0 %3898, %v3871
  %v3900 = vpop.permute.xlu0 %3899
  %3901 = vset.pattern.permute.xlu0 0
  %3902 = vperm.xlu0 %3901, %v3873
  %v3903 = vpop.permute.xlu0 %3902
  %3904 = vset.pattern.permute.xlu0 0
  %3905 = vperm.xlu0 %3904, %v3875
  %v3906 = vpop.permute.xlu0 %3905
  %3907 = vset.pattern.permute.xlu0 0
  %3908 = vperm.xlu0 %3907, %v3877
  %v3909 = vpop.permute.xlu0 %3908
  %v3910 = vperm.slane %v3888, %v127
  %v3911 = vperm.slane %v3891, %v127
  %v3912 = vperm.slane %v3894, %v127
  %v3913 = vperm.slane %v3897, %v127
  %v3914 = vperm.slane %v3900, %v127
  %v3915 = vperm.slane %v3903, %v127
  %v3916 = vperm.slane %v3906, %v127
  %v3917 = vperm.slane %v3909, %v127
  %v3918 = vsel %vm1115, %v3911, %v3910
  %v3919 = vsel %vm1118, %v3912, %v3918
  %v3920 = vsel %vm1121, %v3913, %v3919
  %v3921 = vsel %vm1124, %v3914, %v3920
  %v3922 = vsel %vm1127, %v3915, %v3921
  %v3923 = vsel %vm1130, %v3916, %v3922
  %v3924 = vsel %vm1133, %v3917, %v3923
  %v3926 = vsel %vm2007, %v3924, 0.0
  %3927 = vadd.xlane.f32.xlu0 %v3926
  %v3928 = vpop.xlane.xlu0 %3927
  %v3930 = vperm.slane %v3928, 0
  %v3931 = vperm.slane %v3928, 1
  %v3932 = vperm.slane %v3928, 2
  %v3933 = vperm.slane %v3928, 3
  %v3934 = vperm.slane %v3928, 4
  %v3935 = vperm.slane %v3928, 5
  %v3936 = vperm.slane %v3928, 6
  %v3937 = vperm.slane %v3928, 7
  %v3946 = vrcp.pop %v3930
  %v3947 = vmul.f32 %v3930, %v3946
  %v3948 = vsub.f32 1.0, %v3947
  %v3949 = vmul.f32 %v3946, %v3948
  %v3950 = vadd.f32 %v3946, %v3949
  %vm3951 = vweird.f32 %v3930
  %vm3952 = vweird.f32 %v3946
  %vm3953 = vmor %vm3951, %vm3952
  %v3954 = vsel %vm3953, %v3946, %v3950
  %v3955 = vand.u32 2147483647, %v3930
  %vm3956 = vcmp.eq.f32.partialorder %v3955, 8.507059e+37
  %v3957 = vand.u32 %v3930, 2147483648
  %v3958 = vor.u32 1.1754944e-38, %v3957
  %v3959 = vsel %vm3956, %v3958, %v3954
  %v3960 = vmul.f32 %v3863, %v3959
  %v3961 = vrcp.pop %v3931
  %v3962 = vmul.f32 %v3931, %v3961
  %v3963 = vsub.f32 1.0, %v3962
  %v3964 = vmul.f32 %v3961, %v3963
  %v3965 = vadd.f32 %v3961, %v3964
  %vm3966 = vweird.f32 %v3931
  %vm3967 = vweird.f32 %v3961
  %vm3968 = vmor %vm3966, %vm3967
  %v3969 = vsel %vm3968, %v3961, %v3965
  %v3970 = vand.u32 2147483647, %v3931
  %vm3971 = vcmp.eq.f32.partialorder %v3970, 8.507059e+37
  %v3972 = vand.u32 %v3931, 2147483648
  %v3973 = vor.u32 1.1754944e-38, %v3972
  %v3974 = vsel %vm3971, %v3973, %v3969
  %v3975 = vmul.f32 %v3865, %v3974
  %v3976 = vrcp.pop %v3932
  %v3977 = vmul.f32 %v3932, %v3976
  %v3978 = vsub.f32 1.0, %v3977
  %v3979 = vmul.f32 %v3976, %v3978
  %v3980 = vadd.f32 %v3976, %v3979
  %vm3981 = vweird.f32 %v3932
  %vm3982 = vweird.f32 %v3976
  %vm3983 = vmor %vm3981, %vm3982
  %v3984 = vsel %vm3983, %v3976, %v3980
  %v3985 = vand.u32 2147483647, %v3932
  %vm3986 = vcmp.eq.f32.partialorder %v3985, 8.507059e+37
  %v3987 = vand.u32 %v3932, 2147483648
  %v3988 = vor.u32 1.1754944e-38, %v3987
  %v3989 = vsel %vm3986, %v3988, %v3984
  %v3990 = vmul.f32 %v3867, %v3989
  %v3991 = vrcp.pop %v3933
  %v3992 = vmul.f32 %v3933, %v3991
  %v3993 = vsub.f32 1.0, %v3992
  %v3994 = vmul.f32 %v3991, %v3993
  %v3995 = vadd.f32 %v3991, %v3994
  %vm3996 = vweird.f32 %v3933
  %vm3997 = vweird.f32 %v3991
  %vm3998 = vmor %vm3996, %vm3997
  %v3999 = vsel %vm3998, %v3991, %v3995
  %v4000 = vand.u32 2147483647, %v3933
  %vm4001 = vcmp.eq.f32.partialorder %v4000, 8.507059e+37
  %v4002 = vand.u32 %v3933, 2147483648
  %v4003 = vor.u32 1.1754944e-38, %v4002
  %v4004 = vsel %vm4001, %v4003, %v3999
  %v4005 = vmul.f32 %v3869, %v4004
  %v4006 = vrcp.pop %v3934
  %v4007 = vmul.f32 %v3934, %v4006
  %v4008 = vsub.f32 1.0, %v4007
  %v4009 = vmul.f32 %v4006, %v4008
  %v4010 = vadd.f32 %v4006, %v4009
  %vm4011 = vweird.f32 %v3934
  %vm4012 = vweird.f32 %v4006
  %vm4013 = vmor %vm4011, %vm4012
  %v4014 = vsel %vm4013, %v4006, %v4010
  %v4015 = vand.u32 2147483647, %v3934
  %vm4016 = vcmp.eq.f32.partialorder %v4015, 8.507059e+37
  %v4017 = vand.u32 %v3934, 2147483648
  %v4018 = vor.u32 1.1754944e-38, %v4017
  %v4019 = vsel %vm4016, %v4018, %v4014
  %v4020 = vmul.f32 %v3871, %v4019
  %v4021 = vrcp.pop %v3935
  %v4022 = vmul.f32 %v3935, %v4021
  %v4023 = vsub.f32 1.0, %v4022
  %v4024 = vmul.f32 %v4021, %v4023
  %v4025 = vadd.f32 %v4021, %v4024
  %vm4026 = vweird.f32 %v3935
  %vm4027 = vweird.f32 %v4021
  %vm4028 = vmor %vm4026, %vm4027
  %v4029 = vsel %vm4028, %v4021, %v4025
  %v4030 = vand.u32 2147483647, %v3935
  %vm4031 = vcmp.eq.f32.partialorder %v4030, 8.507059e+37
  %v4032 = vand.u32 %v3935, 2147483648
  %v4033 = vor.u32 1.1754944e-38, %v4032
  %v4034 = vsel %vm4031, %v4033, %v4029
  %v4035 = vmul.f32 %v3873, %v4034
  %v4036 = vrcp.pop %v3936
  %v4037 = vmul.f32 %v3936, %v4036
  %v4038 = vsub.f32 1.0, %v4037
  %v4039 = vmul.f32 %v4036, %v4038
  %v4040 = vadd.f32 %v4036, %v4039
  %vm4041 = vweird.f32 %v3936
  %vm4042 = vweird.f32 %v4036
  %vm4043 = vmor %vm4041, %vm4042
  %v4044 = vsel %vm4043, %v4036, %v4040
  %v4045 = vand.u32 2147483647, %v3936
  %vm4046 = vcmp.eq.f32.partialorder %v4045, 8.507059e+37
  %v4047 = vand.u32 %v3936, 2147483648
  %v4048 = vor.u32 1.1754944e-38, %v4047
  %v4049 = vsel %vm4046, %v4048, %v4044
  %v4050 = vmul.f32 %v3875, %v4049
  %v4051 = vrcp.pop %v3937
  %v4052 = vmul.f32 %v3937, %v4051
  %v4053 = vsub.f32 1.0, %v4052
  %v4054 = vmul.f32 %v4051, %v4053
  %v4055 = vadd.f32 %v4051, %v4054
  %vm4056 = vweird.f32 %v3937
  %vm4057 = vweird.f32 %v4051
  %vm4058 = vmor %vm4056, %vm4057
  %v4059 = vsel %vm4058, %v4051, %v4055
  %v4060 = vand.u32 2147483647, %v3937
  %vm4061 = vcmp.eq.f32.partialorder %v4060, 8.507059e+37
  %v4062 = vand.u32 %v3937, 2147483648
  %v4063 = vor.u32 1.1754944e-38, %v4062
  %v4064 = vsel %vm4061, %v4063, %v4059
  %v4065 = vmul.f32 %v3877, %v4064
  %4067 = vset.pattern.permute.xlu0 0
  %4068 = vperm.xlu0 %4067, %v3960
  %v4069 = vpop.permute.xlu0 %4068
  %4072 = vset.pattern.permute.xlu0 0
  %4073 = vperm.xlu0 %4072, %v3975
  %v4074 = vpop.permute.xlu0 %4073
  %4077 = vset.pattern.permute.xlu0 0
  %4078 = vperm.xlu0 %4077, %v3990
  %v4079 = vpop.permute.xlu0 %4078
  %4082 = vset.pattern.permute.xlu0 0
  %4083 = vperm.xlu0 %4082, %v4005
  %v4084 = vpop.permute.xlu0 %4083
  %4087 = vset.pattern.permute.xlu0 0
  %4088 = vperm.xlu0 %4087, %v4020
  %v4089 = vpop.permute.xlu0 %4088
  %4092 = vset.pattern.permute.xlu0 0
  %4093 = vperm.xlu0 %4092, %v4035
  %v4094 = vpop.permute.xlu0 %4093
  %4097 = vset.pattern.permute.xlu0 0
  %4098 = vperm.xlu0 %4097, %v4050
  %v4099 = vpop.permute.xlu0 %4098
  %4102 = vset.pattern.permute.xlu0 0
  %4103 = vperm.xlu0 %4102, %v4065
  %v4104 = vpop.permute.xlu0 %4103
  %v4106 = vmul.f32 %v4069, %v1094
  %v4107 = vmul.f32 %v4074, %v1095
  %v4108 = vmul.f32 %v4079, %v1096
  %v4109 = vmul.f32 %v4084, %v1097
  %v4110 = vmul.f32 %v4089, %v1098
  %v4111 = vmul.f32 %v4094, %v1099
  %v4112 = vmul.f32 %v4099, %v1100
  %v4113 = vmul.f32 %v4104, %v1101
  %v4114 = vsel %vm56, %v4106, 0.0
  %v4115 = vrot.slane %v4114, 4
  %v4116 = vadd.f32 %v4114, %v4115
  %v4117 = vrot.slane %v4116, 2
  %v4118 = vadd.f32 %v4116, %v4117
  %v4119 = vrot.slane %v4118, 1
  %v4120 = vadd.f32 %v4118, %v4119
  %v4121 = vsel %vm56, %v4107, 0.0
  %v4122 = vrot.slane %v4121, 4
  %v4123 = vadd.f32 %v4121, %v4122
  %v4124 = vrot.slane %v4123, 2
  %v4125 = vadd.f32 %v4123, %v4124
  %v4126 = vrot.slane %v4125, 1
  %v4127 = vadd.f32 %v4125, %v4126
  %v4128 = vsel %vm56, %v4108, 0.0
  %v4129 = vrot.slane %v4128, 4
  %v4130 = vadd.f32 %v4128, %v4129
  %v4131 = vrot.slane %v4130, 2
  %v4132 = vadd.f32 %v4130, %v4131
  %v4133 = vrot.slane %v4132, 1
  %v4134 = vadd.f32 %v4132, %v4133
  %v4135 = vsel %vm56, %v4109, 0.0
  %v4136 = vrot.slane %v4135, 4
  %v4137 = vadd.f32 %v4135, %v4136
  %v4138 = vrot.slane %v4137, 2
  %v4139 = vadd.f32 %v4137, %v4138
  %v4140 = vrot.slane %v4139, 1
  %v4141 = vadd.f32 %v4139, %v4140
  %v4142 = vsel %vm56, %v4110, 0.0
  %v4143 = vrot.slane %v4142, 4
  %v4144 = vadd.f32 %v4142, %v4143
  %v4145 = vrot.slane %v4144, 2
  %v4146 = vadd.f32 %v4144, %v4145
  %v4147 = vrot.slane %v4146, 1
  %v4148 = vadd.f32 %v4146, %v4147
  %v4149 = vsel %vm56, %v4111, 0.0
  %v4150 = vrot.slane %v4149, 4
  %v4151 = vadd.f32 %v4149, %v4150
  %v4152 = vrot.slane %v4151, 2
  %v4153 = vadd.f32 %v4151, %v4152
  %v4154 = vrot.slane %v4153, 1
  %v4155 = vadd.f32 %v4153, %v4154
  %v4156 = vsel %vm56, %v4112, 0.0
  %v4157 = vrot.slane %v4156, 4
  %v4158 = vadd.f32 %v4156, %v4157
  %v4159 = vrot.slane %v4158, 2
  %v4160 = vadd.f32 %v4158, %v4159
  %v4161 = vrot.slane %v4160, 1
  %v4162 = vadd.f32 %v4160, %v4161
  %v4163 = vsel %vm56, %v4113, 0.0
  %v4164 = vrot.slane %v4163, 4
  %v4165 = vadd.f32 %v4163, %v4164
  %v4166 = vrot.slane %v4165, 2
  %v4167 = vadd.f32 %v4165, %v4166
  %v4168 = vrot.slane %v4167, 1
  %v4169 = vadd.f32 %v4167, %v4168
  %v4178 = vsel %vm1115, %v4127, %v4120
  %v4179 = vsel %vm1118, %v4134, %v4178
  %v4180 = vsel %vm1121, %v4141, %v4179
  %v4181 = vsel %vm1124, %v4148, %v4180
  %v4182 = vsel %vm1127, %v4155, %v4181
  %v4183 = vsel %vm1130, %v4162, %v4182
  %v4184 = vsel %vm1133, %v4169, %v4183
  %4186 = vrot.lane.b32.xlu0 %v3689, 64
  %v4187 = vpop.permute.xlu0 %4186
  %v4189 = vsel %vm56, %v4184, %v4187
  %v4191 = vsel %vm1704, %v4189, 0
  %4193 = vmatpush.msra.mxu0 0.0
  %4194 = vmatpush.msra.mxu0 0.0
  %4195 = vmatpush.msra.mxu0 0.0
  %4196 = vmatpush.msra.mxu0 0.0
  %4197 = vmatpush.msra.mxu0 0.0
  %4198 = vmatpush.msra.mxu0 0.0
  %4199 = vmatpush.msra.mxu0 0.0
  %4200 = vmatpush.msra.mxu0 0.0
  %4201 = vmatpush.msra.mxu0 %v1699
  %4202 = vmatpush.msra.mxu0 %v1698
  %4203 = vmatpush.msra.mxu0 %v1697
  %4204 = vmatpush.msra.mxu0 %v1696
  %4205 = vmatpush.msra.mxu0 %v1695
  %4206 = vmatpush.msra.mxu0 %v1694
  %4207 = vmatpush.msra.mxu0 %v1693
  %4208 = vmatpush.msra.mxu0 %v1692
  %4209 = vmatmul.f32.gmra.mxu0 %v4191
  %v4210 = vpop.f32.mrf.mxu0
  %v4211 = vadd.f32 0.0, %v4210
  %4212 = vdwg.mxu0
  %v4213 = vtanh.pop %v4211
  %4215 = vrot.lane.b32.xlu0 %v4213, 96
  %v4216 = vpop.permute.xlu0 %4215
  %vm4218 = vcmask 1048320
  %4219 = vst.msk [vmem:[%s11] sm:$0xff] %vm4218, %v4216
  %v4220 = vadd.s32 %v127, 4294967272
  %v4221 = vperm.slane %v4069, %v4220
  %v4222 = vperm.slane %v4074, %v4220
  %v4223 = vperm.slane %v4079, %v4220
  %v4224 = vperm.slane %v4084, %v4220
  %v4225 = vperm.slane %v4089, %v4220
  %v4226 = vperm.slane %v4094, %v4220
  %v4227 = vperm.slane %v4099, %v4220
  %v4228 = vperm.slane %v4104, %v4220
  %v4229 = vsel %vm1115, %v4222, %v4221
  %v4230 = vsel %vm1118, %v4223, %v4229
  %v4231 = vsel %vm1121, %v4224, %v4230
  %v4232 = vsel %vm1124, %v4225, %v4231
  %v4233 = vsel %vm1127, %v4226, %v4232
  %v4234 = vsel %vm1130, %v4227, %v4233
  %v4235 = vsel %vm1133, %v4228, %v4234
  %vm4237 = vcmask 261312
  %4238 = vst.msk [vmem:[%s12] sm:$0xff] %vm4237, %v4235
  %v4239 = vsel %vm56, %v4213, %v4187
  %v4241 = vsel %vm1704, %v4239, 0
  %4243 = vmatpush.msra.mxu0 0.0
  %4244 = vmatpush.msra.mxu0 0.0
  %4245 = vmatpush.msra.mxu0 0.0
  %4246 = vmatpush.msra.mxu0 0.0
  %4247 = vmatpush.msra.mxu0 0.0
  %4248 = vmatpush.msra.mxu0 0.0
  %4249 = vmatpush.msra.mxu0 0.0
  %4250 = vmatpush.msra.mxu0 0.0
  %4251 = vmatpush.msra.mxu0 %v1691
  %4252 = vmatpush.msra.mxu0 %v1690
  %4253 = vmatpush.msra.mxu0 %v1689
  %4254 = vmatpush.msra.mxu0 %v1688
  %4255 = vmatpush.msra.mxu0 %v1687
  %4256 = vmatpush.msra.mxu0 %v1686
  %4257 = vmatpush.msra.mxu0 %v1685
  %4258 = vmatpush.msra.mxu0 %v1684
  %4259 = vmatmul.f32.gmra.mxu0 %v4241
  %v4260 = vpop.f32.mrf.mxu0
  %v4261 = vadd.f32 0.0, %v4260
  %4262 = vdwg.mxu0
  %v4263 = vadd.f32 %v1673, %v4261
  %v4264 = vxor.u32 %v4263, 2147483648
  %v4265 = vmul.f32 %v4264, 1.442695
  %v4266 = vpow.pop %v4265
  %v4267 = vadd.f32 %v4266, 1.0
  %v4268 = vrcp.pop %v4267
  %v4269 = vmul.f32 %v4267, %v4268
  %v4270 = vsub.f32 1.0, %v4269
  %v4271 = vmul.f32 %v4268, %v4270
  %v4272 = vadd.f32 %v4268, %v4271
  %vm4273 = vweird.f32 %v4267
  %vm4274 = vweird.f32 %v4268
  %vm4275 = vmor %vm4273, %vm4274
  %v4276 = vsel %vm4275, %v4268, %v4272
  %v4277 = vand.u32 2147483647, %v4267
  %vm4278 = vcmp.eq.f32.partialorder %v4277, 8.507059e+37
  %v4279 = vand.u32 %v4267, 2147483648
  %v4280 = vor.u32 1.1754944e-38, %v4279
  %v4281 = vsel %vm4278, %v4280, %v4276
  %v4282 = vmul.f32 1.0, %v4281
  %v4283 = vtanh.pop %v4263
  %v4284 = vmul.f32 %v4282, %v3683
  %4286 = vrot.lane.b32.xlu0 %v4283, 64
  %v4287 = vpop.permute.xlu0 %4286
  %v4289 = vmul.f32 %v4282, %v4287
  %4291 = vrot.lane.b32.xlu0 %v4289, 32
  %v4292 = vpop.permute.xlu0 %4291
  %v4294 = vadd.f32 %v4284, %v4292
  %v4295 = vtanh.pop %v4294
  %4297 = vrot.lane.b32.xlu0 %v4295, 64
  %v4298 = vpop.permute.xlu0 %4297
  %v4300 = vmul.f32 %v4282, %v4298
  %v4302 = vrot.slane %v4300, 1
  %v4303 = vrot.slane %v4300, 2
  %v4304 = vrot.slane %v4300, 3
  %v4305 = vrot.slane %v4300, 4
  %v4306 = vrot.slane %v4300, 5
  %v4307 = vrot.slane %v4300, 6
  %v4308 = vrot.slane %v4300, 7
  %v4309 = vperm.slane %v4300, 0
  %v4310 = vperm.slane %v4302, 0
  %v4311 = vperm.slane %v4303, 0
  %v4312 = vperm.slane %v4304, 0
  %v4313 = vperm.slane %v4305, 0
  %v4314 = vperm.slane %v4306, 0
  %v4315 = vperm.slane %v4307, 0
  %v4316 = vperm.slane %v4308, 0
  %v4325 = vmul.f32 %v4309, %v1799
  %v4326 = vmul.f32 %v4310, %v1801
  %v4327 = vmul.f32 %v4311, %v1803
  %v4328 = vmul.f32 %v4312, %v1805
  %v4329 = vmul.f32 %v4313, %v1807
  %v4330 = vmul.f32 %v4314, %v1809
  %v4331 = vmul.f32 %v4315, %v1811
  %v4332 = vmul.f32 %v4316, %v1813
  %4341 = vrot.lane.b32.xlu0 %v4325, 32
  %v4342 = vpop.permute.xlu0 %4341
  %4343 = vrot.lane.b32.xlu0 %v4326, 32
  %v4344 = vpop.permute.xlu0 %4343
  %4345 = vrot.lane.b32.xlu0 %v4327, 32
  %v4346 = vpop.permute.xlu0 %4345
  %4347 = vrot.lane.b32.xlu0 %v4328, 32
  %v4348 = vpop.permute.xlu0 %4347
  %4349 = vrot.lane.b32.xlu0 %v4329, 32
  %v4350 = vpop.permute.xlu0 %4349
  %4351 = vrot.lane.b32.xlu0 %v4330, 32
  %v4352 = vpop.permute.xlu0 %4351
  %4353 = vrot.lane.b32.xlu0 %v4331, 32
  %v4354 = vpop.permute.xlu0 %4353
  %4355 = vrot.lane.b32.xlu0 %v4332, 32
  %v4356 = vpop.permute.xlu0 %4355
  %v4365 = vsel %vm56, %v4342, 0.0
  %4366 = vadd.xlane.f32.xlu0 %v4365
  %v4367 = vpop.xlane.xlu0 %4366
  %v4368 = vsel %vm56, %v4344, 0.0
  %4369 = vadd.xlane.f32.xlu0 %v4368
  %v4370 = vpop.xlane.xlu0 %4369
  %v4371 = vsel %vm56, %v4346, 0.0
  %4372 = vadd.xlane.f32.xlu0 %v4371
  %v4373 = vpop.xlane.xlu0 %4372
  %v4374 = vsel %vm56, %v4348, 0.0
  %4375 = vadd.xlane.f32.xlu0 %v4374
  %v4376 = vpop.xlane.xlu0 %4375
  %v4377 = vsel %vm56, %v4350, 0.0
  %4378 = vadd.xlane.f32.xlu0 %v4377
  %v4379 = vpop.xlane.xlu0 %4378
  %v4380 = vsel %vm56, %v4352, 0.0
  %4381 = vadd.xlane.f32.xlu0 %v4380
  %v4382 = vpop.xlane.xlu0 %4381
  %v4383 = vsel %vm56, %v4354, 0.0
  %4384 = vadd.xlane.f32.xlu0 %v4383
  %v4385 = vpop.xlane.xlu0 %4384
  %v4386 = vsel %vm56, %v4356, 0.0
  %4387 = vadd.xlane.f32.xlu0 %v4386
  %v4388 = vpop.xlane.xlu0 %4387
  %v4389 = vadd.f32 %v4367, %v1893
  %v4390 = vadd.f32 %v4370, %v1900
  %v4391 = vadd.f32 %v4373, %v1907
  %v4392 = vadd.f32 %v4376, %v1914
  %v4393 = vadd.f32 %v4379, %v1921
  %v4394 = vadd.f32 %v4382, %v1928
  %v4395 = vadd.f32 %v4385, %v1935
  %v4396 = vadd.f32 %v4388, %v1942
  %4405 = vset.pattern.permute.xlu0 0
  %4406 = vperm.xlu0 %4405, %v4389
  %v4407 = vpop.permute.xlu0 %4406
  %4408 = vset.pattern.permute.xlu0 0
  %4409 = vperm.xlu0 %4408, %v4390
  %v4410 = vpop.permute.xlu0 %4409
  %4411 = vset.pattern.permute.xlu0 0
  %4412 = vperm.xlu0 %4411, %v4391
  %v4413 = vpop.permute.xlu0 %4412
  %4414 = vset.pattern.permute.xlu0 0
  %4415 = vperm.xlu0 %4414, %v4392
  %v4416 = vpop.permute.xlu0 %4415
  %4417 = vset.pattern.permute.xlu0 0
  %4418 = vperm.xlu0 %4417, %v4393
  %v4419 = vpop.permute.xlu0 %4418
  %4420 = vset.pattern.permute.xlu0 0
  %4421 = vperm.xlu0 %4420, %v4394
  %v4422 = vpop.permute.xlu0 %4421
  %4423 = vset.pattern.permute.xlu0 0
  %4424 = vperm.xlu0 %4423, %v4395
  %v4425 = vpop.permute.xlu0 %4424
  %4426 = vset.pattern.permute.xlu0 0
  %4427 = vperm.xlu0 %4426, %v4396
  %v4428 = vpop.permute.xlu0 %4427
  %v4429 = vperm.slane %v4407, %v127
  %v4430 = vperm.slane %v4410, %v127
  %v4431 = vperm.slane %v4413, %v127
  %v4432 = vperm.slane %v4416, %v127
  %v4433 = vperm.slane %v4419, %v127
  %v4434 = vperm.slane %v4422, %v127
  %v4435 = vperm.slane %v4425, %v127
  %v4436 = vperm.slane %v4428, %v127
  %v4437 = vsel %vm1115, %v4430, %v4429
  %v4438 = vsel %vm1118, %v4431, %v4437
  %v4439 = vsel %vm1121, %v4432, %v4438
  %v4440 = vsel %vm1124, %v4433, %v4439
  %v4441 = vsel %vm1127, %v4434, %v4440
  %v4442 = vsel %vm1130, %v4435, %v4441
  %v4443 = vsel %vm1133, %v4436, %v4442
  %v4445 = vsel %vm2007, %v4443, -inf
  %4446 = vmax.xlane.f32.xlu0 %v4445
  %v4447 = vpop.xlane.xlu0 %4446
  %v4449 = vperm.slane %v4447, 0
  %v4450 = vperm.slane %v4447, 1
  %v4451 = vperm.slane %v4447, 2
  %v4452 = vperm.slane %v4447, 3
  %v4453 = vperm.slane %v4447, 4
  %v4454 = vperm.slane %v4447, 5
  %v4455 = vperm.slane %v4447, 6
  %v4456 = vperm.slane %v4447, 7
  %v4465 = vsub.f32 %v4389, %v4449
  %v4466 = vsub.f32 %v4390, %v4450
  %v4467 = vsub.f32 %v4391, %v4451
  %v4468 = vsub.f32 %v4392, %v4452
  %v4469 = vsub.f32 %v4393, %v4453
  %v4470 = vsub.f32 %v4394, %v4454
  %v4471 = vsub.f32 %v4395, %v4455
  %v4472 = vsub.f32 %v4396, %v4456
  %v4473 = vmul.f32 %v4465, 1.442695
  %v4474 = vpow.pop %v4473
  %v4475 = vmul.f32 %v4466, 1.442695
  %v4476 = vpow.pop %v4475
  %v4477 = vmul.f32 %v4467, 1.442695
  %v4478 = vpow.pop %v4477
  %v4479 = vmul.f32 %v4468, 1.442695
  %v4480 = vpow.pop %v4479
  %v4481 = vmul.f32 %v4469, 1.442695
  %v4482 = vpow.pop %v4481
  %v4483 = vmul.f32 %v4470, 1.442695
  %v4484 = vpow.pop %v4483
  %v4485 = vmul.f32 %v4471, 1.442695
  %v4486 = vpow.pop %v4485
  %v4487 = vmul.f32 %v4472, 1.442695
  %v4488 = vpow.pop %v4487
  %4497 = vset.pattern.permute.xlu0 0
  %4498 = vperm.xlu0 %4497, %v4474
  %v4499 = vpop.permute.xlu0 %4498
  %4500 = vset.pattern.permute.xlu0 0
  %4501 = vperm.xlu0 %4500, %v4476
  %v4502 = vpop.permute.xlu0 %4501
  %4503 = vset.pattern.permute.xlu0 0
  %4504 = vperm.xlu0 %4503, %v4478
  %v4505 = vpop.permute.xlu0 %4504
  %4506 = vset.pattern.permute.xlu0 0
  %4507 = vperm.xlu0 %4506, %v4480
  %v4508 = vpop.permute.xlu0 %4507
  %4509 = vset.pattern.permute.xlu0 0
  %4510 = vperm.xlu0 %4509, %v4482
  %v4511 = vpop.permute.xlu0 %4510
  %4512 = vset.pattern.permute.xlu0 0
  %4513 = vperm.xlu0 %4512, %v4484
  %v4514 = vpop.permute.xlu0 %4513
  %4515 = vset.pattern.permute.xlu0 0
  %4516 = vperm.xlu0 %4515, %v4486
  %v4517 = vpop.permute.xlu0 %4516
  %4518 = vset.pattern.permute.xlu0 0
  %4519 = vperm.xlu0 %4518, %v4488
  %v4520 = vpop.permute.xlu0 %4519
  %v4521 = vperm.slane %v4499, %v127
  %v4522 = vperm.slane %v4502, %v127
  %v4523 = vperm.slane %v4505, %v127
  %v4524 = vperm.slane %v4508, %v127
  %v4525 = vperm.slane %v4511, %v127
  %v4526 = vperm.slane %v4514, %v127
  %v4527 = vperm.slane %v4517, %v127
  %v4528 = vperm.slane %v4520, %v127
  %v4529 = vsel %vm1115, %v4522, %v4521
  %v4530 = vsel %vm1118, %v4523, %v4529
  %v4531 = vsel %vm1121, %v4524, %v4530
  %v4532 = vsel %vm1124, %v4525, %v4531
  %v4533 = vsel %vm1127, %v4526, %v4532
  %v4534 = vsel %vm1130, %v4527, %v4533
  %v4535 = vsel %vm1133, %v4528, %v4534
  %v4537 = vsel %vm2007, %v4535, 0.0
  %4538 = vadd.xlane.f32.xlu0 %v4537
  %v4539 = vpop.xlane.xlu0 %4538
  %v4541 = vperm.slane %v4539, 0
  %v4542 = vperm.slane %v4539, 1
  %v4543 = vperm.slane %v4539, 2
  %v4544 = vperm.slane %v4539, 3
  %v4545 = vperm.slane %v4539, 4
  %v4546 = vperm.slane %v4539, 5
  %v4547 = vperm.slane %v4539, 6
  %v4548 = vperm.slane %v4539, 7
  %v4557 = vrcp.pop %v4541
  %v4558 = vmul.f32 %v4541, %v4557
  %v4559 = vsub.f32 1.0, %v4558
  %v4560 = vmul.f32 %v4557, %v4559
  %v4561 = vadd.f32 %v4557, %v4560
  %vm4562 = vweird.f32 %v4541
  %vm4563 = vweird.f32 %v4557
  %vm4564 = vmor %vm4562, %vm4563
  %v4565 = vsel %vm4564, %v4557, %v4561
  %v4566 = vand.u32 2147483647, %v4541
  %vm4567 = vcmp.eq.f32.partialorder %v4566, 8.507059e+37
  %v4568 = vand.u32 %v4541, 2147483648
  %v4569 = vor.u32 1.1754944e-38, %v4568
  %v4570 = vsel %vm4567, %v4569, %v4565
  %v4571 = vmul.f32 %v4474, %v4570
  %v4572 = vrcp.pop %v4542
  %v4573 = vmul.f32 %v4542, %v4572
  %v4574 = vsub.f32 1.0, %v4573
  %v4575 = vmul.f32 %v4572, %v4574
  %v4576 = vadd.f32 %v4572, %v4575
  %vm4577 = vweird.f32 %v4542
  %vm4578 = vweird.f32 %v4572
  %vm4579 = vmor %vm4577, %vm4578
  %v4580 = vsel %vm4579, %v4572, %v4576
  %v4581 = vand.u32 2147483647, %v4542
  %vm4582 = vcmp.eq.f32.partialorder %v4581, 8.507059e+37
  %v4583 = vand.u32 %v4542, 2147483648
  %v4584 = vor.u32 1.1754944e-38, %v4583
  %v4585 = vsel %vm4582, %v4584, %v4580
  %v4586 = vmul.f32 %v4476, %v4585
  %v4587 = vrcp.pop %v4543
  %v4588 = vmul.f32 %v4543, %v4587
  %v4589 = vsub.f32 1.0, %v4588
  %v4590 = vmul.f32 %v4587, %v4589
  %v4591 = vadd.f32 %v4587, %v4590
  %vm4592 = vweird.f32 %v4543
  %vm4593 = vweird.f32 %v4587
  %vm4594 = vmor %vm4592, %vm4593
  %v4595 = vsel %vm4594, %v4587, %v4591
  %v4596 = vand.u32 2147483647, %v4543
  %vm4597 = vcmp.eq.f32.partialorder %v4596, 8.507059e+37
  %v4598 = vand.u32 %v4543, 2147483648
  %v4599 = vor.u32 1.1754944e-38, %v4598
  %v4600 = vsel %vm4597, %v4599, %v4595
  %v4601 = vmul.f32 %v4478, %v4600
  %v4602 = vrcp.pop %v4544
  %v4603 = vmul.f32 %v4544, %v4602
  %v4604 = vsub.f32 1.0, %v4603
  %v4605 = vmul.f32 %v4602, %v4604
  %v4606 = vadd.f32 %v4602, %v4605
  %vm4607 = vweird.f32 %v4544
  %vm4608 = vweird.f32 %v4602
  %vm4609 = vmor %vm4607, %vm4608
  %v4610 = vsel %vm4609, %v4602, %v4606
  %v4611 = vand.u32 2147483647, %v4544
  %vm4612 = vcmp.eq.f32.partialorder %v4611, 8.507059e+37
  %v4613 = vand.u32 %v4544, 2147483648
  %v4614 = vor.u32 1.1754944e-38, %v4613
  %v4615 = vsel %vm4612, %v4614, %v4610
  %v4616 = vmul.f32 %v4480, %v4615
  %v4617 = vrcp.pop %v4545
  %v4618 = vmul.f32 %v4545, %v4617
  %v4619 = vsub.f32 1.0, %v4618
  %v4620 = vmul.f32 %v4617, %v4619
  %v4621 = vadd.f32 %v4617, %v4620
  %vm4622 = vweird.f32 %v4545
  %vm4623 = vweird.f32 %v4617
  %vm4624 = vmor %vm4622, %vm4623
  %v4625 = vsel %vm4624, %v4617, %v4621
  %v4626 = vand.u32 2147483647, %v4545
  %vm4627 = vcmp.eq.f32.partialorder %v4626, 8.507059e+37
  %v4628 = vand.u32 %v4545, 2147483648
  %v4629 = vor.u32 1.1754944e-38, %v4628
  %v4630 = vsel %vm4627, %v4629, %v4625
  %v4631 = vmul.f32 %v4482, %v4630
  %v4632 = vrcp.pop %v4546
  %v4633 = vmul.f32 %v4546, %v4632
  %v4634 = vsub.f32 1.0, %v4633
  %v4635 = vmul.f32 %v4632, %v4634
  %v4636 = vadd.f32 %v4632, %v4635
  %vm4637 = vweird.f32 %v4546
  %vm4638 = vweird.f32 %v4632
  %vm4639 = vmor %vm4637, %vm4638
  %v4640 = vsel %vm4639, %v4632, %v4636
  %v4641 = vand.u32 2147483647, %v4546
  %vm4642 = vcmp.eq.f32.partialorder %v4641, 8.507059e+37
  %v4643 = vand.u32 %v4546, 2147483648
  %v4644 = vor.u32 1.1754944e-38, %v4643
  %v4645 = vsel %vm4642, %v4644, %v4640
  %v4646 = vmul.f32 %v4484, %v4645
  %v4647 = vrcp.pop %v4547
  %v4648 = vmul.f32 %v4547, %v4647
  %v4649 = vsub.f32 1.0, %v4648
  %v4650 = vmul.f32 %v4647, %v4649
  %v4651 = vadd.f32 %v4647, %v4650
  %vm4652 = vweird.f32 %v4547
  %vm4653 = vweird.f32 %v4647
  %vm4654 = vmor %vm4652, %vm4653
  %v4655 = vsel %vm4654, %v4647, %v4651
  %v4656 = vand.u32 2147483647, %v4547
  %vm4657 = vcmp.eq.f32.partialorder %v4656, 8.507059e+37
  %v4658 = vand.u32 %v4547, 2147483648
  %v4659 = vor.u32 1.1754944e-38, %v4658
  %v4660 = vsel %vm4657, %v4659, %v4655
  %v4661 = vmul.f32 %v4486, %v4660
  %v4662 = vrcp.pop %v4548
  %v4663 = vmul.f32 %v4548, %v4662
  %v4664 = vsub.f32 1.0, %v4663
  %v4665 = vmul.f32 %v4662, %v4664
  %v4666 = vadd.f32 %v4662, %v4665
  %vm4667 = vweird.f32 %v4548
  %vm4668 = vweird.f32 %v4662
  %vm4669 = vmor %vm4667, %vm4668
  %v4670 = vsel %vm4669, %v4662, %v4666
  %v4671 = vand.u32 2147483647, %v4548
  %vm4672 = vcmp.eq.f32.partialorder %v4671, 8.507059e+37
  %v4673 = vand.u32 %v4548, 2147483648
  %v4674 = vor.u32 1.1754944e-38, %v4673
  %v4675 = vsel %vm4672, %v4674, %v4670
  %v4676 = vmul.f32 %v4488, %v4675
  %4678 = vset.pattern.permute.xlu0 0
  %4679 = vperm.xlu0 %4678, %v4571
  %v4680 = vpop.permute.xlu0 %4679
  %4683 = vset.pattern.permute.xlu0 0
  %4684 = vperm.xlu0 %4683, %v4586
  %v4685 = vpop.permute.xlu0 %4684
  %4688 = vset.pattern.permute.xlu0 0
  %4689 = vperm.xlu0 %4688, %v4601
  %v4690 = vpop.permute.xlu0 %4689
  %4693 = vset.pattern.permute.xlu0 0
  %4694 = vperm.xlu0 %4693, %v4616
  %v4695 = vpop.permute.xlu0 %4694
  %4698 = vset.pattern.permute.xlu0 0
  %4699 = vperm.xlu0 %4698, %v4631
  %v4700 = vpop.permute.xlu0 %4699
  %4703 = vset.pattern.permute.xlu0 0
  %4704 = vperm.xlu0 %4703, %v4646
  %v4705 = vpop.permute.xlu0 %4704
  %4708 = vset.pattern.permute.xlu0 0
  %4709 = vperm.xlu0 %4708, %v4661
  %v4710 = vpop.permute.xlu0 %4709
  %4713 = vset.pattern.permute.xlu0 0
  %4714 = vperm.xlu0 %4713, %v4676
  %v4715 = vpop.permute.xlu0 %4714
  %v4717 = vmul.f32 %v4680, %v1094
  %v4718 = vmul.f32 %v4685, %v1095
  %v4719 = vmul.f32 %v4690, %v1096
  %v4720 = vmul.f32 %v4695, %v1097
  %v4721 = vmul.f32 %v4700, %v1098
  %v4722 = vmul.f32 %v4705, %v1099
  %v4723 = vmul.f32 %v4710, %v1100
  %v4724 = vmul.f32 %v4715, %v1101
  %v4725 = vsel %vm56, %v4717, 0.0
  %v4726 = vrot.slane %v4725, 4
  %v4727 = vadd.f32 %v4725, %v4726
  %v4728 = vrot.slane %v4727, 2
  %v4729 = vadd.f32 %v4727, %v4728
  %v4730 = vrot.slane %v4729, 1
  %v4731 = vadd.f32 %v4729, %v4730
  %v4732 = vsel %vm56, %v4718, 0.0
  %v4733 = vrot.slane %v4732, 4
  %v4734 = vadd.f32 %v4732, %v4733
  %v4735 = vrot.slane %v4734, 2
  %v4736 = vadd.f32 %v4734, %v4735
  %v4737 = vrot.slane %v4736, 1
  %v4738 = vadd.f32 %v4736, %v4737
  %v4739 = vsel %vm56, %v4719, 0.0
  %v4740 = vrot.slane %v4739, 4
  %v4741 = vadd.f32 %v4739, %v4740
  %v4742 = vrot.slane %v4741, 2
  %v4743 = vadd.f32 %v4741, %v4742
  %v4744 = vrot.slane %v4743, 1
  %v4745 = vadd.f32 %v4743, %v4744
  %v4746 = vsel %vm56, %v4720, 0.0
  %v4747 = vrot.slane %v4746, 4
  %v4748 = vadd.f32 %v4746, %v4747
  %v4749 = vrot.slane %v4748, 2
  %v4750 = vadd.f32 %v4748, %v4749
  %v4751 = vrot.slane %v4750, 1
  %v4752 = vadd.f32 %v4750, %v4751
  %v4753 = vsel %vm56, %v4721, 0.0
  %v4754 = vrot.slane %v4753, 4
  %v4755 = vadd.f32 %v4753, %v4754
  %v4756 = vrot.slane %v4755, 2
  %v4757 = vadd.f32 %v4755, %v4756
  %v4758 = vrot.slane %v4757, 1
  %v4759 = vadd.f32 %v4757, %v4758
  %v4760 = vsel %vm56, %v4722, 0.0
  %v4761 = vrot.slane %v4760, 4
  %v4762 = vadd.f32 %v4760, %v4761
  %v4763 = vrot.slane %v4762, 2
  %v4764 = vadd.f32 %v4762, %v4763
  %v4765 = vrot.slane %v4764, 1
  %v4766 = vadd.f32 %v4764, %v4765
  %v4767 = vsel %vm56, %v4723, 0.0
  %v4768 = vrot.slane %v4767, 4
  %v4769 = vadd.f32 %v4767, %v4768
  %v4770 = vrot.slane %v4769, 2
  %v4771 = vadd.f32 %v4769, %v4770
  %v4772 = vrot.slane %v4771, 1
  %v4773 = vadd.f32 %v4771, %v4772
  %v4774 = vsel %vm56, %v4724, 0.0
  %v4775 = vrot.slane %v4774, 4
  %v4776 = vadd.f32 %v4774, %v4775
  %v4777 = vrot.slane %v4776, 2
  %v4778 = vadd.f32 %v4776, %v4777
  %v4779 = vrot.slane %v4778, 1
  %v4780 = vadd.f32 %v4778, %v4779
  %v4789 = vsel %vm1115, %v4738, %v4731
  %v4790 = vsel %vm1118, %v4745, %v4789
  %v4791 = vsel %vm1121, %v4752, %v4790
  %v4792 = vsel %vm1124, %v4759, %v4791
  %v4793 = vsel %vm1127, %v4766, %v4792
  %v4794 = vsel %vm1130, %v4773, %v4793
  %v4795 = vsel %vm1133, %v4780, %v4794
  %4797 = vrot.lane.b32.xlu0 %v4300, 64
  %v4798 = vpop.permute.xlu0 %4797
  %v4800 = vsel %vm56, %v4795, %v4798
  %v4802 = vsel %vm1704, %v4800, 0
  %4804 = vmatpush.msra.mxu0 0.0
  %4805 = vmatpush.msra.mxu0 0.0
  %4806 = vmatpush.msra.mxu0 0.0
  %4807 = vmatpush.msra.mxu0 0.0
  %4808 = vmatpush.msra.mxu0 0.0
  %4809 = vmatpush.msra.mxu0 0.0
  %4810 = vmatpush.msra.mxu0 0.0
  %4811 = vmatpush.msra.mxu0 0.0
  %4812 = vmatpush.msra.mxu0 %v1699
  %4813 = vmatpush.msra.mxu0 %v1698
  %4814 = vmatpush.msra.mxu0 %v1697
  %4815 = vmatpush.msra.mxu0 %v1696
  %4816 = vmatpush.msra.mxu0 %v1695
  %4817 = vmatpush.msra.mxu0 %v1694
  %4818 = vmatpush.msra.mxu0 %v1693
  %4819 = vmatpush.msra.mxu0 %v1692
  %4820 = vmatmul.f32.gmra.mxu0 %v4802
  %v4821 = vpop.f32.mrf.mxu0
  %v4822 = vadd.f32 0.0, %v4821
  %4823 = vdwg.mxu0
  %v4824 = vtanh.pop %v4822
  %4825 = vst.msk [vmem:[%s11 + $0x8] sm:$0xff] %vm56, %v4824
  %v4826 = vadd.s32 %v127, 4294967264
  %v4827 = vperm.slane %v4680, %v4826
  %v4828 = vperm.slane %v4685, %v4826
  %v4829 = vperm.slane %v4690, %v4826
  %v4830 = vperm.slane %v4695, %v4826
  %v4831 = vperm.slane %v4700, %v4826
  %v4832 = vperm.slane %v4705, %v4826
  %v4833 = vperm.slane %v4710, %v4826
  %v4834 = vperm.slane %v4715, %v4826
  %v4835 = vsel %vm1115, %v4828, %v4827
  %v4836 = vsel %vm1118, %v4829, %v4835
  %v4837 = vsel %vm1121, %v4830, %v4836
  %v4838 = vsel %vm1124, %v4831, %v4837
  %v4839 = vsel %vm1127, %v4832, %v4838
  %v4840 = vsel %vm1130, %v4833, %v4839
  %v4841 = vsel %vm1133, %v4834, %v4840
  %vm4843 = vcmask 326912
  %4844 = vst.msk [vmem:[%s12] sm:$0xff] %vm4843, %v4841
  %v4845 = vsel %vm56, %v4824, %v4798
  %v4847 = vsel %vm1704, %v4845, 0
  %4849 = vmatpush.msra.mxu0 0.0
  %4850 = vmatpush.msra.mxu0 0.0
  %4851 = vmatpush.msra.mxu0 0.0
  %4852 = vmatpush.msra.mxu0 0.0
  %4853 = vmatpush.msra.mxu0 0.0
  %4854 = vmatpush.msra.mxu0 0.0
  %4855 = vmatpush.msra.mxu0 0.0
  %4856 = vmatpush.msra.mxu0 0.0
  %4857 = vmatpush.msra.mxu0 %v1691
  %4858 = vmatpush.msra.mxu0 %v1690
  %4859 = vmatpush.msra.mxu0 %v1689
  %4860 = vmatpush.msra.mxu0 %v1688
  %4861 = vmatpush.msra.mxu0 %v1687
  %4862 = vmatpush.msra.mxu0 %v1686
  %4863 = vmatpush.msra.mxu0 %v1685
  %4864 = vmatpush.msra.mxu0 %v1684
  %4865 = vmatmul.f32.gmra.mxu0 %v4847
  %v4866 = vpop.f32.mrf.mxu0
  %v4867 = vadd.f32 0.0, %v4866
  %4868 = vdwg.mxu0
  %v4869 = vadd.f32 %v1676, %v4867
  %v4870 = vxor.u32 %v4869, 2147483648
  %v4871 = vmul.f32 %v4870, 1.442695
  %v4872 = vpow.pop %v4871
  %v4873 = vadd.f32 %v4872, 1.0
  %v4874 = vrcp.pop %v4873
  %v4875 = vmul.f32 %v4873, %v4874
  %v4876 = vsub.f32 1.0, %v4875
  %v4877 = vmul.f32 %v4874, %v4876
  %v4878 = vadd.f32 %v4874, %v4877
  %vm4879 = vweird.f32 %v4873
  %vm4880 = vweird.f32 %v4874
  %vm4881 = vmor %vm4879, %vm4880
  %v4882 = vsel %vm4881, %v4874, %v4878
  %v4883 = vand.u32 2147483647, %v4873
  %vm4884 = vcmp.eq.f32.partialorder %v4883, 8.507059e+37
  %v4885 = vand.u32 %v4873, 2147483648
  %v4886 = vor.u32 1.1754944e-38, %v4885
  %v4887 = vsel %vm4884, %v4886, %v4882
  %v4888 = vmul.f32 1.0, %v4887
  %v4889 = vtanh.pop %v4869
  %v4890 = vmul.f32 %v4888, %v4294
  %4892 = vrot.lane.b32.xlu0 %v4889, 64
  %v4893 = vpop.permute.xlu0 %4892
  %v4895 = vmul.f32 %v4888, %v4893
  %4897 = vrot.lane.b32.xlu0 %v4895, 32
  %v4898 = vpop.permute.xlu0 %4897
  %v4900 = vadd.f32 %v4890, %v4898
  %v4901 = vtanh.pop %v4900
  %4903 = vrot.lane.b32.xlu0 %v4901, 64
  %v4904 = vpop.permute.xlu0 %4903
  %v4906 = vmul.f32 %v4888, %v4904
  %v4908 = vrot.slane %v4906, 1
  %v4909 = vrot.slane %v4906, 2
  %v4910 = vrot.slane %v4906, 3
  %v4911 = vrot.slane %v4906, 4
  %v4912 = vrot.slane %v4906, 5
  %v4913 = vrot.slane %v4906, 6
  %v4914 = vrot.slane %v4906, 7
  %v4915 = vperm.slane %v4906, 0
  %v4916 = vperm.slane %v4908, 0
  %v4917 = vperm.slane %v4909, 0
  %v4918 = vperm.slane %v4910, 0
  %v4919 = vperm.slane %v4911, 0
  %v4920 = vperm.slane %v4912, 0
  %v4921 = vperm.slane %v4913, 0
  %v4922 = vperm.slane %v4914, 0
  %v4931 = vmul.f32 %v4915, %v1799
  %v4932 = vmul.f32 %v4916, %v1801
  %v4933 = vmul.f32 %v4917, %v1803
  %v4934 = vmul.f32 %v4918, %v1805
  %v4935 = vmul.f32 %v4919, %v1807
  %v4936 = vmul.f32 %v4920, %v1809
  %v4937 = vmul.f32 %v4921, %v1811
  %v4938 = vmul.f32 %v4922, %v1813
  %4947 = vrot.lane.b32.xlu0 %v4931, 32
  %v4948 = vpop.permute.xlu0 %4947
  %4949 = vrot.lane.b32.xlu0 %v4932, 32
  %v4950 = vpop.permute.xlu0 %4949
  %4951 = vrot.lane.b32.xlu0 %v4933, 32
  %v4952 = vpop.permute.xlu0 %4951
  %4953 = vrot.lane.b32.xlu0 %v4934, 32
  %v4954 = vpop.permute.xlu0 %4953
  %4955 = vrot.lane.b32.xlu0 %v4935, 32
  %v4956 = vpop.permute.xlu0 %4955
  %4957 = vrot.lane.b32.xlu0 %v4936, 32
  %v4958 = vpop.permute.xlu0 %4957
  %4959 = vrot.lane.b32.xlu0 %v4937, 32
  %v4960 = vpop.permute.xlu0 %4959
  %4961 = vrot.lane.b32.xlu0 %v4938, 32
  %v4962 = vpop.permute.xlu0 %4961
  %v4971 = vsel %vm56, %v4948, 0.0
  %4972 = vadd.xlane.f32.xlu0 %v4971
  %v4973 = vpop.xlane.xlu0 %4972
  %v4974 = vsel %vm56, %v4950, 0.0
  %4975 = vadd.xlane.f32.xlu0 %v4974
  %v4976 = vpop.xlane.xlu0 %4975
  %v4977 = vsel %vm56, %v4952, 0.0
  %4978 = vadd.xlane.f32.xlu0 %v4977
  %v4979 = vpop.xlane.xlu0 %4978
  %v4980 = vsel %vm56, %v4954, 0.0
  %4981 = vadd.xlane.f32.xlu0 %v4980
  %v4982 = vpop.xlane.xlu0 %4981
  %v4983 = vsel %vm56, %v4956, 0.0
  %4984 = vadd.xlane.f32.xlu0 %v4983
  %v4985 = vpop.xlane.xlu0 %4984
  %v4986 = vsel %vm56, %v4958, 0.0
  %4987 = vadd.xlane.f32.xlu0 %v4986
  %v4988 = vpop.xlane.xlu0 %4987
  %v4989 = vsel %vm56, %v4960, 0.0
  %4990 = vadd.xlane.f32.xlu0 %v4989
  %v4991 = vpop.xlane.xlu0 %4990
  %v4992 = vsel %vm56, %v4962, 0.0
  %4993 = vadd.xlane.f32.xlu0 %v4992
  %v4994 = vpop.xlane.xlu0 %4993
  %v4995 = vadd.f32 %v4973, %v1893
  %v4996 = vadd.f32 %v4976, %v1900
  %v4997 = vadd.f32 %v4979, %v1907
  %v4998 = vadd.f32 %v4982, %v1914
  %v4999 = vadd.f32 %v4985, %v1921
  %v5000 = vadd.f32 %v4988, %v1928
  %v5001 = vadd.f32 %v4991, %v1935
  %v5002 = vadd.f32 %v4994, %v1942
  %5011 = vset.pattern.permute.xlu0 0
  %5012 = vperm.xlu0 %5011, %v4995
  %v5013 = vpop.permute.xlu0 %5012
  %5014 = vset.pattern.permute.xlu0 0
  %5015 = vperm.xlu0 %5014, %v4996
  %v5016 = vpop.permute.xlu0 %5015
  %5017 = vset.pattern.permute.xlu0 0
  %5018 = vperm.xlu0 %5017, %v4997
  %v5019 = vpop.permute.xlu0 %5018
  %5020 = vset.pattern.permute.xlu0 0
  %5021 = vperm.xlu0 %5020, %v4998
  %v5022 = vpop.permute.xlu0 %5021
  %5023 = vset.pattern.permute.xlu0 0
  %5024 = vperm.xlu0 %5023, %v4999
  %v5025 = vpop.permute.xlu0 %5024
  %5026 = vset.pattern.permute.xlu0 0
  %5027 = vperm.xlu0 %5026, %v5000
  %v5028 = vpop.permute.xlu0 %5027
  %5029 = vset.pattern.permute.xlu0 0
  %5030 = vperm.xlu0 %5029, %v5001
  %v5031 = vpop.permute.xlu0 %5030
  %5032 = vset.pattern.permute.xlu0 0
  %5033 = vperm.xlu0 %5032, %v5002
  %v5034 = vpop.permute.xlu0 %5033
  %v5035 = vperm.slane %v5013, %v127
  %v5036 = vperm.slane %v5016, %v127
  %v5037 = vperm.slane %v5019, %v127
  %v5038 = vperm.slane %v5022, %v127
  %v5039 = vperm.slane %v5025, %v127
  %v5040 = vperm.slane %v5028, %v127
  %v5041 = vperm.slane %v5031, %v127
  %v5042 = vperm.slane %v5034, %v127
  %v5043 = vsel %vm1115, %v5036, %v5035
  %v5044 = vsel %vm1118, %v5037, %v5043
  %v5045 = vsel %vm1121, %v5038, %v5044
  %v5046 = vsel %vm1124, %v5039, %v5045
  %v5047 = vsel %vm1127, %v5040, %v5046
  %v5048 = vsel %vm1130, %v5041, %v5047
  %v5049 = vsel %vm1133, %v5042, %v5048
  %v5051 = vsel %vm2007, %v5049, -inf
  %5052 = vmax.xlane.f32.xlu0 %v5051
  %v5053 = vpop.xlane.xlu0 %5052
  %v5055 = vperm.slane %v5053, 0
  %v5056 = vperm.slane %v5053, 1
  %v5057 = vperm.slane %v5053, 2
  %v5058 = vperm.slane %v5053, 3
  %v5059 = vperm.slane %v5053, 4
  %v5060 = vperm.slane %v5053, 5
  %v5061 = vperm.slane %v5053, 6
  %v5062 = vperm.slane %v5053, 7
  %v5071 = vsub.f32 %v4995, %v5055
  %v5072 = vsub.f32 %v4996, %v5056
  %v5073 = vsub.f32 %v4997, %v5057
  %v5074 = vsub.f32 %v4998, %v5058
  %v5075 = vsub.f32 %v4999, %v5059
  %v5076 = vsub.f32 %v5000, %v5060
  %v5077 = vsub.f32 %v5001, %v5061
  %v5078 = vsub.f32 %v5002, %v5062
  %v5079 = vmul.f32 %v5071, 1.442695
  %v5080 = vpow.pop %v5079
  %v5081 = vmul.f32 %v5072, 1.442695
  %v5082 = vpow.pop %v5081
  %v5083 = vmul.f32 %v5073, 1.442695
  %v5084 = vpow.pop %v5083
  %v5085 = vmul.f32 %v5074, 1.442695
  %v5086 = vpow.pop %v5085
  %v5087 = vmul.f32 %v5075, 1.442695
  %v5088 = vpow.pop %v5087
  %v5089 = vmul.f32 %v5076, 1.442695
  %v5090 = vpow.pop %v5089
  %v5091 = vmul.f32 %v5077, 1.442695
  %v5092 = vpow.pop %v5091
  %v5093 = vmul.f32 %v5078, 1.442695
  %v5094 = vpow.pop %v5093
  %5103 = vset.pattern.permute.xlu0 0
  %5104 = vperm.xlu0 %5103, %v5080
  %v5105 = vpop.permute.xlu0 %5104
  %5106 = vset.pattern.permute.xlu0 0
  %5107 = vperm.xlu0 %5106, %v5082
  %v5108 = vpop.permute.xlu0 %5107
  %5109 = vset.pattern.permute.xlu0 0
  %5110 = vperm.xlu0 %5109, %v5084
  %v5111 = vpop.permute.xlu0 %5110
  %5112 = vset.pattern.permute.xlu0 0
  %5113 = vperm.xlu0 %5112, %v5086
  %v5114 = vpop.permute.xlu0 %5113
  %5115 = vset.pattern.permute.xlu0 0
  %5116 = vperm.xlu0 %5115, %v5088
  %v5117 = vpop.permute.xlu0 %5116
  %5118 = vset.pattern.permute.xlu0 0
  %5119 = vperm.xlu0 %5118, %v5090
  %v5120 = vpop.permute.xlu0 %5119
  %5121 = vset.pattern.permute.xlu0 0
  %5122 = vperm.xlu0 %5121, %v5092
  %v5123 = vpop.permute.xlu0 %5122
  %5124 = vset.pattern.permute.xlu0 0
  %5125 = vperm.xlu0 %5124, %v5094
  %v5126 = vpop.permute.xlu0 %5125
  %v5127 = vperm.slane %v5105, %v127
  %v5128 = vperm.slane %v5108, %v127
  %v5129 = vperm.slane %v5111, %v127
  %v5130 = vperm.slane %v5114, %v127
  %v5131 = vperm.slane %v5117, %v127
  %v5132 = vperm.slane %v5120, %v127
  %v5133 = vperm.slane %v5123, %v127
  %v5134 = vperm.slane %v5126, %v127
  %v5135 = vsel %vm1115, %v5128, %v5127
  %v5136 = vsel %vm1118, %v5129, %v5135
  %v5137 = vsel %vm1121, %v5130, %v5136
  %v5138 = vsel %vm1124, %v5131, %v5137
  %v5139 = vsel %vm1127, %v5132, %v5138
  %v5140 = vsel %vm1130, %v5133, %v5139
  %v5141 = vsel %vm1133, %v5134, %v5140
  %v5143 = vsel %vm2007, %v5141, 0.0
  %5144 = vadd.xlane.f32.xlu0 %v5143
  %v5145 = vpop.xlane.xlu0 %5144
  %v5147 = vperm.slane %v5145, 0
  %v5148 = vperm.slane %v5145, 1
  %v5149 = vperm.slane %v5145, 2
  %v5150 = vperm.slane %v5145, 3
  %v5151 = vperm.slane %v5145, 4
  %v5152 = vperm.slane %v5145, 5
  %v5153 = vperm.slane %v5145, 6
  %v5154 = vperm.slane %v5145, 7
  %v5163 = vrcp.pop %v5147
  %v5164 = vmul.f32 %v5147, %v5163
  %v5165 = vsub.f32 1.0, %v5164
  %v5166 = vmul.f32 %v5163, %v5165
  %v5167 = vadd.f32 %v5163, %v5166
  %vm5168 = vweird.f32 %v5147
  %vm5169 = vweird.f32 %v5163
  %vm5170 = vmor %vm5168, %vm5169
  %v5171 = vsel %vm5170, %v5163, %v5167
  %v5172 = vand.u32 2147483647, %v5147
  %vm5173 = vcmp.eq.f32.partialorder %v5172, 8.507059e+37
  %v5174 = vand.u32 %v5147, 2147483648
  %v5175 = vor.u32 1.1754944e-38, %v5174
  %v5176 = vsel %vm5173, %v5175, %v5171
  %v5177 = vmul.f32 %v5080, %v5176
  %v5178 = vrcp.pop %v5148
  %v5179 = vmul.f32 %v5148, %v5178
  %v5180 = vsub.f32 1.0, %v5179
  %v5181 = vmul.f32 %v5178, %v5180
  %v5182 = vadd.f32 %v5178, %v5181
  %vm5183 = vweird.f32 %v5148
  %vm5184 = vweird.f32 %v5178
  %vm5185 = vmor %vm5183, %vm5184
  %v5186 = vsel %vm5185, %v5178, %v5182
  %v5187 = vand.u32 2147483647, %v5148
  %vm5188 = vcmp.eq.f32.partialorder %v5187, 8.507059e+37
  %v5189 = vand.u32 %v5148, 2147483648
  %v5190 = vor.u32 1.1754944e-38, %v5189
  %v5191 = vsel %vm5188, %v5190, %v5186
  %v5192 = vmul.f32 %v5082, %v5191
  %v5193 = vrcp.pop %v5149
  %v5194 = vmul.f32 %v5149, %v5193
  %v5195 = vsub.f32 1.0, %v5194
  %v5196 = vmul.f32 %v5193, %v5195
  %v5197 = vadd.f32 %v5193, %v5196
  %vm5198 = vweird.f32 %v5149
  %vm5199 = vweird.f32 %v5193
  %vm5200 = vmor %vm5198, %vm5199
  %v5201 = vsel %vm5200, %v5193, %v5197
  %v5202 = vand.u32 2147483647, %v5149
  %vm5203 = vcmp.eq.f32.partialorder %v5202, 8.507059e+37
  %v5204 = vand.u32 %v5149, 2147483648
  %v5205 = vor.u32 1.1754944e-38, %v5204
  %v5206 = vsel %vm5203, %v5205, %v5201
  %v5207 = vmul.f32 %v5084, %v5206
  %v5208 = vrcp.pop %v5150
  %v5209 = vmul.f32 %v5150, %v5208
  %v5210 = vsub.f32 1.0, %v5209
  %v5211 = vmul.f32 %v5208, %v5210
  %v5212 = vadd.f32 %v5208, %v5211
  %vm5213 = vweird.f32 %v5150
  %vm5214 = vweird.f32 %v5208
  %vm5215 = vmor %vm5213, %vm5214
  %v5216 = vsel %vm5215, %v5208, %v5212
  %v5217 = vand.u32 2147483647, %v5150
  %vm5218 = vcmp.eq.f32.partialorder %v5217, 8.507059e+37
  %v5219 = vand.u32 %v5150, 2147483648
  %v5220 = vor.u32 1.1754944e-38, %v5219
  %v5221 = vsel %vm5218, %v5220, %v5216
  %v5222 = vmul.f32 %v5086, %v5221
  %v5223 = vrcp.pop %v5151
  %v5224 = vmul.f32 %v5151, %v5223
  %v5225 = vsub.f32 1.0, %v5224
  %v5226 = vmul.f32 %v5223, %v5225
  %v5227 = vadd.f32 %v5223, %v5226
  %vm5228 = vweird.f32 %v5151
  %vm5229 = vweird.f32 %v5223
  %vm5230 = vmor %vm5228, %vm5229
  %v5231 = vsel %vm5230, %v5223, %v5227
  %v5232 = vand.u32 2147483647, %v5151
  %vm5233 = vcmp.eq.f32.partialorder %v5232, 8.507059e+37
  %v5234 = vand.u32 %v5151, 2147483648
  %v5235 = vor.u32 1.1754944e-38, %v5234
  %v5236 = vsel %vm5233, %v5235, %v5231
  %v5237 = vmul.f32 %v5088, %v5236
  %v5238 = vrcp.pop %v5152
  %v5239 = vmul.f32 %v5152, %v5238
  %v5240 = vsub.f32 1.0, %v5239
  %v5241 = vmul.f32 %v5238, %v5240
  %v5242 = vadd.f32 %v5238, %v5241
  %vm5243 = vweird.f32 %v5152
  %vm5244 = vweird.f32 %v5238
  %vm5245 = vmor %vm5243, %vm5244
  %v5246 = vsel %vm5245, %v5238, %v5242
  %v5247 = vand.u32 2147483647, %v5152
  %vm5248 = vcmp.eq.f32.partialorder %v5247, 8.507059e+37
  %v5249 = vand.u32 %v5152, 2147483648
  %v5250 = vor.u32 1.1754944e-38, %v5249
  %v5251 = vsel %vm5248, %v5250, %v5246
  %v5252 = vmul.f32 %v5090, %v5251
  %v5253 = vrcp.pop %v5153
  %v5254 = vmul.f32 %v5153, %v5253
  %v5255 = vsub.f32 1.0, %v5254
  %v5256 = vmul.f32 %v5253, %v5255
  %v5257 = vadd.f32 %v5253, %v5256
  %vm5258 = vweird.f32 %v5153
  %vm5259 = vweird.f32 %v5253
  %vm5260 = vmor %vm5258, %vm5259
  %v5261 = vsel %vm5260, %v5253, %v5257
  %v5262 = vand.u32 2147483647, %v5153
  %vm5263 = vcmp.eq.f32.partialorder %v5262, 8.507059e+37
  %v5264 = vand.u32 %v5153, 2147483648
  %v5265 = vor.u32 1.1754944e-38, %v5264
  %v5266 = vsel %vm5263, %v5265, %v5261
  %v5267 = vmul.f32 %v5092, %v5266
  %v5268 = vrcp.pop %v5154
  %v5269 = vmul.f32 %v5154, %v5268
  %v5270 = vsub.f32 1.0, %v5269
  %v5271 = vmul.f32 %v5268, %v5270
  %v5272 = vadd.f32 %v5268, %v5271
  %vm5273 = vweird.f32 %v5154
  %vm5274 = vweird.f32 %v5268
  %vm5275 = vmor %vm5273, %vm5274
  %v5276 = vsel %vm5275, %v5268, %v5272
  %v5277 = vand.u32 2147483647, %v5154
  %vm5278 = vcmp.eq.f32.partialorder %v5277, 8.507059e+37
  %v5279 = vand.u32 %v5154, 2147483648
  %v5280 = vor.u32 1.1754944e-38, %v5279
  %v5281 = vsel %vm5278, %v5280, %v5276
  %v5282 = vmul.f32 %v5094, %v5281
  %5284 = vset.pattern.permute.xlu0 0
  %5285 = vperm.xlu0 %5284, %v5177
  %v5286 = vpop.permute.xlu0 %5285
  %5289 = vset.pattern.permute.xlu0 0
  %5290 = vperm.xlu0 %5289, %v5192
  %v5291 = vpop.permute.xlu0 %5290
  %5294 = vset.pattern.permute.xlu0 0
  %5295 = vperm.xlu0 %5294, %v5207
  %v5296 = vpop.permute.xlu0 %5295
  %5299 = vset.pattern.permute.xlu0 0
  %5300 = vperm.xlu0 %5299, %v5222
  %v5301 = vpop.permute.xlu0 %5300
  %5304 = vset.pattern.permute.xlu0 0
  %5305 = vperm.xlu0 %5304, %v5237
  %v5306 = vpop.permute.xlu0 %5305
  %5309 = vset.pattern.permute.xlu0 0
  %5310 = vperm.xlu0 %5309, %v5252
  %v5311 = vpop.permute.xlu0 %5310
  %5314 = vset.pattern.permute.xlu0 0
  %5315 = vperm.xlu0 %5314, %v5267
  %v5316 = vpop.permute.xlu0 %5315
  %5319 = vset.pattern.permute.xlu0 0
  %5320 = vperm.xlu0 %5319, %v5282
  %v5321 = vpop.permute.xlu0 %5320
  %v5323 = vmul.f32 %v5286, %v1094
  %v5324 = vmul.f32 %v5291, %v1095
  %v5325 = vmul.f32 %v5296, %v1096
  %v5326 = vmul.f32 %v5301, %v1097
  %v5327 = vmul.f32 %v5306, %v1098
  %v5328 = vmul.f32 %v5311, %v1099
  %v5329 = vmul.f32 %v5316, %v1100
  %v5330 = vmul.f32 %v5321, %v1101
  %v5331 = vsel %vm56, %v5323, 0.0
  %v5332 = vrot.slane %v5331, 4
  %v5333 = vadd.f32 %v5331, %v5332
  %v5334 = vrot.slane %v5333, 2
  %v5335 = vadd.f32 %v5333, %v5334
  %v5336 = vrot.slane %v5335, 1
  %v5337 = vadd.f32 %v5335, %v5336
  %v5338 = vsel %vm56, %v5324, 0.0
  %v5339 = vrot.slane %v5338, 4
  %v5340 = vadd.f32 %v5338, %v5339
  %v5341 = vrot.slane %v5340, 2
  %v5342 = vadd.f32 %v5340, %v5341
  %v5343 = vrot.slane %v5342, 1
  %v5344 = vadd.f32 %v5342, %v5343
  %v5345 = vsel %vm56, %v5325, 0.0
  %v5346 = vrot.slane %v5345, 4
  %v5347 = vadd.f32 %v5345, %v5346
  %v5348 = vrot.slane %v5347, 2
  %v5349 = vadd.f32 %v5347, %v5348
  %v5350 = vrot.slane %v5349, 1
  %v5351 = vadd.f32 %v5349, %v5350
  %v5352 = vsel %vm56, %v5326, 0.0
  %v5353 = vrot.slane %v5352, 4
  %v5354 = vadd.f32 %v5352, %v5353
  %v5355 = vrot.slane %v5354, 2
  %v5356 = vadd.f32 %v5354, %v5355
  %v5357 = vrot.slane %v5356, 1
  %v5358 = vadd.f32 %v5356, %v5357
  %v5359 = vsel %vm56, %v5327, 0.0
  %v5360 = vrot.slane %v5359, 4
  %v5361 = vadd.f32 %v5359, %v5360
  %v5362 = vrot.slane %v5361, 2
  %v5363 = vadd.f32 %v5361, %v5362
  %v5364 = vrot.slane %v5363, 1
  %v5365 = vadd.f32 %v5363, %v5364
  %v5366 = vsel %vm56, %v5328, 0.0
  %v5367 = vrot.slane %v5366, 4
  %v5368 = vadd.f32 %v5366, %v5367
  %v5369 = vrot.slane %v5368, 2
  %v5370 = vadd.f32 %v5368, %v5369
  %v5371 = vrot.slane %v5370, 1
  %v5372 = vadd.f32 %v5370, %v5371
  %v5373 = vsel %vm56, %v5329, 0.0
  %v5374 = vrot.slane %v5373, 4
  %v5375 = vadd.f32 %v5373, %v5374
  %v5376 = vrot.slane %v5375, 2
  %v5377 = vadd.f32 %v5375, %v5376
  %v5378 = vrot.slane %v5377, 1
  %v5379 = vadd.f32 %v5377, %v5378
  %v5380 = vsel %vm56, %v5330, 0.0
  %v5381 = vrot.slane %v5380, 4
  %v5382 = vadd.f32 %v5380, %v5381
  %v5383 = vrot.slane %v5382, 2
  %v5384 = vadd.f32 %v5382, %v5383
  %v5385 = vrot.slane %v5384, 1
  %v5386 = vadd.f32 %v5384, %v5385
  %v5395 = vsel %vm1115, %v5344, %v5337
  %v5396 = vsel %vm1118, %v5351, %v5395
  %v5397 = vsel %vm1121, %v5358, %v5396
  %v5398 = vsel %vm1124, %v5365, %v5397
  %v5399 = vsel %vm1127, %v5372, %v5398
  %v5400 = vsel %vm1130, %v5379, %v5399
  %v5401 = vsel %vm1133, %v5386, %v5400
  %5403 = vrot.lane.b32.xlu0 %v4906, 64
  %v5404 = vpop.permute.xlu0 %5403
  %v5406 = vsel %vm56, %v5401, %v5404
  %v5408 = vsel %vm1704, %v5406, 0
  %5410 = vmatpush.msra.mxu0 0.0
  %5411 = vmatpush.msra.mxu0 0.0
  %5412 = vmatpush.msra.mxu0 0.0
  %5413 = vmatpush.msra.mxu0 0.0
  %5414 = vmatpush.msra.mxu0 0.0
  %5415 = vmatpush.msra.mxu0 0.0
  %5416 = vmatpush.msra.mxu0 0.0
  %5417 = vmatpush.msra.mxu0 0.0
  %5418 = vmatpush.msra.mxu0 %v1699
  %5419 = vmatpush.msra.mxu0 %v1698
  %5420 = vmatpush.msra.mxu0 %v1697
  %5421 = vmatpush.msra.mxu0 %v1696
  %5422 = vmatpush.msra.mxu0 %v1695
  %5423 = vmatpush.msra.mxu0 %v1694
  %5424 = vmatpush.msra.mxu0 %v1693
  %5425 = vmatpush.msra.mxu0 %v1692
  %5426 = vmatmul.f32.gmra.mxu0 %v5408
  %v5427 = vpop.f32.mrf.mxu0
  %v5428 = vadd.f32 0.0, %v5427
  %5429 = vdwg.mxu0
  %v5430 = vtanh.pop %v5428
  %5432 = vrot.lane.b32.xlu0 %v5430, 32
  %v5433 = vpop.permute.xlu0 %5432
  %5435 = vst.msk [vmem:[%s11 + $0x8] sm:$0xff] %vm2996, %v5433
  %v5436 = vadd.s32 %v127, 4294967256
  %v5437 = vperm.slane %v5286, %v5436
  %v5438 = vperm.slane %v5291, %v5436
  %v5439 = vperm.slane %v5296, %v5436
  %v5440 = vperm.slane %v5301, %v5436
  %v5441 = vperm.slane %v5306, %v5436
  %v5442 = vperm.slane %v5311, %v5436
  %v5443 = vperm.slane %v5316, %v5436
  %v5444 = vperm.slane %v5321, %v5436
  %v5445 = vsel %vm1115, %v5438, %v5437
  %v5446 = vsel %vm1118, %v5439, %v5445
  %v5447 = vsel %vm1121, %v5440, %v5446
  %v5448 = vsel %vm1124, %v5441, %v5447
  %v5449 = vsel %vm1127, %v5442, %v5448
  %v5450 = vsel %vm1130, %v5443, %v5449
  %v5451 = vsel %vm1133, %v5444, %v5450
  %vm5453 = vcmask 392512
  %5454 = vst.msk [vmem:[%s12] sm:$0xff] %vm5453, %v5451
  %v5455 = vsel %vm56, %v5430, %v5404
  %v5457 = vsel %vm1704, %v5455, 0
  %5459 = vmatpush.msra.mxu0 0.0
  %5460 = vmatpush.msra.mxu0 0.0
  %5461 = vmatpush.msra.mxu0 0.0
  %5462 = vmatpush.msra.mxu0 0.0
  %5463 = vmatpush.msra.mxu0 0.0
  %5464 = vmatpush.msra.mxu0 0.0
  %5465 = vmatpush.msra.mxu0 0.0
  %5466 = vmatpush.msra.mxu0 0.0
  %5467 = vmatpush.msra.mxu0 %v1691
  %5468 = vmatpush.msra.mxu0 %v1690
  %5469 = vmatpush.msra.mxu0 %v1689
  %5470 = vmatpush.msra.mxu0 %v1688
  %5471 = vmatpush.msra.mxu0 %v1687
  %5472 = vmatpush.msra.mxu0 %v1686
  %5473 = vmatpush.msra.mxu0 %v1685
  %5474 = vmatpush.msra.mxu0 %v1684
  %5475 = vmatmul.f32.gmra.mxu0 %v5457
  %v5476 = vpop.f32.mrf.mxu0
  %v5477 = vadd.f32 0.0, %v5476
  %5478 = vdwg.mxu0
  %v5479 = vadd.f32 %v1679, %v5477
  %v5480 = vxor.u32 %v5479, 2147483648
  %v5481 = vmul.f32 %v5480, 1.442695
  %v5482 = vpow.pop %v5481
  %v5483 = vadd.f32 %v5482, 1.0
  %v5484 = vrcp.pop %v5483
  %v5485 = vmul.f32 %v5483, %v5484
  %v5486 = vsub.f32 1.0, %v5485
  %v5487 = vmul.f32 %v5484, %v5486
  %v5488 = vadd.f32 %v5484, %v5487
  %vm5489 = vweird.f32 %v5483
  %vm5490 = vweird.f32 %v5484
  %vm5491 = vmor %vm5489, %vm5490
  %v5492 = vsel %vm5491, %v5484, %v5488
  %v5493 = vand.u32 2147483647, %v5483
  %vm5494 = vcmp.eq.f32.partialorder %v5493, 8.507059e+37
  %v5495 = vand.u32 %v5483, 2147483648
  %v5496 = vor.u32 1.1754944e-38, %v5495
  %v5497 = vsel %vm5494, %v5496, %v5492
  %v5498 = vmul.f32 1.0, %v5497
  %v5499 = vtanh.pop %v5479
  %v5500 = vmul.f32 %v5498, %v4900
  %5502 = vrot.lane.b32.xlu0 %v5499, 64
  %v5503 = vpop.permute.xlu0 %5502
  %v5505 = vmul.f32 %v5498, %v5503
  %5507 = vrot.lane.b32.xlu0 %v5505, 32
  %v5508 = vpop.permute.xlu0 %5507
  %v5510 = vadd.f32 %v5500, %v5508
  %v5511 = vtanh.pop %v5510
  %5513 = vrot.lane.b32.xlu0 %v5511, 64
  %v5514 = vpop.permute.xlu0 %5513
  %v5516 = vmul.f32 %v5498, %v5514
  %v5518 = vrot.slane %v5516, 1
  %v5519 = vrot.slane %v5516, 2
  %v5520 = vrot.slane %v5516, 3
  %v5521 = vrot.slane %v5516, 4
  %v5522 = vrot.slane %v5516, 5
  %v5523 = vrot.slane %v5516, 6
  %v5524 = vrot.slane %v5516, 7
  %v5525 = vperm.slane %v5516, 0
  %v5526 = vperm.slane %v5518, 0
  %v5527 = vperm.slane %v5519, 0
  %v5528 = vperm.slane %v5520, 0
  %v5529 = vperm.slane %v5521, 0
  %v5530 = vperm.slane %v5522, 0
  %v5531 = vperm.slane %v5523, 0
  %v5532 = vperm.slane %v5524, 0
  %v5541 = vmul.f32 %v5525, %v1799
  %v5542 = vmul.f32 %v5526, %v1801
  %v5543 = vmul.f32 %v5527, %v1803
  %v5544 = vmul.f32 %v5528, %v1805
  %v5545 = vmul.f32 %v5529, %v1807
  %v5546 = vmul.f32 %v5530, %v1809
  %v5547 = vmul.f32 %v5531, %v1811
  %v5548 = vmul.f32 %v5532, %v1813
  %5557 = vrot.lane.b32.xlu0 %v5541, 32
  %v5558 = vpop.permute.xlu0 %5557
  %5559 = vrot.lane.b32.xlu0 %v5542, 32
  %v5560 = vpop.permute.xlu0 %5559
  %5561 = vrot.lane.b32.xlu0 %v5543, 32
  %v5562 = vpop.permute.xlu0 %5561
  %5563 = vrot.lane.b32.xlu0 %v5544, 32
  %v5564 = vpop.permute.xlu0 %5563
  %5565 = vrot.lane.b32.xlu0 %v5545, 32
  %v5566 = vpop.permute.xlu0 %5565
  %5567 = vrot.lane.b32.xlu0 %v5546, 32
  %v5568 = vpop.permute.xlu0 %5567
  %5569 = vrot.lane.b32.xlu0 %v5547, 32
  %v5570 = vpop.permute.xlu0 %5569
  %5571 = vrot.lane.b32.xlu0 %v5548, 32
  %v5572 = vpop.permute.xlu0 %5571
  %v5581 = vsel %vm56, %v5558, 0.0
  %5582 = vadd.xlane.f32.xlu0 %v5581
  %v5583 = vpop.xlane.xlu0 %5582
  %v5584 = vsel %vm56, %v5560, 0.0
  %5585 = vadd.xlane.f32.xlu0 %v5584
  %v5586 = vpop.xlane.xlu0 %5585
  %v5587 = vsel %vm56, %v5562, 0.0
  %5588 = vadd.xlane.f32.xlu0 %v5587
  %v5589 = vpop.xlane.xlu0 %5588
  %v5590 = vsel %vm56, %v5564, 0.0
  %5591 = vadd.xlane.f32.xlu0 %v5590
  %v5592 = vpop.xlane.xlu0 %5591
  %v5593 = vsel %vm56, %v5566, 0.0
  %5594 = vadd.xlane.f32.xlu0 %v5593
  %v5595 = vpop.xlane.xlu0 %5594
  %v5596 = vsel %vm56, %v5568, 0.0
  %5597 = vadd.xlane.f32.xlu0 %v5596
  %v5598 = vpop.xlane.xlu0 %5597
  %v5599 = vsel %vm56, %v5570, 0.0
  %5600 = vadd.xlane.f32.xlu0 %v5599
  %v5601 = vpop.xlane.xlu0 %5600
  %v5602 = vsel %vm56, %v5572, 0.0
  %5603 = vadd.xlane.f32.xlu0 %v5602
  %v5604 = vpop.xlane.xlu0 %5603
  %v5605 = vadd.f32 %v5583, %v1893
  %v5606 = vadd.f32 %v5586, %v1900
  %v5607 = vadd.f32 %v5589, %v1907
  %v5608 = vadd.f32 %v5592, %v1914
  %v5609 = vadd.f32 %v5595, %v1921
  %v5610 = vadd.f32 %v5598, %v1928
  %v5611 = vadd.f32 %v5601, %v1935
  %v5612 = vadd.f32 %v5604, %v1942
  %5621 = vset.pattern.permute.xlu0 0
  %5622 = vperm.xlu0 %5621, %v5605
  %v5623 = vpop.permute.xlu0 %5622
  %5624 = vset.pattern.permute.xlu0 0
  %5625 = vperm.xlu0 %5624, %v5606
  %v5626 = vpop.permute.xlu0 %5625
  %5627 = vset.pattern.permute.xlu0 0
  %5628 = vperm.xlu0 %5627, %v5607
  %v5629 = vpop.permute.xlu0 %5628
  %5630 = vset.pattern.permute.xlu0 0
  %5631 = vperm.xlu0 %5630, %v5608
  %v5632 = vpop.permute.xlu0 %5631
  %5633 = vset.pattern.permute.xlu0 0
  %5634 = vperm.xlu0 %5633, %v5609
  %v5635 = vpop.permute.xlu0 %5634
  %5636 = vset.pattern.permute.xlu0 0
  %5637 = vperm.xlu0 %5636, %v5610
  %v5638 = vpop.permute.xlu0 %5637
  %5639 = vset.pattern.permute.xlu0 0
  %5640 = vperm.xlu0 %5639, %v5611
  %v5641 = vpop.permute.xlu0 %5640
  %5642 = vset.pattern.permute.xlu0 0
  %5643 = vperm.xlu0 %5642, %v5612
  %v5644 = vpop.permute.xlu0 %5643
  %v5645 = vperm.slane %v5623, %v127
  %v5646 = vperm.slane %v5626, %v127
  %v5647 = vperm.slane %v5629, %v127
  %v5648 = vperm.slane %v5632, %v127
  %v5649 = vperm.slane %v5635, %v127
  %v5650 = vperm.slane %v5638, %v127
  %v5651 = vperm.slane %v5641, %v127
  %v5652 = vperm.slane %v5644, %v127
  %v5653 = vsel %vm1115, %v5646, %v5645
  %v5654 = vsel %vm1118, %v5647, %v5653
  %v5655 = vsel %vm1121, %v5648, %v5654
  %v5656 = vsel %vm1124, %v5649, %v5655
  %v5657 = vsel %vm1127, %v5650, %v5656
  %v5658 = vsel %vm1130, %v5651, %v5657
  %v5659 = vsel %vm1133, %v5652, %v5658
  %v5661 = vsel %vm2007, %v5659, -inf
  %5662 = vmax.xlane.f32.xlu0 %v5661
  %v5663 = vpop.xlane.xlu0 %5662
  %v5665 = vperm.slane %v5663, 0
  %v5666 = vperm.slane %v5663, 1
  %v5667 = vperm.slane %v5663, 2
  %v5668 = vperm.slane %v5663, 3
  %v5669 = vperm.slane %v5663, 4
  %v5670 = vperm.slane %v5663, 5
  %v5671 = vperm.slane %v5663, 6
  %v5672 = vperm.slane %v5663, 7
  %v5681 = vsub.f32 %v5605, %v5665
  %v5682 = vsub.f32 %v5606, %v5666
  %v5683 = vsub.f32 %v5607, %v5667
  %v5684 = vsub.f32 %v5608, %v5668
  %v5685 = vsub.f32 %v5609, %v5669
  %v5686 = vsub.f32 %v5610, %v5670
  %v5687 = vsub.f32 %v5611, %v5671
  %v5688 = vsub.f32 %v5612, %v5672
  %v5689 = vmul.f32 %v5681, 1.442695
  %v5690 = vpow.pop %v5689
  %v5691 = vmul.f32 %v5682, 1.442695
  %v5692 = vpow.pop %v5691
  %v5693 = vmul.f32 %v5683, 1.442695
  %v5694 = vpow.pop %v5693
  %v5695 = vmul.f32 %v5684, 1.442695
  %v5696 = vpow.pop %v5695
  %v5697 = vmul.f32 %v5685, 1.442695
  %v5698 = vpow.pop %v5697
  %v5699 = vmul.f32 %v5686, 1.442695
  %v5700 = vpow.pop %v5699
  %v5701 = vmul.f32 %v5687, 1.442695
  %v5702 = vpow.pop %v5701
  %v5703 = vmul.f32 %v5688, 1.442695
  %v5704 = vpow.pop %v5703
  %5713 = vset.pattern.permute.xlu0 0
  %5714 = vperm.xlu0 %5713, %v5690
  %v5715 = vpop.permute.xlu0 %5714
  %5716 = vset.pattern.permute.xlu0 0
  %5717 = vperm.xlu0 %5716, %v5692
  %v5718 = vpop.permute.xlu0 %5717
  %5719 = vset.pattern.permute.xlu0 0
  %5720 = vperm.xlu0 %5719, %v5694
  %v5721 = vpop.permute.xlu0 %5720
  %5722 = vset.pattern.permute.xlu0 0
  %5723 = vperm.xlu0 %5722, %v5696
  %v5724 = vpop.permute.xlu0 %5723
  %5725 = vset.pattern.permute.xlu0 0
  %5726 = vperm.xlu0 %5725, %v5698
  %v5727 = vpop.permute.xlu0 %5726
  %5728 = vset.pattern.permute.xlu0 0
  %5729 = vperm.xlu0 %5728, %v5700
  %v5730 = vpop.permute.xlu0 %5729
  %5731 = vset.pattern.permute.xlu0 0
  %5732 = vperm.xlu0 %5731, %v5702
  %v5733 = vpop.permute.xlu0 %5732
  %5734 = vset.pattern.permute.xlu0 0
  %5735 = vperm.xlu0 %5734, %v5704
  %v5736 = vpop.permute.xlu0 %5735
  %v5737 = vperm.slane %v5715, %v127
  %v5738 = vperm.slane %v5718, %v127
  %v5739 = vperm.slane %v5721, %v127
  %v5740 = vperm.slane %v5724, %v127
  %v5741 = vperm.slane %v5727, %v127
  %v5742 = vperm.slane %v5730, %v127
  %v5743 = vperm.slane %v5733, %v127
  %v5744 = vperm.slane %v5736, %v127
  %v5745 = vsel %vm1115, %v5738, %v5737
  %v5746 = vsel %vm1118, %v5739, %v5745
  %v5747 = vsel %vm1121, %v5740, %v5746
  %v5748 = vsel %vm1124, %v5741, %v5747
  %v5749 = vsel %vm1127, %v5742, %v5748
  %v5750 = vsel %vm1130, %v5743, %v5749
  %v5751 = vsel %vm1133, %v5744, %v5750
  %v5753 = vsel %vm2007, %v5751, 0.0
  %5754 = vadd.xlane.f32.xlu0 %v5753
  %v5755 = vpop.xlane.xlu0 %5754
  %v5757 = vperm.slane %v5755, 0
  %v5758 = vperm.slane %v5755, 1
  %v5759 = vperm.slane %v5755, 2
  %v5760 = vperm.slane %v5755, 3
  %v5761 = vperm.slane %v5755, 4
  %v5762 = vperm.slane %v5755, 5
  %v5763 = vperm.slane %v5755, 6
  %v5764 = vperm.slane %v5755, 7
  %v5773 = vrcp.pop %v5757
  %v5774 = vmul.f32 %v5757, %v5773
  %v5775 = vsub.f32 1.0, %v5774
  %v5776 = vmul.f32 %v5773, %v5775
  %v5777 = vadd.f32 %v5773, %v5776
  %vm5778 = vweird.f32 %v5757
  %vm5779 = vweird.f32 %v5773
  %vm5780 = vmor %vm5778, %vm5779
  %v5781 = vsel %vm5780, %v5773, %v5777
  %v5782 = vand.u32 2147483647, %v5757
  %vm5783 = vcmp.eq.f32.partialorder %v5782, 8.507059e+37
  %v5784 = vand.u32 %v5757, 2147483648
  %v5785 = vor.u32 1.1754944e-38, %v5784
  %v5786 = vsel %vm5783, %v5785, %v5781
  %v5787 = vmul.f32 %v5690, %v5786
  %v5788 = vrcp.pop %v5758
  %v5789 = vmul.f32 %v5758, %v5788
  %v5790 = vsub.f32 1.0, %v5789
  %v5791 = vmul.f32 %v5788, %v5790
  %v5792 = vadd.f32 %v5788, %v5791
  %vm5793 = vweird.f32 %v5758
  %vm5794 = vweird.f32 %v5788
  %vm5795 = vmor %vm5793, %vm5794
  %v5796 = vsel %vm5795, %v5788, %v5792
  %v5797 = vand.u32 2147483647, %v5758
  %vm5798 = vcmp.eq.f32.partialorder %v5797, 8.507059e+37
  %v5799 = vand.u32 %v5758, 2147483648
  %v5800 = vor.u32 1.1754944e-38, %v5799
  %v5801 = vsel %vm5798, %v5800, %v5796
  %v5802 = vmul.f32 %v5692, %v5801
  %v5803 = vrcp.pop %v5759
  %v5804 = vmul.f32 %v5759, %v5803
  %v5805 = vsub.f32 1.0, %v5804
  %v5806 = vmul.f32 %v5803, %v5805
  %v5807 = vadd.f32 %v5803, %v5806
  %vm5808 = vweird.f32 %v5759
  %vm5809 = vweird.f32 %v5803
  %vm5810 = vmor %vm5808, %vm5809
  %v5811 = vsel %vm5810, %v5803, %v5807
  %v5812 = vand.u32 2147483647, %v5759
  %vm5813 = vcmp.eq.f32.partialorder %v5812, 8.507059e+37
  %v5814 = vand.u32 %v5759, 2147483648
  %v5815 = vor.u32 1.1754944e-38, %v5814
  %v5816 = vsel %vm5813, %v5815, %v5811
  %v5817 = vmul.f32 %v5694, %v5816
  %v5818 = vrcp.pop %v5760
  %v5819 = vmul.f32 %v5760, %v5818
  %v5820 = vsub.f32 1.0, %v5819
  %v5821 = vmul.f32 %v5818, %v5820
  %v5822 = vadd.f32 %v5818, %v5821
  %vm5823 = vweird.f32 %v5760
  %vm5824 = vweird.f32 %v5818
  %vm5825 = vmor %vm5823, %vm5824
  %v5826 = vsel %vm5825, %v5818, %v5822
  %v5827 = vand.u32 2147483647, %v5760
  %vm5828 = vcmp.eq.f32.partialorder %v5827, 8.507059e+37
  %v5829 = vand.u32 %v5760, 2147483648
  %v5830 = vor.u32 1.1754944e-38, %v5829
  %v5831 = vsel %vm5828, %v5830, %v5826
  %v5832 = vmul.f32 %v5696, %v5831
  %v5833 = vrcp.pop %v5761
  %v5834 = vmul.f32 %v5761, %v5833
  %v5835 = vsub.f32 1.0, %v5834
  %v5836 = vmul.f32 %v5833, %v5835
  %v5837 = vadd.f32 %v5833, %v5836
  %vm5838 = vweird.f32 %v5761
  %vm5839 = vweird.f32 %v5833
  %vm5840 = vmor %vm5838, %vm5839
  %v5841 = vsel %vm5840, %v5833, %v5837
  %v5842 = vand.u32 2147483647, %v5761
  %vm5843 = vcmp.eq.f32.partialorder %v5842, 8.507059e+37
  %v5844 = vand.u32 %v5761, 2147483648
  %v5845 = vor.u32 1.1754944e-38, %v5844
  %v5846 = vsel %vm5843, %v5845, %v5841
  %v5847 = vmul.f32 %v5698, %v5846
  %v5848 = vrcp.pop %v5762
  %v5849 = vmul.f32 %v5762, %v5848
  %v5850 = vsub.f32 1.0, %v5849
  %v5851 = vmul.f32 %v5848, %v5850
  %v5852 = vadd.f32 %v5848, %v5851
  %vm5853 = vweird.f32 %v5762
  %vm5854 = vweird.f32 %v5848
  %vm5855 = vmor %vm5853, %vm5854
  %v5856 = vsel %vm5855, %v5848, %v5852
  %v5857 = vand.u32 2147483647, %v5762
  %vm5858 = vcmp.eq.f32.partialorder %v5857, 8.507059e+37
  %v5859 = vand.u32 %v5762, 2147483648
  %v5860 = vor.u32 1.1754944e-38, %v5859
  %v5861 = vsel %vm5858, %v5860, %v5856
  %v5862 = vmul.f32 %v5700, %v5861
  %v5863 = vrcp.pop %v5763
  %v5864 = vmul.f32 %v5763, %v5863
  %v5865 = vsub.f32 1.0, %v5864
  %v5866 = vmul.f32 %v5863, %v5865
  %v5867 = vadd.f32 %v5863, %v5866
  %vm5868 = vweird.f32 %v5763
  %vm5869 = vweird.f32 %v5863
  %vm5870 = vmor %vm5868, %vm5869
  %v5871 = vsel %vm5870, %v5863, %v5867
  %v5872 = vand.u32 2147483647, %v5763
  %vm5873 = vcmp.eq.f32.partialorder %v5872, 8.507059e+37
  %v5874 = vand.u32 %v5763, 2147483648
  %v5875 = vor.u32 1.1754944e-38, %v5874
  %v5876 = vsel %vm5873, %v5875, %v5871
  %v5877 = vmul.f32 %v5702, %v5876
  %v5878 = vrcp.pop %v5764
  %v5879 = vmul.f32 %v5764, %v5878
  %v5880 = vsub.f32 1.0, %v5879
  %v5881 = vmul.f32 %v5878, %v5880
  %v5882 = vadd.f32 %v5878, %v5881
  %vm5883 = vweird.f32 %v5764
  %vm5884 = vweird.f32 %v5878
  %vm5885 = vmor %vm5883, %vm5884
  %v5886 = vsel %vm5885, %v5878, %v5882
  %v5887 = vand.u32 2147483647, %v5764
  %vm5888 = vcmp.eq.f32.partialorder %v5887, 8.507059e+37
  %v5889 = vand.u32 %v5764, 2147483648
  %v5890 = vor.u32 1.1754944e-38, %v5889
  %v5891 = vsel %vm5888, %v5890, %v5886
  %v5892 = vmul.f32 %v5704, %v5891
  %5894 = vset.pattern.permute.xlu0 0
  %5895 = vperm.xlu0 %5894, %v5787
  %v5896 = vpop.permute.xlu0 %5895
  %5899 = vset.pattern.permute.xlu0 0
  %5900 = vperm.xlu0 %5899, %v5802
  %v5901 = vpop.permute.xlu0 %5900
  %5904 = vset.pattern.permute.xlu0 0
  %5905 = vperm.xlu0 %5904, %v5817
  %v5906 = vpop.permute.xlu0 %5905
  %5909 = vset.pattern.permute.xlu0 0
  %5910 = vperm.xlu0 %5909, %v5832
  %v5911 = vpop.permute.xlu0 %5910
  %5914 = vset.pattern.permute.xlu0 0
  %5915 = vperm.xlu0 %5914, %v5847
  %v5916 = vpop.permute.xlu0 %5915
  %5919 = vset.pattern.permute.xlu0 0
  %5920 = vperm.xlu0 %5919, %v5862
  %v5921 = vpop.permute.xlu0 %5920
  %5924 = vset.pattern.permute.xlu0 0
  %5925 = vperm.xlu0 %5924, %v5877
  %v5926 = vpop.permute.xlu0 %5925
  %5929 = vset.pattern.permute.xlu0 0
  %5930 = vperm.xlu0 %5929, %v5892
  %v5931 = vpop.permute.xlu0 %5930
  %v5933 = vmul.f32 %v5896, %v1094
  %v5934 = vmul.f32 %v5901, %v1095
  %v5935 = vmul.f32 %v5906, %v1096
  %v5936 = vmul.f32 %v5911, %v1097
  %v5937 = vmul.f32 %v5916, %v1098
  %v5938 = vmul.f32 %v5921, %v1099
  %v5939 = vmul.f32 %v5926, %v1100
  %v5940 = vmul.f32 %v5931, %v1101
  %v5941 = vsel %vm56, %v5933, 0.0
  %v5942 = vrot.slane %v5941, 4
  %v5943 = vadd.f32 %v5941, %v5942
  %v5944 = vrot.slane %v5943, 2
  %v5945 = vadd.f32 %v5943, %v5944
  %v5946 = vrot.slane %v5945, 1
  %v5947 = vadd.f32 %v5945, %v5946
  %v5948 = vsel %vm56, %v5934, 0.0
  %v5949 = vrot.slane %v5948, 4
  %v5950 = vadd.f32 %v5948, %v5949
  %v5951 = vrot.slane %v5950, 2
  %v5952 = vadd.f32 %v5950, %v5951
  %v5953 = vrot.slane %v5952, 1
  %v5954 = vadd.f32 %v5952, %v5953
  %v5955 = vsel %vm56, %v5935, 0.0
  %v5956 = vrot.slane %v5955, 4
  %v5957 = vadd.f32 %v5955, %v5956
  %v5958 = vrot.slane %v5957, 2
  %v5959 = vadd.f32 %v5957, %v5958
  %v5960 = vrot.slane %v5959, 1
  %v5961 = vadd.f32 %v5959, %v5960
  %v5962 = vsel %vm56, %v5936, 0.0
  %v5963 = vrot.slane %v5962, 4
  %v5964 = vadd.f32 %v5962, %v5963
  %v5965 = vrot.slane %v5964, 2
  %v5966 = vadd.f32 %v5964, %v5965
  %v5967 = vrot.slane %v5966, 1
  %v5968 = vadd.f32 %v5966, %v5967
  %v5969 = vsel %vm56, %v5937, 0.0
  %v5970 = vrot.slane %v5969, 4
  %v5971 = vadd.f32 %v5969, %v5970
  %v5972 = vrot.slane %v5971, 2
  %v5973 = vadd.f32 %v5971, %v5972
  %v5974 = vrot.slane %v5973, 1
  %v5975 = vadd.f32 %v5973, %v5974
  %v5976 = vsel %vm56, %v5938, 0.0
  %v5977 = vrot.slane %v5976, 4
  %v5978 = vadd.f32 %v5976, %v5977
  %v5979 = vrot.slane %v5978, 2
  %v5980 = vadd.f32 %v5978, %v5979
  %v5981 = vrot.slane %v5980, 1
  %v5982 = vadd.f32 %v5980, %v5981
  %v5983 = vsel %vm56, %v5939, 0.0
  %v5984 = vrot.slane %v5983, 4
  %v5985 = vadd.f32 %v5983, %v5984
  %v5986 = vrot.slane %v5985, 2
  %v5987 = vadd.f32 %v5985, %v5986
  %v5988 = vrot.slane %v5987, 1
  %v5989 = vadd.f32 %v5987, %v5988
  %v5990 = vsel %vm56, %v5940, 0.0
  %v5991 = vrot.slane %v5990, 4
  %v5992 = vadd.f32 %v5990, %v5991
  %v5993 = vrot.slane %v5992, 2
  %v5994 = vadd.f32 %v5992, %v5993
  %v5995 = vrot.slane %v5994, 1
  %v5996 = vadd.f32 %v5994, %v5995
  %v6005 = vsel %vm1115, %v5954, %v5947
  %v6006 = vsel %vm1118, %v5961, %v6005
  %v6007 = vsel %vm1121, %v5968, %v6006
  %v6008 = vsel %vm1124, %v5975, %v6007
  %v6009 = vsel %vm1127, %v5982, %v6008
  %v6010 = vsel %vm1130, %v5989, %v6009
  %v6011 = vsel %vm1133, %v5996, %v6010
  %6013 = vrot.lane.b32.xlu0 %v5516, 64
  %v6014 = vpop.permute.xlu0 %6013
  %v6016 = vsel %vm56, %v6011, %v6014
  %v6018 = vsel %vm1704, %v6016, 0
  %6020 = vmatpush.msra.mxu0 0.0
  %6021 = vmatpush.msra.mxu0 0.0
  %6022 = vmatpush.msra.mxu0 0.0
  %6023 = vmatpush.msra.mxu0 0.0
  %6024 = vmatpush.msra.mxu0 0.0
  %6025 = vmatpush.msra.mxu0 0.0
  %6026 = vmatpush.msra.mxu0 0.0
  %6027 = vmatpush.msra.mxu0 0.0
  %6028 = vmatpush.msra.mxu0 %v1699
  %6029 = vmatpush.msra.mxu0 %v1698
  %6030 = vmatpush.msra.mxu0 %v1697
  %6031 = vmatpush.msra.mxu0 %v1696
  %6032 = vmatpush.msra.mxu0 %v1695
  %6033 = vmatpush.msra.mxu0 %v1694
  %6034 = vmatpush.msra.mxu0 %v1693
  %6035 = vmatpush.msra.mxu0 %v1692
  %6036 = vmatmul.f32.gmra.mxu0 %v6018
  %v6037 = vpop.f32.mrf.mxu0
  %v6038 = vadd.f32 0.0, %v6037
  %6039 = vdwg.mxu0
  %v6040 = vtanh.pop %v6038
  %6042 = vrot.lane.b32.xlu0 %v6040, 64
  %v6043 = vpop.permute.xlu0 %6042
  %6045 = vst.msk [vmem:[%s11 + $0x8] sm:$0xff] %vm3607, %v6043
  %v6046 = vadd.s32 %v127, 4294967248
  %v6047 = vperm.slane %v5896, %v6046
  %v6048 = vperm.slane %v5901, %v6046
  %v6049 = vperm.slane %v5906, %v6046
  %v6050 = vperm.slane %v5911, %v6046
  %v6051 = vperm.slane %v5916, %v6046
  %v6052 = vperm.slane %v5921, %v6046
  %v6053 = vperm.slane %v5926, %v6046
  %v6054 = vperm.slane %v5931, %v6046
  %v6055 = vsel %vm1115, %v6048, %v6047
  %v6056 = vsel %vm1118, %v6049, %v6055
  %v6057 = vsel %vm1121, %v6050, %v6056
  %v6058 = vsel %vm1124, %v6051, %v6057
  %v6059 = vsel %vm1127, %v6052, %v6058
  %v6060 = vsel %vm1130, %v6053, %v6059
  %v6061 = vsel %vm1133, %v6054, %v6060
  %vm6063 = vcmask 458112
  %6064 = vst.msk [vmem:[%s12] sm:$0xff] %vm6063, %v6061
  %v6065 = vsel %vm56, %v6040, %v6014
  %v6067 = vsel %vm1704, %v6065, 0
  %6069 = vmatpush.msra.mxu0 0.0
  %6070 = vmatpush.msra.mxu0 0.0
  %6071 = vmatpush.msra.mxu0 0.0
  %6072 = vmatpush.msra.mxu0 0.0
  %6073 = vmatpush.msra.mxu0 0.0
  %6074 = vmatpush.msra.mxu0 0.0
  %6075 = vmatpush.msra.mxu0 0.0
  %6076 = vmatpush.msra.mxu0 0.0
  %6077 = vmatpush.msra.mxu0 %v1691
  %6078 = vmatpush.msra.mxu0 %v1690
  %6079 = vmatpush.msra.mxu0 %v1689
  %6080 = vmatpush.msra.mxu0 %v1688
  %6081 = vmatpush.msra.mxu0 %v1687
  %6082 = vmatpush.msra.mxu0 %v1686
  %6083 = vmatpush.msra.mxu0 %v1685
  %6084 = vmatpush.msra.mxu0 %v1684
  %6085 = vmatmul.f32.gmra.mxu0 %v6067
  %v6086 = vpop.f32.mrf.mxu0
  %v6087 = vadd.f32 0.0, %v6086
  %6088 = vdwg.mxu0
  %v6089 = vadd.f32 %v1682, %v6087
  %v6090 = vxor.u32 %v6089, 2147483648
  %v6091 = vmul.f32 %v6090, 1.442695
  %v6092 = vpow.pop %v6091
  %v6093 = vadd.f32 %v6092, 1.0
  %v6094 = vrcp.pop %v6093
  %v6095 = vmul.f32 %v6093, %v6094
  %v6096 = vsub.f32 1.0, %v6095
  %v6097 = vmul.f32 %v6094, %v6096
  %v6098 = vadd.f32 %v6094, %v6097
  %vm6099 = vweird.f32 %v6093
  %vm6100 = vweird.f32 %v6094
  %vm6101 = vmor %vm6099, %vm6100
  %v6102 = vsel %vm6101, %v6094, %v6098
  %v6103 = vand.u32 2147483647, %v6093
  %vm6104 = vcmp.eq.f32.partialorder %v6103, 8.507059e+37
  %v6105 = vand.u32 %v6093, 2147483648
  %v6106 = vor.u32 1.1754944e-38, %v6105
  %v6107 = vsel %vm6104, %v6106, %v6102
  %v6108 = vmul.f32 1.0, %v6107
  %v6109 = vtanh.pop %v6089
  %v6110 = vmul.f32 %v6108, %v5510
  %6112 = vrot.lane.b32.xlu0 %v6109, 64
  %v6113 = vpop.permute.xlu0 %6112
  %v6115 = vmul.f32 %v6108, %v6113
  %6117 = vrot.lane.b32.xlu0 %v6115, 32
  %v6118 = vpop.permute.xlu0 %6117
  %v6120 = vadd.f32 %v6110, %v6118
  %v6121 = vtanh.pop %v6120
  %6123 = vrot.lane.b32.xlu0 %v6121, 64
  %v6124 = vpop.permute.xlu0 %6123
  %v6126 = vmul.f32 %v6108, %v6124
  %v6128 = vrot.slane %v6126, 1
  %v6129 = vrot.slane %v6126, 2
  %v6130 = vrot.slane %v6126, 3
  %v6131 = vrot.slane %v6126, 4
  %v6132 = vrot.slane %v6126, 5
  %v6133 = vrot.slane %v6126, 6
  %v6134 = vrot.slane %v6126, 7
  %v6135 = vperm.slane %v6126, 0
  %v6136 = vperm.slane %v6128, 0
  %v6137 = vperm.slane %v6129, 0
  %v6138 = vperm.slane %v6130, 0
  %v6139 = vperm.slane %v6131, 0
  %v6140 = vperm.slane %v6132, 0
  %v6141 = vperm.slane %v6133, 0
  %v6142 = vperm.slane %v6134, 0
  %v6151 = vmul.f32 %v6135, %v1799
  %v6152 = vmul.f32 %v6136, %v1801
  %v6153 = vmul.f32 %v6137, %v1803
  %v6154 = vmul.f32 %v6138, %v1805
  %v6155 = vmul.f32 %v6139, %v1807
  %v6156 = vmul.f32 %v6140, %v1809
  %v6157 = vmul.f32 %v6141, %v1811
  %v6158 = vmul.f32 %v6142, %v1813
  %6167 = vrot.lane.b32.xlu0 %v6151, 32
  %v6168 = vpop.permute.xlu0 %6167
  %6169 = vrot.lane.b32.xlu0 %v6152, 32
  %v6170 = vpop.permute.xlu0 %6169
  %6171 = vrot.lane.b32.xlu0 %v6153, 32
  %v6172 = vpop.permute.xlu0 %6171
  %6173 = vrot.lane.b32.xlu0 %v6154, 32
  %v6174 = vpop.permute.xlu0 %6173
  %6175 = vrot.lane.b32.xlu0 %v6155, 32
  %v6176 = vpop.permute.xlu0 %6175
  %6177 = vrot.lane.b32.xlu0 %v6156, 32
  %v6178 = vpop.permute.xlu0 %6177
  %6179 = vrot.lane.b32.xlu0 %v6157, 32
  %v6180 = vpop.permute.xlu0 %6179
  %6181 = vrot.lane.b32.xlu0 %v6158, 32
  %v6182 = vpop.permute.xlu0 %6181
  %v6191 = vsel %vm56, %v6168, 0.0
  %6192 = vadd.xlane.f32.xlu0 %v6191
  %v6193 = vpop.xlane.xlu0 %6192
  %v6194 = vsel %vm56, %v6170, 0.0
  %6195 = vadd.xlane.f32.xlu0 %v6194
  %v6196 = vpop.xlane.xlu0 %6195
  %v6197 = vsel %vm56, %v6172, 0.0
  %6198 = vadd.xlane.f32.xlu0 %v6197
  %v6199 = vpop.xlane.xlu0 %6198
  %v6200 = vsel %vm56, %v6174, 0.0
  %6201 = vadd.xlane.f32.xlu0 %v6200
  %v6202 = vpop.xlane.xlu0 %6201
  %v6203 = vsel %vm56, %v6176, 0.0
  %6204 = vadd.xlane.f32.xlu0 %v6203
  %v6205 = vpop.xlane.xlu0 %6204
  %v6206 = vsel %vm56, %v6178, 0.0
  %6207 = vadd.xlane.f32.xlu0 %v6206
  %v6208 = vpop.xlane.xlu0 %6207
  %v6209 = vsel %vm56, %v6180, 0.0
  %6210 = vadd.xlane.f32.xlu0 %v6209
  %v6211 = vpop.xlane.xlu0 %6210
  %v6212 = vsel %vm56, %v6182, 0.0
  %6213 = vadd.xlane.f32.xlu0 %v6212
  %v6214 = vpop.xlane.xlu0 %6213
  %v6215 = vadd.f32 %v6193, %v1893
  %v6216 = vadd.f32 %v6196, %v1900
  %v6217 = vadd.f32 %v6199, %v1907
  %v6218 = vadd.f32 %v6202, %v1914
  %v6219 = vadd.f32 %v6205, %v1921
  %v6220 = vadd.f32 %v6208, %v1928
  %v6221 = vadd.f32 %v6211, %v1935
  %v6222 = vadd.f32 %v6214, %v1942
  %6231 = vset.pattern.permute.xlu0 0
  %6232 = vperm.xlu0 %6231, %v6215
  %v6233 = vpop.permute.xlu0 %6232
  %6234 = vset.pattern.permute.xlu0 0
  %6235 = vperm.xlu0 %6234, %v6216
  %v6236 = vpop.permute.xlu0 %6235
  %6237 = vset.pattern.permute.xlu0 0
  %6238 = vperm.xlu0 %6237, %v6217
  %v6239 = vpop.permute.xlu0 %6238
  %6240 = vset.pattern.permute.xlu0 0
  %6241 = vperm.xlu0 %6240, %v6218
  %v6242 = vpop.permute.xlu0 %6241
  %6243 = vset.pattern.permute.xlu0 0
  %6244 = vperm.xlu0 %6243, %v6219
  %v6245 = vpop.permute.xlu0 %6244
  %6246 = vset.pattern.permute.xlu0 0
  %6247 = vperm.xlu0 %6246, %v6220
  %v6248 = vpop.permute.xlu0 %6247
  %6249 = vset.pattern.permute.xlu0 0
  %6250 = vperm.xlu0 %6249, %v6221
  %v6251 = vpop.permute.xlu0 %6250
  %6252 = vset.pattern.permute.xlu0 0
  %6253 = vperm.xlu0 %6252, %v6222
  %v6254 = vpop.permute.xlu0 %6253
  %v6255 = vperm.slane %v6233, %v127
  %v6256 = vperm.slane %v6236, %v127
  %v6257 = vperm.slane %v6239, %v127
  %v6258 = vperm.slane %v6242, %v127
  %v6259 = vperm.slane %v6245, %v127
  %v6260 = vperm.slane %v6248, %v127
  %v6261 = vperm.slane %v6251, %v127
  %v6262 = vperm.slane %v6254, %v127
  %v6263 = vsel %vm1115, %v6256, %v6255
  %v6264 = vsel %vm1118, %v6257, %v6263
  %v6265 = vsel %vm1121, %v6258, %v6264
  %v6266 = vsel %vm1124, %v6259, %v6265
  %v6267 = vsel %vm1127, %v6260, %v6266
  %v6268 = vsel %vm1130, %v6261, %v6267
  %v6269 = vsel %vm1133, %v6262, %v6268
  %v6271 = vsel %vm2007, %v6269, -inf
  %6272 = vmax.xlane.f32.xlu0 %v6271
  %v6273 = vpop.xlane.xlu0 %6272
  %v6275 = vperm.slane %v6273, 0
  %v6276 = vperm.slane %v6273, 1
  %v6277 = vperm.slane %v6273, 2
  %v6278 = vperm.slane %v6273, 3
  %v6279 = vperm.slane %v6273, 4
  %v6280 = vperm.slane %v6273, 5
  %v6281 = vperm.slane %v6273, 6
  %v6282 = vperm.slane %v6273, 7
  %v6291 = vsub.f32 %v6215, %v6275
  %v6292 = vsub.f32 %v6216, %v6276
  %v6293 = vsub.f32 %v6217, %v6277
  %v6294 = vsub.f32 %v6218, %v6278
  %v6295 = vsub.f32 %v6219, %v6279
  %v6296 = vsub.f32 %v6220, %v6280
  %v6297 = vsub.f32 %v6221, %v6281
  %v6298 = vsub.f32 %v6222, %v6282
  %v6299 = vmul.f32 %v6291, 1.442695
  %v6300 = vpow.pop %v6299
  %v6301 = vmul.f32 %v6292, 1.442695
  %v6302 = vpow.pop %v6301
  %v6303 = vmul.f32 %v6293, 1.442695
  %v6304 = vpow.pop %v6303
  %v6305 = vmul.f32 %v6294, 1.442695
  %v6306 = vpow.pop %v6305
  %v6307 = vmul.f32 %v6295, 1.442695
  %v6308 = vpow.pop %v6307
  %v6309 = vmul.f32 %v6296, 1.442695
  %v6310 = vpow.pop %v6309
  %v6311 = vmul.f32 %v6297, 1.442695
  %v6312 = vpow.pop %v6311
  %v6313 = vmul.f32 %v6298, 1.442695
  %v6314 = vpow.pop %v6313
  %6323 = vset.pattern.permute.xlu0 0
  %6324 = vperm.xlu0 %6323, %v6300
  %v6325 = vpop.permute.xlu0 %6324
  %6326 = vset.pattern.permute.xlu0 0
  %6327 = vperm.xlu0 %6326, %v6302
  %v6328 = vpop.permute.xlu0 %6327
  %6329 = vset.pattern.permute.xlu0 0
  %6330 = vperm.xlu0 %6329, %v6304
  %v6331 = vpop.permute.xlu0 %6330
  %6332 = vset.pattern.permute.xlu0 0
  %6333 = vperm.xlu0 %6332, %v6306
  %v6334 = vpop.permute.xlu0 %6333
  %6335 = vset.pattern.permute.xlu0 0
  %6336 = vperm.xlu0 %6335, %v6308
  %v6337 = vpop.permute.xlu0 %6336
  %6338 = vset.pattern.permute.xlu0 0
  %6339 = vperm.xlu0 %6338, %v6310
  %v6340 = vpop.permute.xlu0 %6339
  %6341 = vset.pattern.permute.xlu0 0
  %6342 = vperm.xlu0 %6341, %v6312
  %v6343 = vpop.permute.xlu0 %6342
  %6344 = vset.pattern.permute.xlu0 0
  %6345 = vperm.xlu0 %6344, %v6314
  %v6346 = vpop.permute.xlu0 %6345
  %v6347 = vperm.slane %v6325, %v127
  %v6348 = vperm.slane %v6328, %v127
  %v6349 = vperm.slane %v6331, %v127
  %v6350 = vperm.slane %v6334, %v127
  %v6351 = vperm.slane %v6337, %v127
  %v6352 = vperm.slane %v6340, %v127
  %v6353 = vperm.slane %v6343, %v127
  %v6354 = vperm.slane %v6346, %v127
  %v6355 = vsel %vm1115, %v6348, %v6347
  %v6356 = vsel %vm1118, %v6349, %v6355
  %v6357 = vsel %vm1121, %v6350, %v6356
  %v6358 = vsel %vm1124, %v6351, %v6357
  %v6359 = vsel %vm1127, %v6352, %v6358
  %v6360 = vsel %vm1130, %v6353, %v6359
  %v6361 = vsel %vm1133, %v6354, %v6360
  %v6363 = vsel %vm2007, %v6361, 0.0
  %6364 = vadd.xlane.f32.xlu0 %v6363
  %v6365 = vpop.xlane.xlu0 %6364
  %v6367 = vperm.slane %v6365, 0
  %v6368 = vperm.slane %v6365, 1
  %v6369 = vperm.slane %v6365, 2
  %v6370 = vperm.slane %v6365, 3
  %v6371 = vperm.slane %v6365, 4
  %v6372 = vperm.slane %v6365, 5
  %v6373 = vperm.slane %v6365, 6
  %v6374 = vperm.slane %v6365, 7
  %v6383 = vrcp.pop %v6367
  %v6384 = vmul.f32 %v6367, %v6383
  %v6385 = vsub.f32 1.0, %v6384
  %v6386 = vmul.f32 %v6383, %v6385
  %v6387 = vadd.f32 %v6383, %v6386
  %vm6388 = vweird.f32 %v6367
  %vm6389 = vweird.f32 %v6383
  %vm6390 = vmor %vm6388, %vm6389
  %v6391 = vsel %vm6390, %v6383, %v6387
  %v6392 = vand.u32 2147483647, %v6367
  %vm6393 = vcmp.eq.f32.partialorder %v6392, 8.507059e+37
  %v6394 = vand.u32 %v6367, 2147483648
  %v6395 = vor.u32 1.1754944e-38, %v6394
  %v6396 = vsel %vm6393, %v6395, %v6391
  %v6397 = vmul.f32 %v6300, %v6396
  %v6398 = vrcp.pop %v6368
  %v6399 = vmul.f32 %v6368, %v6398
  %v6400 = vsub.f32 1.0, %v6399
  %v6401 = vmul.f32 %v6398, %v6400
  %v6402 = vadd.f32 %v6398, %v6401
  %vm6403 = vweird.f32 %v6368
  %vm6404 = vweird.f32 %v6398
  %vm6405 = vmor %vm6403, %vm6404
  %v6406 = vsel %vm6405, %v6398, %v6402
  %v6407 = vand.u32 2147483647, %v6368
  %vm6408 = vcmp.eq.f32.partialorder %v6407, 8.507059e+37
  %v6409 = vand.u32 %v6368, 2147483648
  %v6410 = vor.u32 1.1754944e-38, %v6409
  %v6411 = vsel %vm6408, %v6410, %v6406
  %v6412 = vmul.f32 %v6302, %v6411
  %v6413 = vrcp.pop %v6369
  %v6414 = vmul.f32 %v6369, %v6413
  %v6415 = vsub.f32 1.0, %v6414
  %v6416 = vmul.f32 %v6413, %v6415
  %v6417 = vadd.f32 %v6413, %v6416
  %vm6418 = vweird.f32 %v6369
  %vm6419 = vweird.f32 %v6413
  %vm6420 = vmor %vm6418, %vm6419
  %v6421 = vsel %vm6420, %v6413, %v6417
  %v6422 = vand.u32 2147483647, %v6369
  %vm6423 = vcmp.eq.f32.partialorder %v6422, 8.507059e+37
  %v6424 = vand.u32 %v6369, 2147483648
  %v6425 = vor.u32 1.1754944e-38, %v6424
  %v6426 = vsel %vm6423, %v6425, %v6421
  %v6427 = vmul.f32 %v6304, %v6426
  %v6428 = vrcp.pop %v6370
  %v6429 = vmul.f32 %v6370, %v6428
  %v6430 = vsub.f32 1.0, %v6429
  %v6431 = vmul.f32 %v6428, %v6430
  %v6432 = vadd.f32 %v6428, %v6431
  %vm6433 = vweird.f32 %v6370
  %vm6434 = vweird.f32 %v6428
  %vm6435 = vmor %vm6433, %vm6434
  %v6436 = vsel %vm6435, %v6428, %v6432
  %v6437 = vand.u32 2147483647, %v6370
  %vm6438 = vcmp.eq.f32.partialorder %v6437, 8.507059e+37
  %v6439 = vand.u32 %v6370, 2147483648
  %v6440 = vor.u32 1.1754944e-38, %v6439
  %v6441 = vsel %vm6438, %v6440, %v6436
  %v6442 = vmul.f32 %v6306, %v6441
  %v6443 = vrcp.pop %v6371
  %v6444 = vmul.f32 %v6371, %v6443
  %v6445 = vsub.f32 1.0, %v6444
  %v6446 = vmul.f32 %v6443, %v6445
  %v6447 = vadd.f32 %v6443, %v6446
  %vm6448 = vweird.f32 %v6371
  %vm6449 = vweird.f32 %v6443
  %vm6450 = vmor %vm6448, %vm6449
  %v6451 = vsel %vm6450, %v6443, %v6447
  %v6452 = vand.u32 2147483647, %v6371
  %vm6453 = vcmp.eq.f32.partialorder %v6452, 8.507059e+37
  %v6454 = vand.u32 %v6371, 2147483648
  %v6455 = vor.u32 1.1754944e-38, %v6454
  %v6456 = vsel %vm6453, %v6455, %v6451
  %v6457 = vmul.f32 %v6308, %v6456
  %v6458 = vrcp.pop %v6372
  %v6459 = vmul.f32 %v6372, %v6458
  %v6460 = vsub.f32 1.0, %v6459
  %v6461 = vmul.f32 %v6458, %v6460
  %v6462 = vadd.f32 %v6458, %v6461
  %vm6463 = vweird.f32 %v6372
  %vm6464 = vweird.f32 %v6458
  %vm6465 = vmor %vm6463, %vm6464
  %v6466 = vsel %vm6465, %v6458, %v6462
  %v6467 = vand.u32 2147483647, %v6372
  %vm6468 = vcmp.eq.f32.partialorder %v6467, 8.507059e+37
  %v6469 = vand.u32 %v6372, 2147483648
  %v6470 = vor.u32 1.1754944e-38, %v6469
  %v6471 = vsel %vm6468, %v6470, %v6466
  %v6472 = vmul.f32 %v6310, %v6471
  %v6473 = vrcp.pop %v6373
  %v6474 = vmul.f32 %v6373, %v6473
  %v6475 = vsub.f32 1.0, %v6474
  %v6476 = vmul.f32 %v6473, %v6475
  %v6477 = vadd.f32 %v6473, %v6476
  %vm6478 = vweird.f32 %v6373
  %vm6479 = vweird.f32 %v6473
  %vm6480 = vmor %vm6478, %vm6479
  %v6481 = vsel %vm6480, %v6473, %v6477
  %v6482 = vand.u32 2147483647, %v6373
  %vm6483 = vcmp.eq.f32.partialorder %v6482, 8.507059e+37
  %v6484 = vand.u32 %v6373, 2147483648
  %v6485 = vor.u32 1.1754944e-38, %v6484
  %v6486 = vsel %vm6483, %v6485, %v6481
  %v6487 = vmul.f32 %v6312, %v6486
  %v6488 = vrcp.pop %v6374
  %v6489 = vmul.f32 %v6374, %v6488
  %v6490 = vsub.f32 1.0, %v6489
  %v6491 = vmul.f32 %v6488, %v6490
  %v6492 = vadd.f32 %v6488, %v6491
  %vm6493 = vweird.f32 %v6374
  %vm6494 = vweird.f32 %v6488
  %vm6495 = vmor %vm6493, %vm6494
  %v6496 = vsel %vm6495, %v6488, %v6492
  %v6497 = vand.u32 2147483647, %v6374
  %vm6498 = vcmp.eq.f32.partialorder %v6497, 8.507059e+37
  %v6499 = vand.u32 %v6374, 2147483648
  %v6500 = vor.u32 1.1754944e-38, %v6499
  %v6501 = vsel %vm6498, %v6500, %v6496
  %v6502 = vmul.f32 %v6314, %v6501
  %6504 = vset.pattern.permute.xlu0 0
  %6505 = vperm.xlu0 %6504, %v6397
  %v6506 = vpop.permute.xlu0 %6505
  %6509 = vset.pattern.permute.xlu0 0
  %6510 = vperm.xlu0 %6509, %v6412
  %v6511 = vpop.permute.xlu0 %6510
  %6514 = vset.pattern.permute.xlu0 0
  %6515 = vperm.xlu0 %6514, %v6427
  %v6516 = vpop.permute.xlu0 %6515
  %6519 = vset.pattern.permute.xlu0 0
  %6520 = vperm.xlu0 %6519, %v6442
  %v6521 = vpop.permute.xlu0 %6520
  %6524 = vset.pattern.permute.xlu0 0
  %6525 = vperm.xlu0 %6524, %v6457
  %v6526 = vpop.permute.xlu0 %6525
  %6529 = vset.pattern.permute.xlu0 0
  %6530 = vperm.xlu0 %6529, %v6472
  %v6531 = vpop.permute.xlu0 %6530
  %6534 = vset.pattern.permute.xlu0 0
  %6535 = vperm.xlu0 %6534, %v6487
  %v6536 = vpop.permute.xlu0 %6535
  %6539 = vset.pattern.permute.xlu0 0
  %6540 = vperm.xlu0 %6539, %v6502
  %v6541 = vpop.permute.xlu0 %6540
  %v6543 = vmul.f32 %v6506, %v1094
  %v6544 = vmul.f32 %v6511, %v1095
  %v6545 = vmul.f32 %v6516, %v1096
  %v6546 = vmul.f32 %v6521, %v1097
  %v6547 = vmul.f32 %v6526, %v1098
  %v6548 = vmul.f32 %v6531, %v1099
  %v6549 = vmul.f32 %v6536, %v1100
  %v6550 = vmul.f32 %v6541, %v1101
  %v6551 = vsel %vm56, %v6543, 0.0
  %v6552 = vrot.slane %v6551, 4
  %v6553 = vadd.f32 %v6551, %v6552
  %v6554 = vrot.slane %v6553, 2
  %v6555 = vadd.f32 %v6553, %v6554
  %v6556 = vrot.slane %v6555, 1
  %v6557 = vadd.f32 %v6555, %v6556
  %v6558 = vsel %vm56, %v6544, 0.0
  %v6559 = vrot.slane %v6558, 4
  %v6560 = vadd.f32 %v6558, %v6559
  %v6561 = vrot.slane %v6560, 2
  %v6562 = vadd.f32 %v6560, %v6561
  %v6563 = vrot.slane %v6562, 1
  %v6564 = vadd.f32 %v6562, %v6563
  %v6565 = vsel %vm56, %v6545, 0.0
  %v6566 = vrot.slane %v6565, 4
  %v6567 = vadd.f32 %v6565, %v6566
  %v6568 = vrot.slane %v6567, 2
  %v6569 = vadd.f32 %v6567, %v6568
  %v6570 = vrot.slane %v6569, 1
  %v6571 = vadd.f32 %v6569, %v6570
  %v6572 = vsel %vm56, %v6546, 0.0
  %v6573 = vrot.slane %v6572, 4
  %v6574 = vadd.f32 %v6572, %v6573
  %v6575 = vrot.slane %v6574, 2
  %v6576 = vadd.f32 %v6574, %v6575
  %v6577 = vrot.slane %v6576, 1
  %v6578 = vadd.f32 %v6576, %v6577
  %v6579 = vsel %vm56, %v6547, 0.0
  %v6580 = vrot.slane %v6579, 4
  %v6581 = vadd.f32 %v6579, %v6580
  %v6582 = vrot.slane %v6581, 2
  %v6583 = vadd.f32 %v6581, %v6582
  %v6584 = vrot.slane %v6583, 1
  %v6585 = vadd.f32 %v6583, %v6584
  %v6586 = vsel %vm56, %v6548, 0.0
  %v6587 = vrot.slane %v6586, 4
  %v6588 = vadd.f32 %v6586, %v6587
  %v6589 = vrot.slane %v6588, 2
  %v6590 = vadd.f32 %v6588, %v6589
  %v6591 = vrot.slane %v6590, 1
  %v6592 = vadd.f32 %v6590, %v6591
  %v6593 = vsel %vm56, %v6549, 0.0
  %v6594 = vrot.slane %v6593, 4
  %v6595 = vadd.f32 %v6593, %v6594
  %v6596 = vrot.slane %v6595, 2
  %v6597 = vadd.f32 %v6595, %v6596
  %v6598 = vrot.slane %v6597, 1
  %v6599 = vadd.f32 %v6597, %v6598
  %v6600 = vsel %vm56, %v6550, 0.0
  %v6601 = vrot.slane %v6600, 4
  %v6602 = vadd.f32 %v6600, %v6601
  %v6603 = vrot.slane %v6602, 2
  %v6604 = vadd.f32 %v6602, %v6603
  %v6605 = vrot.slane %v6604, 1
  %v6606 = vadd.f32 %v6604, %v6605
  %v6615 = vsel %vm1115, %v6564, %v6557
  %v6616 = vsel %vm1118, %v6571, %v6615
  %v6617 = vsel %vm1121, %v6578, %v6616
  %v6618 = vsel %vm1124, %v6585, %v6617
  %v6619 = vsel %vm1127, %v6592, %v6618
  %v6620 = vsel %vm1130, %v6599, %v6619
  %v6621 = vsel %vm1133, %v6606, %v6620
  %6623 = vrot.lane.b32.xlu0 %v6126, 64
  %v6624 = vpop.permute.xlu0 %6623
  %v6626 = vsel %vm56, %v6621, %v6624
  %v6628 = vsel %vm1704, %v6626, 0
  %6630 = vmatpush.msra.mxu0 0.0
  %6631 = vmatpush.msra.mxu0 0.0
  %6632 = vmatpush.msra.mxu0 0.0
  %6633 = vmatpush.msra.mxu0 0.0
  %6634 = vmatpush.msra.mxu0 0.0
  %6635 = vmatpush.msra.mxu0 0.0
  %6636 = vmatpush.msra.mxu0 0.0
  %6637 = vmatpush.msra.mxu0 0.0
  %6638 = vmatpush.msra.mxu0 %v1699
  %6639 = vmatpush.msra.mxu0 %v1698
  %6640 = vmatpush.msra.mxu0 %v1697
  %6641 = vmatpush.msra.mxu0 %v1696
  %6642 = vmatpush.msra.mxu0 %v1695
  %6643 = vmatpush.msra.mxu0 %v1694
  %6644 = vmatpush.msra.mxu0 %v1693
  %6645 = vmatpush.msra.mxu0 %v1692
  %6646 = vmatmul.f32.gmra.mxu0 %v6628
  %v6647 = vpop.f32.mrf.mxu0
  %v6648 = vadd.f32 0.0, %v6647
  %6649 = vdwg.mxu0
  %v6650 = vtanh.pop %v6648
  %6652 = vrot.lane.b32.xlu0 %v6650, 96
  %v6653 = vpop.permute.xlu0 %6652
  %6655 = vst.msk [vmem:[%s11 + $0x8] sm:$0xff] %vm4218, %v6653
  %v6656 = vadd.s32 %v127, 4294967240
  %v6657 = vperm.slane %v6506, %v6656
  %v6658 = vperm.slane %v6511, %v6656
  %v6659 = vperm.slane %v6516, %v6656
  %v6660 = vperm.slane %v6521, %v6656
  %v6661 = vperm.slane %v6526, %v6656
  %v6662 = vperm.slane %v6531, %v6656
  %v6663 = vperm.slane %v6536, %v6656
  %v6664 = vperm.slane %v6541, %v6656
  %v6665 = vsel %vm1115, %v6658, %v6657
  %v6666 = vsel %vm1118, %v6659, %v6665
  %v6667 = vsel %vm1121, %v6660, %v6666
  %v6668 = vsel %vm1124, %v6661, %v6667
  %v6669 = vsel %vm1127, %v6662, %v6668
  %v6670 = vsel %vm1130, %v6663, %v6669
  %v6671 = vsel %vm1133, %v6664, %v6670
  %vm6673 = vcmask 523712
  %6674 = vst.msk [vmem:[%s12] sm:$0xff] %vm6673, %v6671
  // Predicated region
  $region46: #{dqn_forward.1} parent=0 // pred_check
    _
  $region47: #{dqn_forward.1} parent=0 // pred_check_branch
    %6676 = sbr.rel (0) target = $region49
  $region48: #{dqn_forward.1} parent=0 // pred_region
    _
  $region49: #{dqn_forward.1} parent=0 // pred_fallthru
    _
  // Predicated region
  $region50: #{dqn_forward.1} parent=0 // pred_check
    _
  $region51: #{dqn_forward.1} parent=0 // pred_check_branch
    %6678 = sbr.rel (0) target = $region53
  $region52: #{dqn_forward.1} parent=0 // pred_region
    _
  $region53: #{dqn_forward.1} parent=0 // pred_fallthru
    _
  // Predicated region
  $region54: #{dqn_forward.1} parent=0 // pred_check
    _
  $region55: #{dqn_forward.1} parent=0 // pred_check_branch
    %6680 = sbr.rel (0) target = $region57
  $region56: #{dqn_forward.1} parent=0 // pred_region
    _
  $region57: #{dqn_forward.1} parent=0 // pred_fallthru
    _
  // Predicated region
  $region58: #{dqn_forward.1} parent=0 // pred_check
    _
  $region59: #{dqn_forward.1} parent=0 // pred_check_branch
    %6682 = sbr.rel (0) target = $region61
  $region60: #{dqn_forward.1} parent=0 // pred_region
    _
  $region61: #{dqn_forward.1} parent=0 // pred_fallthru
    _

</llo_original>
